<compile_context>
chip_gen: v7x
topology: tpu7x:2x2x1
jax: 0.10.0
libtpu: 0.0.40
codegen_flags: <defaults>
</compile_context>

<pallas_src>
import jax
import jax.numpy as jnp
import numpy as np
from jax.experimental import pallas as pl
from jax.experimental.pallas import tpu as pltpu

# ---------------------------------------------------------------------------
# Small Net instance: after two 2x2 pools the torch .view(-1, 1920) flatten
# requires 64 * (H//4) * (W//4) == 1920  ->  H = 8, W = 60, batch N = 2.
# ---------------------------------------------------------------------------
N, CIN, H, W = 2, 3, 8, 60
H1, W1 = H // 2, W // 2          # conv2 input grid (after pool1): 4 x 30
H2, W2 = H // 4, W // 4          # grid after pool2:               2 x 15
C1, C2 = 16, 64
RP = N * H1 * W1                 # 240: conv1-pooled rows == conv2 pre-pool rows
RS = 4 * RP                      # 960: pool-slot-stacked conv1 im2col rows
RQ = N * H2 * W2                 # 60 : conv2-pooled rows
FEAT = C2 * H2 * W2              # 1920
F1, F2, F3 = 120, 84, 2
F3P = 128                        # lane-dense padded output width
assert FEAT == 1920


# ---------------------------------------------------------------------------
# Fused kernel
# ---------------------------------------------------------------------------
def _fused_net_kernel(cc1_ref, w1_ref, b1_ref,
                      mask_ref, w2_ref, b2_ref, spool_ref,
                      w1f_ref, b1f_ref, w2f_ref, b2f_ref, w3f_ref, b3f_ref,
                      o_ref):
    f32, bf16 = jnp.float32, jnp.bfloat16

    # ---- conv1 + bias + relu fused with 2x2 maxpool -------------------------
    # im2col rows arrive in 4 pool-slot-stacked blocks -> pool = max of 4
    # aligned row blocks.  relu(max(conv)+b) == maxpool(relu(conv+b)).
    y1 = jnp.dot(cc1_ref[...], w1_ref[...], preferred_element_type=f32)      # (960,16)
    m1 = jnp.maximum(jnp.maximum(y1[0 * RP:1 * RP], y1[1 * RP:2 * RP]),
                     jnp.maximum(y1[2 * RP:3 * RP], y1[3 * RP:4 * RP]))       # (240,16)
    h1 = jnp.maximum(m1 + b1_ref[...], 0.0).astype(bf16)                      # (240,16)

    # ---- conv2: in-kernel im2col via row rotations + border masks -----------
    # rows of h1 are (n, y, x) pixels; a 3x3 tap is a wrap-rotation of the row
    # axis (static slice + concat) zeroed at image borders by a 0/1 mask.
    maskb = mask_ref[...]                                                     # (240,9) bf16
    pieces = []
    for t in range(9):
        ky, kx = t // 3, t % 3
        k = ((ky - 1) * W1 + (kx - 1)) % RP
        rolled = h1 if k == 0 else jnp.concatenate([h1[k:], h1[:k]], axis=0)
        pieces.append(rolled * maskb[:, t:t + 1])
    x2 = jnp.concatenate(pieces, axis=1)                                      # (240,144)
    y2 = jnp.dot(x2, w2_ref[...], preferred_element_type=f32)                 # (240,64)

    # ---- 2x2 maxpool of the conv2 grid via 0/1 row-selection matmuls --------
    y2b = y2.astype(bf16)
    p0 = jnp.dot(spool_ref[0], y2b, preferred_element_type=f32)
    p1 = jnp.dot(spool_ref[1], y2b, preferred_element_type=f32)
    p2 = jnp.dot(spool_ref[2], y2b, preferred_element_type=f32)
    p3 = jnp.dot(spool_ref[3], y2b, preferred_element_type=f32)
    h2 = jnp.maximum(jnp.maximum(p0, p1), jnp.maximum(p2, p3)) + b2_ref[...]  # (60,64)
    h2 = jnp.maximum(h2, 0.0).astype(bf16)

    # ---- torch .view(-1, 1920): lane-concatenate each image's 30 rows -------
    # (fc1's weight columns are pre-permuted to this (pixel-major, ch-minor)
    #  order, so this is exactly equivalent to the NCHW flatten.)
    per_img = H2 * W2
    imgs = []
    for n in range(N):
        imgs.append(jnp.concatenate(
            [h2[n * per_img + p: n * per_img + p + 1, :] for p in range(per_img)],
            axis=1))
    fc_in = jnp.concatenate(imgs, axis=0)                                     # (2,1920)

    # ---- MLP head ------------------------------------------------------------
    a1 = jnp.dot(fc_in, w1f_ref[...], preferred_element_type=f32) + b1f_ref[...]
    a1 = jnp.maximum(a1, 0.0).astype(bf16)
    a2 = jnp.dot(a1, w2f_ref[...], preferred_element_type=f32) + b2f_ref[...]
    a2 = jnp.maximum(a2, 0.0).astype(bf16)
    # fc3 weight/bias are zero-padded to 128 output columns -> lane-dense store.
    out = jnp.dot(a2, w3f_ref[...], preferred_element_type=f32) + b3f_ref[...]
    o_ref[...] = out.astype(o_ref.dtype)


# ---------------------------------------------------------------------------
# One-time parameter / constant preparation (hoisted out of the hot path)
# ---------------------------------------------------------------------------
def _conv2_tap_masks():
    m = np.zeros((RP, 9), np.float32)
    for n in range(N):
        for i in range(H1):
            for j in range(W1):
                r = n * H1 * W1 + i * W1 + j
                for ky in range(3):
                    for kx in range(3):
                        if 0 <= i + ky - 1 < H1 and 0 <= j + kx - 1 < W1:
                            m[r, ky * 3 + kx] = 1.0
    return m


def _pool2_select():
    s = np.zeros((4, RQ, RP), np.float32)
    for n in range(N):
        for i2 in range(H2):
            for j2 in range(W2):
                b = n * H2 * W2 + i2 * W2 + j2
                for dy2 in range(2):
                    for dx2 in range(2):
                        a = n * H1 * W1 + (2 * i2 + dy2) * W1 + (2 * j2 + dx2)
                        s[2 * dy2 + dx2, b, a] = 1.0
    return s


def prepare_params(p):
    bf16, f32 = jnp.bfloat16, jnp.float32
    # conv weights -> (9*Cin, Cout), rows ordered (ky,kx) major, cin minor.
    w1 = jnp.transpose(p["conv1_w"], (2, 3, 1, 0)).reshape(9 * CIN, C1).astype(bf16)
    w2 = jnp.transpose(p["conv2_w"], (2, 3, 1, 0)).reshape(9 * C1, C2).astype(bf16)
    # fc1 columns permuted from torch's (c, y, x) order to (pixel, c) order.
    w1f = jnp.transpose(p["fc1_w"].reshape(F1, C2, H2 * W2),
                        (2, 1, 0)).reshape(FEAT, F1).astype(bf16)
    # fc3 padded to 128 output columns (lane-dense final store).
    w3f = jnp.pad(p["fc3_w"].T.astype(bf16), ((0, 0), (0, F3P - F3)))
    b3f = jnp.pad(p["fc3_b"].astype(f32), (0, F3P - F3)).reshape(1, F3P)
    return dict(
        w1=w1, b1=p["conv1_b"].reshape(1, C1).astype(f32),
        mask=jnp.asarray(_conv2_tap_masks(), bf16),
        w2=w2, b2=p["conv2_b"].reshape(1, C2).astype(f32),
        spool=jnp.asarray(_pool2_select(), bf16),
        w1f=w1f, b1f=p["fc1_b"].reshape(1, F1).astype(f32),
        w2f=p["fc2_w"].T.astype(bf16), b2f=p["fc2_b"].reshape(1, F2).astype(f32),
        w3f=w3f, b3f=b3f,
    )


# ---------------------------------------------------------------------------
# Wrapper
# ---------------------------------------------------------------------------
def _im2col_slot_stacked(x):
    """x: (N,3,H,W) f32 -> (4*N*H1*W1, 27) bf16, 4 vertically stacked pool slots."""
    n, c, h, w = x.shape
    xp = jnp.pad(x, ((0, 0), (0, 0), (1, 1), (1, 1)))
    taps = [xp[:, :, ky:ky + h, kx:kx + w] for ky in range(3) for kx in range(3)]
    cols = jnp.stack(taps, axis=1).transpose(0, 3, 4, 1, 2).reshape(n, h, w, 9 * c)
    blocks = [cols[:, dy2::2, dx2::2, :].reshape(n * (h // 2) * (w // 2), 9 * c)
              for dy2 in range(2) for dx2 in range(2)]
    return jnp.concatenate(blocks, axis=0).astype(jnp.bfloat16)


@jax.jit
def net_forward(x, q):
    cc1 = _im2col_slot_stacked(x.astype(jnp.float32))       # matches x.float()
    args = (cc1, q["w1"], q["b1"], q["mask"], q["w2"], q["b2"], q["spool"],
            q["w1f"], q["b1f"], q["w2f"], q["b2f"], q["w3f"], q["b3f"])

    def full_spec(a):
        zeros = (0,) * a.ndim
        return pl.BlockSpec(a.shape, lambda i, z=zeros: z)

    flops = 2 * (RS * 9 * CIN * C1 + RP * 9 * C1 * C2 + 4 * RQ * RP * C2
                 + N * FEAT * F1 + N * F1 * F2 + N * F2 * F3P)
    bytes_accessed = sum(int(a.size) * a.dtype.itemsize for a in args) + N * F3P * 4

    out_padded = pl.pallas_call(
        _fused_net_kernel,
        out_shape=jax.ShapeDtypeStruct((N, F3P), jnp.float32),
        grid=(1,),
        in_specs=[full_spec(a) for a in args],
        out_specs=pl.BlockSpec((N, F3P), lambda i: (0, 0)),
        compiler_params=pltpu.CompilerParams(dimension_semantics=("arbitrary",)),
        cost_estimate=pl.CostEstimate(flops=flops, transcendentals=0,
                                      bytes_accessed=bytes_accessed),
    )(*args)
    return out_padded[:, :F3]          # drop the lane-padding columns


# ---------------------------------------------------------------------------
# Deterministic PyTorch-style init and pure-JAX reference
# ---------------------------------------------------------------------------
def init_params(key):
    ks = jax.random.split(key, 10)

    def u(k, shape, fan_in):
        bound = 1.0 / float(fan_in) ** 0.5
        return jax.random.uniform(k, shape, jnp.float32, -bound, bound)

    return {
        "conv1_w": u(ks[0], (16, 3, 3, 3), 3 * 9),
        "conv1_b": u(ks[1], (16,), 3 * 9),
        "conv2_w": u(ks[2], (64, 16, 3, 3), 16 * 9),
        "conv2_b": u(ks[3], (64,), 16 * 9),
        "fc1_w": u(ks[4], (120, 1920), 1920),
        "fc1_b": u(ks[5], (120,), 1920),
        "fc2_w": u(ks[6], (84, 120), 120),
        "fc2_b": u(ks[7], (84,), 120),
        "fc3_w": u(ks[8], (2, 84), 84),
        "fc3_b": u(ks[9], (2,), 84),
    }


def reference_forward(x, p):
    def conv(x, w, b):
        y = jax.lax.conv_general_dilated(
            x, w, (1, 1), ((1, 1), (1, 1)),
            dimension_numbers=("NCHW", "OIHW", "NCHW"))
        return y + b[None, :, None, None]

    def pool(x):
        return jax.lax.reduce_window(x, -jnp.inf, jax.lax.max,
                                     (1, 1, 2, 2), (1, 1, 2, 2), "VALID")

    x = x.astype(jnp.float32)
    x = pool(jax.nn.relu(conv(x, p["conv1_w"], p["conv1_b"])))
    x = pool(jax.nn.relu(conv(x, p["conv2_w"], p["conv2_b"])))
    x = x.reshape(-1, 1920)
    x = jax.nn.relu(x @ p["fc1_w"].T + p["fc1_b"])
    x = jax.nn.relu(x @ p["fc2_w"].T + p["fc2_b"])
    return x @ p["fc3_w"].T + p["fc3_b"]


if __name__ == "__main__":
    key = jax.random.PRNGKey(0)
    kx, kp = jax.random.split(key)
    x = jax.random.normal(kx, (N, CIN, H, W), jnp.float32)
    params = init_params(kp)
    prepped = prepare_params(params)

    out = net_forward(x, prepped)
    out = jax.block_until_ready(out)
    assert out.shape == (N, F3), out.shape

    ref = reference_forward(x, params)
    err = float(jnp.max(jnp.abs(out - ref)))
    if not err < 5e-2:
        raise AssertionError(f"Pallas/reference mismatch: max abs err {err}")

    print("KERNEL_OK")
</pallas_src>

<mosaic_0001>
module attributes {stable_mosaic.version = 11 : i64} {
  func.func @_fused_net_kernel(%arg0: i32, %arg1: memref<960x27xbf16, #tpu.memory_space<vmem>>, %arg2: memref<27x16xbf16, #tpu.memory_space<vmem>>, %arg3: memref<1x16xf32, #tpu.memory_space<vmem>>, %arg4: memref<240x9xbf16, #tpu.memory_space<vmem>>, %arg5: memref<144x64xbf16, #tpu.memory_space<vmem>>, %arg6: memref<1x64xf32, #tpu.memory_space<vmem>>, %arg7: memref<4x60x240xbf16, #tpu.memory_space<vmem>>, %arg8: memref<1920x120xbf16, #tpu.memory_space<vmem>>, %arg9: memref<1x120xf32, #tpu.memory_space<vmem>>, %arg10: memref<120x84xbf16, #tpu.memory_space<vmem>>, %arg11: memref<1x84xf32, #tpu.memory_space<vmem>>, %arg12: memref<84x128xbf16, #tpu.memory_space<vmem>>, %arg13: memref<1x128xf32, #tpu.memory_space<vmem>>, %arg14: memref<2x128xf32, #tpu.memory_space<vmem>>) attributes {dimension_semantics = [#tpu.dimension_semantics<arbitrary>], iteration_bounds = array<i64: 1>, scalar_prefetch = 0 : i64, scratch_operands = 0 : i64, tpu.core_type = #tpu.core_type<tc>, window_params = [{pipeline_mode = #tpu.pipeline_mode<synchronous>, transform_indices = @transform_0, window_bounds = array<i64: 960, 27>}, {pipeline_mode = #tpu.pipeline_mode<synchronous>, transform_indices = @transform_1, window_bounds = array<i64: 27, 16>}, {pipeline_mode = #tpu.pipeline_mode<synchronous>, transform_indices = @transform_2, window_bounds = array<i64: 1, 16>}, {pipeline_mode = #tpu.pipeline_mode<synchronous>, transform_indices = @transform_3, window_bounds = array<i64: 240, 9>}, {pipeline_mode = #tpu.pipeline_mode<synchronous>, transform_indices = @transform_4, window_bounds = array<i64: 144, 64>}, {pipeline_mode = #tpu.pipeline_mode<synchronous>, transform_indices = @transform_5, window_bounds = array<i64: 1, 64>}, {pipeline_mode = #tpu.pipeline_mode<synchronous>, transform_indices = @transform_6, window_bounds = array<i64: 4, 60, 240>}, {pipeline_mode = #tpu.pipeline_mode<synchronous>, transform_indices = @transform_7, window_bounds = array<i64: 1920, 120>}, {pipeline_mode = #tpu.pipeline_mode<synchronous>, transform_indices = @transform_8, window_bounds = array<i64: 1, 120>}, {pipeline_mode = #tpu.pipeline_mode<synchronous>, transform_indices = @transform_9, window_bounds = array<i64: 120, 84>}, {pipeline_mode = #tpu.pipeline_mode<synchronous>, transform_indices = @transform_10, window_bounds = array<i64: 1, 84>}, {pipeline_mode = #tpu.pipeline_mode<synchronous>, transform_indices = @transform_11, window_bounds = array<i64: 84, 128>}, {pipeline_mode = #tpu.pipeline_mode<synchronous>, transform_indices = @transform_12, window_bounds = array<i64: 1, 128>}, {pipeline_mode = #tpu.pipeline_mode<synchronous>, transform_indices = @transform_13, window_bounds = array<i64: 2, 128>}]} {
    %c0 = arith.constant 0 : index
    %c0_0 = arith.constant 0 : index
    %0 = vector.load %arg1[%c0, %c0_0] : memref<960x27xbf16, #tpu.memory_space<vmem>>, vector<960x27xbf16>
    %c0_1 = arith.constant 0 : index
    %c0_2 = arith.constant 0 : index
    %1 = vector.load %arg2[%c0_1, %c0_2] : memref<27x16xbf16, #tpu.memory_space<vmem>>, vector<27x16xbf16>
    %cst = arith.constant dense<0.000000e+00> : vector<960x16xf32>
    %2 = tpu.matmul %0, %1, %cst {dimension_numbers = #tpu.dot_dimension_numbers<[1], [0], [0], [1], [0, 0, 1, 1], [], []>} : vector<960x27xbf16>, vector<27x16xbf16>, vector<960x16xf32> -> vector<960x16xf32>
    %3 = vector.extract_strided_slice %2 {offsets = [0, 0], sizes = [240, 16], strides = [1, 1]} : vector<960x16xf32> to vector<240x16xf32>
    %4 = vector.extract_strided_slice %2 {offsets = [240, 0], sizes = [240, 16], strides = [1, 1]} : vector<960x16xf32> to vector<240x16xf32>
    %5 = arith.maximumf %3, %4 : vector<240x16xf32>
    %6 = vector.extract_strided_slice %2 {offsets = [480, 0], sizes = [240, 16], strides = [1, 1]} : vector<960x16xf32> to vector<240x16xf32>
    %7 = vector.extract_strided_slice %2 {offsets = [720, 0], sizes = [240, 16], strides = [1, 1]} : vector<960x16xf32> to vector<240x16xf32>
    %8 = arith.maximumf %6, %7 : vector<240x16xf32>
    %9 = arith.maximumf %5, %8 : vector<240x16xf32>
    %c0_3 = arith.constant 0 : index
    %c0_4 = arith.constant 0 : index
    %10 = vector.load %arg3[%c0_3, %c0_4] : memref<1x16xf32, #tpu.memory_space<vmem>>, vector<1x16xf32>
    %11 = vector.broadcast %10 : vector<1x16xf32> to vector<240x16xf32>
    %12 = arith.addf %9, %11 : vector<240x16xf32>
    %cst_5 = arith.constant 0.000000e+00 : f32
    %13 = vector.broadcast %cst_5 : f32 to vector<240x16xf32>
    %14 = arith.maximumf %12, %13 : vector<240x16xf32>
    %15 = arith.truncf %14 : vector<240x16xf32> to vector<240x16xbf16>
    %c0_6 = arith.constant 0 : index
    %c0_7 = arith.constant 0 : index
    %16 = vector.load %arg4[%c0_6, %c0_7] : memref<240x9xbf16, #tpu.memory_space<vmem>>, vector<240x9xbf16>
    %17 = vector.extract_strided_slice %15 {offsets = [209, 0], sizes = [31, 16], strides = [1, 1]} : vector<240x16xbf16> to vector<31x16xbf16>
    %18 = vector.extract_strided_slice %15 {offsets = [0, 0], sizes = [209, 16], strides = [1, 1]} : vector<240x16xbf16> to vector<209x16xbf16>
    %19 = tpu.concatenate %17, %18 in 0 : vector<31x16xbf16>, vector<209x16xbf16> -> vector<240x16xbf16>
    %20 = vector.extract_strided_slice %16 {offsets = [0, 0], sizes = [240, 1], strides = [1, 1]} : vector<240x9xbf16> to vector<240x1xbf16>
    %21 = vector.broadcast %20 : vector<240x1xbf16> to vector<240x16xbf16>
    %22 = arith.mulf %19, %21 : vector<240x16xbf16>
    %23 = vector.extract_strided_slice %15 {offsets = [210, 0], sizes = [30, 16], strides = [1, 1]} : vector<240x16xbf16> to vector<30x16xbf16>
    %24 = vector.extract_strided_slice %15 {offsets = [0, 0], sizes = [210, 16], strides = [1, 1]} : vector<240x16xbf16> to vector<210x16xbf16>
    %25 = tpu.concatenate %23, %24 in 0 : vector<30x16xbf16>, vector<210x16xbf16> -> vector<240x16xbf16>
    %26 = vector.extract_strided_slice %16 {offsets = [0, 1], sizes = [240, 1], strides = [1, 1]} : vector<240x9xbf16> to vector<240x1xbf16>
    %27 = vector.broadcast %26 : vector<240x1xbf16> to vector<240x16xbf16>
    %28 = arith.mulf %25, %27 : vector<240x16xbf16>
    %29 = vector.extract_strided_slice %15 {offsets = [211, 0], sizes = [29, 16], strides = [1, 1]} : vector<240x16xbf16> to vector<29x16xbf16>
    %30 = vector.extract_strided_slice %15 {offsets = [0, 0], sizes = [211, 16], strides = [1, 1]} : vector<240x16xbf16> to vector<211x16xbf16>
    %31 = tpu.concatenate %29, %30 in 0 : vector<29x16xbf16>, vector<211x16xbf16> -> vector<240x16xbf16>
    %32 = vector.extract_strided_slice %16 {offsets = [0, 2], sizes = [240, 1], strides = [1, 1]} : vector<240x9xbf16> to vector<240x1xbf16>
    %33 = vector.broadcast %32 : vector<240x1xbf16> to vector<240x16xbf16>
    %34 = arith.mulf %31, %33 : vector<240x16xbf16>
    %35 = vector.extract_strided_slice %15 {offsets = [239, 0], sizes = [1, 16], strides = [1, 1]} : vector<240x16xbf16> to vector<1x16xbf16>
    %36 = vector.extract_strided_slice %15 {offsets = [0, 0], sizes = [239, 16], strides = [1, 1]} : vector<240x16xbf16> to vector<239x16xbf16>
    %37 = tpu.concatenate %35, %36 in 0 : vector<1x16xbf16>, vector<239x16xbf16> -> vector<240x16xbf16>
    %38 = vector.extract_strided_slice %16 {offsets = [0, 3], sizes = [240, 1], strides = [1, 1]} : vector<240x9xbf16> to vector<240x1xbf16>
    %39 = vector.broadcast %38 : vector<240x1xbf16> to vector<240x16xbf16>
    %40 = arith.mulf %37, %39 : vector<240x16xbf16>
    %41 = vector.extract_strided_slice %16 {offsets = [0, 4], sizes = [240, 1], strides = [1, 1]} : vector<240x9xbf16> to vector<240x1xbf16>
    %42 = vector.broadcast %41 : vector<240x1xbf16> to vector<240x16xbf16>
    %43 = arith.mulf %15, %42 : vector<240x16xbf16>
    %44 = vector.extract_strided_slice %15 {offsets = [1, 0], sizes = [239, 16], strides = [1, 1]} : vector<240x16xbf16> to vector<239x16xbf16>
    %45 = vector.extract_strided_slice %15 {offsets = [0, 0], sizes = [1, 16], strides = [1, 1]} : vector<240x16xbf16> to vector<1x16xbf16>
    %46 = tpu.concatenate %44, %45 in 0 : vector<239x16xbf16>, vector<1x16xbf16> -> vector<240x16xbf16>
    %47 = vector.extract_strided_slice %16 {offsets = [0, 5], sizes = [240, 1], strides = [1, 1]} : vector<240x9xbf16> to vector<240x1xbf16>
    %48 = vector.broadcast %47 : vector<240x1xbf16> to vector<240x16xbf16>
    %49 = arith.mulf %46, %48 : vector<240x16xbf16>
    %50 = vector.extract_strided_slice %15 {offsets = [29, 0], sizes = [211, 16], strides = [1, 1]} : vector<240x16xbf16> to vector<211x16xbf16>
    %51 = vector.extract_strided_slice %15 {offsets = [0, 0], sizes = [29, 16], strides = [1, 1]} : vector<240x16xbf16> to vector<29x16xbf16>
    %52 = tpu.concatenate %50, %51 in 0 : vector<211x16xbf16>, vector<29x16xbf16> -> vector<240x16xbf16>
    %53 = vector.extract_strided_slice %16 {offsets = [0, 6], sizes = [240, 1], strides = [1, 1]} : vector<240x9xbf16> to vector<240x1xbf16>
    %54 = vector.broadcast %53 : vector<240x1xbf16> to vector<240x16xbf16>
    %55 = arith.mulf %52, %54 : vector<240x16xbf16>
    %56 = vector.extract_strided_slice %15 {offsets = [30, 0], sizes = [210, 16], strides = [1, 1]} : vector<240x16xbf16> to vector<210x16xbf16>
    %57 = vector.extract_strided_slice %15 {offsets = [0, 0], sizes = [30, 16], strides = [1, 1]} : vector<240x16xbf16> to vector<30x16xbf16>
    %58 = tpu.concatenate %56, %57 in 0 : vector<210x16xbf16>, vector<30x16xbf16> -> vector<240x16xbf16>
    %59 = vector.extract_strided_slice %16 {offsets = [0, 7], sizes = [240, 1], strides = [1, 1]} : vector<240x9xbf16> to vector<240x1xbf16>
    %60 = vector.broadcast %59 : vector<240x1xbf16> to vector<240x16xbf16>
    %61 = arith.mulf %58, %60 : vector<240x16xbf16>
    %62 = vector.extract_strided_slice %15 {offsets = [31, 0], sizes = [209, 16], strides = [1, 1]} : vector<240x16xbf16> to vector<209x16xbf16>
    %63 = vector.extract_strided_slice %15 {offsets = [0, 0], sizes = [31, 16], strides = [1, 1]} : vector<240x16xbf16> to vector<31x16xbf16>
    %64 = tpu.concatenate %62, %63 in 0 : vector<209x16xbf16>, vector<31x16xbf16> -> vector<240x16xbf16>
    %65 = vector.extract_strided_slice %16 {offsets = [0, 8], sizes = [240, 1], strides = [1, 1]} : vector<240x9xbf16> to vector<240x1xbf16>
    %66 = vector.broadcast %65 : vector<240x1xbf16> to vector<240x16xbf16>
    %67 = arith.mulf %64, %66 : vector<240x16xbf16>
    %68 = tpu.concatenate %22, %28, %34, %40, %43, %49, %55, %61, %67 in 1 : vector<240x16xbf16>, vector<240x16xbf16>, vector<240x16xbf16>, vector<240x16xbf16>, vector<240x16xbf16>, vector<240x16xbf16>, vector<240x16xbf16>, vector<240x16xbf16>, vector<240x16xbf16> -> vector<240x144xbf16>
    %c0_8 = arith.constant 0 : index
    %c0_9 = arith.constant 0 : index
    %69 = vector.load %arg5[%c0_8, %c0_9] : memref<144x64xbf16, #tpu.memory_space<vmem>>, vector<144x64xbf16>
    %cst_10 = arith.constant dense<0.000000e+00> : vector<240x64xf32>
    %70 = tpu.matmul %68, %69, %cst_10 {dimension_numbers = #tpu.dot_dimension_numbers<[1], [0], [0], [1], [0, 0, 1, 1], [], []>} : vector<240x144xbf16>, vector<144x64xbf16>, vector<240x64xf32> -> vector<240x64xf32>
    %71 = arith.truncf %70 : vector<240x64xf32> to vector<240x64xbf16>
    %c0_11 = arith.constant 0 : index
    %c0_12 = arith.constant 0 : index
    %c0_13 = arith.constant 0 : index
    %72 = vector.load %arg7[%c0_11, %c0_12, %c0_13] : memref<4x60x240xbf16, #tpu.memory_space<vmem>>, vector<1x60x240xbf16>
    %73 = vector.shape_cast %72 : vector<1x60x240xbf16> to vector<60x240xbf16>
    %cst_14 = arith.constant dense<0.000000e+00> : vector<60x64xf32>
    %74 = tpu.matmul %73, %71, %cst_14 {dimension_numbers = #tpu.dot_dimension_numbers<[1], [0], [0], [1], [0, 0, 1, 1], [], []>} : vector<60x240xbf16>, vector<240x64xbf16>, vector<60x64xf32> -> vector<60x64xf32>
    %c1 = arith.constant 1 : index
    %c0_15 = arith.constant 0 : index
    %c0_16 = arith.constant 0 : index
    %75 = vector.load %arg7[%c1, %c0_15, %c0_16] : memref<4x60x240xbf16, #tpu.memory_space<vmem>>, vector<1x60x240xbf16>
    %76 = vector.shape_cast %75 : vector<1x60x240xbf16> to vector<60x240xbf16>
    %cst_17 = arith.constant dense<0.000000e+00> : vector<60x64xf32>
    %77 = tpu.matmul %76, %71, %cst_17 {dimension_numbers = #tpu.dot_dimension_numbers<[1], [0], [0], [1], [0, 0, 1, 1], [], []>} : vector<60x240xbf16>, vector<240x64xbf16>, vector<60x64xf32> -> vector<60x64xf32>
    %c2 = arith.constant 2 : index
    %c0_18 = arith.constant 0 : index
    %c0_19 = arith.constant 0 : index
    %78 = vector.load %arg7[%c2, %c0_18, %c0_19] : memref<4x60x240xbf16, #tpu.memory_space<vmem>>, vector<1x60x240xbf16>
    %79 = vector.shape_cast %78 : vector<1x60x240xbf16> to vector<60x240xbf16>
    %cst_20 = arith.constant dense<0.000000e+00> : vector<60x64xf32>
    %80 = tpu.matmul %79, %71, %cst_20 {dimension_numbers = #tpu.dot_dimension_numbers<[1], [0], [0], [1], [0, 0, 1, 1], [], []>} : vector<60x240xbf16>, vector<240x64xbf16>, vector<60x64xf32> -> vector<60x64xf32>
    %c3 = arith.constant 3 : index
    %c0_21 = arith.constant 0 : index
    %c0_22 = arith.constant 0 : index
    %81 = vector.load %arg7[%c3, %c0_21, %c0_22] : memref<4x60x240xbf16, #tpu.memory_space<vmem>>, vector<1x60x240xbf16>
    %82 = vector.shape_cast %81 : vector<1x60x240xbf16> to vector<60x240xbf16>
    %cst_23 = arith.constant dense<0.000000e+00> : vector<60x64xf32>
    %83 = tpu.matmul %82, %71, %cst_23 {dimension_numbers = #tpu.dot_dimension_numbers<[1], [0], [0], [1], [0, 0, 1, 1], [], []>} : vector<60x240xbf16>, vector<240x64xbf16>, vector<60x64xf32> -> vector<60x64xf32>
    %84 = arith.maximumf %74, %77 : vector<60x64xf32>
    %85 = arith.maximumf %80, %83 : vector<60x64xf32>
    %86 = arith.maximumf %84, %85 : vector<60x64xf32>
    %c0_24 = arith.constant 0 : index
    %c0_25 = arith.constant 0 : index
    %87 = vector.load %arg6[%c0_24, %c0_25] : memref<1x64xf32, #tpu.memory_space<vmem>>, vector<1x64xf32>
    %88 = vector.broadcast %87 : vector<1x64xf32> to vector<60x64xf32>
    %89 = arith.addf %86, %88 : vector<60x64xf32>
    %cst_26 = arith.constant 0.000000e+00 : f32
    %90 = vector.broadcast %cst_26 : f32 to vector<60x64xf32>
    %91 = arith.maximumf %89, %90 : vector<60x64xf32>
    %92 = arith.truncf %91 : vector<60x64xf32> to vector<60x64xbf16>
    %93 = vector.extract_strided_slice %92 {offsets = [0, 0], sizes = [1, 64], strides = [1, 1]} : vector<60x64xbf16> to vector<1x64xbf16>
    %94 = vector.extract_strided_slice %92 {offsets = [1, 0], sizes = [1, 64], strides = [1, 1]} : vector<60x64xbf16> to vector<1x64xbf16>
    %95 = vector.extract_strided_slice %92 {offsets = [2, 0], sizes = [1, 64], strides = [1, 1]} : vector<60x64xbf16> to vector<1x64xbf16>
    %96 = vector.extract_strided_slice %92 {offsets = [3, 0], sizes = [1, 64], strides = [1, 1]} : vector<60x64xbf16> to vector<1x64xbf16>
    %97 = vector.extract_strided_slice %92 {offsets = [4, 0], sizes = [1, 64], strides = [1, 1]} : vector<60x64xbf16> to vector<1x64xbf16>
    %98 = vector.extract_strided_slice %92 {offsets = [5, 0], sizes = [1, 64], strides = [1, 1]} : vector<60x64xbf16> to vector<1x64xbf16>
    %99 = vector.extract_strided_slice %92 {offsets = [6, 0], sizes = [1, 64], strides = [1, 1]} : vector<60x64xbf16> to vector<1x64xbf16>
    %100 = vector.extract_strided_slice %92 {offsets = [7, 0], sizes = [1, 64], strides = [1, 1]} : vector<60x64xbf16> to vector<1x64xbf16>
    %101 = vector.extract_strided_slice %92 {offsets = [8, 0], sizes = [1, 64], strides = [1, 1]} : vector<60x64xbf16> to vector<1x64xbf16>
    %102 = vector.extract_strided_slice %92 {offsets = [9, 0], sizes = [1, 64], strides = [1, 1]} : vector<60x64xbf16> to vector<1x64xbf16>
    %103 = vector.extract_strided_slice %92 {offsets = [10, 0], sizes = [1, 64], strides = [1, 1]} : vector<60x64xbf16> to vector<1x64xbf16>
    %104 = vector.extract_strided_slice %92 {offsets = [11, 0], sizes = [1, 64], strides = [1, 1]} : vector<60x64xbf16> to vector<1x64xbf16>
    %105 = vector.extract_strided_slice %92 {offsets = [12, 0], sizes = [1, 64], strides = [1, 1]} : vector<60x64xbf16> to vector<1x64xbf16>
    %106 = vector.extract_strided_slice %92 {offsets = [13, 0], sizes = [1, 64], strides = [1, 1]} : vector<60x64xbf16> to vector<1x64xbf16>
    %107 = vector.extract_strided_slice %92 {offsets = [14, 0], sizes = [1, 64], strides = [1, 1]} : vector<60x64xbf16> to vector<1x64xbf16>
    %108 = vector.extract_strided_slice %92 {offsets = [15, 0], sizes = [1, 64], strides = [1, 1]} : vector<60x64xbf16> to vector<1x64xbf16>
    %109 = vector.extract_strided_slice %92 {offsets = [16, 0], sizes = [1, 64], strides = [1, 1]} : vector<60x64xbf16> to vector<1x64xbf16>
    %110 = vector.extract_strided_slice %92 {offsets = [17, 0], sizes = [1, 64], strides = [1, 1]} : vector<60x64xbf16> to vector<1x64xbf16>
    %111 = vector.extract_strided_slice %92 {offsets = [18, 0], sizes = [1, 64], strides = [1, 1]} : vector<60x64xbf16> to vector<1x64xbf16>
    %112 = vector.extract_strided_slice %92 {offsets = [19, 0], sizes = [1, 64], strides = [1, 1]} : vector<60x64xbf16> to vector<1x64xbf16>
    %113 = vector.extract_strided_slice %92 {offsets = [20, 0], sizes = [1, 64], strides = [1, 1]} : vector<60x64xbf16> to vector<1x64xbf16>
    %114 = vector.extract_strided_slice %92 {offsets = [21, 0], sizes = [1, 64], strides = [1, 1]} : vector<60x64xbf16> to vector<1x64xbf16>
    %115 = vector.extract_strided_slice %92 {offsets = [22, 0], sizes = [1, 64], strides = [1, 1]} : vector<60x64xbf16> to vector<1x64xbf16>
    %116 = vector.extract_strided_slice %92 {offsets = [23, 0], sizes = [1, 64], strides = [1, 1]} : vector<60x64xbf16> to vector<1x64xbf16>
    %117 = vector.extract_strided_slice %92 {offsets = [24, 0], sizes = [1, 64], strides = [1, 1]} : vector<60x64xbf16> to vector<1x64xbf16>
    %118 = vector.extract_strided_slice %92 {offsets = [25, 0], sizes = [1, 64], strides = [1, 1]} : vector<60x64xbf16> to vector<1x64xbf16>
    %119 = vector.extract_strided_slice %92 {offsets = [26, 0], sizes = [1, 64], strides = [1, 1]} : vector<60x64xbf16> to vector<1x64xbf16>
    %120 = vector.extract_strided_slice %92 {offsets = [27, 0], sizes = [1, 64], strides = [1, 1]} : vector<60x64xbf16> to vector<1x64xbf16>
    %121 = vector.extract_strided_slice %92 {offsets = [28, 0], sizes = [1, 64], strides = [1, 1]} : vector<60x64xbf16> to vector<1x64xbf16>
    %122 = vector.extract_strided_slice %92 {offsets = [29, 0], sizes = [1, 64], strides = [1, 1]} : vector<60x64xbf16> to vector<1x64xbf16>
    %123 = tpu.concatenate %93, %94, %95, %96, %97, %98, %99, %100, %101, %102, %103, %104, %105, %106, %107, %108 in 1 : vector<1x64xbf16>, vector<1x64xbf16>, vector<1x64xbf16>, vector<1x64xbf16>, vector<1x64xbf16>, vector<1x64xbf16>, vector<1x64xbf16>, vector<1x64xbf16>, vector<1x64xbf16>, vector<1x64xbf16>, vector<1x64xbf16>, vector<1x64xbf16>, vector<1x64xbf16>, vector<1x64xbf16>, vector<1x64xbf16>, vector<1x64xbf16> -> vector<1x1024xbf16>
    %124 = tpu.concatenate %109, %110, %111, %112, %113, %114, %115, %116, %117, %118, %119, %120, %121, %122 in 1 : vector<1x64xbf16>, vector<1x64xbf16>, vector<1x64xbf16>, vector<1x64xbf16>, vector<1x64xbf16>, vector<1x64xbf16>, vector<1x64xbf16>, vector<1x64xbf16>, vector<1x64xbf16>, vector<1x64xbf16>, vector<1x64xbf16>, vector<1x64xbf16>, vector<1x64xbf16>, vector<1x64xbf16> -> vector<1x896xbf16>
    %125 = tpu.concatenate %123, %124 in 1 : vector<1x1024xbf16>, vector<1x896xbf16> -> vector<1x1920xbf16>
    %126 = vector.extract_strided_slice %92 {offsets = [30, 0], sizes = [1, 64], strides = [1, 1]} : vector<60x64xbf16> to vector<1x64xbf16>
    %127 = vector.extract_strided_slice %92 {offsets = [31, 0], sizes = [1, 64], strides = [1, 1]} : vector<60x64xbf16> to vector<1x64xbf16>
    %128 = vector.extract_strided_slice %92 {offsets = [32, 0], sizes = [1, 64], strides = [1, 1]} : vector<60x64xbf16> to vector<1x64xbf16>
    %129 = vector.extract_strided_slice %92 {offsets = [33, 0], sizes = [1, 64], strides = [1, 1]} : vector<60x64xbf16> to vector<1x64xbf16>
    %130 = vector.extract_strided_slice %92 {offsets = [34, 0], sizes = [1, 64], strides = [1, 1]} : vector<60x64xbf16> to vector<1x64xbf16>
    %131 = vector.extract_strided_slice %92 {offsets = [35, 0], sizes = [1, 64], strides = [1, 1]} : vector<60x64xbf16> to vector<1x64xbf16>
    %132 = vector.extract_strided_slice %92 {offsets = [36, 0], sizes = [1, 64], strides = [1, 1]} : vector<60x64xbf16> to vector<1x64xbf16>
    %133 = vector.extract_strided_slice %92 {offsets = [37, 0], sizes = [1, 64], strides = [1, 1]} : vector<60x64xbf16> to vector<1x64xbf16>
    %134 = vector.extract_strided_slice %92 {offsets = [38, 0], sizes = [1, 64], strides = [1, 1]} : vector<60x64xbf16> to vector<1x64xbf16>
    %135 = vector.extract_strided_slice %92 {offsets = [39, 0], sizes = [1, 64], strides = [1, 1]} : vector<60x64xbf16> to vector<1x64xbf16>
    %136 = vector.extract_strided_slice %92 {offsets = [40, 0], sizes = [1, 64], strides = [1, 1]} : vector<60x64xbf16> to vector<1x64xbf16>
    %137 = vector.extract_strided_slice %92 {offsets = [41, 0], sizes = [1, 64], strides = [1, 1]} : vector<60x64xbf16> to vector<1x64xbf16>
    %138 = vector.extract_strided_slice %92 {offsets = [42, 0], sizes = [1, 64], strides = [1, 1]} : vector<60x64xbf16> to vector<1x64xbf16>
    %139 = vector.extract_strided_slice %92 {offsets = [43, 0], sizes = [1, 64], strides = [1, 1]} : vector<60x64xbf16> to vector<1x64xbf16>
    %140 = vector.extract_strided_slice %92 {offsets = [44, 0], sizes = [1, 64], strides = [1, 1]} : vector<60x64xbf16> to vector<1x64xbf16>
    %141 = vector.extract_strided_slice %92 {offsets = [45, 0], sizes = [1, 64], strides = [1, 1]} : vector<60x64xbf16> to vector<1x64xbf16>
    %142 = vector.extract_strided_slice %92 {offsets = [46, 0], sizes = [1, 64], strides = [1, 1]} : vector<60x64xbf16> to vector<1x64xbf16>
    %143 = vector.extract_strided_slice %92 {offsets = [47, 0], sizes = [1, 64], strides = [1, 1]} : vector<60x64xbf16> to vector<1x64xbf16>
    %144 = vector.extract_strided_slice %92 {offsets = [48, 0], sizes = [1, 64], strides = [1, 1]} : vector<60x64xbf16> to vector<1x64xbf16>
    %145 = vector.extract_strided_slice %92 {offsets = [49, 0], sizes = [1, 64], strides = [1, 1]} : vector<60x64xbf16> to vector<1x64xbf16>
    %146 = vector.extract_strided_slice %92 {offsets = [50, 0], sizes = [1, 64], strides = [1, 1]} : vector<60x64xbf16> to vector<1x64xbf16>
    %147 = vector.extract_strided_slice %92 {offsets = [51, 0], sizes = [1, 64], strides = [1, 1]} : vector<60x64xbf16> to vector<1x64xbf16>
    %148 = vector.extract_strided_slice %92 {offsets = [52, 0], sizes = [1, 64], strides = [1, 1]} : vector<60x64xbf16> to vector<1x64xbf16>
    %149 = vector.extract_strided_slice %92 {offsets = [53, 0], sizes = [1, 64], strides = [1, 1]} : vector<60x64xbf16> to vector<1x64xbf16>
    %150 = vector.extract_strided_slice %92 {offsets = [54, 0], sizes = [1, 64], strides = [1, 1]} : vector<60x64xbf16> to vector<1x64xbf16>
    %151 = vector.extract_strided_slice %92 {offsets = [55, 0], sizes = [1, 64], strides = [1, 1]} : vector<60x64xbf16> to vector<1x64xbf16>
    %152 = vector.extract_strided_slice %92 {offsets = [56, 0], sizes = [1, 64], strides = [1, 1]} : vector<60x64xbf16> to vector<1x64xbf16>
    %153 = vector.extract_strided_slice %92 {offsets = [57, 0], sizes = [1, 64], strides = [1, 1]} : vector<60x64xbf16> to vector<1x64xbf16>
    %154 = vector.extract_strided_slice %92 {offsets = [58, 0], sizes = [1, 64], strides = [1, 1]} : vector<60x64xbf16> to vector<1x64xbf16>
    %155 = vector.extract_strided_slice %92 {offsets = [59, 0], sizes = [1, 64], strides = [1, 1]} : vector<60x64xbf16> to vector<1x64xbf16>
    %156 = tpu.concatenate %126, %127, %128, %129, %130, %131, %132, %133, %134, %135, %136, %137, %138, %139, %140, %141 in 1 : vector<1x64xbf16>, vector<1x64xbf16>, vector<1x64xbf16>, vector<1x64xbf16>, vector<1x64xbf16>, vector<1x64xbf16>, vector<1x64xbf16>, vector<1x64xbf16>, vector<1x64xbf16>, vector<1x64xbf16>, vector<1x64xbf16>, vector<1x64xbf16>, vector<1x64xbf16>, vector<1x64xbf16>, vector<1x64xbf16>, vector<1x64xbf16> -> vector<1x1024xbf16>
    %157 = tpu.concatenate %142, %143, %144, %145, %146, %147, %148, %149, %150, %151, %152, %153, %154, %155 in 1 : vector<1x64xbf16>, vector<1x64xbf16>, vector<1x64xbf16>, vector<1x64xbf16>, vector<1x64xbf16>, vector<1x64xbf16>, vector<1x64xbf16>, vector<1x64xbf16>, vector<1x64xbf16>, vector<1x64xbf16>, vector<1x64xbf16>, vector<1x64xbf16>, vector<1x64xbf16>, vector<1x64xbf16> -> vector<1x896xbf16>
    %158 = tpu.concatenate %156, %157 in 1 : vector<1x1024xbf16>, vector<1x896xbf16> -> vector<1x1920xbf16>
    %159 = tpu.concatenate %125, %158 in 0 : vector<1x1920xbf16>, vector<1x1920xbf16> -> vector<2x1920xbf16>
    %c0_27 = arith.constant 0 : index
    %c0_28 = arith.constant 0 : index
    %160 = vector.load %arg8[%c0_27, %c0_28] : memref<1920x120xbf16, #tpu.memory_space<vmem>>, vector<1920x120xbf16>
    %cst_29 = arith.constant dense<0.000000e+00> : vector<2x120xf32>
    %161 = tpu.matmul %159, %160, %cst_29 {dimension_numbers = #tpu.dot_dimension_numbers<[1], [0], [0], [1], [0, 0, 1, 1], [], []>} : vector<2x1920xbf16>, vector<1920x120xbf16>, vector<2x120xf32> -> vector<2x120xf32>
    %c0_30 = arith.constant 0 : index
    %c0_31 = arith.constant 0 : index
    %162 = vector.load %arg9[%c0_30, %c0_31] : memref<1x120xf32, #tpu.memory_space<vmem>>, vector<1x120xf32>
    %163 = vector.broadcast %162 : vector<1x120xf32> to vector<2x120xf32>
    %164 = arith.addf %161, %163 : vector<2x120xf32>
    %cst_32 = arith.constant 0.000000e+00 : f32
    %165 = vector.broadcast %cst_32 : f32 to vector<2x120xf32>
    %166 = arith.maximumf %164, %165 : vector<2x120xf32>
    %167 = arith.truncf %166 : vector<2x120xf32> to vector<2x120xbf16>
    %c0_33 = arith.constant 0 : index
    %c0_34 = arith.constant 0 : index
    %168 = vector.load %arg10[%c0_33, %c0_34] : memref<120x84xbf16, #tpu.memory_space<vmem>>, vector<120x84xbf16>
    %cst_35 = arith.constant dense<0.000000e+00> : vector<2x84xf32>
    %169 = tpu.matmul %167, %168, %cst_35 {dimension_numbers = #tpu.dot_dimension_numbers<[1], [0], [0], [1], [0, 0, 1, 1], [], []>} : vector<2x120xbf16>, vector<120x84xbf16>, vector<2x84xf32> -> vector<2x84xf32>
    %c0_36 = arith.constant 0 : index
    %c0_37 = arith.constant 0 : index
    %170 = vector.load %arg11[%c0_36, %c0_37] : memref<1x84xf32, #tpu.memory_space<vmem>>, vector<1x84xf32>
    %171 = vector.broadcast %170 : vector<1x84xf32> to vector<2x84xf32>
    %172 = arith.addf %169, %171 : vector<2x84xf32>
    %cst_38 = arith.constant 0.000000e+00 : f32
    %173 = vector.broadcast %cst_38 : f32 to vector<2x84xf32>
    %174 = arith.maximumf %172, %173 : vector<2x84xf32>
    %175 = arith.truncf %174 : vector<2x84xf32> to vector<2x84xbf16>
    %c0_39 = arith.constant 0 : index
    %c0_40 = arith.constant 0 : index
    %176 = vector.load %arg12[%c0_39, %c0_40] : memref<84x128xbf16, #tpu.memory_space<vmem>>, vector<84x128xbf16>
    %cst_41 = arith.constant dense<0.000000e+00> : vector<2x128xf32>
    %177 = tpu.matmul %175, %176, %cst_41 {dimension_numbers = #tpu.dot_dimension_numbers<[1], [0], [0], [1], [0, 0, 1, 1], [], []>} : vector<2x84xbf16>, vector<84x128xbf16>, vector<2x128xf32> -> vector<2x128xf32>
    %c0_42 = arith.constant 0 : index
    %c0_43 = arith.constant 0 : index
    %178 = vector.load %arg13[%c0_42, %c0_43] : memref<1x128xf32, #tpu.memory_space<vmem>>, vector<1x128xf32>
    %179 = vector.broadcast %178 : vector<1x128xf32> to vector<2x128xf32>
    %180 = arith.addf %177, %179 : vector<2x128xf32>
    %c0_44 = arith.constant 0 : index
    %c0_45 = arith.constant 0 : index
    %181 = vector.load %arg14[%c0_44, %c0_45] : memref<2x128xf32, #tpu.memory_space<vmem>>, vector<2x128xf32>
    tpu.vector_store %arg14[%c0_44, %c0_45], %180 {strides = array<i32>} : memref<2x128xf32, #tpu.memory_space<vmem>>, vector<2x128xf32>,
    return
  }
  func.func @transform_0(%arg0: i32) -> (i32, i32) {
    %c0_i32 = arith.constant 0 : i32
    %c0_i32_0 = arith.constant 0 : i32
    %c0_i32_1 = arith.constant 0 : i32
    return %c0_i32, %c0_i32_0 : i32, i32
  }
  func.func @transform_1(%arg0: i32) -> (i32, i32) {
    %c0_i32 = arith.constant 0 : i32
    %c0_i32_0 = arith.constant 0 : i32
    %c0_i32_1 = arith.constant 0 : i32
    return %c0_i32, %c0_i32_0 : i32, i32
  }
  func.func @transform_2(%arg0: i32) -> (i32, i32) {
    %c0_i32 = arith.constant 0 : i32
    %c0_i32_0 = arith.constant 0 : i32
    %c0_i32_1 = arith.constant 0 : i32
    return %c0_i32, %c0_i32_0 : i32, i32
  }
  func.func @transform_3(%arg0: i32) -> (i32, i32) {
    %c0_i32 = arith.constant 0 : i32
    %c0_i32_0 = arith.constant 0 : i32
    %c0_i32_1 = arith.constant 0 : i32
    return %c0_i32, %c0_i32_0 : i32, i32
  }
  func.func @transform_4(%arg0: i32) -> (i32, i32) {
    %c0_i32 = arith.constant 0 : i32
    %c0_i32_0 = arith.constant 0 : i32
    %c0_i32_1 = arith.constant 0 : i32
    return %c0_i32, %c0_i32_0 : i32, i32
  }
  func.func @transform_5(%arg0: i32) -> (i32, i32) {
    %c0_i32 = arith.constant 0 : i32
    %c0_i32_0 = arith.constant 0 : i32
    %c0_i32_1 = arith.constant 0 : i32
    return %c0_i32, %c0_i32_0 : i32, i32
  }
  func.func @transform_6(%arg0: i32) -> (i32, i32, i32) {
    %c0_i32 = arith.constant 0 : i32
    %c0_i32_0 = arith.constant 0 : i32
    %c0_i32_1 = arith.constant 0 : i32
    %c0_i32_2 = arith.constant 0 : i32
    return %c0_i32, %c0_i32_0, %c0_i32_1 : i32, i32, i32
  }
  func.func @transform_7(%arg0: i32) -> (i32, i32) {
    %c0_i32 = arith.constant 0 : i32
    %c0_i32_0 = arith.constant 0 : i32
    %c0_i32_1 = arith.constant 0 : i32
    return %c0_i32, %c0_i32_0 : i32, i32
  }
  func.func @transform_8(%arg0: i32) -> (i32, i32) {
    %c0_i32 = arith.constant 0 : i32
    %c0_i32_0 = arith.constant 0 : i32
    %c0_i32_1 = arith.constant 0 : i32
    return %c0_i32, %c0_i32_0 : i32, i32
  }
  func.func @transform_9(%arg0: i32) -> (i32, i32) {
    %c0_i32 = arith.constant 0 : i32
    %c0_i32_0 = arith.constant 0 : i32
    %c0_i32_1 = arith.constant 0 : i32
    return %c0_i32, %c0_i32_0 : i32, i32
  }
  func.func @transform_10(%arg0: i32) -> (i32, i32) {
    %c0_i32 = arith.constant 0 : i32
    %c0_i32_0 = arith.constant 0 : i32
    %c0_i32_1 = arith.constant 0 : i32
    return %c0_i32, %c0_i32_0 : i32, i32
  }
  func.func @transform_11(%arg0: i32) -> (i32, i32) {
    %c0_i32 = arith.constant 0 : i32
    %c0_i32_0 = arith.constant 0 : i32
    %c0_i32_1 = arith.constant 0 : i32
    return %c0_i32, %c0_i32_0 : i32, i32
  }
  func.func @transform_12(%arg0: i32) -> (i32, i32) {
    %c0_i32 = arith.constant 0 : i32
    %c0_i32_0 = arith.constant 0 : i32
    %c0_i32_1 = arith.constant 0 : i32
    return %c0_i32, %c0_i32_0 : i32, i32
  }
  func.func @transform_13(%arg0: i32) -> (i32, i32) {
    %c0_i32 = arith.constant 0 : i32
    %c0_i32_0 = arith.constant 0 : i32
    %c0_i32_1 = arith.constant 0 : i32
    return %c0_i32, %c0_i32_0 : i32, i32
  }
}

</mosaic_0001>

<llo_original>
// kernel: net_forward.1
$region0: #{net_forward.1}
  #allocation0 [shape = 'u32[]', space=smem, size = 0x4, offset = 0x4, fixed_abs, tag = 'smem constant byte address 0x4 - core index']
  #allocation1 [shape = 'u32[144,128]{1,0:T(1,128)}', space=vmem, size = 0x12000, scoped, tag = 'internal scratch']
  %s0 = inlined_call_operand.vmem [shape: bf16[960,27], index: 0, kind: input, shape index: {}]
  %s1 = inlined_call_operand.vmem [shape: bf16[27,16], index: 1, kind: input, shape index: {}]
  %s2 = inlined_call_operand.vmem [shape: f32[1,16], index: 2, kind: input, shape index: {}]
  %s3 = inlined_call_operand.vmem [shape: bf16[240,9], index: 3, kind: input, shape index: {}]
  %s4 = inlined_call_operand.vmem [shape: bf16[144,64], index: 4, kind: input, shape index: {}]
  %s5 = inlined_call_operand.vmem [shape: f32[1,64], index: 5, kind: input, shape index: {}]
  %s6 = inlined_call_operand.vmem [shape: bf16[4,60,240], index: 6, kind: input, shape index: {}]
  %s7 = inlined_call_operand.vmem [shape: bf16[1920,120], index: 7, kind: input, shape index: {}]
  %s8 = inlined_call_operand.vmem [shape: f32[1,120], index: 8, kind: input, shape index: {}]
  %s9 = inlined_call_operand.vmem [shape: bf16[120,84], index: 9, kind: input, shape index: {}]
  %s10 = inlined_call_operand.vmem [shape: f32[1,84], index: 10, kind: input, shape index: {}]
  %s11 = inlined_call_operand.vmem [shape: bf16[84,128], index: 11, kind: input, shape index: {}]
  %s12 = inlined_call_operand.vmem [shape: f32[1,128], index: 12, kind: input, shape index: {}]
  %s13 = inlined_call_operand.hbm [shape: f32[2,128], index: 13, kind: output, shape index: {}]
  %s14 = sld [smem:[#allocation0]]
  $region62: #{net_forward.1} parent=0
    _
  %s16 = ssub.s32 1, %s14
  %s17 = scalar_select 0, %s16, %s14
  $region1: #{net_forward.1} parent=0
    #allocation2 [shape = 'u8[1024]{0}', space=vmem, size = 0x400, scoped, tag = 'output window, operand 0, single buffered']
    #allocation3 [shape = 's32[1]{0}', space=sflag, size = 0x4, scoped, tag = 'scoped memory for net_forward.1']
    %18 = vsyncpa [#allocation3], 0
    // Predicated region
    $region2: #{net_forward.1} parent=1 // pred_check
      _
    $region3: #{net_forward.1} parent=1 // pred_check_branch
      %20 = sbr.rel (0) target = $region5
    $region4: #{net_forward.1} parent=1 // pred_region
      _
    $region5: #{net_forward.1} parent=1 // pred_fallthru
      _
    // Predicated region
    $region6: #{net_forward.1} parent=1 // pred_check
      _
    $region7: #{net_forward.1} parent=1 // pred_check_branch
      %22 = sbr.rel (0) target = $region9
    $region8: #{net_forward.1} parent=1 // pred_region
      _
    $region9: #{net_forward.1} parent=1 // pred_fallthru
      _
    // Predicated region
    $region10: #{net_forward.1} parent=1 // pred_check
      _
    $region11: #{net_forward.1} parent=1 // pred_check_branch
      %24 = sbr.rel (0) target = $region13
    $region12: #{net_forward.1} parent=1 // pred_region
      _
    $region13: #{net_forward.1} parent=1 // pred_fallthru
      _
    // Predicated region
    $region14: #{net_forward.1} parent=1 // pred_check
      _
    $region15: #{net_forward.1} parent=1 // pred_check_branch
      %26 = sbr.rel (0) target = $region17
    $region16: #{net_forward.1} parent=1 // pred_region
      _
    $region17: #{net_forward.1} parent=1 // pred_fallthru
      _
    // Predicated region
    $region18: #{net_forward.1} parent=1 // pred_check
      _
    $region19: #{net_forward.1} parent=1 // pred_check_branch
      %28 = sbr.rel (0) target = $region21
    $region20: #{net_forward.1} parent=1 // pred_region
      _
    $region21: #{net_forward.1} parent=1 // pred_fallthru
      _
    // Predicated region
    $region22: #{net_forward.1} parent=1 // pred_check
      _
    $region23: #{net_forward.1} parent=1 // pred_check_branch
      %30 = sbr.rel (0) target = $region25
    $region24: #{net_forward.1} parent=1 // pred_region
      _
    $region25: #{net_forward.1} parent=1 // pred_fallthru
      _
    // Predicated region
    $region26: #{net_forward.1} parent=1 // pred_check
      _
    $region27: #{net_forward.1} parent=1 // pred_check_branch
      %32 = sbr.rel (0) target = $region29
    $region28: #{net_forward.1} parent=1 // pred_region
      _
    $region29: #{net_forward.1} parent=1 // pred_fallthru
      _
    // Predicated region
    $region30: #{net_forward.1} parent=1 // pred_check
      _
    $region31: #{net_forward.1} parent=1 // pred_check_branch
      %34 = sbr.rel (0) target = $region33
    $region32: #{net_forward.1} parent=1 // pred_region
      _
    $region33: #{net_forward.1} parent=1 // pred_fallthru
      _
    // Predicated region
    $region34: #{net_forward.1} parent=1 // pred_check
      _
    $region35: #{net_forward.1} parent=1 // pred_check_branch
      %36 = sbr.rel (0) target = $region37
    $region36: #{net_forward.1} parent=1 // pred_region
      _
    $region37: #{net_forward.1} parent=1 // pred_fallthru
      _
    // Predicated region
    $region38: #{net_forward.1} parent=1 // pred_check
      _
    $region39: #{net_forward.1} parent=1 // pred_check_branch
      %38 = sbr.rel (0) target = $region41
    $region40: #{net_forward.1} parent=1 // pred_region
      _
    $region41: #{net_forward.1} parent=1 // pred_fallthru
      _
    // Predicated region
    $region42: #{net_forward.1} parent=1 // pred_check
      _
    $region43: #{net_forward.1} parent=1 // pred_check_branch
      %40 = sbr.rel (0) target = $region45
    $region44: #{net_forward.1} parent=1 // pred_region
      _
    $region45: #{net_forward.1} parent=1 // pred_fallthru
      _
    // Predicated region
    $region46: #{net_forward.1} parent=1 // pred_check
      _
    $region47: #{net_forward.1} parent=1 // pred_check_branch
      %42 = sbr.rel (0) target = $region49
    $region48: #{net_forward.1} parent=1 // pred_region
      _
    $region49: #{net_forward.1} parent=1 // pred_fallthru
      _
    // Predicated region
    $region50: #{net_forward.1} parent=1 // pred_check
      _
    $region51: #{net_forward.1} parent=1 // pred_check_branch
      %44 = sbr.rel (0) target = $region53
    $region52: #{net_forward.1} parent=1 // pred_region
      _
    $region53: #{net_forward.1} parent=1 // pred_fallthru
      _
    %v46 = vld [vmem:[%s0] sm:$0xf]
    %v47 = vld [vmem:[%s0 + $0x4] sm:$0xf]
    %v48 = vld [vmem:[%s0 + $0x8] sm:$0xf]
    %v49 = vld [vmem:[%s0 + $0xc] sm:$0xf]
    %v50 = vld [vmem:[%s0 + $0x10] sm:$0xf]
    %v51 = vld [vmem:[%s0 + $0x14] sm:$0xf]
    %v52 = vld [vmem:[%s0 + $0x18] sm:$0xf]
    %v53 = vld [vmem:[%s0 + $0x1c] sm:$0xf]
    %v54 = vld [vmem:[%s0 + $0x20] sm:$0xf]
    %v55 = vld [vmem:[%s0 + $0x24] sm:$0xf]
    %v56 = vld [vmem:[%s0 + $0x28] sm:$0xf]
    %v57 = vld [vmem:[%s0 + $0x2c] sm:$0xf]
    %v58 = vld [vmem:[%s0 + $0x30] sm:$0xf]
    %v59 = vld [vmem:[%s0 + $0x34] sm:$0xf]
    %v60 = vld [vmem:[%s0 + $0x38] sm:$0xf]
    %v61 = vld [vmem:[%s0 + $0x3c] sm:$0xf]
    %v62 = vld [vmem:[%s0 + $0x40] sm:$0xf]
    %v63 = vld [vmem:[%s0 + $0x44] sm:$0xf]
    %v64 = vld [vmem:[%s0 + $0x48] sm:$0xf]
    %v65 = vld [vmem:[%s0 + $0x4c] sm:$0xf]
    %v66 = vld [vmem:[%s0 + $0x50] sm:$0xf]
    %v67 = vld [vmem:[%s0 + $0x54] sm:$0xf]
    %v68 = vld [vmem:[%s0 + $0x58] sm:$0xf]
    %v69 = vld [vmem:[%s0 + $0x5c] sm:$0xf]
    %v70 = vld [vmem:[%s0 + $0x60] sm:$0xf]
    %v71 = vld [vmem:[%s0 + $0x64] sm:$0xf]
    %v72 = vld [vmem:[%s0 + $0x68] sm:$0xf]
    %v73 = vld [vmem:[%s0 + $0x6c] sm:$0xf]
    %v74 = vld [vmem:[%s0 + $0x70] sm:$0xf]
    %v75 = vld [vmem:[%s0 + $0x74] sm:$0xf]
    %v76 = vld [vmem:[%s0 + $0x78] sm:$0xf]
    %v77 = vld [vmem:[%s0 + $0x7c] sm:$0xf]
    %v78 = vld [vmem:[%s0 + $0x80] sm:$0xf]
    %v79 = vld [vmem:[%s0 + $0x84] sm:$0xf]
    %v80 = vld [vmem:[%s0 + $0x88] sm:$0xf]
    %v81 = vld [vmem:[%s0 + $0x8c] sm:$0xf]
    %v82 = vld [vmem:[%s0 + $0x90] sm:$0xf]
    %v83 = vld [vmem:[%s0 + $0x94] sm:$0xf]
    %v84 = vld [vmem:[%s0 + $0x98] sm:$0xf]
    %v85 = vld [vmem:[%s0 + $0x9c] sm:$0xf]
    %v86 = vld [vmem:[%s0 + $0xa0] sm:$0xf]
    %v87 = vld [vmem:[%s0 + $0xa4] sm:$0xf]
    %v88 = vld [vmem:[%s0 + $0xa8] sm:$0xf]
    %v89 = vld [vmem:[%s0 + $0xac] sm:$0xf]
    %v90 = vld [vmem:[%s0 + $0xb0] sm:$0xf]
    %v91 = vld [vmem:[%s0 + $0xb4] sm:$0xf]
    %v92 = vld [vmem:[%s0 + $0xb8] sm:$0xf]
    %v93 = vld [vmem:[%s0 + $0xbc] sm:$0xf]
    %v94 = vld [vmem:[%s0 + $0xc0] sm:$0xf]
    %v95 = vld [vmem:[%s0 + $0xc4] sm:$0xf]
    %v96 = vld [vmem:[%s0 + $0xc8] sm:$0xf]
    %v97 = vld [vmem:[%s0 + $0xcc] sm:$0xf]
    %v98 = vld [vmem:[%s0 + $0xd0] sm:$0xf]
    %v99 = vld [vmem:[%s0 + $0xd4] sm:$0xf]
    %v100 = vld [vmem:[%s0 + $0xd8] sm:$0xf]
    %v101 = vld [vmem:[%s0 + $0xdc] sm:$0xf]
    %v102 = vld [vmem:[%s0 + $0xe0] sm:$0xf]
    %v103 = vld [vmem:[%s0 + $0xe4] sm:$0xf]
    %v104 = vld [vmem:[%s0 + $0xe8] sm:$0xf]
    %v105 = vld [vmem:[%s0 + $0xec] sm:$0xf]
    %v106 = vld [vmem:[%s0 + $0xf0] sm:$0xf]
    %v107 = vld [vmem:[%s0 + $0xf4] sm:$0xf]
    %v108 = vld [vmem:[%s0 + $0xf8] sm:$0xf]
    %v109 = vld [vmem:[%s0 + $0xfc] sm:$0xf]
    %v110 = vld [vmem:[%s0 + $0x100] sm:$0xf]
    %v111 = vld [vmem:[%s0 + $0x104] sm:$0xf]
    %v112 = vld [vmem:[%s0 + $0x108] sm:$0xf]
    %v113 = vld [vmem:[%s0 + $0x10c] sm:$0xf]
    %v114 = vld [vmem:[%s0 + $0x110] sm:$0xf]
    %v115 = vld [vmem:[%s0 + $0x114] sm:$0xf]
    %v116 = vld [vmem:[%s0 + $0x118] sm:$0xf]
    %v117 = vld [vmem:[%s0 + $0x11c] sm:$0xf]
    %v118 = vld [vmem:[%s0 + $0x120] sm:$0xf]
    %v119 = vld [vmem:[%s0 + $0x124] sm:$0xf]
    %v120 = vld [vmem:[%s0 + $0x128] sm:$0xf]
    %v121 = vld [vmem:[%s0 + $0x12c] sm:$0xf]
    %v122 = vld [vmem:[%s0 + $0x130] sm:$0xf]
    %v123 = vld [vmem:[%s0 + $0x134] sm:$0xf]
    %v124 = vld [vmem:[%s0 + $0x138] sm:$0xf]
    %v125 = vld [vmem:[%s0 + $0x13c] sm:$0xf]
    %v126 = vld [vmem:[%s0 + $0x140] sm:$0xf]
    %v127 = vld [vmem:[%s0 + $0x144] sm:$0xf]
    %v128 = vld [vmem:[%s0 + $0x148] sm:$0xf]
    %v129 = vld [vmem:[%s0 + $0x14c] sm:$0xf]
    %v130 = vld [vmem:[%s0 + $0x150] sm:$0xf]
    %v131 = vld [vmem:[%s0 + $0x154] sm:$0xf]
    %v132 = vld [vmem:[%s0 + $0x158] sm:$0xf]
    %v133 = vld [vmem:[%s0 + $0x15c] sm:$0xf]
    %v134 = vld [vmem:[%s0 + $0x160] sm:$0xf]
    %v135 = vld [vmem:[%s0 + $0x164] sm:$0xf]
    %v136 = vld [vmem:[%s0 + $0x168] sm:$0xf]
    %v137 = vld [vmem:[%s0 + $0x16c] sm:$0xf]
    %v138 = vld [vmem:[%s0 + $0x170] sm:$0xf]
    %v139 = vld [vmem:[%s0 + $0x174] sm:$0xf]
    %v140 = vld [vmem:[%s0 + $0x178] sm:$0xf]
    %v141 = vld [vmem:[%s0 + $0x17c] sm:$0xf]
    %v142 = vld [vmem:[%s0 + $0x180] sm:$0xf]
    %v143 = vld [vmem:[%s0 + $0x184] sm:$0xf]
    %v144 = vld [vmem:[%s0 + $0x188] sm:$0xf]
    %v145 = vld [vmem:[%s0 + $0x18c] sm:$0xf]
    %v146 = vld [vmem:[%s0 + $0x190] sm:$0xf]
    %v147 = vld [vmem:[%s0 + $0x194] sm:$0xf]
    %v148 = vld [vmem:[%s0 + $0x198] sm:$0xf]
    %v149 = vld [vmem:[%s0 + $0x19c] sm:$0xf]
    %v150 = vld [vmem:[%s0 + $0x1a0] sm:$0xf]
    %v151 = vld [vmem:[%s0 + $0x1a4] sm:$0xf]
    %v152 = vld [vmem:[%s0 + $0x1a8] sm:$0xf]
    %v153 = vld [vmem:[%s0 + $0x1ac] sm:$0xf]
    %v154 = vld [vmem:[%s0 + $0x1b0] sm:$0xf]
    %v155 = vld [vmem:[%s0 + $0x1b4] sm:$0xf]
    %v156 = vld [vmem:[%s0 + $0x1b8] sm:$0xf]
    %v157 = vld [vmem:[%s0 + $0x1bc] sm:$0xf]
    %v158 = vld [vmem:[%s0 + $0x1c0] sm:$0xf]
    %v159 = vld [vmem:[%s0 + $0x1c4] sm:$0xf]
    %v160 = vld [vmem:[%s0 + $0x1c8] sm:$0xf]
    %v161 = vld [vmem:[%s0 + $0x1cc] sm:$0xf]
    %v162 = vld [vmem:[%s0 + $0x1d0] sm:$0xf]
    %v163 = vld [vmem:[%s0 + $0x1d4] sm:$0xf]
    %v164 = vld [vmem:[%s0 + $0x1d8] sm:$0xf]
    %v165 = vld [vmem:[%s0 + $0x1dc] sm:$0xf]
    %v166 = vld [vmem:[%s1] sm:$0xf]
    %v167 = vld [vmem:[%s1 + $0x4] sm:$0xf]
    %v168 = vld [vmem:[%s1 + $0x8] sm:$0xf]
    %v169 = vld [vmem:[%s1 + $0xc] sm:$0x3]
    %v290 = vunpack.c.l.b16 %v46
    %v291 = vunpack.c.l.b16 %v47
    %v292 = vunpack.c.l.b16 %v48
    %v293 = vunpack.c.l.b16 %v49
    %v294 = vunpack.c.l.b16 %v50
    %v295 = vunpack.c.l.b16 %v51
    %v296 = vunpack.c.l.b16 %v52
    %v297 = vunpack.c.l.b16 %v53
    %v298 = vunpack.c.l.b16 %v54
    %v299 = vunpack.c.l.b16 %v55
    %v300 = vunpack.c.l.b16 %v56
    %v301 = vunpack.c.l.b16 %v57
    %v302 = vunpack.c.l.b16 %v58
    %v303 = vunpack.c.l.b16 %v59
    %v304 = vunpack.c.l.b16 %v60
    %v305 = vunpack.c.l.b16 %v61
    %v306 = vunpack.c.l.b16 %v62
    %v307 = vunpack.c.l.b16 %v63
    %v308 = vunpack.c.l.b16 %v64
    %v309 = vunpack.c.l.b16 %v65
    %v310 = vunpack.c.l.b16 %v66
    %v311 = vunpack.c.l.b16 %v67
    %v312 = vunpack.c.l.b16 %v68
    %v313 = vunpack.c.l.b16 %v69
    %v314 = vunpack.c.l.b16 %v70
    %v315 = vunpack.c.l.b16 %v71
    %v316 = vunpack.c.l.b16 %v72
    %v317 = vunpack.c.l.b16 %v73
    %v318 = vunpack.c.l.b16 %v74
    %v319 = vunpack.c.l.b16 %v75
    %v320 = vunpack.c.l.b16 %v76
    %v321 = vunpack.c.l.b16 %v77
    %v322 = vunpack.c.l.b16 %v78
    %v323 = vunpack.c.l.b16 %v79
    %v324 = vunpack.c.l.b16 %v80
    %v325 = vunpack.c.l.b16 %v81
    %v326 = vunpack.c.l.b16 %v82
    %v327 = vunpack.c.l.b16 %v83
    %v328 = vunpack.c.l.b16 %v84
    %v329 = vunpack.c.l.b16 %v85
    %v330 = vunpack.c.l.b16 %v86
    %v331 = vunpack.c.l.b16 %v87
    %v332 = vunpack.c.l.b16 %v88
    %v333 = vunpack.c.l.b16 %v89
    %v334 = vunpack.c.l.b16 %v90
    %v335 = vunpack.c.l.b16 %v91
    %v336 = vunpack.c.l.b16 %v92
    %v337 = vunpack.c.l.b16 %v93
    %v338 = vunpack.c.l.b16 %v94
    %v339 = vunpack.c.l.b16 %v95
    %v340 = vunpack.c.l.b16 %v96
    %v341 = vunpack.c.l.b16 %v97
    %v342 = vunpack.c.l.b16 %v98
    %v343 = vunpack.c.l.b16 %v99
    %v344 = vunpack.c.l.b16 %v100
    %v345 = vunpack.c.l.b16 %v101
    %v346 = vunpack.c.l.b16 %v102
    %v347 = vunpack.c.l.b16 %v103
    %v348 = vunpack.c.l.b16 %v104
    %v349 = vunpack.c.l.b16 %v105
    %v350 = vunpack.c.l.b16 %v106
    %v351 = vunpack.c.l.b16 %v107
    %v352 = vunpack.c.l.b16 %v108
    %v353 = vunpack.c.l.b16 %v109
    %v354 = vunpack.c.l.b16 %v110
    %v355 = vunpack.c.l.b16 %v111
    %v356 = vunpack.c.l.b16 %v112
    %v357 = vunpack.c.l.b16 %v113
    %v358 = vunpack.c.l.b16 %v114
    %v359 = vunpack.c.l.b16 %v115
    %v360 = vunpack.c.l.b16 %v116
    %v361 = vunpack.c.l.b16 %v117
    %v362 = vunpack.c.l.b16 %v118
    %v363 = vunpack.c.l.b16 %v119
    %v364 = vunpack.c.l.b16 %v120
    %v365 = vunpack.c.l.b16 %v121
    %v366 = vunpack.c.l.b16 %v122
    %v367 = vunpack.c.l.b16 %v123
    %v368 = vunpack.c.l.b16 %v124
    %v369 = vunpack.c.l.b16 %v125
    %v370 = vunpack.c.l.b16 %v126
    %v371 = vunpack.c.l.b16 %v127
    %v372 = vunpack.c.l.b16 %v128
    %v373 = vunpack.c.l.b16 %v129
    %v374 = vunpack.c.l.b16 %v130
    %v375 = vunpack.c.l.b16 %v131
    %v376 = vunpack.c.l.b16 %v132
    %v377 = vunpack.c.l.b16 %v133
    %v378 = vunpack.c.l.b16 %v134
    %v379 = vunpack.c.l.b16 %v135
    %v380 = vunpack.c.l.b16 %v136
    %v381 = vunpack.c.l.b16 %v137
    %v382 = vunpack.c.l.b16 %v138
    %v383 = vunpack.c.l.b16 %v139
    %v384 = vunpack.c.l.b16 %v140
    %v385 = vunpack.c.l.b16 %v141
    %v386 = vunpack.c.l.b16 %v142
    %v387 = vunpack.c.l.b16 %v143
    %v388 = vunpack.c.l.b16 %v144
    %v389 = vunpack.c.l.b16 %v145
    %v390 = vunpack.c.l.b16 %v146
    %v391 = vunpack.c.l.b16 %v147
    %v392 = vunpack.c.l.b16 %v148
    %v393 = vunpack.c.l.b16 %v149
    %v394 = vunpack.c.l.b16 %v150
    %v395 = vunpack.c.l.b16 %v151
    %v396 = vunpack.c.l.b16 %v152
    %v397 = vunpack.c.l.b16 %v153
    %v398 = vunpack.c.l.b16 %v154
    %v399 = vunpack.c.l.b16 %v155
    %v400 = vunpack.c.l.b16 %v156
    %v401 = vunpack.c.l.b16 %v157
    %v402 = vunpack.c.l.b16 %v158
    %v403 = vunpack.c.l.b16 %v159
    %v404 = vunpack.c.l.b16 %v160
    %v405 = vunpack.c.l.b16 %v161
    %v406 = vunpack.c.l.b16 %v162
    %v407 = vunpack.c.l.b16 %v163
    %v408 = vunpack.c.l.b16 %v164
    %v409 = vunpack.c.l.b16 %v165
    %v410 = vpack.c.b16 %v291, %v290
    %v411 = vpack.c.b16 %v293, %v292
    %v412 = vpack.c.b16 %v295, %v294
    %v413 = vpack.c.b16 %v297, %v296
    %v414 = vpack.c.b16 %v299, %v298
    %v415 = vpack.c.b16 %v301, %v300
    %v416 = vpack.c.b16 %v303, %v302
    %v417 = vpack.c.b16 %v305, %v304
    %v418 = vpack.c.b16 %v307, %v306
    %v419 = vpack.c.b16 %v309, %v308
    %v420 = vpack.c.b16 %v311, %v310
    %v421 = vpack.c.b16 %v313, %v312
    %v422 = vpack.c.b16 %v315, %v314
    %v423 = vpack.c.b16 %v317, %v316
    %v424 = vpack.c.b16 %v319, %v318
    %v425 = vpack.c.b16 %v321, %v320
    %v426 = vpack.c.b16 %v323, %v322
    %v427 = vpack.c.b16 %v325, %v324
    %v428 = vpack.c.b16 %v327, %v326
    %v429 = vpack.c.b16 %v329, %v328
    %v430 = vpack.c.b16 %v331, %v330
    %v431 = vpack.c.b16 %v333, %v332
    %v432 = vpack.c.b16 %v335, %v334
    %v433 = vpack.c.b16 %v337, %v336
    %v434 = vpack.c.b16 %v339, %v338
    %v435 = vpack.c.b16 %v341, %v340
    %v436 = vpack.c.b16 %v343, %v342
    %v437 = vpack.c.b16 %v345, %v344
    %v438 = vpack.c.b16 %v347, %v346
    %v439 = vpack.c.b16 %v349, %v348
    %v440 = vpack.c.b16 %v351, %v350
    %v441 = vpack.c.b16 %v353, %v352
    %v442 = vpack.c.b16 %v355, %v354
    %v443 = vpack.c.b16 %v357, %v356
    %v444 = vpack.c.b16 %v359, %v358
    %v445 = vpack.c.b16 %v361, %v360
    %v446 = vpack.c.b16 %v363, %v362
    %v447 = vpack.c.b16 %v365, %v364
    %v448 = vpack.c.b16 %v367, %v366
    %v449 = vpack.c.b16 %v369, %v368
    %v450 = vpack.c.b16 %v371, %v370
    %v451 = vpack.c.b16 %v373, %v372
    %v452 = vpack.c.b16 %v375, %v374
    %v453 = vpack.c.b16 %v377, %v376
    %v454 = vpack.c.b16 %v379, %v378
    %v455 = vpack.c.b16 %v381, %v380
    %v456 = vpack.c.b16 %v383, %v382
    %v457 = vpack.c.b16 %v385, %v384
    %v458 = vpack.c.b16 %v387, %v386
    %v459 = vpack.c.b16 %v389, %v388
    %v460 = vpack.c.b16 %v391, %v390
    %v461 = vpack.c.b16 %v393, %v392
    %v462 = vpack.c.b16 %v395, %v394
    %v463 = vpack.c.b16 %v397, %v396
    %v464 = vpack.c.b16 %v399, %v398
    %v465 = vpack.c.b16 %v401, %v400
    %v466 = vpack.c.b16 %v403, %v402
    %v467 = vpack.c.b16 %v405, %v404
    %v468 = vpack.c.b16 %v407, %v406
    %v469 = vpack.c.b16 %v409, %v408
    %v474 = vunpack.c.l.b16 %v166
    %v475 = vunpack.c.l.b16 %v167
    %v476 = vunpack.c.l.b16 %v168
    %v477 = vunpack.c.l.b16 %v169
    %v478 = vpack.c.b16 %v475, %v474
    %v479 = vpack.c.b16 %v477, %v476
    %vm481 = vcmask 220160
    %v483 = vsel %vm481, %v410, 0
    %v486 = vsel %vm481, %v411, 0
    %v489 = vsel %vm481, %v412, 0
    %v492 = vsel %vm481, %v413, 0
    %v495 = vsel %vm481, %v414, 0
    %v498 = vsel %vm481, %v415, 0
    %v501 = vsel %vm481, %v416, 0
    %v504 = vsel %vm481, %v417, 0
    %v507 = vsel %vm481, %v418, 0
    %v510 = vsel %vm481, %v419, 0
    %v513 = vsel %vm481, %v420, 0
    %v516 = vsel %vm481, %v421, 0
    %v519 = vsel %vm481, %v422, 0
    %v522 = vsel %vm481, %v423, 0
    %v525 = vsel %vm481, %v424, 0
    %v528 = vsel %vm481, %v425, 0
    %v531 = vsel %vm481, %v426, 0
    %v534 = vsel %vm481, %v427, 0
    %v537 = vsel %vm481, %v428, 0
    %v540 = vsel %vm481, %v429, 0
    %v543 = vsel %vm481, %v430, 0
    %v546 = vsel %vm481, %v431, 0
    %v549 = vsel %vm481, %v432, 0
    %v552 = vsel %vm481, %v433, 0
    %v555 = vsel %vm481, %v434, 0
    %v558 = vsel %vm481, %v435, 0
    %v561 = vsel %vm481, %v436, 0
    %v564 = vsel %vm481, %v437, 0
    %v567 = vsel %vm481, %v438, 0
    %v570 = vsel %vm481, %v439, 0
    %v573 = vsel %vm481, %v440, 0
    %v576 = vsel %vm481, %v441, 0
    %v579 = vsel %vm481, %v442, 0
    %v582 = vsel %vm481, %v443, 0
    %v585 = vsel %vm481, %v444, 0
    %v588 = vsel %vm481, %v445, 0
    %v591 = vsel %vm481, %v446, 0
    %v594 = vsel %vm481, %v447, 0
    %v597 = vsel %vm481, %v448, 0
    %v600 = vsel %vm481, %v449, 0
    %v603 = vsel %vm481, %v450, 0
    %v606 = vsel %vm481, %v451, 0
    %v609 = vsel %vm481, %v452, 0
    %v612 = vsel %vm481, %v453, 0
    %v615 = vsel %vm481, %v454, 0
    %v618 = vsel %vm481, %v455, 0
    %v621 = vsel %vm481, %v456, 0
    %v624 = vsel %vm481, %v457, 0
    %v627 = vsel %vm481, %v458, 0
    %v630 = vsel %vm481, %v459, 0
    %v633 = vsel %vm481, %v460, 0
    %v636 = vsel %vm481, %v461, 0
    %v639 = vsel %vm481, %v462, 0
    %v642 = vsel %vm481, %v463, 0
    %v645 = vsel %vm481, %v464, 0
    %v648 = vsel %vm481, %v465, 0
    %v651 = vsel %vm481, %v466, 0
    %v654 = vsel %vm481, %v467, 0
    %v657 = vsel %vm481, %v468, 0
    %v660 = vsel %vm481, %v469, 0
    %vm662 = vcmask 1044480
    %vm663 = vcmask 1045504
    %v664 = vsel %vm662, 4294967295, 65535
    %v665 = vsel %vm663, %v664, 0
    %v667 = vand.u32 %v479, %v665
    %669 = vmatprep.subr.bf16.mxu0 0
    %670 = vmatpush1.bf16.msra.mxu0 %v478
    %671 = vmatprep.subr.bf16.mxu0 0
    %672 = vmatpush1.bf16.msra.mxu0 %v667
    %673 = vmatprep.subr.bf16.mxu0 0
    %674 = vmatpush1.bf16.msra.mxu0 0
    %675 = vmatprep.subr.bf16.mxu0 0
    %676 = vmatpush1.bf16.msra.mxu0 0
    %677 = vmatprep.subr.bf16.mxu0 0
    %678 = vmatpush1.bf16.msra.mxu0 0
    %679 = vmatprep.subr.bf16.mxu0 0
    %680 = vmatpush1.bf16.msra.mxu0 0
    %681 = vmatprep.subr.bf16.mxu0 0
    %682 = vmatpush1.bf16.msra.mxu0 0
    %683 = vmatprep.subr.bf16.mxu0 0
    %684 = vmatpush1.bf16.msra.mxu0 0
    %685 = vmatprep.subr.bf16.mxu0 0
    %686 = vmatpush1.bf16.msra.mxu0 0
    %687 = vmatprep.subr.bf16.mxu0 0
    %688 = vmatpush1.bf16.msra.mxu0 0
    %689 = vmatprep.subr.bf16.mxu0 0
    %690 = vmatpush1.bf16.msra.mxu0 0
    %691 = vmatprep.subr.bf16.mxu0 0
    %692 = vmatpush1.bf16.msra.mxu0 0
    %693 = vmatprep.subr.bf16.mxu0 0
    %694 = vmatpush1.bf16.msra.mxu0 0
    %695 = vmatprep.subr.bf16.mxu0 0
    %696 = vmatpush1.bf16.msra.mxu0 0
    %697 = vmatprep.subr.bf16.mxu0 0
    %698 = vmatpush1.bf16.msra.mxu0 0
    %699 = vmatprep.subr.bf16.mxu0 0
    %700 = vmatpush1.bf16.msra.mxu0 0
    %701 = vmatprep.mubr.bf16.mxu0 0
    %702 = vmatmul.mubr.bf16.gmra.mrb[0].mxu0 %v483
    %v703 = vpop.f32.mrb[0].mxu0
    %v704 = vadd.f32 0.0, %v703
    %v705 = vpop.f32.mrb[0].mxu0
    %v706 = vpop.f32.mrb[0].mxu0
    %v707 = vadd.f32 0.0, %v706
    %v708 = vpop.f32.mrb[0].mxu0
    %709 = vmatprep.mubr.bf16.mxu0 0
    %710 = vmatmul.mubr.bf16.gmra.mrb[0].mxu0 %v486
    %v711 = vpop.f32.mrb[0].mxu0
    %v712 = vadd.f32 0.0, %v711
    %v713 = vpop.f32.mrb[0].mxu0
    %v714 = vpop.f32.mrb[0].mxu0
    %v715 = vadd.f32 0.0, %v714
    %v716 = vpop.f32.mrb[0].mxu0
    %717 = vmatprep.mubr.bf16.mxu0 0
    %718 = vmatmul.mubr.bf16.gmra.mrb[0].mxu0 %v489
    %v719 = vpop.f32.mrb[0].mxu0
    %v720 = vadd.f32 0.0, %v719
    %v721 = vpop.f32.mrb[0].mxu0
    %v722 = vpop.f32.mrb[0].mxu0
    %v723 = vadd.f32 0.0, %v722
    %v724 = vpop.f32.mrb[0].mxu0
    %725 = vmatprep.mubr.bf16.mxu0 0
    %726 = vmatmul.mubr.bf16.gmra.mrb[0].mxu0 %v492
    %v727 = vpop.f32.mrb[0].mxu0
    %v728 = vadd.f32 0.0, %v727
    %v729 = vpop.f32.mrb[0].mxu0
    %v730 = vpop.f32.mrb[0].mxu0
    %v731 = vadd.f32 0.0, %v730
    %v732 = vpop.f32.mrb[0].mxu0
    %733 = vmatprep.mubr.bf16.mxu0 0
    %734 = vmatmul.mubr.bf16.gmra.mrb[0].mxu0 %v495
    %v735 = vpop.f32.mrb[0].mxu0
    %v736 = vadd.f32 0.0, %v735
    %v737 = vpop.f32.mrb[0].mxu0
    %v738 = vpop.f32.mrb[0].mxu0
    %v739 = vadd.f32 0.0, %v738
    %v740 = vpop.f32.mrb[0].mxu0
    %741 = vmatprep.mubr.bf16.mxu0 0
    %742 = vmatmul.mubr.bf16.gmra.mrb[0].mxu0 %v498
    %v743 = vpop.f32.mrb[0].mxu0
    %v744 = vadd.f32 0.0, %v743
    %v745 = vpop.f32.mrb[0].mxu0
    %v746 = vpop.f32.mrb[0].mxu0
    %v747 = vadd.f32 0.0, %v746
    %v748 = vpop.f32.mrb[0].mxu0
    %749 = vmatprep.mubr.bf16.mxu0 0
    %750 = vmatmul.mubr.bf16.gmra.mrb[0].mxu0 %v501
    %v751 = vpop.f32.mrb[0].mxu0
    %v752 = vadd.f32 0.0, %v751
    %v753 = vpop.f32.mrb[0].mxu0
    %v754 = vpop.f32.mrb[0].mxu0
    %v755 = vadd.f32 0.0, %v754
    %v756 = vpop.f32.mrb[0].mxu0
    %757 = vmatprep.mubr.bf16.mxu0 0
    %758 = vmatmul.mubr.bf16.gmra.mrb[0].mxu0 %v504
    %v759 = vpop.f32.mrb[0].mxu0
    %v760 = vadd.f32 0.0, %v759
    %v761 = vpop.f32.mrb[0].mxu0
    %v762 = vpop.f32.mrb[0].mxu0
    %v763 = vadd.f32 0.0, %v762
    %v764 = vpop.f32.mrb[0].mxu0
    %765 = vmatprep.mubr.bf16.mxu0 0
    %766 = vmatmul.mubr.bf16.gmra.mrb[0].mxu0 %v507
    %v767 = vpop.f32.mrb[0].mxu0
    %v768 = vadd.f32 0.0, %v767
    %v769 = vpop.f32.mrb[0].mxu0
    %v770 = vpop.f32.mrb[0].mxu0
    %v771 = vadd.f32 0.0, %v770
    %v772 = vpop.f32.mrb[0].mxu0
    %773 = vmatprep.mubr.bf16.mxu0 0
    %774 = vmatmul.mubr.bf16.gmra.mrb[0].mxu0 %v510
    %v775 = vpop.f32.mrb[0].mxu0
    %v776 = vadd.f32 0.0, %v775
    %v777 = vpop.f32.mrb[0].mxu0
    %v778 = vpop.f32.mrb[0].mxu0
    %v779 = vadd.f32 0.0, %v778
    %v780 = vpop.f32.mrb[0].mxu0
    %781 = vmatprep.mubr.bf16.mxu0 0
    %782 = vmatmul.mubr.bf16.gmra.mrb[0].mxu0 %v513
    %v783 = vpop.f32.mrb[0].mxu0
    %v784 = vadd.f32 0.0, %v783
    %v785 = vpop.f32.mrb[0].mxu0
    %v786 = vpop.f32.mrb[0].mxu0
    %v787 = vadd.f32 0.0, %v786
    %v788 = vpop.f32.mrb[0].mxu0
    %789 = vmatprep.mubr.bf16.mxu0 0
    %790 = vmatmul.mubr.bf16.gmra.mrb[0].mxu0 %v516
    %v791 = vpop.f32.mrb[0].mxu0
    %v792 = vadd.f32 0.0, %v791
    %v793 = vpop.f32.mrb[0].mxu0
    %v794 = vpop.f32.mrb[0].mxu0
    %v795 = vadd.f32 0.0, %v794
    %v796 = vpop.f32.mrb[0].mxu0
    %797 = vmatprep.mubr.bf16.mxu0 0
    %798 = vmatmul.mubr.bf16.gmra.mrb[0].mxu0 %v519
    %v799 = vpop.f32.mrb[0].mxu0
    %v800 = vadd.f32 0.0, %v799
    %v801 = vpop.f32.mrb[0].mxu0
    %v802 = vpop.f32.mrb[0].mxu0
    %v803 = vadd.f32 0.0, %v802
    %v804 = vpop.f32.mrb[0].mxu0
    %805 = vmatprep.mubr.bf16.mxu0 0
    %806 = vmatmul.mubr.bf16.gmra.mrb[0].mxu0 %v522
    %v807 = vpop.f32.mrb[0].mxu0
    %v808 = vadd.f32 0.0, %v807
    %v809 = vpop.f32.mrb[0].mxu0
    %v810 = vpop.f32.mrb[0].mxu0
    %v811 = vadd.f32 0.0, %v810
    %v812 = vpop.f32.mrb[0].mxu0
    %813 = vmatprep.mubr.bf16.mxu0 0
    %814 = vmatmul.mubr.bf16.gmra.mrb[0].mxu0 %v525
    %v815 = vpop.f32.mrb[0].mxu0
    %v816 = vadd.f32 0.0, %v815
    %v817 = vpop.f32.mrb[0].mxu0
    %v818 = vpop.f32.mrb[0].mxu0
    %v819 = vadd.f32 0.0, %v818
    %v820 = vpop.f32.mrb[0].mxu0
    %821 = vmatprep.mubr.bf16.mxu0 0
    %822 = vmatmul.mubr.bf16.gmra.mrb[0].mxu0 %v528
    %v823 = vpop.f32.mrb[0].mxu0
    %v824 = vadd.f32 0.0, %v823
    %v825 = vpop.f32.mrb[0].mxu0
    %v826 = vpop.f32.mrb[0].mxu0
    %v827 = vadd.f32 0.0, %v826
    %v828 = vpop.f32.mrb[0].mxu0
    %829 = vmatprep.mubr.bf16.mxu0 0
    %830 = vmatmul.mubr.bf16.gmra.mrb[0].mxu0 %v531
    %v831 = vpop.f32.mrb[0].mxu0
    %v832 = vadd.f32 0.0, %v831
    %v833 = vpop.f32.mrb[0].mxu0
    %v834 = vpop.f32.mrb[0].mxu0
    %v835 = vadd.f32 0.0, %v834
    %v836 = vpop.f32.mrb[0].mxu0
    %837 = vmatprep.mubr.bf16.mxu0 0
    %838 = vmatmul.mubr.bf16.gmra.mrb[0].mxu0 %v534
    %v839 = vpop.f32.mrb[0].mxu0
    %v840 = vadd.f32 0.0, %v839
    %v841 = vpop.f32.mrb[0].mxu0
    %v842 = vpop.f32.mrb[0].mxu0
    %v843 = vadd.f32 0.0, %v842
    %v844 = vpop.f32.mrb[0].mxu0
    %845 = vmatprep.mubr.bf16.mxu0 0
    %846 = vmatmul.mubr.bf16.gmra.mrb[0].mxu0 %v537
    %v847 = vpop.f32.mrb[0].mxu0
    %v848 = vadd.f32 0.0, %v847
    %v849 = vpop.f32.mrb[0].mxu0
    %v850 = vpop.f32.mrb[0].mxu0
    %v851 = vadd.f32 0.0, %v850
    %v852 = vpop.f32.mrb[0].mxu0
    %853 = vmatprep.mubr.bf16.mxu0 0
    %854 = vmatmul.mubr.bf16.gmra.mrb[0].mxu0 %v540
    %v855 = vpop.f32.mrb[0].mxu0
    %v856 = vadd.f32 0.0, %v855
    %v857 = vpop.f32.mrb[0].mxu0
    %v858 = vpop.f32.mrb[0].mxu0
    %v859 = vadd.f32 0.0, %v858
    %v860 = vpop.f32.mrb[0].mxu0
    %861 = vmatprep.mubr.bf16.mxu0 0
    %862 = vmatmul.mubr.bf16.gmra.mrb[0].mxu0 %v543
    %v863 = vpop.f32.mrb[0].mxu0
    %v864 = vadd.f32 0.0, %v863
    %v865 = vpop.f32.mrb[0].mxu0
    %v866 = vpop.f32.mrb[0].mxu0
    %v867 = vadd.f32 0.0, %v866
    %v868 = vpop.f32.mrb[0].mxu0
    %869 = vmatprep.mubr.bf16.mxu0 0
    %870 = vmatmul.mubr.bf16.gmra.mrb[0].mxu0 %v546
    %v871 = vpop.f32.mrb[0].mxu0
    %v872 = vadd.f32 0.0, %v871
    %v873 = vpop.f32.mrb[0].mxu0
    %v874 = vpop.f32.mrb[0].mxu0
    %v875 = vadd.f32 0.0, %v874
    %v876 = vpop.f32.mrb[0].mxu0
    %877 = vmatprep.mubr.bf16.mxu0 0
    %878 = vmatmul.mubr.bf16.gmra.mrb[0].mxu0 %v549
    %v879 = vpop.f32.mrb[0].mxu0
    %v880 = vadd.f32 0.0, %v879
    %v881 = vpop.f32.mrb[0].mxu0
    %v882 = vpop.f32.mrb[0].mxu0
    %v883 = vadd.f32 0.0, %v882
    %v884 = vpop.f32.mrb[0].mxu0
    %885 = vmatprep.mubr.bf16.mxu0 0
    %886 = vmatmul.mubr.bf16.gmra.mrb[0].mxu0 %v552
    %v887 = vpop.f32.mrb[0].mxu0
    %v888 = vadd.f32 0.0, %v887
    %v889 = vpop.f32.mrb[0].mxu0
    %v890 = vpop.f32.mrb[0].mxu0
    %v891 = vadd.f32 0.0, %v890
    %v892 = vpop.f32.mrb[0].mxu0
    %893 = vmatprep.mubr.bf16.mxu0 0
    %894 = vmatmul.mubr.bf16.gmra.mrb[0].mxu0 %v555
    %v895 = vpop.f32.mrb[0].mxu0
    %v896 = vadd.f32 0.0, %v895
    %v897 = vpop.f32.mrb[0].mxu0
    %v898 = vpop.f32.mrb[0].mxu0
    %v899 = vadd.f32 0.0, %v898
    %v900 = vpop.f32.mrb[0].mxu0
    %901 = vmatprep.mubr.bf16.mxu0 0
    %902 = vmatmul.mubr.bf16.gmra.mrb[0].mxu0 %v558
    %v903 = vpop.f32.mrb[0].mxu0
    %v904 = vadd.f32 0.0, %v903
    %v905 = vpop.f32.mrb[0].mxu0
    %v906 = vpop.f32.mrb[0].mxu0
    %v907 = vadd.f32 0.0, %v906
    %v908 = vpop.f32.mrb[0].mxu0
    %909 = vmatprep.mubr.bf16.mxu0 0
    %910 = vmatmul.mubr.bf16.gmra.mrb[0].mxu0 %v561
    %v911 = vpop.f32.mrb[0].mxu0
    %v912 = vadd.f32 0.0, %v911
    %v913 = vpop.f32.mrb[0].mxu0
    %v914 = vpop.f32.mrb[0].mxu0
    %v915 = vadd.f32 0.0, %v914
    %v916 = vpop.f32.mrb[0].mxu0
    %917 = vmatprep.mubr.bf16.mxu0 0
    %918 = vmatmul.mubr.bf16.gmra.mrb[0].mxu0 %v564
    %v919 = vpop.f32.mrb[0].mxu0
    %v920 = vadd.f32 0.0, %v919
    %v921 = vpop.f32.mrb[0].mxu0
    %v922 = vpop.f32.mrb[0].mxu0
    %v923 = vadd.f32 0.0, %v922
    %v924 = vpop.f32.mrb[0].mxu0
    %925 = vmatprep.mubr.bf16.mxu0 0
    %926 = vmatmul.mubr.bf16.gmra.mrb[0].mxu0 %v567
    %v927 = vpop.f32.mrb[0].mxu0
    %v928 = vadd.f32 0.0, %v927
    %v929 = vpop.f32.mrb[0].mxu0
    %v930 = vpop.f32.mrb[0].mxu0
    %v931 = vadd.f32 0.0, %v930
    %v932 = vpop.f32.mrb[0].mxu0
    %933 = vmatprep.mubr.bf16.mxu0 0
    %934 = vmatmul.mubr.bf16.gmra.mrb[0].mxu0 %v570
    %v935 = vpop.f32.mrb[0].mxu0
    %v936 = vadd.f32 0.0, %v935
    %v937 = vpop.f32.mrb[0].mxu0
    %v938 = vpop.f32.mrb[0].mxu0
    %v939 = vadd.f32 0.0, %v938
    %v940 = vpop.f32.mrb[0].mxu0
    %941 = vmatprep.mubr.bf16.mxu0 0
    %942 = vmatmul.mubr.bf16.gmra.mrb[0].mxu0 %v573
    %v943 = vpop.f32.mrb[0].mxu0
    %v944 = vadd.f32 0.0, %v943
    %v945 = vpop.f32.mrb[0].mxu0
    %v946 = vpop.f32.mrb[0].mxu0
    %v947 = vadd.f32 0.0, %v946
    %v948 = vpop.f32.mrb[0].mxu0
    %949 = vmatprep.mubr.bf16.mxu0 0
    %950 = vmatmul.mubr.bf16.gmra.mrb[0].mxu0 %v576
    %v951 = vpop.f32.mrb[0].mxu0
    %v952 = vadd.f32 0.0, %v951
    %v953 = vpop.f32.mrb[0].mxu0
    %v954 = vpop.f32.mrb[0].mxu0
    %v955 = vadd.f32 0.0, %v954
    %v956 = vpop.f32.mrb[0].mxu0
    %957 = vmatprep.mubr.bf16.mxu0 0
    %958 = vmatmul.mubr.bf16.gmra.mrb[0].mxu0 %v579
    %v959 = vpop.f32.mrb[0].mxu0
    %v960 = vadd.f32 0.0, %v959
    %v961 = vpop.f32.mrb[0].mxu0
    %v962 = vpop.f32.mrb[0].mxu0
    %v963 = vadd.f32 0.0, %v962
    %v964 = vpop.f32.mrb[0].mxu0
    %965 = vmatprep.mubr.bf16.mxu0 0
    %966 = vmatmul.mubr.bf16.gmra.mrb[0].mxu0 %v582
    %v967 = vpop.f32.mrb[0].mxu0
    %v968 = vadd.f32 0.0, %v967
    %v969 = vpop.f32.mrb[0].mxu0
    %v970 = vpop.f32.mrb[0].mxu0
    %v971 = vadd.f32 0.0, %v970
    %v972 = vpop.f32.mrb[0].mxu0
    %973 = vmatprep.mubr.bf16.mxu0 0
    %974 = vmatmul.mubr.bf16.gmra.mrb[0].mxu0 %v585
    %v975 = vpop.f32.mrb[0].mxu0
    %v976 = vadd.f32 0.0, %v975
    %v977 = vpop.f32.mrb[0].mxu0
    %v978 = vpop.f32.mrb[0].mxu0
    %v979 = vadd.f32 0.0, %v978
    %v980 = vpop.f32.mrb[0].mxu0
    %981 = vmatprep.mubr.bf16.mxu0 0
    %982 = vmatmul.mubr.bf16.gmra.mrb[0].mxu0 %v588
    %v983 = vpop.f32.mrb[0].mxu0
    %v984 = vadd.f32 0.0, %v983
    %v985 = vpop.f32.mrb[0].mxu0
    %v986 = vpop.f32.mrb[0].mxu0
    %v987 = vadd.f32 0.0, %v986
    %v988 = vpop.f32.mrb[0].mxu0
    %989 = vmatprep.mubr.bf16.mxu0 0
    %990 = vmatmul.mubr.bf16.gmra.mrb[0].mxu0 %v591
    %v991 = vpop.f32.mrb[0].mxu0
    %v992 = vadd.f32 0.0, %v991
    %v993 = vpop.f32.mrb[0].mxu0
    %v994 = vpop.f32.mrb[0].mxu0
    %v995 = vadd.f32 0.0, %v994
    %v996 = vpop.f32.mrb[0].mxu0
    %997 = vmatprep.mubr.bf16.mxu0 0
    %998 = vmatmul.mubr.bf16.gmra.mrb[0].mxu0 %v594
    %v999 = vpop.f32.mrb[0].mxu0
    %v1000 = vadd.f32 0.0, %v999
    %v1001 = vpop.f32.mrb[0].mxu0
    %v1002 = vpop.f32.mrb[0].mxu0
    %v1003 = vadd.f32 0.0, %v1002
    %v1004 = vpop.f32.mrb[0].mxu0
    %1005 = vmatprep.mubr.bf16.mxu0 0
    %1006 = vmatmul.mubr.bf16.gmra.mrb[0].mxu0 %v597
    %v1007 = vpop.f32.mrb[0].mxu0
    %v1008 = vadd.f32 0.0, %v1007
    %v1009 = vpop.f32.mrb[0].mxu0
    %v1010 = vpop.f32.mrb[0].mxu0
    %v1011 = vadd.f32 0.0, %v1010
    %v1012 = vpop.f32.mrb[0].mxu0
    %1013 = vmatprep.mubr.bf16.mxu0 0
    %1014 = vmatmul.mubr.bf16.gmra.mrb[0].mxu0 %v600
    %v1015 = vpop.f32.mrb[0].mxu0
    %v1016 = vadd.f32 0.0, %v1015
    %v1017 = vpop.f32.mrb[0].mxu0
    %v1018 = vpop.f32.mrb[0].mxu0
    %v1019 = vadd.f32 0.0, %v1018
    %v1020 = vpop.f32.mrb[0].mxu0
    %1021 = vmatprep.mubr.bf16.mxu0 0
    %1022 = vmatmul.mubr.bf16.gmra.mrb[0].mxu0 %v603
    %v1023 = vpop.f32.mrb[0].mxu0
    %v1024 = vadd.f32 0.0, %v1023
    %v1025 = vpop.f32.mrb[0].mxu0
    %v1026 = vpop.f32.mrb[0].mxu0
    %v1027 = vadd.f32 0.0, %v1026
    %v1028 = vpop.f32.mrb[0].mxu0
    %1029 = vmatprep.mubr.bf16.mxu0 0
    %1030 = vmatmul.mubr.bf16.gmra.mrb[0].mxu0 %v606
    %v1031 = vpop.f32.mrb[0].mxu0
    %v1032 = vadd.f32 0.0, %v1031
    %v1033 = vpop.f32.mrb[0].mxu0
    %v1034 = vpop.f32.mrb[0].mxu0
    %v1035 = vadd.f32 0.0, %v1034
    %v1036 = vpop.f32.mrb[0].mxu0
    %1037 = vmatprep.mubr.bf16.mxu0 0
    %1038 = vmatmul.mubr.bf16.gmra.mrb[0].mxu0 %v609
    %v1039 = vpop.f32.mrb[0].mxu0
    %v1040 = vadd.f32 0.0, %v1039
    %v1041 = vpop.f32.mrb[0].mxu0
    %v1042 = vpop.f32.mrb[0].mxu0
    %v1043 = vadd.f32 0.0, %v1042
    %v1044 = vpop.f32.mrb[0].mxu0
    %1045 = vmatprep.mubr.bf16.mxu0 0
    %1046 = vmatmul.mubr.bf16.gmra.mrb[0].mxu0 %v612
    %v1047 = vpop.f32.mrb[0].mxu0
    %v1048 = vadd.f32 0.0, %v1047
    %v1049 = vpop.f32.mrb[0].mxu0
    %v1050 = vpop.f32.mrb[0].mxu0
    %v1051 = vadd.f32 0.0, %v1050
    %v1052 = vpop.f32.mrb[0].mxu0
    %1053 = vmatprep.mubr.bf16.mxu0 0
    %1054 = vmatmul.mubr.bf16.gmra.mrb[0].mxu0 %v615
    %v1055 = vpop.f32.mrb[0].mxu0
    %v1056 = vadd.f32 0.0, %v1055
    %v1057 = vpop.f32.mrb[0].mxu0
    %v1058 = vpop.f32.mrb[0].mxu0
    %v1059 = vadd.f32 0.0, %v1058
    %v1060 = vpop.f32.mrb[0].mxu0
    %1061 = vmatprep.mubr.bf16.mxu0 0
    %1062 = vmatmul.mubr.bf16.gmra.mrb[0].mxu0 %v618
    %v1063 = vpop.f32.mrb[0].mxu0
    %v1064 = vadd.f32 0.0, %v1063
    %v1065 = vpop.f32.mrb[0].mxu0
    %v1066 = vpop.f32.mrb[0].mxu0
    %v1067 = vadd.f32 0.0, %v1066
    %v1068 = vpop.f32.mrb[0].mxu0
    %1069 = vmatprep.mubr.bf16.mxu0 0
    %1070 = vmatmul.mubr.bf16.gmra.mrb[0].mxu0 %v621
    %v1071 = vpop.f32.mrb[0].mxu0
    %v1072 = vadd.f32 0.0, %v1071
    %v1073 = vpop.f32.mrb[0].mxu0
    %v1074 = vpop.f32.mrb[0].mxu0
    %v1075 = vadd.f32 0.0, %v1074
    %v1076 = vpop.f32.mrb[0].mxu0
    %1077 = vmatprep.mubr.bf16.mxu0 0
    %1078 = vmatmul.mubr.bf16.gmra.mrb[0].mxu0 %v624
    %v1079 = vpop.f32.mrb[0].mxu0
    %v1080 = vadd.f32 0.0, %v1079
    %v1081 = vpop.f32.mrb[0].mxu0
    %v1082 = vpop.f32.mrb[0].mxu0
    %v1083 = vadd.f32 0.0, %v1082
    %v1084 = vpop.f32.mrb[0].mxu0
    %1085 = vmatprep.mubr.bf16.mxu0 0
    %1086 = vmatmul.mubr.bf16.gmra.mrb[0].mxu0 %v627
    %v1087 = vpop.f32.mrb[0].mxu0
    %v1088 = vadd.f32 0.0, %v1087
    %v1089 = vpop.f32.mrb[0].mxu0
    %v1090 = vpop.f32.mrb[0].mxu0
    %v1091 = vadd.f32 0.0, %v1090
    %v1092 = vpop.f32.mrb[0].mxu0
    %1093 = vmatprep.mubr.bf16.mxu0 0
    %1094 = vmatmul.mubr.bf16.gmra.mrb[0].mxu0 %v630
    %v1095 = vpop.f32.mrb[0].mxu0
    %v1096 = vadd.f32 0.0, %v1095
    %v1097 = vpop.f32.mrb[0].mxu0
    %v1098 = vpop.f32.mrb[0].mxu0
    %v1099 = vadd.f32 0.0, %v1098
    %v1100 = vpop.f32.mrb[0].mxu0
    %1101 = vmatprep.mubr.bf16.mxu0 0
    %1102 = vmatmul.mubr.bf16.gmra.mrb[0].mxu0 %v633
    %v1103 = vpop.f32.mrb[0].mxu0
    %v1104 = vadd.f32 0.0, %v1103
    %v1105 = vpop.f32.mrb[0].mxu0
    %v1106 = vpop.f32.mrb[0].mxu0
    %v1107 = vadd.f32 0.0, %v1106
    %v1108 = vpop.f32.mrb[0].mxu0
    %1109 = vmatprep.mubr.bf16.mxu0 0
    %1110 = vmatmul.mubr.bf16.gmra.mrb[0].mxu0 %v636
    %v1111 = vpop.f32.mrb[0].mxu0
    %v1112 = vadd.f32 0.0, %v1111
    %v1113 = vpop.f32.mrb[0].mxu0
    %v1114 = vpop.f32.mrb[0].mxu0
    %v1115 = vadd.f32 0.0, %v1114
    %v1116 = vpop.f32.mrb[0].mxu0
    %1117 = vmatprep.mubr.bf16.mxu0 0
    %1118 = vmatmul.mubr.bf16.gmra.mrb[0].mxu0 %v639
    %v1119 = vpop.f32.mrb[0].mxu0
    %v1120 = vadd.f32 0.0, %v1119
    %v1121 = vpop.f32.mrb[0].mxu0
    %v1122 = vpop.f32.mrb[0].mxu0
    %v1123 = vadd.f32 0.0, %v1122
    %v1124 = vpop.f32.mrb[0].mxu0
    %1125 = vmatprep.mubr.bf16.mxu0 0
    %1126 = vmatmul.mubr.bf16.gmra.mrb[0].mxu0 %v642
    %v1127 = vpop.f32.mrb[0].mxu0
    %v1128 = vadd.f32 0.0, %v1127
    %v1129 = vpop.f32.mrb[0].mxu0
    %v1130 = vpop.f32.mrb[0].mxu0
    %v1131 = vadd.f32 0.0, %v1130
    %v1132 = vpop.f32.mrb[0].mxu0
    %1133 = vmatprep.mubr.bf16.mxu0 0
    %1134 = vmatmul.mubr.bf16.gmra.mrb[0].mxu0 %v645
    %v1135 = vpop.f32.mrb[0].mxu0
    %v1136 = vadd.f32 0.0, %v1135
    %v1137 = vpop.f32.mrb[0].mxu0
    %v1138 = vpop.f32.mrb[0].mxu0
    %v1139 = vadd.f32 0.0, %v1138
    %v1140 = vpop.f32.mrb[0].mxu0
    %1141 = vmatprep.mubr.bf16.mxu0 0
    %1142 = vmatmul.mubr.bf16.gmra.mrb[0].mxu0 %v648
    %v1143 = vpop.f32.mrb[0].mxu0
    %v1144 = vadd.f32 0.0, %v1143
    %v1145 = vpop.f32.mrb[0].mxu0
    %v1146 = vpop.f32.mrb[0].mxu0
    %v1147 = vadd.f32 0.0, %v1146
    %v1148 = vpop.f32.mrb[0].mxu0
    %1149 = vmatprep.mubr.bf16.mxu0 0
    %1150 = vmatmul.mubr.bf16.gmra.mrb[0].mxu0 %v651
    %v1151 = vpop.f32.mrb[0].mxu0
    %v1152 = vadd.f32 0.0, %v1151
    %v1153 = vpop.f32.mrb[0].mxu0
    %v1154 = vpop.f32.mrb[0].mxu0
    %v1155 = vadd.f32 0.0, %v1154
    %v1156 = vpop.f32.mrb[0].mxu0
    %1157 = vmatprep.mubr.bf16.mxu0 0
    %1158 = vmatmul.mubr.bf16.gmra.mrb[0].mxu0 %v654
    %v1159 = vpop.f32.mrb[0].mxu0
    %v1160 = vadd.f32 0.0, %v1159
    %v1161 = vpop.f32.mrb[0].mxu0
    %v1162 = vpop.f32.mrb[0].mxu0
    %v1163 = vadd.f32 0.0, %v1162
    %v1164 = vpop.f32.mrb[0].mxu0
    %1165 = vmatprep.mubr.bf16.mxu0 0
    %1166 = vmatmul.mubr.bf16.gmra.mrb[0].mxu0 %v657
    %v1167 = vpop.f32.mrb[0].mxu0
    %v1168 = vadd.f32 0.0, %v1167
    %v1169 = vpop.f32.mrb[0].mxu0
    %v1170 = vpop.f32.mrb[0].mxu0
    %v1171 = vadd.f32 0.0, %v1170
    %v1172 = vpop.f32.mrb[0].mxu0
    %1173 = vmatprep.mubr.bf16.mxu0 0
    %1174 = vmatmul.mubr.bf16.gmra.mrb[0].mxu0 %v660
    %v1175 = vpop.f32.mrb[0].mxu0
    %v1176 = vadd.f32 0.0, %v1175
    %v1177 = vpop.f32.mrb[0].mxu0
    %v1178 = vpop.f32.mrb[0].mxu0
    %v1179 = vadd.f32 0.0, %v1178
    %v1180 = vpop.f32.mrb[0].mxu0
    %1181 = vdwg.mxu0
    %v1182 = vmax.f32 %v704, %v824
    %v1183 = vmax.f32 %v707, %v827
    %v1184 = vmax.f32 %v712, %v832
    %v1185 = vmax.f32 %v715, %v835
    %v1186 = vmax.f32 %v720, %v840
    %v1187 = vmax.f32 %v723, %v843
    %v1188 = vmax.f32 %v728, %v848
    %v1189 = vmax.f32 %v731, %v851
    %v1190 = vmax.f32 %v736, %v856
    %v1191 = vmax.f32 %v739, %v859
    %v1192 = vmax.f32 %v744, %v864
    %v1193 = vmax.f32 %v747, %v867
    %v1194 = vmax.f32 %v752, %v872
    %v1195 = vmax.f32 %v755, %v875
    %v1196 = vmax.f32 %v760, %v880
    %v1197 = vmax.f32 %v763, %v883
    %v1198 = vmax.f32 %v768, %v888
    %v1199 = vmax.f32 %v771, %v891
    %v1200 = vmax.f32 %v776, %v896
    %v1201 = vmax.f32 %v779, %v899
    %v1202 = vmax.f32 %v784, %v904
    %v1203 = vmax.f32 %v787, %v907
    %v1204 = vmax.f32 %v792, %v912
    %v1205 = vmax.f32 %v795, %v915
    %v1206 = vmax.f32 %v800, %v920
    %v1207 = vmax.f32 %v803, %v923
    %v1208 = vmax.f32 %v808, %v928
    %v1209 = vmax.f32 %v811, %v931
    %v1210 = vmax.f32 %v816, %v936
    %v1211 = vmax.f32 %v819, %v939
    %v1212 = vmax.f32 %v944, %v1064
    %v1213 = vmax.f32 %v947, %v1067
    %v1214 = vmax.f32 %v952, %v1072
    %v1215 = vmax.f32 %v955, %v1075
    %v1216 = vmax.f32 %v960, %v1080
    %v1217 = vmax.f32 %v963, %v1083
    %v1218 = vmax.f32 %v968, %v1088
    %v1219 = vmax.f32 %v971, %v1091
    %v1220 = vmax.f32 %v976, %v1096
    %v1221 = vmax.f32 %v979, %v1099
    %v1222 = vmax.f32 %v984, %v1104
    %v1223 = vmax.f32 %v987, %v1107
    %v1224 = vmax.f32 %v992, %v1112
    %v1225 = vmax.f32 %v995, %v1115
    %v1226 = vmax.f32 %v1000, %v1120
    %v1227 = vmax.f32 %v1003, %v1123
    %v1228 = vmax.f32 %v1008, %v1128
    %v1229 = vmax.f32 %v1011, %v1131
    %v1230 = vmax.f32 %v1016, %v1136
    %v1231 = vmax.f32 %v1019, %v1139
    %v1232 = vmax.f32 %v1024, %v1144
    %v1233 = vmax.f32 %v1027, %v1147
    %v1234 = vmax.f32 %v1032, %v1152
    %v1235 = vmax.f32 %v1035, %v1155
    %v1236 = vmax.f32 %v1040, %v1160
    %v1237 = vmax.f32 %v1043, %v1163
    %v1238 = vmax.f32 %v1048, %v1168
    %v1239 = vmax.f32 %v1051, %v1171
    %v1240 = vmax.f32 %v1056, %v1176
    %v1241 = vmax.f32 %v1059, %v1179
    %v1242 = vmax.f32 %v1182, %v1212
    %v1243 = vmax.f32 %v1183, %v1213
    %v1244 = vmax.f32 %v1184, %v1214
    %v1245 = vmax.f32 %v1185, %v1215
    %v1246 = vmax.f32 %v1186, %v1216
    %v1247 = vmax.f32 %v1187, %v1217
    %v1248 = vmax.f32 %v1188, %v1218
    %v1249 = vmax.f32 %v1189, %v1219
    %v1250 = vmax.f32 %v1190, %v1220
    %v1251 = vmax.f32 %v1191, %v1221
    %v1252 = vmax.f32 %v1192, %v1222
    %v1253 = vmax.f32 %v1193, %v1223
    %v1254 = vmax.f32 %v1194, %v1224
    %v1255 = vmax.f32 %v1195, %v1225
    %v1256 = vmax.f32 %v1196, %v1226
    %v1257 = vmax.f32 %v1197, %v1227
    %v1258 = vmax.f32 %v1198, %v1228
    %v1259 = vmax.f32 %v1199, %v1229
    %v1260 = vmax.f32 %v1200, %v1230
    %v1261 = vmax.f32 %v1201, %v1231
    %v1262 = vmax.f32 %v1202, %v1232
    %v1263 = vmax.f32 %v1203, %v1233
    %v1264 = vmax.f32 %v1204, %v1234
    %v1265 = vmax.f32 %v1205, %v1235
    %v1266 = vmax.f32 %v1206, %v1236
    %v1267 = vmax.f32 %v1207, %v1237
    %v1268 = vmax.f32 %v1208, %v1238
    %v1269 = vmax.f32 %v1209, %v1239
    %v1270 = vmax.f32 %v1210, %v1240
    %v1271 = vmax.f32 %v1211, %v1241
    %v1272 = vld [vmem:[%s2] sm:$0x1]
    %v1274 = vlaneseq
    %v1275 = vshrl.u32 %v1274, 7
    %v1276 = vsub.s32 0, %v1275
    %v1277 = vrot.slane %v1272, %v1276
    %v1279 = vadd.f32 %v1242, %v1277
    %v1280 = vadd.f32 %v1243, %v1277
    %v1281 = vadd.f32 %v1244, %v1277
    %v1282 = vadd.f32 %v1245, %v1277
    %v1283 = vadd.f32 %v1246, %v1277
    %v1284 = vadd.f32 %v1247, %v1277
    %v1285 = vadd.f32 %v1248, %v1277
    %v1286 = vadd.f32 %v1249, %v1277
    %v1287 = vadd.f32 %v1250, %v1277
    %v1288 = vadd.f32 %v1251, %v1277
    %v1289 = vadd.f32 %v1252, %v1277
    %v1290 = vadd.f32 %v1253, %v1277
    %v1291 = vadd.f32 %v1254, %v1277
    %v1292 = vadd.f32 %v1255, %v1277
    %v1293 = vadd.f32 %v1256, %v1277
    %v1294 = vadd.f32 %v1257, %v1277
    %v1295 = vadd.f32 %v1258, %v1277
    %v1296 = vadd.f32 %v1259, %v1277
    %v1297 = vadd.f32 %v1260, %v1277
    %v1298 = vadd.f32 %v1261, %v1277
    %v1299 = vadd.f32 %v1262, %v1277
    %v1300 = vadd.f32 %v1263, %v1277
    %v1301 = vadd.f32 %v1264, %v1277
    %v1302 = vadd.f32 %v1265, %v1277
    %v1303 = vadd.f32 %v1266, %v1277
    %v1304 = vadd.f32 %v1267, %v1277
    %v1305 = vadd.f32 %v1268, %v1277
    %v1306 = vadd.f32 %v1269, %v1277
    %v1307 = vadd.f32 %v1270, %v1277
    %v1308 = vadd.f32 %v1271, %v1277
    %v1309 = vmax.f32 %v1279, 0.0
    %v1310 = vmax.f32 %v1280, 0.0
    %v1311 = vmax.f32 %v1281, 0.0
    %v1312 = vmax.f32 %v1282, 0.0
    %v1313 = vmax.f32 %v1283, 0.0
    %v1314 = vmax.f32 %v1284, 0.0
    %v1315 = vmax.f32 %v1285, 0.0
    %v1316 = vmax.f32 %v1286, 0.0
    %v1317 = vmax.f32 %v1287, 0.0
    %v1318 = vmax.f32 %v1288, 0.0
    %v1319 = vmax.f32 %v1289, 0.0
    %v1320 = vmax.f32 %v1290, 0.0
    %v1321 = vmax.f32 %v1291, 0.0
    %v1322 = vmax.f32 %v1292, 0.0
    %v1323 = vmax.f32 %v1293, 0.0
    %v1324 = vmax.f32 %v1294, 0.0
    %v1325 = vmax.f32 %v1295, 0.0
    %v1326 = vmax.f32 %v1296, 0.0
    %v1327 = vmax.f32 %v1297, 0.0
    %v1328 = vmax.f32 %v1298, 0.0
    %v1329 = vmax.f32 %v1299, 0.0
    %v1330 = vmax.f32 %v1300, 0.0
    %v1331 = vmax.f32 %v1301, 0.0
    %v1332 = vmax.f32 %v1302, 0.0
    %v1333 = vmax.f32 %v1303, 0.0
    %v1334 = vmax.f32 %v1304, 0.0
    %v1335 = vmax.f32 %v1305, 0.0
    %v1336 = vmax.f32 %v1306, 0.0
    %v1337 = vmax.f32 %v1307, 0.0
    %v1338 = vmax.f32 %v1308, 0.0
    %v1339 = vpack.c.bf16 %v1310, %v1309
    %v1340 = vpack.c.bf16 %v1312, %v1311
    %v1341 = vpack.c.bf16 %v1314, %v1313
    %v1342 = vpack.c.bf16 %v1316, %v1315
    %v1343 = vpack.c.bf16 %v1318, %v1317
    %v1344 = vpack.c.bf16 %v1320, %v1319
    %v1345 = vpack.c.bf16 %v1322, %v1321
    %v1346 = vpack.c.bf16 %v1324, %v1323
    %v1347 = vpack.c.bf16 %v1326, %v1325
    %v1348 = vpack.c.bf16 %v1328, %v1327
    %v1349 = vpack.c.bf16 %v1330, %v1329
    %v1350 = vpack.c.bf16 %v1332, %v1331
    %v1351 = vpack.c.bf16 %v1334, %v1333
    %v1352 = vpack.c.bf16 %v1336, %v1335
    %v1353 = vpack.c.bf16 %v1338, %v1337
    %v1354 = vld [vmem:[%s3] sm:$0xf]
    %v1355 = vld [vmem:[%s3 + $0x4] sm:$0xf]
    %v1356 = vld [vmem:[%s3 + $0x8] sm:$0xf]
    %v1357 = vld [vmem:[%s3 + $0xc] sm:$0xf]
    %v1358 = vld [vmem:[%s3 + $0x10] sm:$0xf]
    %v1359 = vld [vmem:[%s3 + $0x14] sm:$0xf]
    %v1360 = vld [vmem:[%s3 + $0x18] sm:$0xf]
    %v1361 = vld [vmem:[%s3 + $0x1c] sm:$0xf]
    %v1362 = vld [vmem:[%s3 + $0x20] sm:$0xf]
    %v1363 = vld [vmem:[%s3 + $0x24] sm:$0xf]
    %v1364 = vld [vmem:[%s3 + $0x28] sm:$0xf]
    %v1365 = vld [vmem:[%s3 + $0x2c] sm:$0xf]
    %v1366 = vld [vmem:[%s3 + $0x30] sm:$0xf]
    %v1367 = vld [vmem:[%s3 + $0x34] sm:$0xf]
    %v1368 = vld [vmem:[%s3 + $0x38] sm:$0xf]
    %v1369 = vld [vmem:[%s3 + $0x3c] sm:$0xf]
    %v1370 = vld [vmem:[%s3 + $0x40] sm:$0xf]
    %v1371 = vld [vmem:[%s3 + $0x44] sm:$0xf]
    %v1372 = vld [vmem:[%s3 + $0x48] sm:$0xf]
    %v1373 = vld [vmem:[%s3 + $0x4c] sm:$0xf]
    %v1374 = vld [vmem:[%s3 + $0x50] sm:$0xf]
    %v1375 = vld [vmem:[%s3 + $0x54] sm:$0xf]
    %v1376 = vld [vmem:[%s3 + $0x58] sm:$0xf]
    %v1377 = vld [vmem:[%s3 + $0x5c] sm:$0xf]
    %v1378 = vld [vmem:[%s3 + $0x60] sm:$0xf]
    %v1379 = vld [vmem:[%s3 + $0x64] sm:$0xf]
    %v1380 = vld [vmem:[%s3 + $0x68] sm:$0xf]
    %v1381 = vld [vmem:[%s3 + $0x6c] sm:$0xf]
    %v1382 = vld [vmem:[%s3 + $0x70] sm:$0xf]
    %v1383 = vld [vmem:[%s3 + $0x74] sm:$0xf]
    %vm1384 = vsmask.f32 7424
    %v1386 = vshrl.u32 %v1352, 16
    %v1388 = vshll.u32 %v1352, 16
    %v1390 = vrot.slane %v1388, 1
    %v1391 = vor.u32 %v1386, %v1390
    %v1393 = vshll.u32 %v1353, 16
    %v1395 = vrot.slane %v1393, 1
    %v1396 = vsel %vm1384, %v1391, %v1395
    %v1397 = vshrl.u32 %v1353, 16
    %v1399 = vor.u32 %v1397, %v1395
    %v1403 = vshll.u32 %v1339, 16
    %v1405 = vrot.slane %v1403, 1
    %v1406 = vshrl.u32 %v1339, 16
    %v1408 = vor.u32 %v1406, %v1405
    %v1410 = vshll.u32 %v1340, 16
    %v1412 = vrot.slane %v1410, 1
    %v1413 = vsel %vm1384, %v1408, %v1412
    %v1414 = vshrl.u32 %v1340, 16
    %v1416 = vor.u32 %v1414, %v1412
    %v1418 = vshll.u32 %v1341, 16
    %v1420 = vrot.slane %v1418, 1
    %v1421 = vsel %vm1384, %v1416, %v1420
    %v1422 = vshrl.u32 %v1341, 16
    %v1424 = vor.u32 %v1422, %v1420
    %v1426 = vshll.u32 %v1342, 16
    %v1428 = vrot.slane %v1426, 1
    %v1429 = vsel %vm1384, %v1424, %v1428
    %v1430 = vshrl.u32 %v1342, 16
    %v1432 = vor.u32 %v1430, %v1428
    %v1434 = vshll.u32 %v1343, 16
    %v1436 = vrot.slane %v1434, 1
    %v1437 = vsel %vm1384, %v1432, %v1436
    %v1438 = vshrl.u32 %v1343, 16
    %v1440 = vor.u32 %v1438, %v1436
    %v1442 = vshll.u32 %v1344, 16
    %v1444 = vrot.slane %v1442, 1
    %v1445 = vsel %vm1384, %v1440, %v1444
    %v1446 = vshrl.u32 %v1344, 16
    %v1448 = vor.u32 %v1446, %v1444
    %v1450 = vshll.u32 %v1345, 16
    %v1452 = vrot.slane %v1450, 1
    %v1453 = vsel %vm1384, %v1448, %v1452
    %v1454 = vshrl.u32 %v1345, 16
    %v1456 = vor.u32 %v1454, %v1452
    %v1458 = vshll.u32 %v1346, 16
    %v1460 = vrot.slane %v1458, 1
    %v1461 = vsel %vm1384, %v1456, %v1460
    %v1462 = vshrl.u32 %v1346, 16
    %v1464 = vor.u32 %v1462, %v1460
    %v1466 = vshll.u32 %v1347, 16
    %v1468 = vrot.slane %v1466, 1
    %v1469 = vsel %vm1384, %v1464, %v1468
    %v1470 = vshrl.u32 %v1347, 16
    %v1472 = vor.u32 %v1470, %v1468
    %v1474 = vshll.u32 %v1348, 16
    %v1476 = vrot.slane %v1474, 1
    %v1477 = vsel %vm1384, %v1472, %v1476
    %v1478 = vshrl.u32 %v1348, 16
    %v1480 = vor.u32 %v1478, %v1476
    %v1482 = vshll.u32 %v1349, 16
    %v1484 = vrot.slane %v1482, 1
    %v1485 = vsel %vm1384, %v1480, %v1484
    %v1486 = vshrl.u32 %v1349, 16
    %v1488 = vor.u32 %v1486, %v1484
    %v1490 = vshll.u32 %v1350, 16
    %v1492 = vrot.slane %v1490, 1
    %v1493 = vsel %vm1384, %v1488, %v1492
    %v1494 = vshrl.u32 %v1350, 16
    %v1496 = vor.u32 %v1494, %v1492
    %v1498 = vshll.u32 %v1351, 16
    %v1500 = vrot.slane %v1498, 1
    %v1501 = vsel %vm1384, %v1496, %v1500
    %v1502 = vshrl.u32 %v1351, 16
    %v1504 = vor.u32 %v1502, %v1500
    %v1505 = vsel %vm1384, %v1504, %v1390
    %vm1520 = vcmask 1047552
    %vm1521 = vmand %vm1520, %vm1384
    %v1522 = vsel %vm1521, %v1399, %v1405
    %1524 = vset.pattern.permute.xlu0 0
    %1525 = vperm.xlu0 %1524, %v1354
    %v1526 = vpop.permute.xlu0 %1525
    %v1529 = vunpack.c.l.s4 839922192
    %v1530 = vunpack.c.0.s8 %v1529
    %v1531 = vlaneseq
    %v1532 = vshrl.u32 %v1531, 7
    %v1533 = vsub.s32 %v1530, %v1532
    %v1534 = vrot.slane %v1526, %v1533
    %1536 = vset.pattern.permute.xlu0 0
    %1537 = vperm.xlu0 %1536, %v1355
    %v1538 = vpop.permute.xlu0 %1537
    %v1541 = vunpack.c.l.s4 839922192
    %v1542 = vunpack.c.0.s8 %v1541
    %v1543 = vlaneseq
    %v1544 = vshrl.u32 %v1543, 7
    %v1545 = vsub.s32 %v1542, %v1544
    %v1546 = vrot.slane %v1538, %v1545
    %1548 = vset.pattern.permute.xlu0 0
    %1549 = vperm.xlu0 %1548, %v1356
    %v1550 = vpop.permute.xlu0 %1549
    %v1553 = vunpack.c.l.s4 839922192
    %v1554 = vunpack.c.0.s8 %v1553
    %v1555 = vlaneseq
    %v1556 = vshrl.u32 %v1555, 7
    %v1557 = vsub.s32 %v1554, %v1556
    %v1558 = vrot.slane %v1550, %v1557
    %1560 = vset.pattern.permute.xlu0 0
    %1561 = vperm.xlu0 %1560, %v1357
    %v1562 = vpop.permute.xlu0 %1561
    %v1565 = vunpack.c.l.s4 839922192
    %v1566 = vunpack.c.0.s8 %v1565
    %v1567 = vlaneseq
    %v1568 = vshrl.u32 %v1567, 7
    %v1569 = vsub.s32 %v1566, %v1568
    %v1570 = vrot.slane %v1562, %v1569
    %1572 = vset.pattern.permute.xlu0 0
    %1573 = vperm.xlu0 %1572, %v1358
    %v1574 = vpop.permute.xlu0 %1573
    %v1577 = vunpack.c.l.s4 839922192
    %v1578 = vunpack.c.0.s8 %v1577
    %v1579 = vlaneseq
    %v1580 = vshrl.u32 %v1579, 7
    %v1581 = vsub.s32 %v1578, %v1580
    %v1582 = vrot.slane %v1574, %v1581
    %1584 = vset.pattern.permute.xlu0 0
    %1585 = vperm.xlu0 %1584, %v1359
    %v1586 = vpop.permute.xlu0 %1585
    %v1589 = vunpack.c.l.s4 839922192
    %v1590 = vunpack.c.0.s8 %v1589
    %v1591 = vlaneseq
    %v1592 = vshrl.u32 %v1591, 7
    %v1593 = vsub.s32 %v1590, %v1592
    %v1594 = vrot.slane %v1586, %v1593
    %1596 = vset.pattern.permute.xlu0 0
    %1597 = vperm.xlu0 %1596, %v1360
    %v1598 = vpop.permute.xlu0 %1597
    %v1601 = vunpack.c.l.s4 839922192
    %v1602 = vunpack.c.0.s8 %v1601
    %v1603 = vlaneseq
    %v1604 = vshrl.u32 %v1603, 7
    %v1605 = vsub.s32 %v1602, %v1604
    %v1606 = vrot.slane %v1598, %v1605
    %1608 = vset.pattern.permute.xlu0 0
    %1609 = vperm.xlu0 %1608, %v1361
    %v1610 = vpop.permute.xlu0 %1609
    %v1613 = vunpack.c.l.s4 839922192
    %v1614 = vunpack.c.0.s8 %v1613
    %v1615 = vlaneseq
    %v1616 = vshrl.u32 %v1615, 7
    %v1617 = vsub.s32 %v1614, %v1616
    %v1618 = vrot.slane %v1610, %v1617
    %1620 = vset.pattern.permute.xlu0 0
    %1621 = vperm.xlu0 %1620, %v1362
    %v1622 = vpop.permute.xlu0 %1621
    %v1625 = vunpack.c.l.s4 839922192
    %v1626 = vunpack.c.0.s8 %v1625
    %v1627 = vlaneseq
    %v1628 = vshrl.u32 %v1627, 7
    %v1629 = vsub.s32 %v1626, %v1628
    %v1630 = vrot.slane %v1622, %v1629
    %1632 = vset.pattern.permute.xlu0 0
    %1633 = vperm.xlu0 %1632, %v1363
    %v1634 = vpop.permute.xlu0 %1633
    %v1637 = vunpack.c.l.s4 839922192
    %v1638 = vunpack.c.0.s8 %v1637
    %v1639 = vlaneseq
    %v1640 = vshrl.u32 %v1639, 7
    %v1641 = vsub.s32 %v1638, %v1640
    %v1642 = vrot.slane %v1634, %v1641
    %1644 = vset.pattern.permute.xlu0 0
    %1645 = vperm.xlu0 %1644, %v1364
    %v1646 = vpop.permute.xlu0 %1645
    %v1649 = vunpack.c.l.s4 839922192
    %v1650 = vunpack.c.0.s8 %v1649
    %v1651 = vlaneseq
    %v1652 = vshrl.u32 %v1651, 7
    %v1653 = vsub.s32 %v1650, %v1652
    %v1654 = vrot.slane %v1646, %v1653
    %1656 = vset.pattern.permute.xlu0 0
    %1657 = vperm.xlu0 %1656, %v1365
    %v1658 = vpop.permute.xlu0 %1657
    %v1661 = vunpack.c.l.s4 839922192
    %v1662 = vunpack.c.0.s8 %v1661
    %v1663 = vlaneseq
    %v1664 = vshrl.u32 %v1663, 7
    %v1665 = vsub.s32 %v1662, %v1664
    %v1666 = vrot.slane %v1658, %v1665
    %1668 = vset.pattern.permute.xlu0 0
    %1669 = vperm.xlu0 %1668, %v1366
    %v1670 = vpop.permute.xlu0 %1669
    %v1673 = vunpack.c.l.s4 839922192
    %v1674 = vunpack.c.0.s8 %v1673
    %v1675 = vlaneseq
    %v1676 = vshrl.u32 %v1675, 7
    %v1677 = vsub.s32 %v1674, %v1676
    %v1678 = vrot.slane %v1670, %v1677
    %1680 = vset.pattern.permute.xlu0 0
    %1681 = vperm.xlu0 %1680, %v1367
    %v1682 = vpop.permute.xlu0 %1681
    %v1685 = vunpack.c.l.s4 839922192
    %v1686 = vunpack.c.0.s8 %v1685
    %v1687 = vlaneseq
    %v1688 = vshrl.u32 %v1687, 7
    %v1689 = vsub.s32 %v1686, %v1688
    %v1690 = vrot.slane %v1682, %v1689
    %1692 = vset.pattern.permute.xlu0 0
    %1693 = vperm.xlu0 %1692, %v1368
    %v1694 = vpop.permute.xlu0 %1693
    %v1697 = vunpack.c.l.s4 839922192
    %v1698 = vunpack.c.0.s8 %v1697
    %v1699 = vlaneseq
    %v1700 = vshrl.u32 %v1699, 7
    %v1701 = vsub.s32 %v1698, %v1700
    %v1702 = vrot.slane %v1694, %v1701
    %1704 = vset.pattern.permute.xlu0 0
    %1705 = vperm.xlu0 %1704, %v1369
    %v1706 = vpop.permute.xlu0 %1705
    %v1709 = vunpack.c.l.s4 839922192
    %v1710 = vunpack.c.0.s8 %v1709
    %v1711 = vlaneseq
    %v1712 = vshrl.u32 %v1711, 7
    %v1713 = vsub.s32 %v1710, %v1712
    %v1714 = vrot.slane %v1706, %v1713
    %1716 = vset.pattern.permute.xlu0 0
    %1717 = vperm.xlu0 %1716, %v1370
    %v1718 = vpop.permute.xlu0 %1717
    %v1721 = vunpack.c.l.s4 839922192
    %v1722 = vunpack.c.0.s8 %v1721
    %v1723 = vlaneseq
    %v1724 = vshrl.u32 %v1723, 7
    %v1725 = vsub.s32 %v1722, %v1724
    %v1726 = vrot.slane %v1718, %v1725
    %1728 = vset.pattern.permute.xlu0 0
    %1729 = vperm.xlu0 %1728, %v1371
    %v1730 = vpop.permute.xlu0 %1729
    %v1733 = vunpack.c.l.s4 839922192
    %v1734 = vunpack.c.0.s8 %v1733
    %v1735 = vlaneseq
    %v1736 = vshrl.u32 %v1735, 7
    %v1737 = vsub.s32 %v1734, %v1736
    %v1738 = vrot.slane %v1730, %v1737
    %1740 = vset.pattern.permute.xlu0 0
    %1741 = vperm.xlu0 %1740, %v1372
    %v1742 = vpop.permute.xlu0 %1741
    %v1745 = vunpack.c.l.s4 839922192
    %v1746 = vunpack.c.0.s8 %v1745
    %v1747 = vlaneseq
    %v1748 = vshrl.u32 %v1747, 7
    %v1749 = vsub.s32 %v1746, %v1748
    %v1750 = vrot.slane %v1742, %v1749
    %1752 = vset.pattern.permute.xlu0 0
    %1753 = vperm.xlu0 %1752, %v1373
    %v1754 = vpop.permute.xlu0 %1753
    %v1757 = vunpack.c.l.s4 839922192
    %v1758 = vunpack.c.0.s8 %v1757
    %v1759 = vlaneseq
    %v1760 = vshrl.u32 %v1759, 7
    %v1761 = vsub.s32 %v1758, %v1760
    %v1762 = vrot.slane %v1754, %v1761
    %1764 = vset.pattern.permute.xlu0 0
    %1765 = vperm.xlu0 %1764, %v1374
    %v1766 = vpop.permute.xlu0 %1765
    %v1769 = vunpack.c.l.s4 839922192
    %v1770 = vunpack.c.0.s8 %v1769
    %v1771 = vlaneseq
    %v1772 = vshrl.u32 %v1771, 7
    %v1773 = vsub.s32 %v1770, %v1772
    %v1774 = vrot.slane %v1766, %v1773
    %1776 = vset.pattern.permute.xlu0 0
    %1777 = vperm.xlu0 %1776, %v1375
    %v1778 = vpop.permute.xlu0 %1777
    %v1781 = vunpack.c.l.s4 839922192
    %v1782 = vunpack.c.0.s8 %v1781
    %v1783 = vlaneseq
    %v1784 = vshrl.u32 %v1783, 7
    %v1785 = vsub.s32 %v1782, %v1784
    %v1786 = vrot.slane %v1778, %v1785
    %1788 = vset.pattern.permute.xlu0 0
    %1789 = vperm.xlu0 %1788, %v1376
    %v1790 = vpop.permute.xlu0 %1789
    %v1793 = vunpack.c.l.s4 839922192
    %v1794 = vunpack.c.0.s8 %v1793
    %v1795 = vlaneseq
    %v1796 = vshrl.u32 %v1795, 7
    %v1797 = vsub.s32 %v1794, %v1796
    %v1798 = vrot.slane %v1790, %v1797
    %1800 = vset.pattern.permute.xlu0 0
    %1801 = vperm.xlu0 %1800, %v1377
    %v1802 = vpop.permute.xlu0 %1801
    %v1805 = vunpack.c.l.s4 839922192
    %v1806 = vunpack.c.0.s8 %v1805
    %v1807 = vlaneseq
    %v1808 = vshrl.u32 %v1807, 7
    %v1809 = vsub.s32 %v1806, %v1808
    %v1810 = vrot.slane %v1802, %v1809
    %1812 = vset.pattern.permute.xlu0 0
    %1813 = vperm.xlu0 %1812, %v1378
    %v1814 = vpop.permute.xlu0 %1813
    %v1817 = vunpack.c.l.s4 839922192
    %v1818 = vunpack.c.0.s8 %v1817
    %v1819 = vlaneseq
    %v1820 = vshrl.u32 %v1819, 7
    %v1821 = vsub.s32 %v1818, %v1820
    %v1822 = vrot.slane %v1814, %v1821
    %1824 = vset.pattern.permute.xlu0 0
    %1825 = vperm.xlu0 %1824, %v1379
    %v1826 = vpop.permute.xlu0 %1825
    %v1829 = vunpack.c.l.s4 839922192
    %v1830 = vunpack.c.0.s8 %v1829
    %v1831 = vlaneseq
    %v1832 = vshrl.u32 %v1831, 7
    %v1833 = vsub.s32 %v1830, %v1832
    %v1834 = vrot.slane %v1826, %v1833
    %1836 = vset.pattern.permute.xlu0 0
    %1837 = vperm.xlu0 %1836, %v1380
    %v1838 = vpop.permute.xlu0 %1837
    %v1841 = vunpack.c.l.s4 839922192
    %v1842 = vunpack.c.0.s8 %v1841
    %v1843 = vlaneseq
    %v1844 = vshrl.u32 %v1843, 7
    %v1845 = vsub.s32 %v1842, %v1844
    %v1846 = vrot.slane %v1838, %v1845
    %1848 = vset.pattern.permute.xlu0 0
    %1849 = vperm.xlu0 %1848, %v1381
    %v1850 = vpop.permute.xlu0 %1849
    %v1853 = vunpack.c.l.s4 839922192
    %v1854 = vunpack.c.0.s8 %v1853
    %v1855 = vlaneseq
    %v1856 = vshrl.u32 %v1855, 7
    %v1857 = vsub.s32 %v1854, %v1856
    %v1858 = vrot.slane %v1850, %v1857
    %1860 = vset.pattern.permute.xlu0 0
    %1861 = vperm.xlu0 %1860, %v1382
    %v1862 = vpop.permute.xlu0 %1861
    %v1865 = vunpack.c.l.s4 839922192
    %v1866 = vunpack.c.0.s8 %v1865
    %v1867 = vlaneseq
    %v1868 = vshrl.u32 %v1867, 7
    %v1869 = vsub.s32 %v1866, %v1868
    %v1870 = vrot.slane %v1862, %v1869
    %1872 = vset.pattern.permute.xlu0 0
    %1873 = vperm.xlu0 %1872, %v1383
    %v1874 = vpop.permute.xlu0 %1873
    %v1877 = vunpack.c.l.s4 839922192
    %v1878 = vunpack.c.0.s8 %v1877
    %v1879 = vlaneseq
    %v1880 = vshrl.u32 %v1879, 7
    %v1881 = vsub.s32 %v1878, %v1880
    %v1882 = vrot.slane %v1874, %v1881
    %v1913 = vunpack.c.l.b16 %v1534
    %v1914 = vunpack.c.l.b16 %v1546
    %v1915 = vunpack.c.l.b16 %v1558
    %v1916 = vunpack.c.l.b16 %v1570
    %v1917 = vunpack.c.l.b16 %v1582
    %v1918 = vunpack.c.l.b16 %v1594
    %v1919 = vunpack.c.l.b16 %v1606
    %v1920 = vunpack.c.l.b16 %v1618
    %v1921 = vunpack.c.l.b16 %v1630
    %v1922 = vunpack.c.l.b16 %v1642
    %v1923 = vunpack.c.l.b16 %v1654
    %v1924 = vunpack.c.l.b16 %v1666
    %v1925 = vunpack.c.l.b16 %v1678
    %v1926 = vunpack.c.l.b16 %v1690
    %v1927 = vunpack.c.l.b16 %v1702
    %v1928 = vunpack.c.l.b16 %v1714
    %v1929 = vunpack.c.l.b16 %v1726
    %v1930 = vunpack.c.l.b16 %v1738
    %v1931 = vunpack.c.l.b16 %v1750
    %v1932 = vunpack.c.l.b16 %v1762
    %v1933 = vunpack.c.l.b16 %v1774
    %v1934 = vunpack.c.l.b16 %v1786
    %v1935 = vunpack.c.l.b16 %v1798
    %v1936 = vunpack.c.l.b16 %v1810
    %v1937 = vunpack.c.l.b16 %v1822
    %v1938 = vunpack.c.l.b16 %v1834
    %v1939 = vunpack.c.l.b16 %v1846
    %v1940 = vunpack.c.l.b16 %v1858
    %v1941 = vunpack.c.l.b16 %v1870
    %v1942 = vunpack.c.l.b16 %v1882
    %v1943 = vpack.c.b16 %v1914, %v1913
    %v1944 = vpack.c.b16 %v1916, %v1915
    %v1945 = vpack.c.b16 %v1918, %v1917
    %v1946 = vpack.c.b16 %v1920, %v1919
    %v1947 = vpack.c.b16 %v1922, %v1921
    %v1948 = vpack.c.b16 %v1924, %v1923
    %v1949 = vpack.c.b16 %v1926, %v1925
    %v1950 = vpack.c.b16 %v1928, %v1927
    %v1951 = vpack.c.b16 %v1930, %v1929
    %v1952 = vpack.c.b16 %v1932, %v1931
    %v1953 = vpack.c.b16 %v1934, %v1933
    %v1954 = vpack.c.b16 %v1936, %v1935
    %v1955 = vpack.c.b16 %v1938, %v1937
    %v1956 = vpack.c.b16 %v1940, %v1939
    %v1957 = vpack.c.b16 %v1942, %v1941
    %v1973 = vmul.bf16 %v1396, %v1943
    %v1974 = vmul.bf16 %v1522, %v1944
    %v1975 = vmul.bf16 %v1413, %v1945
    %v1976 = vmul.bf16 %v1421, %v1946
    %v1977 = vmul.bf16 %v1429, %v1947
    %v1978 = vmul.bf16 %v1437, %v1948
    %v1979 = vmul.bf16 %v1445, %v1949
    %v1980 = vmul.bf16 %v1453, %v1950
    %v1981 = vmul.bf16 %v1461, %v1951
    %v1982 = vmul.bf16 %v1469, %v1952
    %v1983 = vmul.bf16 %v1477, %v1953
    %v1984 = vmul.bf16 %v1485, %v1954
    %v1985 = vmul.bf16 %v1493, %v1955
    %v1986 = vmul.bf16 %v1501, %v1956
    %v1987 = vmul.bf16 %v1505, %v1957
    %vm1990 = vcmask 1046528
    %v1991 = vrot.slane %v1352, 1
    %v1992 = vrot.slane %v1353, 1
    %v1993 = vsel %vm1990, %v1991, %v1992
    %v2008 = vrot.slane %v1339, 1
    %v2009 = vrot.slane %v1340, 1
    %v2010 = vsel %vm1990, %v2008, %v2009
    %v2011 = vrot.slane %v1341, 1
    %v2012 = vsel %vm1990, %v2009, %v2011
    %v2013 = vrot.slane %v1342, 1
    %v2014 = vsel %vm1990, %v2011, %v2013
    %v2015 = vrot.slane %v1343, 1
    %v2016 = vsel %vm1990, %v2013, %v2015
    %v2017 = vrot.slane %v1344, 1
    %v2018 = vsel %vm1990, %v2015, %v2017
    %v2019 = vrot.slane %v1345, 1
    %v2020 = vsel %vm1990, %v2017, %v2019
    %v2021 = vrot.slane %v1346, 1
    %v2022 = vsel %vm1990, %v2019, %v2021
    %v2023 = vrot.slane %v1347, 1
    %v2024 = vsel %vm1990, %v2021, %v2023
    %v2025 = vrot.slane %v1348, 1
    %v2026 = vsel %vm1990, %v2023, %v2025
    %v2027 = vrot.slane %v1349, 1
    %v2028 = vsel %vm1990, %v2025, %v2027
    %v2029 = vrot.slane %v1350, 1
    %v2030 = vsel %vm1990, %v2027, %v2029
    %v2031 = vrot.slane %v1351, 1
    %v2032 = vsel %vm1990, %v2029, %v2031
    %v2033 = vsel %vm1990, %v2031, %v1991
    %vm2047 = vcmask 1046528
    %v2050 = vsel %vm2047, %v1992, %v2008
    %2052 = vset.pattern.permute.xlu0 1
    %2053 = vperm.xlu0 %2052, %v1354
    %v2054 = vpop.permute.xlu0 %2053
    %v2057 = vunpack.c.l.s4 839922192
    %v2058 = vunpack.c.0.s8 %v2057
    %v2059 = vlaneseq
    %v2060 = vshrl.u32 %v2059, 7
    %v2061 = vsub.s32 %v2058, %v2060
    %v2062 = vrot.slane %v2054, %v2061
    %2063 = vset.pattern.permute.xlu0 1
    %2064 = vperm.xlu0 %2063, %v1355
    %v2065 = vpop.permute.xlu0 %2064
    %v2068 = vunpack.c.l.s4 839922192
    %v2069 = vunpack.c.0.s8 %v2068
    %v2070 = vlaneseq
    %v2071 = vshrl.u32 %v2070, 7
    %v2072 = vsub.s32 %v2069, %v2071
    %v2073 = vrot.slane %v2065, %v2072
    %2074 = vset.pattern.permute.xlu0 1
    %2075 = vperm.xlu0 %2074, %v1356
    %v2076 = vpop.permute.xlu0 %2075
    %v2079 = vunpack.c.l.s4 839922192
    %v2080 = vunpack.c.0.s8 %v2079
    %v2081 = vlaneseq
    %v2082 = vshrl.u32 %v2081, 7
    %v2083 = vsub.s32 %v2080, %v2082
    %v2084 = vrot.slane %v2076, %v2083
    %2085 = vset.pattern.permute.xlu0 1
    %2086 = vperm.xlu0 %2085, %v1357
    %v2087 = vpop.permute.xlu0 %2086
    %v2090 = vunpack.c.l.s4 839922192
    %v2091 = vunpack.c.0.s8 %v2090
    %v2092 = vlaneseq
    %v2093 = vshrl.u32 %v2092, 7
    %v2094 = vsub.s32 %v2091, %v2093
    %v2095 = vrot.slane %v2087, %v2094
    %2096 = vset.pattern.permute.xlu0 1
    %2097 = vperm.xlu0 %2096, %v1358
    %v2098 = vpop.permute.xlu0 %2097
    %v2101 = vunpack.c.l.s4 839922192
    %v2102 = vunpack.c.0.s8 %v2101
    %v2103 = vlaneseq
    %v2104 = vshrl.u32 %v2103, 7
    %v2105 = vsub.s32 %v2102, %v2104
    %v2106 = vrot.slane %v2098, %v2105
    %2107 = vset.pattern.permute.xlu0 1
    %2108 = vperm.xlu0 %2107, %v1359
    %v2109 = vpop.permute.xlu0 %2108
    %v2112 = vunpack.c.l.s4 839922192
    %v2113 = vunpack.c.0.s8 %v2112
    %v2114 = vlaneseq
    %v2115 = vshrl.u32 %v2114, 7
    %v2116 = vsub.s32 %v2113, %v2115
    %v2117 = vrot.slane %v2109, %v2116
    %2118 = vset.pattern.permute.xlu0 1
    %2119 = vperm.xlu0 %2118, %v1360
    %v2120 = vpop.permute.xlu0 %2119
    %v2123 = vunpack.c.l.s4 839922192
    %v2124 = vunpack.c.0.s8 %v2123
    %v2125 = vlaneseq
    %v2126 = vshrl.u32 %v2125, 7
    %v2127 = vsub.s32 %v2124, %v2126
    %v2128 = vrot.slane %v2120, %v2127
    %2129 = vset.pattern.permute.xlu0 1
    %2130 = vperm.xlu0 %2129, %v1361
    %v2131 = vpop.permute.xlu0 %2130
    %v2134 = vunpack.c.l.s4 839922192
    %v2135 = vunpack.c.0.s8 %v2134
    %v2136 = vlaneseq
    %v2137 = vshrl.u32 %v2136, 7
    %v2138 = vsub.s32 %v2135, %v2137
    %v2139 = vrot.slane %v2131, %v2138
    %2140 = vset.pattern.permute.xlu0 1
    %2141 = vperm.xlu0 %2140, %v1362
    %v2142 = vpop.permute.xlu0 %2141
    %v2145 = vunpack.c.l.s4 839922192
    %v2146 = vunpack.c.0.s8 %v2145
    %v2147 = vlaneseq
    %v2148 = vshrl.u32 %v2147, 7
    %v2149 = vsub.s32 %v2146, %v2148
    %v2150 = vrot.slane %v2142, %v2149
    %2151 = vset.pattern.permute.xlu0 1
    %2152 = vperm.xlu0 %2151, %v1363
    %v2153 = vpop.permute.xlu0 %2152
    %v2156 = vunpack.c.l.s4 839922192
    %v2157 = vunpack.c.0.s8 %v2156
    %v2158 = vlaneseq
    %v2159 = vshrl.u32 %v2158, 7
    %v2160 = vsub.s32 %v2157, %v2159
    %v2161 = vrot.slane %v2153, %v2160
    %2162 = vset.pattern.permute.xlu0 1
    %2163 = vperm.xlu0 %2162, %v1364
    %v2164 = vpop.permute.xlu0 %2163
    %v2167 = vunpack.c.l.s4 839922192
    %v2168 = vunpack.c.0.s8 %v2167
    %v2169 = vlaneseq
    %v2170 = vshrl.u32 %v2169, 7
    %v2171 = vsub.s32 %v2168, %v2170
    %v2172 = vrot.slane %v2164, %v2171
    %2173 = vset.pattern.permute.xlu0 1
    %2174 = vperm.xlu0 %2173, %v1365
    %v2175 = vpop.permute.xlu0 %2174
    %v2178 = vunpack.c.l.s4 839922192
    %v2179 = vunpack.c.0.s8 %v2178
    %v2180 = vlaneseq
    %v2181 = vshrl.u32 %v2180, 7
    %v2182 = vsub.s32 %v2179, %v2181
    %v2183 = vrot.slane %v2175, %v2182
    %2184 = vset.pattern.permute.xlu0 1
    %2185 = vperm.xlu0 %2184, %v1366
    %v2186 = vpop.permute.xlu0 %2185
    %v2189 = vunpack.c.l.s4 839922192
    %v2190 = vunpack.c.0.s8 %v2189
    %v2191 = vlaneseq
    %v2192 = vshrl.u32 %v2191, 7
    %v2193 = vsub.s32 %v2190, %v2192
    %v2194 = vrot.slane %v2186, %v2193
    %2195 = vset.pattern.permute.xlu0 1
    %2196 = vperm.xlu0 %2195, %v1367
    %v2197 = vpop.permute.xlu0 %2196
    %v2200 = vunpack.c.l.s4 839922192
    %v2201 = vunpack.c.0.s8 %v2200
    %v2202 = vlaneseq
    %v2203 = vshrl.u32 %v2202, 7
    %v2204 = vsub.s32 %v2201, %v2203
    %v2205 = vrot.slane %v2197, %v2204
    %2206 = vset.pattern.permute.xlu0 1
    %2207 = vperm.xlu0 %2206, %v1368
    %v2208 = vpop.permute.xlu0 %2207
    %v2211 = vunpack.c.l.s4 839922192
    %v2212 = vunpack.c.0.s8 %v2211
    %v2213 = vlaneseq
    %v2214 = vshrl.u32 %v2213, 7
    %v2215 = vsub.s32 %v2212, %v2214
    %v2216 = vrot.slane %v2208, %v2215
    %2217 = vset.pattern.permute.xlu0 1
    %2218 = vperm.xlu0 %2217, %v1369
    %v2219 = vpop.permute.xlu0 %2218
    %v2222 = vunpack.c.l.s4 839922192
    %v2223 = vunpack.c.0.s8 %v2222
    %v2224 = vlaneseq
    %v2225 = vshrl.u32 %v2224, 7
    %v2226 = vsub.s32 %v2223, %v2225
    %v2227 = vrot.slane %v2219, %v2226
    %2228 = vset.pattern.permute.xlu0 1
    %2229 = vperm.xlu0 %2228, %v1370
    %v2230 = vpop.permute.xlu0 %2229
    %v2233 = vunpack.c.l.s4 839922192
    %v2234 = vunpack.c.0.s8 %v2233
    %v2235 = vlaneseq
    %v2236 = vshrl.u32 %v2235, 7
    %v2237 = vsub.s32 %v2234, %v2236
    %v2238 = vrot.slane %v2230, %v2237
    %2239 = vset.pattern.permute.xlu0 1
    %2240 = vperm.xlu0 %2239, %v1371
    %v2241 = vpop.permute.xlu0 %2240
    %v2244 = vunpack.c.l.s4 839922192
    %v2245 = vunpack.c.0.s8 %v2244
    %v2246 = vlaneseq
    %v2247 = vshrl.u32 %v2246, 7
    %v2248 = vsub.s32 %v2245, %v2247
    %v2249 = vrot.slane %v2241, %v2248
    %2250 = vset.pattern.permute.xlu0 1
    %2251 = vperm.xlu0 %2250, %v1372
    %v2252 = vpop.permute.xlu0 %2251
    %v2255 = vunpack.c.l.s4 839922192
    %v2256 = vunpack.c.0.s8 %v2255
    %v2257 = vlaneseq
    %v2258 = vshrl.u32 %v2257, 7
    %v2259 = vsub.s32 %v2256, %v2258
    %v2260 = vrot.slane %v2252, %v2259
    %2261 = vset.pattern.permute.xlu0 1
    %2262 = vperm.xlu0 %2261, %v1373
    %v2263 = vpop.permute.xlu0 %2262
    %v2266 = vunpack.c.l.s4 839922192
    %v2267 = vunpack.c.0.s8 %v2266
    %v2268 = vlaneseq
    %v2269 = vshrl.u32 %v2268, 7
    %v2270 = vsub.s32 %v2267, %v2269
    %v2271 = vrot.slane %v2263, %v2270
    %2272 = vset.pattern.permute.xlu0 1
    %2273 = vperm.xlu0 %2272, %v1374
    %v2274 = vpop.permute.xlu0 %2273
    %v2277 = vunpack.c.l.s4 839922192
    %v2278 = vunpack.c.0.s8 %v2277
    %v2279 = vlaneseq
    %v2280 = vshrl.u32 %v2279, 7
    %v2281 = vsub.s32 %v2278, %v2280
    %v2282 = vrot.slane %v2274, %v2281
    %2283 = vset.pattern.permute.xlu0 1
    %2284 = vperm.xlu0 %2283, %v1375
    %v2285 = vpop.permute.xlu0 %2284
    %v2288 = vunpack.c.l.s4 839922192
    %v2289 = vunpack.c.0.s8 %v2288
    %v2290 = vlaneseq
    %v2291 = vshrl.u32 %v2290, 7
    %v2292 = vsub.s32 %v2289, %v2291
    %v2293 = vrot.slane %v2285, %v2292
    %2294 = vset.pattern.permute.xlu0 1
    %2295 = vperm.xlu0 %2294, %v1376
    %v2296 = vpop.permute.xlu0 %2295
    %v2299 = vunpack.c.l.s4 839922192
    %v2300 = vunpack.c.0.s8 %v2299
    %v2301 = vlaneseq
    %v2302 = vshrl.u32 %v2301, 7
    %v2303 = vsub.s32 %v2300, %v2302
    %v2304 = vrot.slane %v2296, %v2303
    %2305 = vset.pattern.permute.xlu0 1
    %2306 = vperm.xlu0 %2305, %v1377
    %v2307 = vpop.permute.xlu0 %2306
    %v2310 = vunpack.c.l.s4 839922192
    %v2311 = vunpack.c.0.s8 %v2310
    %v2312 = vlaneseq
    %v2313 = vshrl.u32 %v2312, 7
    %v2314 = vsub.s32 %v2311, %v2313
    %v2315 = vrot.slane %v2307, %v2314
    %2316 = vset.pattern.permute.xlu0 1
    %2317 = vperm.xlu0 %2316, %v1378
    %v2318 = vpop.permute.xlu0 %2317
    %v2321 = vunpack.c.l.s4 839922192
    %v2322 = vunpack.c.0.s8 %v2321
    %v2323 = vlaneseq
    %v2324 = vshrl.u32 %v2323, 7
    %v2325 = vsub.s32 %v2322, %v2324
    %v2326 = vrot.slane %v2318, %v2325
    %2327 = vset.pattern.permute.xlu0 1
    %2328 = vperm.xlu0 %2327, %v1379
    %v2329 = vpop.permute.xlu0 %2328
    %v2332 = vunpack.c.l.s4 839922192
    %v2333 = vunpack.c.0.s8 %v2332
    %v2334 = vlaneseq
    %v2335 = vshrl.u32 %v2334, 7
    %v2336 = vsub.s32 %v2333, %v2335
    %v2337 = vrot.slane %v2329, %v2336
    %2338 = vset.pattern.permute.xlu0 1
    %2339 = vperm.xlu0 %2338, %v1380
    %v2340 = vpop.permute.xlu0 %2339
    %v2343 = vunpack.c.l.s4 839922192
    %v2344 = vunpack.c.0.s8 %v2343
    %v2345 = vlaneseq
    %v2346 = vshrl.u32 %v2345, 7
    %v2347 = vsub.s32 %v2344, %v2346
    %v2348 = vrot.slane %v2340, %v2347
    %2349 = vset.pattern.permute.xlu0 1
    %2350 = vperm.xlu0 %2349, %v1381
    %v2351 = vpop.permute.xlu0 %2350
    %v2354 = vunpack.c.l.s4 839922192
    %v2355 = vunpack.c.0.s8 %v2354
    %v2356 = vlaneseq
    %v2357 = vshrl.u32 %v2356, 7
    %v2358 = vsub.s32 %v2355, %v2357
    %v2359 = vrot.slane %v2351, %v2358
    %2360 = vset.pattern.permute.xlu0 1
    %2361 = vperm.xlu0 %2360, %v1382
    %v2362 = vpop.permute.xlu0 %2361
    %v2365 = vunpack.c.l.s4 839922192
    %v2366 = vunpack.c.0.s8 %v2365
    %v2367 = vlaneseq
    %v2368 = vshrl.u32 %v2367, 7
    %v2369 = vsub.s32 %v2366, %v2368
    %v2370 = vrot.slane %v2362, %v2369
    %2371 = vset.pattern.permute.xlu0 1
    %2372 = vperm.xlu0 %2371, %v1383
    %v2373 = vpop.permute.xlu0 %2372
    %v2376 = vunpack.c.l.s4 839922192
    %v2377 = vunpack.c.0.s8 %v2376
    %v2378 = vlaneseq
    %v2379 = vshrl.u32 %v2378, 7
    %v2380 = vsub.s32 %v2377, %v2379
    %v2381 = vrot.slane %v2373, %v2380
    %v2412 = vunpack.c.l.b16 %v2062
    %v2413 = vunpack.c.l.b16 %v2073
    %v2414 = vunpack.c.l.b16 %v2084
    %v2415 = vunpack.c.l.b16 %v2095
    %v2416 = vunpack.c.l.b16 %v2106
    %v2417 = vunpack.c.l.b16 %v2117
    %v2418 = vunpack.c.l.b16 %v2128
    %v2419 = vunpack.c.l.b16 %v2139
    %v2420 = vunpack.c.l.b16 %v2150
    %v2421 = vunpack.c.l.b16 %v2161
    %v2422 = vunpack.c.l.b16 %v2172
    %v2423 = vunpack.c.l.b16 %v2183
    %v2424 = vunpack.c.l.b16 %v2194
    %v2425 = vunpack.c.l.b16 %v2205
    %v2426 = vunpack.c.l.b16 %v2216
    %v2427 = vunpack.c.l.b16 %v2227
    %v2428 = vunpack.c.l.b16 %v2238
    %v2429 = vunpack.c.l.b16 %v2249
    %v2430 = vunpack.c.l.b16 %v2260
    %v2431 = vunpack.c.l.b16 %v2271
    %v2432 = vunpack.c.l.b16 %v2282
    %v2433 = vunpack.c.l.b16 %v2293
    %v2434 = vunpack.c.l.b16 %v2304
    %v2435 = vunpack.c.l.b16 %v2315
    %v2436 = vunpack.c.l.b16 %v2326
    %v2437 = vunpack.c.l.b16 %v2337
    %v2438 = vunpack.c.l.b16 %v2348
    %v2439 = vunpack.c.l.b16 %v2359
    %v2440 = vunpack.c.l.b16 %v2370
    %v2441 = vunpack.c.l.b16 %v2381
    %v2442 = vpack.c.b16 %v2413, %v2412
    %v2443 = vpack.c.b16 %v2415, %v2414
    %v2444 = vpack.c.b16 %v2417, %v2416
    %v2445 = vpack.c.b16 %v2419, %v2418
    %v2446 = vpack.c.b16 %v2421, %v2420
    %v2447 = vpack.c.b16 %v2423, %v2422
    %v2448 = vpack.c.b16 %v2425, %v2424
    %v2449 = vpack.c.b16 %v2427, %v2426
    %v2450 = vpack.c.b16 %v2429, %v2428
    %v2451 = vpack.c.b16 %v2431, %v2430
    %v2452 = vpack.c.b16 %v2433, %v2432
    %v2453 = vpack.c.b16 %v2435, %v2434
    %v2454 = vpack.c.b16 %v2437, %v2436
    %v2455 = vpack.c.b16 %v2439, %v2438
    %v2456 = vpack.c.b16 %v2441, %v2440
    %v2472 = vmul.bf16 %v1993, %v2442
    %v2473 = vmul.bf16 %v2050, %v2443
    %v2474 = vmul.bf16 %v2010, %v2444
    %v2475 = vmul.bf16 %v2012, %v2445
    %v2476 = vmul.bf16 %v2014, %v2446
    %v2477 = vmul.bf16 %v2016, %v2447
    %v2478 = vmul.bf16 %v2018, %v2448
    %v2479 = vmul.bf16 %v2020, %v2449
    %v2480 = vmul.bf16 %v2022, %v2450
    %v2481 = vmul.bf16 %v2024, %v2451
    %v2482 = vmul.bf16 %v2026, %v2452
    %v2483 = vmul.bf16 %v2028, %v2453
    %v2484 = vmul.bf16 %v2030, %v2454
    %v2485 = vmul.bf16 %v2032, %v2455
    %v2486 = vmul.bf16 %v2033, %v2456
    %vm2487 = vsmask.f32 6400
    %v2488 = vrot.slane %v1386, 1
    %v2489 = vrot.slane %v1388, 2
    %v2490 = vor.u32 %v2488, %v2489
    %v2491 = vrot.slane %v1397, 1
    %v2492 = vrot.slane %v1393, 2
    %v2493 = vor.u32 %v2491, %v2492
    %v2494 = vsel %vm2487, %v2490, %v2493
    %v2497 = vrot.slane %v1406, 1
    %v2498 = vrot.slane %v1403, 2
    %v2499 = vor.u32 %v2497, %v2498
    %v2500 = vrot.slane %v1414, 1
    %v2501 = vrot.slane %v1410, 2
    %v2502 = vor.u32 %v2500, %v2501
    %v2503 = vsel %vm2487, %v2499, %v2502
    %v2504 = vrot.slane %v1422, 1
    %v2505 = vrot.slane %v1418, 2
    %v2506 = vor.u32 %v2504, %v2505
    %v2507 = vsel %vm2487, %v2502, %v2506
    %v2508 = vrot.slane %v1430, 1
    %v2509 = vrot.slane %v1426, 2
    %v2510 = vor.u32 %v2508, %v2509
    %v2511 = vsel %vm2487, %v2506, %v2510
    %v2512 = vrot.slane %v1438, 1
    %v2513 = vrot.slane %v1434, 2
    %v2514 = vor.u32 %v2512, %v2513
    %v2515 = vsel %vm2487, %v2510, %v2514
    %v2516 = vrot.slane %v1446, 1
    %v2517 = vrot.slane %v1442, 2
    %v2518 = vor.u32 %v2516, %v2517
    %v2519 = vsel %vm2487, %v2514, %v2518
    %v2520 = vrot.slane %v1454, 1
    %v2521 = vrot.slane %v1450, 2
    %v2522 = vor.u32 %v2520, %v2521
    %v2523 = vsel %vm2487, %v2518, %v2522
    %v2524 = vrot.slane %v1462, 1
    %v2525 = vrot.slane %v1458, 2
    %v2526 = vor.u32 %v2524, %v2525
    %v2527 = vsel %vm2487, %v2522, %v2526
    %v2528 = vrot.slane %v1470, 1
    %v2529 = vrot.slane %v1466, 2
    %v2530 = vor.u32 %v2528, %v2529
    %v2531 = vsel %vm2487, %v2526, %v2530
    %v2532 = vrot.slane %v1478, 1
    %v2533 = vrot.slane %v1474, 2
    %v2534 = vor.u32 %v2532, %v2533
    %v2535 = vsel %vm2487, %v2530, %v2534
    %v2536 = vrot.slane %v1486, 1
    %v2537 = vrot.slane %v1482, 2
    %v2538 = vor.u32 %v2536, %v2537
    %v2539 = vsel %vm2487, %v2534, %v2538
    %v2540 = vrot.slane %v1494, 1
    %v2541 = vrot.slane %v1490, 2
    %v2542 = vor.u32 %v2540, %v2541
    %v2543 = vsel %vm2487, %v2538, %v2542
    %v2544 = vrot.slane %v1502, 1
    %v2545 = vrot.slane %v1498, 2
    %v2546 = vor.u32 %v2544, %v2545
    %v2547 = vsel %vm2487, %v2542, %v2546
    %v2548 = vsel %vm2487, %v2546, %v2490
    %vm2563 = vmand %vm1990, %vm2487
    %v2564 = vsel %vm2563, %v2493, %v2499
    %2565 = vset.pattern.permute.xlu0 2
    %2566 = vperm.xlu0 %2565, %v1354
    %v2567 = vpop.permute.xlu0 %2566
    %v2570 = vunpack.c.l.s4 839922192
    %v2571 = vunpack.c.0.s8 %v2570
    %v2572 = vlaneseq
    %v2573 = vshrl.u32 %v2572, 7
    %v2574 = vsub.s32 %v2571, %v2573
    %v2575 = vrot.slane %v2567, %v2574
    %2576 = vset.pattern.permute.xlu0 2
    %2577 = vperm.xlu0 %2576, %v1355
    %v2578 = vpop.permute.xlu0 %2577
    %v2581 = vunpack.c.l.s4 839922192
    %v2582 = vunpack.c.0.s8 %v2581
    %v2583 = vlaneseq
    %v2584 = vshrl.u32 %v2583, 7
    %v2585 = vsub.s32 %v2582, %v2584
    %v2586 = vrot.slane %v2578, %v2585
    %2587 = vset.pattern.permute.xlu0 2
    %2588 = vperm.xlu0 %2587, %v1356
    %v2589 = vpop.permute.xlu0 %2588
    %v2592 = vunpack.c.l.s4 839922192
    %v2593 = vunpack.c.0.s8 %v2592
    %v2594 = vlaneseq
    %v2595 = vshrl.u32 %v2594, 7
    %v2596 = vsub.s32 %v2593, %v2595
    %v2597 = vrot.slane %v2589, %v2596
    %2598 = vset.pattern.permute.xlu0 2
    %2599 = vperm.xlu0 %2598, %v1357
    %v2600 = vpop.permute.xlu0 %2599
    %v2603 = vunpack.c.l.s4 839922192
    %v2604 = vunpack.c.0.s8 %v2603
    %v2605 = vlaneseq
    %v2606 = vshrl.u32 %v2605, 7
    %v2607 = vsub.s32 %v2604, %v2606
    %v2608 = vrot.slane %v2600, %v2607
    %2609 = vset.pattern.permute.xlu0 2
    %2610 = vperm.xlu0 %2609, %v1358
    %v2611 = vpop.permute.xlu0 %2610
    %v2614 = vunpack.c.l.s4 839922192
    %v2615 = vunpack.c.0.s8 %v2614
    %v2616 = vlaneseq
    %v2617 = vshrl.u32 %v2616, 7
    %v2618 = vsub.s32 %v2615, %v2617
    %v2619 = vrot.slane %v2611, %v2618
    %2620 = vset.pattern.permute.xlu0 2
    %2621 = vperm.xlu0 %2620, %v1359
    %v2622 = vpop.permute.xlu0 %2621
    %v2625 = vunpack.c.l.s4 839922192
    %v2626 = vunpack.c.0.s8 %v2625
    %v2627 = vlaneseq
    %v2628 = vshrl.u32 %v2627, 7
    %v2629 = vsub.s32 %v2626, %v2628
    %v2630 = vrot.slane %v2622, %v2629
    %2631 = vset.pattern.permute.xlu0 2
    %2632 = vperm.xlu0 %2631, %v1360
    %v2633 = vpop.permute.xlu0 %2632
    %v2636 = vunpack.c.l.s4 839922192
    %v2637 = vunpack.c.0.s8 %v2636
    %v2638 = vlaneseq
    %v2639 = vshrl.u32 %v2638, 7
    %v2640 = vsub.s32 %v2637, %v2639
    %v2641 = vrot.slane %v2633, %v2640
    %2642 = vset.pattern.permute.xlu0 2
    %2643 = vperm.xlu0 %2642, %v1361
    %v2644 = vpop.permute.xlu0 %2643
    %v2647 = vunpack.c.l.s4 839922192
    %v2648 = vunpack.c.0.s8 %v2647
    %v2649 = vlaneseq
    %v2650 = vshrl.u32 %v2649, 7
    %v2651 = vsub.s32 %v2648, %v2650
    %v2652 = vrot.slane %v2644, %v2651
    %2653 = vset.pattern.permute.xlu0 2
    %2654 = vperm.xlu0 %2653, %v1362
    %v2655 = vpop.permute.xlu0 %2654
    %v2658 = vunpack.c.l.s4 839922192
    %v2659 = vunpack.c.0.s8 %v2658
    %v2660 = vlaneseq
    %v2661 = vshrl.u32 %v2660, 7
    %v2662 = vsub.s32 %v2659, %v2661
    %v2663 = vrot.slane %v2655, %v2662
    %2664 = vset.pattern.permute.xlu0 2
    %2665 = vperm.xlu0 %2664, %v1363
    %v2666 = vpop.permute.xlu0 %2665
    %v2669 = vunpack.c.l.s4 839922192
    %v2670 = vunpack.c.0.s8 %v2669
    %v2671 = vlaneseq
    %v2672 = vshrl.u32 %v2671, 7
    %v2673 = vsub.s32 %v2670, %v2672
    %v2674 = vrot.slane %v2666, %v2673
    %2675 = vset.pattern.permute.xlu0 2
    %2676 = vperm.xlu0 %2675, %v1364
    %v2677 = vpop.permute.xlu0 %2676
    %v2680 = vunpack.c.l.s4 839922192
    %v2681 = vunpack.c.0.s8 %v2680
    %v2682 = vlaneseq
    %v2683 = vshrl.u32 %v2682, 7
    %v2684 = vsub.s32 %v2681, %v2683
    %v2685 = vrot.slane %v2677, %v2684
    %2686 = vset.pattern.permute.xlu0 2
    %2687 = vperm.xlu0 %2686, %v1365
    %v2688 = vpop.permute.xlu0 %2687
    %v2691 = vunpack.c.l.s4 839922192
    %v2692 = vunpack.c.0.s8 %v2691
    %v2693 = vlaneseq
    %v2694 = vshrl.u32 %v2693, 7
    %v2695 = vsub.s32 %v2692, %v2694
    %v2696 = vrot.slane %v2688, %v2695
    %2697 = vset.pattern.permute.xlu0 2
    %2698 = vperm.xlu0 %2697, %v1366
    %v2699 = vpop.permute.xlu0 %2698
    %v2702 = vunpack.c.l.s4 839922192
    %v2703 = vunpack.c.0.s8 %v2702
    %v2704 = vlaneseq
    %v2705 = vshrl.u32 %v2704, 7
    %v2706 = vsub.s32 %v2703, %v2705
    %v2707 = vrot.slane %v2699, %v2706
    %2708 = vset.pattern.permute.xlu0 2
    %2709 = vperm.xlu0 %2708, %v1367
    %v2710 = vpop.permute.xlu0 %2709
    %v2713 = vunpack.c.l.s4 839922192
    %v2714 = vunpack.c.0.s8 %v2713
    %v2715 = vlaneseq
    %v2716 = vshrl.u32 %v2715, 7
    %v2717 = vsub.s32 %v2714, %v2716
    %v2718 = vrot.slane %v2710, %v2717
    %2719 = vset.pattern.permute.xlu0 2
    %2720 = vperm.xlu0 %2719, %v1368
    %v2721 = vpop.permute.xlu0 %2720
    %v2724 = vunpack.c.l.s4 839922192
    %v2725 = vunpack.c.0.s8 %v2724
    %v2726 = vlaneseq
    %v2727 = vshrl.u32 %v2726, 7
    %v2728 = vsub.s32 %v2725, %v2727
    %v2729 = vrot.slane %v2721, %v2728
    %2730 = vset.pattern.permute.xlu0 2
    %2731 = vperm.xlu0 %2730, %v1369
    %v2732 = vpop.permute.xlu0 %2731
    %v2735 = vunpack.c.l.s4 839922192
    %v2736 = vunpack.c.0.s8 %v2735
    %v2737 = vlaneseq
    %v2738 = vshrl.u32 %v2737, 7
    %v2739 = vsub.s32 %v2736, %v2738
    %v2740 = vrot.slane %v2732, %v2739
    %2741 = vset.pattern.permute.xlu0 2
    %2742 = vperm.xlu0 %2741, %v1370
    %v2743 = vpop.permute.xlu0 %2742
    %v2746 = vunpack.c.l.s4 839922192
    %v2747 = vunpack.c.0.s8 %v2746
    %v2748 = vlaneseq
    %v2749 = vshrl.u32 %v2748, 7
    %v2750 = vsub.s32 %v2747, %v2749
    %v2751 = vrot.slane %v2743, %v2750
    %2752 = vset.pattern.permute.xlu0 2
    %2753 = vperm.xlu0 %2752, %v1371
    %v2754 = vpop.permute.xlu0 %2753
    %v2757 = vunpack.c.l.s4 839922192
    %v2758 = vunpack.c.0.s8 %v2757
    %v2759 = vlaneseq
    %v2760 = vshrl.u32 %v2759, 7
    %v2761 = vsub.s32 %v2758, %v2760
    %v2762 = vrot.slane %v2754, %v2761
    %2763 = vset.pattern.permute.xlu0 2
    %2764 = vperm.xlu0 %2763, %v1372
    %v2765 = vpop.permute.xlu0 %2764
    %v2768 = vunpack.c.l.s4 839922192
    %v2769 = vunpack.c.0.s8 %v2768
    %v2770 = vlaneseq
    %v2771 = vshrl.u32 %v2770, 7
    %v2772 = vsub.s32 %v2769, %v2771
    %v2773 = vrot.slane %v2765, %v2772
    %2774 = vset.pattern.permute.xlu0 2
    %2775 = vperm.xlu0 %2774, %v1373
    %v2776 = vpop.permute.xlu0 %2775
    %v2779 = vunpack.c.l.s4 839922192
    %v2780 = vunpack.c.0.s8 %v2779
    %v2781 = vlaneseq
    %v2782 = vshrl.u32 %v2781, 7
    %v2783 = vsub.s32 %v2780, %v2782
    %v2784 = vrot.slane %v2776, %v2783
    %2785 = vset.pattern.permute.xlu0 2
    %2786 = vperm.xlu0 %2785, %v1374
    %v2787 = vpop.permute.xlu0 %2786
    %v2790 = vunpack.c.l.s4 839922192
    %v2791 = vunpack.c.0.s8 %v2790
    %v2792 = vlaneseq
    %v2793 = vshrl.u32 %v2792, 7
    %v2794 = vsub.s32 %v2791, %v2793
    %v2795 = vrot.slane %v2787, %v2794
    %2796 = vset.pattern.permute.xlu0 2
    %2797 = vperm.xlu0 %2796, %v1375
    %v2798 = vpop.permute.xlu0 %2797
    %v2801 = vunpack.c.l.s4 839922192
    %v2802 = vunpack.c.0.s8 %v2801
    %v2803 = vlaneseq
    %v2804 = vshrl.u32 %v2803, 7
    %v2805 = vsub.s32 %v2802, %v2804
    %v2806 = vrot.slane %v2798, %v2805
    %2807 = vset.pattern.permute.xlu0 2
    %2808 = vperm.xlu0 %2807, %v1376
    %v2809 = vpop.permute.xlu0 %2808
    %v2812 = vunpack.c.l.s4 839922192
    %v2813 = vunpack.c.0.s8 %v2812
    %v2814 = vlaneseq
    %v2815 = vshrl.u32 %v2814, 7
    %v2816 = vsub.s32 %v2813, %v2815
    %v2817 = vrot.slane %v2809, %v2816
    %2818 = vset.pattern.permute.xlu0 2
    %2819 = vperm.xlu0 %2818, %v1377
    %v2820 = vpop.permute.xlu0 %2819
    %v2823 = vunpack.c.l.s4 839922192
    %v2824 = vunpack.c.0.s8 %v2823
    %v2825 = vlaneseq
    %v2826 = vshrl.u32 %v2825, 7
    %v2827 = vsub.s32 %v2824, %v2826
    %v2828 = vrot.slane %v2820, %v2827
    %2829 = vset.pattern.permute.xlu0 2
    %2830 = vperm.xlu0 %2829, %v1378
    %v2831 = vpop.permute.xlu0 %2830
    %v2834 = vunpack.c.l.s4 839922192
    %v2835 = vunpack.c.0.s8 %v2834
    %v2836 = vlaneseq
    %v2837 = vshrl.u32 %v2836, 7
    %v2838 = vsub.s32 %v2835, %v2837
    %v2839 = vrot.slane %v2831, %v2838
    %2840 = vset.pattern.permute.xlu0 2
    %2841 = vperm.xlu0 %2840, %v1379
    %v2842 = vpop.permute.xlu0 %2841
    %v2845 = vunpack.c.l.s4 839922192
    %v2846 = vunpack.c.0.s8 %v2845
    %v2847 = vlaneseq
    %v2848 = vshrl.u32 %v2847, 7
    %v2849 = vsub.s32 %v2846, %v2848
    %v2850 = vrot.slane %v2842, %v2849
    %2851 = vset.pattern.permute.xlu0 2
    %2852 = vperm.xlu0 %2851, %v1380
    %v2853 = vpop.permute.xlu0 %2852
    %v2856 = vunpack.c.l.s4 839922192
    %v2857 = vunpack.c.0.s8 %v2856
    %v2858 = vlaneseq
    %v2859 = vshrl.u32 %v2858, 7
    %v2860 = vsub.s32 %v2857, %v2859
    %v2861 = vrot.slane %v2853, %v2860
    %2862 = vset.pattern.permute.xlu0 2
    %2863 = vperm.xlu0 %2862, %v1381
    %v2864 = vpop.permute.xlu0 %2863
    %v2867 = vunpack.c.l.s4 839922192
    %v2868 = vunpack.c.0.s8 %v2867
    %v2869 = vlaneseq
    %v2870 = vshrl.u32 %v2869, 7
    %v2871 = vsub.s32 %v2868, %v2870
    %v2872 = vrot.slane %v2864, %v2871
    %2873 = vset.pattern.permute.xlu0 2
    %2874 = vperm.xlu0 %2873, %v1382
    %v2875 = vpop.permute.xlu0 %2874
    %v2878 = vunpack.c.l.s4 839922192
    %v2879 = vunpack.c.0.s8 %v2878
    %v2880 = vlaneseq
    %v2881 = vshrl.u32 %v2880, 7
    %v2882 = vsub.s32 %v2879, %v2881
    %v2883 = vrot.slane %v2875, %v2882
    %2884 = vset.pattern.permute.xlu0 2
    %2885 = vperm.xlu0 %2884, %v1383
    %v2886 = vpop.permute.xlu0 %2885
    %v2889 = vunpack.c.l.s4 839922192
    %v2890 = vunpack.c.0.s8 %v2889
    %v2891 = vlaneseq
    %v2892 = vshrl.u32 %v2891, 7
    %v2893 = vsub.s32 %v2890, %v2892
    %v2894 = vrot.slane %v2886, %v2893
    %v2925 = vunpack.c.l.b16 %v2575
    %v2926 = vunpack.c.l.b16 %v2586
    %v2927 = vunpack.c.l.b16 %v2597
    %v2928 = vunpack.c.l.b16 %v2608
    %v2929 = vunpack.c.l.b16 %v2619
    %v2930 = vunpack.c.l.b16 %v2630
    %v2931 = vunpack.c.l.b16 %v2641
    %v2932 = vunpack.c.l.b16 %v2652
    %v2933 = vunpack.c.l.b16 %v2663
    %v2934 = vunpack.c.l.b16 %v2674
    %v2935 = vunpack.c.l.b16 %v2685
    %v2936 = vunpack.c.l.b16 %v2696
    %v2937 = vunpack.c.l.b16 %v2707
    %v2938 = vunpack.c.l.b16 %v2718
    %v2939 = vunpack.c.l.b16 %v2729
    %v2940 = vunpack.c.l.b16 %v2740
    %v2941 = vunpack.c.l.b16 %v2751
    %v2942 = vunpack.c.l.b16 %v2762
    %v2943 = vunpack.c.l.b16 %v2773
    %v2944 = vunpack.c.l.b16 %v2784
    %v2945 = vunpack.c.l.b16 %v2795
    %v2946 = vunpack.c.l.b16 %v2806
    %v2947 = vunpack.c.l.b16 %v2817
    %v2948 = vunpack.c.l.b16 %v2828
    %v2949 = vunpack.c.l.b16 %v2839
    %v2950 = vunpack.c.l.b16 %v2850
    %v2951 = vunpack.c.l.b16 %v2861
    %v2952 = vunpack.c.l.b16 %v2872
    %v2953 = vunpack.c.l.b16 %v2883
    %v2954 = vunpack.c.l.b16 %v2894
    %v2955 = vpack.c.b16 %v2926, %v2925
    %v2956 = vpack.c.b16 %v2928, %v2927
    %v2957 = vpack.c.b16 %v2930, %v2929
    %v2958 = vpack.c.b16 %v2932, %v2931
    %v2959 = vpack.c.b16 %v2934, %v2933
    %v2960 = vpack.c.b16 %v2936, %v2935
    %v2961 = vpack.c.b16 %v2938, %v2937
    %v2962 = vpack.c.b16 %v2940, %v2939
    %v2963 = vpack.c.b16 %v2942, %v2941
    %v2964 = vpack.c.b16 %v2944, %v2943
    %v2965 = vpack.c.b16 %v2946, %v2945
    %v2966 = vpack.c.b16 %v2948, %v2947
    %v2967 = vpack.c.b16 %v2950, %v2949
    %v2968 = vpack.c.b16 %v2952, %v2951
    %v2969 = vpack.c.b16 %v2954, %v2953
    %v2985 = vmul.bf16 %v2494, %v2955
    %v2986 = vmul.bf16 %v2564, %v2956
    %v2987 = vmul.bf16 %v2503, %v2957
    %v2988 = vmul.bf16 %v2507, %v2958
    %v2989 = vmul.bf16 %v2511, %v2959
    %v2990 = vmul.bf16 %v2515, %v2960
    %v2991 = vmul.bf16 %v2519, %v2961
    %v2992 = vmul.bf16 %v2523, %v2962
    %v2993 = vmul.bf16 %v2527, %v2963
    %v2994 = vmul.bf16 %v2531, %v2964
    %v2995 = vmul.bf16 %v2535, %v2965
    %v2996 = vmul.bf16 %v2539, %v2966
    %v2997 = vmul.bf16 %v2543, %v2967
    %v2998 = vmul.bf16 %v2547, %v2968
    %v2999 = vmul.bf16 %v2548, %v2969
    %v3000 = vrot.slane %v1397, 7
    %vm3002 = vsmask.f32 256
    %v3003 = vrot.slane %v1406, 7
    %v3004 = vor.u32 %v3003, %v1403
    %v3005 = vrot.slane %v1414, 7
    %v3006 = vor.u32 %v3005, %v1410
    %v3007 = vsel %vm3002, %v3003, %v3006
    %v3008 = vrot.slane %v1422, 7
    %v3009 = vor.u32 %v3008, %v1418
    %v3010 = vsel %vm3002, %v3005, %v3009
    %v3011 = vrot.slane %v1430, 7
    %v3012 = vor.u32 %v3011, %v1426
    %v3013 = vsel %vm3002, %v3008, %v3012
    %v3014 = vrot.slane %v1438, 7
    %v3015 = vor.u32 %v3014, %v1434
    %v3016 = vsel %vm3002, %v3011, %v3015
    %v3017 = vrot.slane %v1446, 7
    %v3018 = vor.u32 %v3017, %v1442
    %v3019 = vsel %vm3002, %v3014, %v3018
    %v3020 = vrot.slane %v1454, 7
    %v3021 = vor.u32 %v3020, %v1450
    %v3022 = vsel %vm3002, %v3017, %v3021
    %v3023 = vrot.slane %v1462, 7
    %v3024 = vor.u32 %v3023, %v1458
    %v3025 = vsel %vm3002, %v3020, %v3024
    %v3026 = vrot.slane %v1470, 7
    %v3027 = vor.u32 %v3026, %v1466
    %v3028 = vsel %vm3002, %v3023, %v3027
    %v3029 = vrot.slane %v1478, 7
    %v3030 = vor.u32 %v3029, %v1474
    %v3031 = vsel %vm3002, %v3026, %v3030
    %v3032 = vrot.slane %v1486, 7
    %v3033 = vor.u32 %v3032, %v1482
    %v3034 = vsel %vm3002, %v3029, %v3033
    %v3035 = vrot.slane %v1494, 7
    %v3036 = vor.u32 %v3035, %v1490
    %v3037 = vsel %vm3002, %v3032, %v3036
    %v3038 = vrot.slane %v1502, 7
    %v3039 = vor.u32 %v3038, %v1498
    %v3040 = vsel %vm3002, %v3035, %v3039
    %v3041 = vrot.slane %v1386, 7
    %v3042 = vor.u32 %v3041, %v1388
    %v3043 = vsel %vm3002, %v3038, %v3042
    %v3044 = vor.u32 %v3000, %v1393
    %v3045 = vsel %vm3002, %v3041, %v3044
    %vm3061 = vcmask 1040384
    %vm3062 = vmand %vm3061, %vm3002
    %v3063 = vsel %vm3062, %v3000, %v3004
    %3064 = vset.pattern.permute.xlu0 3
    %3065 = vperm.xlu0 %3064, %v1354
    %v3066 = vpop.permute.xlu0 %3065
    %v3069 = vunpack.c.l.s4 839922192
    %v3070 = vunpack.c.0.s8 %v3069
    %v3071 = vlaneseq
    %v3072 = vshrl.u32 %v3071, 7
    %v3073 = vsub.s32 %v3070, %v3072
    %v3074 = vrot.slane %v3066, %v3073
    %3075 = vset.pattern.permute.xlu0 3
    %3076 = vperm.xlu0 %3075, %v1355
    %v3077 = vpop.permute.xlu0 %3076
    %v3080 = vunpack.c.l.s4 839922192
    %v3081 = vunpack.c.0.s8 %v3080
    %v3082 = vlaneseq
    %v3083 = vshrl.u32 %v3082, 7
    %v3084 = vsub.s32 %v3081, %v3083
    %v3085 = vrot.slane %v3077, %v3084
    %3086 = vset.pattern.permute.xlu0 3
    %3087 = vperm.xlu0 %3086, %v1356
    %v3088 = vpop.permute.xlu0 %3087
    %v3091 = vunpack.c.l.s4 839922192
    %v3092 = vunpack.c.0.s8 %v3091
    %v3093 = vlaneseq
    %v3094 = vshrl.u32 %v3093, 7
    %v3095 = vsub.s32 %v3092, %v3094
    %v3096 = vrot.slane %v3088, %v3095
    %3097 = vset.pattern.permute.xlu0 3
    %3098 = vperm.xlu0 %3097, %v1357
    %v3099 = vpop.permute.xlu0 %3098
    %v3102 = vunpack.c.l.s4 839922192
    %v3103 = vunpack.c.0.s8 %v3102
    %v3104 = vlaneseq
    %v3105 = vshrl.u32 %v3104, 7
    %v3106 = vsub.s32 %v3103, %v3105
    %v3107 = vrot.slane %v3099, %v3106
    %3108 = vset.pattern.permute.xlu0 3
    %3109 = vperm.xlu0 %3108, %v1358
    %v3110 = vpop.permute.xlu0 %3109
    %v3113 = vunpack.c.l.s4 839922192
    %v3114 = vunpack.c.0.s8 %v3113
    %v3115 = vlaneseq
    %v3116 = vshrl.u32 %v3115, 7
    %v3117 = vsub.s32 %v3114, %v3116
    %v3118 = vrot.slane %v3110, %v3117
    %3119 = vset.pattern.permute.xlu0 3
    %3120 = vperm.xlu0 %3119, %v1359
    %v3121 = vpop.permute.xlu0 %3120
    %v3124 = vunpack.c.l.s4 839922192
    %v3125 = vunpack.c.0.s8 %v3124
    %v3126 = vlaneseq
    %v3127 = vshrl.u32 %v3126, 7
    %v3128 = vsub.s32 %v3125, %v3127
    %v3129 = vrot.slane %v3121, %v3128
    %3130 = vset.pattern.permute.xlu0 3
    %3131 = vperm.xlu0 %3130, %v1360
    %v3132 = vpop.permute.xlu0 %3131
    %v3135 = vunpack.c.l.s4 839922192
    %v3136 = vunpack.c.0.s8 %v3135
    %v3137 = vlaneseq
    %v3138 = vshrl.u32 %v3137, 7
    %v3139 = vsub.s32 %v3136, %v3138
    %v3140 = vrot.slane %v3132, %v3139
    %3141 = vset.pattern.permute.xlu0 3
    %3142 = vperm.xlu0 %3141, %v1361
    %v3143 = vpop.permute.xlu0 %3142
    %v3146 = vunpack.c.l.s4 839922192
    %v3147 = vunpack.c.0.s8 %v3146
    %v3148 = vlaneseq
    %v3149 = vshrl.u32 %v3148, 7
    %v3150 = vsub.s32 %v3147, %v3149
    %v3151 = vrot.slane %v3143, %v3150
    %3152 = vset.pattern.permute.xlu0 3
    %3153 = vperm.xlu0 %3152, %v1362
    %v3154 = vpop.permute.xlu0 %3153
    %v3157 = vunpack.c.l.s4 839922192
    %v3158 = vunpack.c.0.s8 %v3157
    %v3159 = vlaneseq
    %v3160 = vshrl.u32 %v3159, 7
    %v3161 = vsub.s32 %v3158, %v3160
    %v3162 = vrot.slane %v3154, %v3161
    %3163 = vset.pattern.permute.xlu0 3
    %3164 = vperm.xlu0 %3163, %v1363
    %v3165 = vpop.permute.xlu0 %3164
    %v3168 = vunpack.c.l.s4 839922192
    %v3169 = vunpack.c.0.s8 %v3168
    %v3170 = vlaneseq
    %v3171 = vshrl.u32 %v3170, 7
    %v3172 = vsub.s32 %v3169, %v3171
    %v3173 = vrot.slane %v3165, %v3172
    %3174 = vset.pattern.permute.xlu0 3
    %3175 = vperm.xlu0 %3174, %v1364
    %v3176 = vpop.permute.xlu0 %3175
    %v3179 = vunpack.c.l.s4 839922192
    %v3180 = vunpack.c.0.s8 %v3179
    %v3181 = vlaneseq
    %v3182 = vshrl.u32 %v3181, 7
    %v3183 = vsub.s32 %v3180, %v3182
    %v3184 = vrot.slane %v3176, %v3183
    %3185 = vset.pattern.permute.xlu0 3
    %3186 = vperm.xlu0 %3185, %v1365
    %v3187 = vpop.permute.xlu0 %3186
    %v3190 = vunpack.c.l.s4 839922192
    %v3191 = vunpack.c.0.s8 %v3190
    %v3192 = vlaneseq
    %v3193 = vshrl.u32 %v3192, 7
    %v3194 = vsub.s32 %v3191, %v3193
    %v3195 = vrot.slane %v3187, %v3194
    %3196 = vset.pattern.permute.xlu0 3
    %3197 = vperm.xlu0 %3196, %v1366
    %v3198 = vpop.permute.xlu0 %3197
    %v3201 = vunpack.c.l.s4 839922192
    %v3202 = vunpack.c.0.s8 %v3201
    %v3203 = vlaneseq
    %v3204 = vshrl.u32 %v3203, 7
    %v3205 = vsub.s32 %v3202, %v3204
    %v3206 = vrot.slane %v3198, %v3205
    %3207 = vset.pattern.permute.xlu0 3
    %3208 = vperm.xlu0 %3207, %v1367
    %v3209 = vpop.permute.xlu0 %3208
    %v3212 = vunpack.c.l.s4 839922192
    %v3213 = vunpack.c.0.s8 %v3212
    %v3214 = vlaneseq
    %v3215 = vshrl.u32 %v3214, 7
    %v3216 = vsub.s32 %v3213, %v3215
    %v3217 = vrot.slane %v3209, %v3216
    %3218 = vset.pattern.permute.xlu0 3
    %3219 = vperm.xlu0 %3218, %v1368
    %v3220 = vpop.permute.xlu0 %3219
    %v3223 = vunpack.c.l.s4 839922192
    %v3224 = vunpack.c.0.s8 %v3223
    %v3225 = vlaneseq
    %v3226 = vshrl.u32 %v3225, 7
    %v3227 = vsub.s32 %v3224, %v3226
    %v3228 = vrot.slane %v3220, %v3227
    %3229 = vset.pattern.permute.xlu0 3
    %3230 = vperm.xlu0 %3229, %v1369
    %v3231 = vpop.permute.xlu0 %3230
    %v3234 = vunpack.c.l.s4 839922192
    %v3235 = vunpack.c.0.s8 %v3234
    %v3236 = vlaneseq
    %v3237 = vshrl.u32 %v3236, 7
    %v3238 = vsub.s32 %v3235, %v3237
    %v3239 = vrot.slane %v3231, %v3238
    %3240 = vset.pattern.permute.xlu0 3
    %3241 = vperm.xlu0 %3240, %v1370
    %v3242 = vpop.permute.xlu0 %3241
    %v3245 = vunpack.c.l.s4 839922192
    %v3246 = vunpack.c.0.s8 %v3245
    %v3247 = vlaneseq
    %v3248 = vshrl.u32 %v3247, 7
    %v3249 = vsub.s32 %v3246, %v3248
    %v3250 = vrot.slane %v3242, %v3249
    %3251 = vset.pattern.permute.xlu0 3
    %3252 = vperm.xlu0 %3251, %v1371
    %v3253 = vpop.permute.xlu0 %3252
    %v3256 = vunpack.c.l.s4 839922192
    %v3257 = vunpack.c.0.s8 %v3256
    %v3258 = vlaneseq
    %v3259 = vshrl.u32 %v3258, 7
    %v3260 = vsub.s32 %v3257, %v3259
    %v3261 = vrot.slane %v3253, %v3260
    %3262 = vset.pattern.permute.xlu0 3
    %3263 = vperm.xlu0 %3262, %v1372
    %v3264 = vpop.permute.xlu0 %3263
    %v3267 = vunpack.c.l.s4 839922192
    %v3268 = vunpack.c.0.s8 %v3267
    %v3269 = vlaneseq
    %v3270 = vshrl.u32 %v3269, 7
    %v3271 = vsub.s32 %v3268, %v3270
    %v3272 = vrot.slane %v3264, %v3271
    %3273 = vset.pattern.permute.xlu0 3
    %3274 = vperm.xlu0 %3273, %v1373
    %v3275 = vpop.permute.xlu0 %3274
    %v3278 = vunpack.c.l.s4 839922192
    %v3279 = vunpack.c.0.s8 %v3278
    %v3280 = vlaneseq
    %v3281 = vshrl.u32 %v3280, 7
    %v3282 = vsub.s32 %v3279, %v3281
    %v3283 = vrot.slane %v3275, %v3282
    %3284 = vset.pattern.permute.xlu0 3
    %3285 = vperm.xlu0 %3284, %v1374
    %v3286 = vpop.permute.xlu0 %3285
    %v3289 = vunpack.c.l.s4 839922192
    %v3290 = vunpack.c.0.s8 %v3289
    %v3291 = vlaneseq
    %v3292 = vshrl.u32 %v3291, 7
    %v3293 = vsub.s32 %v3290, %v3292
    %v3294 = vrot.slane %v3286, %v3293
    %3295 = vset.pattern.permute.xlu0 3
    %3296 = vperm.xlu0 %3295, %v1375
    %v3297 = vpop.permute.xlu0 %3296
    %v3300 = vunpack.c.l.s4 839922192
    %v3301 = vunpack.c.0.s8 %v3300
    %v3302 = vlaneseq
    %v3303 = vshrl.u32 %v3302, 7
    %v3304 = vsub.s32 %v3301, %v3303
    %v3305 = vrot.slane %v3297, %v3304
    %3306 = vset.pattern.permute.xlu0 3
    %3307 = vperm.xlu0 %3306, %v1376
    %v3308 = vpop.permute.xlu0 %3307
    %v3311 = vunpack.c.l.s4 839922192
    %v3312 = vunpack.c.0.s8 %v3311
    %v3313 = vlaneseq
    %v3314 = vshrl.u32 %v3313, 7
    %v3315 = vsub.s32 %v3312, %v3314
    %v3316 = vrot.slane %v3308, %v3315
    %3317 = vset.pattern.permute.xlu0 3
    %3318 = vperm.xlu0 %3317, %v1377
    %v3319 = vpop.permute.xlu0 %3318
    %v3322 = vunpack.c.l.s4 839922192
    %v3323 = vunpack.c.0.s8 %v3322
    %v3324 = vlaneseq
    %v3325 = vshrl.u32 %v3324, 7
    %v3326 = vsub.s32 %v3323, %v3325
    %v3327 = vrot.slane %v3319, %v3326
    %3328 = vset.pattern.permute.xlu0 3
    %3329 = vperm.xlu0 %3328, %v1378
    %v3330 = vpop.permute.xlu0 %3329
    %v3333 = vunpack.c.l.s4 839922192
    %v3334 = vunpack.c.0.s8 %v3333
    %v3335 = vlaneseq
    %v3336 = vshrl.u32 %v3335, 7
    %v3337 = vsub.s32 %v3334, %v3336
    %v3338 = vrot.slane %v3330, %v3337
    %3339 = vset.pattern.permute.xlu0 3
    %3340 = vperm.xlu0 %3339, %v1379
    %v3341 = vpop.permute.xlu0 %3340
    %v3344 = vunpack.c.l.s4 839922192
    %v3345 = vunpack.c.0.s8 %v3344
    %v3346 = vlaneseq
    %v3347 = vshrl.u32 %v3346, 7
    %v3348 = vsub.s32 %v3345, %v3347
    %v3349 = vrot.slane %v3341, %v3348
    %3350 = vset.pattern.permute.xlu0 3
    %3351 = vperm.xlu0 %3350, %v1380
    %v3352 = vpop.permute.xlu0 %3351
    %v3355 = vunpack.c.l.s4 839922192
    %v3356 = vunpack.c.0.s8 %v3355
    %v3357 = vlaneseq
    %v3358 = vshrl.u32 %v3357, 7
    %v3359 = vsub.s32 %v3356, %v3358
    %v3360 = vrot.slane %v3352, %v3359
    %3361 = vset.pattern.permute.xlu0 3
    %3362 = vperm.xlu0 %3361, %v1381
    %v3363 = vpop.permute.xlu0 %3362
    %v3366 = vunpack.c.l.s4 839922192
    %v3367 = vunpack.c.0.s8 %v3366
    %v3368 = vlaneseq
    %v3369 = vshrl.u32 %v3368, 7
    %v3370 = vsub.s32 %v3367, %v3369
    %v3371 = vrot.slane %v3363, %v3370
    %3372 = vset.pattern.permute.xlu0 3
    %3373 = vperm.xlu0 %3372, %v1382
    %v3374 = vpop.permute.xlu0 %3373
    %v3377 = vunpack.c.l.s4 839922192
    %v3378 = vunpack.c.0.s8 %v3377
    %v3379 = vlaneseq
    %v3380 = vshrl.u32 %v3379, 7
    %v3381 = vsub.s32 %v3378, %v3380
    %v3382 = vrot.slane %v3374, %v3381
    %3383 = vset.pattern.permute.xlu0 3
    %3384 = vperm.xlu0 %3383, %v1383
    %v3385 = vpop.permute.xlu0 %3384
    %v3388 = vunpack.c.l.s4 839922192
    %v3389 = vunpack.c.0.s8 %v3388
    %v3390 = vlaneseq
    %v3391 = vshrl.u32 %v3390, 7
    %v3392 = vsub.s32 %v3389, %v3391
    %v3393 = vrot.slane %v3385, %v3392
    %v3424 = vunpack.c.l.b16 %v3074
    %v3425 = vunpack.c.l.b16 %v3085
    %v3426 = vunpack.c.l.b16 %v3096
    %v3427 = vunpack.c.l.b16 %v3107
    %v3428 = vunpack.c.l.b16 %v3118
    %v3429 = vunpack.c.l.b16 %v3129
    %v3430 = vunpack.c.l.b16 %v3140
    %v3431 = vunpack.c.l.b16 %v3151
    %v3432 = vunpack.c.l.b16 %v3162
    %v3433 = vunpack.c.l.b16 %v3173
    %v3434 = vunpack.c.l.b16 %v3184
    %v3435 = vunpack.c.l.b16 %v3195
    %v3436 = vunpack.c.l.b16 %v3206
    %v3437 = vunpack.c.l.b16 %v3217
    %v3438 = vunpack.c.l.b16 %v3228
    %v3439 = vunpack.c.l.b16 %v3239
    %v3440 = vunpack.c.l.b16 %v3250
    %v3441 = vunpack.c.l.b16 %v3261
    %v3442 = vunpack.c.l.b16 %v3272
    %v3443 = vunpack.c.l.b16 %v3283
    %v3444 = vunpack.c.l.b16 %v3294
    %v3445 = vunpack.c.l.b16 %v3305
    %v3446 = vunpack.c.l.b16 %v3316
    %v3447 = vunpack.c.l.b16 %v3327
    %v3448 = vunpack.c.l.b16 %v3338
    %v3449 = vunpack.c.l.b16 %v3349
    %v3450 = vunpack.c.l.b16 %v3360
    %v3451 = vunpack.c.l.b16 %v3371
    %v3452 = vunpack.c.l.b16 %v3382
    %v3453 = vunpack.c.l.b16 %v3393
    %v3454 = vpack.c.b16 %v3425, %v3424
    %v3455 = vpack.c.b16 %v3427, %v3426
    %v3456 = vpack.c.b16 %v3429, %v3428
    %v3457 = vpack.c.b16 %v3431, %v3430
    %v3458 = vpack.c.b16 %v3433, %v3432
    %v3459 = vpack.c.b16 %v3435, %v3434
    %v3460 = vpack.c.b16 %v3437, %v3436
    %v3461 = vpack.c.b16 %v3439, %v3438
    %v3462 = vpack.c.b16 %v3441, %v3440
    %v3463 = vpack.c.b16 %v3443, %v3442
    %v3464 = vpack.c.b16 %v3445, %v3444
    %v3465 = vpack.c.b16 %v3447, %v3446
    %v3466 = vpack.c.b16 %v3449, %v3448
    %v3467 = vpack.c.b16 %v3451, %v3450
    %v3468 = vpack.c.b16 %v3453, %v3452
    %v3484 = vmul.bf16 %v3063, %v3454
    %v3485 = vmul.bf16 %v3007, %v3455
    %v3486 = vmul.bf16 %v3010, %v3456
    %v3487 = vmul.bf16 %v3013, %v3457
    %v3488 = vmul.bf16 %v3016, %v3458
    %v3489 = vmul.bf16 %v3019, %v3459
    %v3490 = vmul.bf16 %v3022, %v3460
    %v3491 = vmul.bf16 %v3025, %v3461
    %v3492 = vmul.bf16 %v3028, %v3462
    %v3493 = vmul.bf16 %v3031, %v3463
    %v3494 = vmul.bf16 %v3034, %v3464
    %v3495 = vmul.bf16 %v3037, %v3465
    %v3496 = vmul.bf16 %v3040, %v3466
    %v3497 = vmul.bf16 %v3043, %v3467
    %v3498 = vmul.bf16 %v3045, %v3468
    %3499 = vset.pattern.permute.xlu0 4
    %3500 = vperm.xlu0 %3499, %v1354
    %v3501 = vpop.permute.xlu0 %3500
    %v3504 = vunpack.c.l.s4 839922192
    %v3505 = vunpack.c.0.s8 %v3504
    %v3506 = vlaneseq
    %v3507 = vshrl.u32 %v3506, 7
    %v3508 = vsub.s32 %v3505, %v3507
    %v3509 = vrot.slane %v3501, %v3508
    %3510 = vset.pattern.permute.xlu0 4
    %3511 = vperm.xlu0 %3510, %v1355
    %v3512 = vpop.permute.xlu0 %3511
    %v3515 = vunpack.c.l.s4 839922192
    %v3516 = vunpack.c.0.s8 %v3515
    %v3517 = vlaneseq
    %v3518 = vshrl.u32 %v3517, 7
    %v3519 = vsub.s32 %v3516, %v3518
    %v3520 = vrot.slane %v3512, %v3519
    %3521 = vset.pattern.permute.xlu0 4
    %3522 = vperm.xlu0 %3521, %v1356
    %v3523 = vpop.permute.xlu0 %3522
    %v3526 = vunpack.c.l.s4 839922192
    %v3527 = vunpack.c.0.s8 %v3526
    %v3528 = vlaneseq
    %v3529 = vshrl.u32 %v3528, 7
    %v3530 = vsub.s32 %v3527, %v3529
    %v3531 = vrot.slane %v3523, %v3530
    %3532 = vset.pattern.permute.xlu0 4
    %3533 = vperm.xlu0 %3532, %v1357
    %v3534 = vpop.permute.xlu0 %3533
    %v3537 = vunpack.c.l.s4 839922192
    %v3538 = vunpack.c.0.s8 %v3537
    %v3539 = vlaneseq
    %v3540 = vshrl.u32 %v3539, 7
    %v3541 = vsub.s32 %v3538, %v3540
    %v3542 = vrot.slane %v3534, %v3541
    %3543 = vset.pattern.permute.xlu0 4
    %3544 = vperm.xlu0 %3543, %v1358
    %v3545 = vpop.permute.xlu0 %3544
    %v3548 = vunpack.c.l.s4 839922192
    %v3549 = vunpack.c.0.s8 %v3548
    %v3550 = vlaneseq
    %v3551 = vshrl.u32 %v3550, 7
    %v3552 = vsub.s32 %v3549, %v3551
    %v3553 = vrot.slane %v3545, %v3552
    %3554 = vset.pattern.permute.xlu0 4
    %3555 = vperm.xlu0 %3554, %v1359
    %v3556 = vpop.permute.xlu0 %3555
    %v3559 = vunpack.c.l.s4 839922192
    %v3560 = vunpack.c.0.s8 %v3559
    %v3561 = vlaneseq
    %v3562 = vshrl.u32 %v3561, 7
    %v3563 = vsub.s32 %v3560, %v3562
    %v3564 = vrot.slane %v3556, %v3563
    %3565 = vset.pattern.permute.xlu0 4
    %3566 = vperm.xlu0 %3565, %v1360
    %v3567 = vpop.permute.xlu0 %3566
    %v3570 = vunpack.c.l.s4 839922192
    %v3571 = vunpack.c.0.s8 %v3570
    %v3572 = vlaneseq
    %v3573 = vshrl.u32 %v3572, 7
    %v3574 = vsub.s32 %v3571, %v3573
    %v3575 = vrot.slane %v3567, %v3574
    %3576 = vset.pattern.permute.xlu0 4
    %3577 = vperm.xlu0 %3576, %v1361
    %v3578 = vpop.permute.xlu0 %3577
    %v3581 = vunpack.c.l.s4 839922192
    %v3582 = vunpack.c.0.s8 %v3581
    %v3583 = vlaneseq
    %v3584 = vshrl.u32 %v3583, 7
    %v3585 = vsub.s32 %v3582, %v3584
    %v3586 = vrot.slane %v3578, %v3585
    %3587 = vset.pattern.permute.xlu0 4
    %3588 = vperm.xlu0 %3587, %v1362
    %v3589 = vpop.permute.xlu0 %3588
    %v3592 = vunpack.c.l.s4 839922192
    %v3593 = vunpack.c.0.s8 %v3592
    %v3594 = vlaneseq
    %v3595 = vshrl.u32 %v3594, 7
    %v3596 = vsub.s32 %v3593, %v3595
    %v3597 = vrot.slane %v3589, %v3596
    %3598 = vset.pattern.permute.xlu0 4
    %3599 = vperm.xlu0 %3598, %v1363
    %v3600 = vpop.permute.xlu0 %3599
    %v3603 = vunpack.c.l.s4 839922192
    %v3604 = vunpack.c.0.s8 %v3603
    %v3605 = vlaneseq
    %v3606 = vshrl.u32 %v3605, 7
    %v3607 = vsub.s32 %v3604, %v3606
    %v3608 = vrot.slane %v3600, %v3607
    %3609 = vset.pattern.permute.xlu0 4
    %3610 = vperm.xlu0 %3609, %v1364
    %v3611 = vpop.permute.xlu0 %3610
    %v3614 = vunpack.c.l.s4 839922192
    %v3615 = vunpack.c.0.s8 %v3614
    %v3616 = vlaneseq
    %v3617 = vshrl.u32 %v3616, 7
    %v3618 = vsub.s32 %v3615, %v3617
    %v3619 = vrot.slane %v3611, %v3618
    %3620 = vset.pattern.permute.xlu0 4
    %3621 = vperm.xlu0 %3620, %v1365
    %v3622 = vpop.permute.xlu0 %3621
    %v3625 = vunpack.c.l.s4 839922192
    %v3626 = vunpack.c.0.s8 %v3625
    %v3627 = vlaneseq
    %v3628 = vshrl.u32 %v3627, 7
    %v3629 = vsub.s32 %v3626, %v3628
    %v3630 = vrot.slane %v3622, %v3629
    %3631 = vset.pattern.permute.xlu0 4
    %3632 = vperm.xlu0 %3631, %v1366
    %v3633 = vpop.permute.xlu0 %3632
    %v3636 = vunpack.c.l.s4 839922192
    %v3637 = vunpack.c.0.s8 %v3636
    %v3638 = vlaneseq
    %v3639 = vshrl.u32 %v3638, 7
    %v3640 = vsub.s32 %v3637, %v3639
    %v3641 = vrot.slane %v3633, %v3640
    %3642 = vset.pattern.permute.xlu0 4
    %3643 = vperm.xlu0 %3642, %v1367
    %v3644 = vpop.permute.xlu0 %3643
    %v3647 = vunpack.c.l.s4 839922192
    %v3648 = vunpack.c.0.s8 %v3647
    %v3649 = vlaneseq
    %v3650 = vshrl.u32 %v3649, 7
    %v3651 = vsub.s32 %v3648, %v3650
    %v3652 = vrot.slane %v3644, %v3651
    %3653 = vset.pattern.permute.xlu0 4
    %3654 = vperm.xlu0 %3653, %v1368
    %v3655 = vpop.permute.xlu0 %3654
    %v3658 = vunpack.c.l.s4 839922192
    %v3659 = vunpack.c.0.s8 %v3658
    %v3660 = vlaneseq
    %v3661 = vshrl.u32 %v3660, 7
    %v3662 = vsub.s32 %v3659, %v3661
    %v3663 = vrot.slane %v3655, %v3662
    %3664 = vset.pattern.permute.xlu0 4
    %3665 = vperm.xlu0 %3664, %v1369
    %v3666 = vpop.permute.xlu0 %3665
    %v3669 = vunpack.c.l.s4 839922192
    %v3670 = vunpack.c.0.s8 %v3669
    %v3671 = vlaneseq
    %v3672 = vshrl.u32 %v3671, 7
    %v3673 = vsub.s32 %v3670, %v3672
    %v3674 = vrot.slane %v3666, %v3673
    %3675 = vset.pattern.permute.xlu0 4
    %3676 = vperm.xlu0 %3675, %v1370
    %v3677 = vpop.permute.xlu0 %3676
    %v3680 = vunpack.c.l.s4 839922192
    %v3681 = vunpack.c.0.s8 %v3680
    %v3682 = vlaneseq
    %v3683 = vshrl.u32 %v3682, 7
    %v3684 = vsub.s32 %v3681, %v3683
    %v3685 = vrot.slane %v3677, %v3684
    %3686 = vset.pattern.permute.xlu0 4
    %3687 = vperm.xlu0 %3686, %v1371
    %v3688 = vpop.permute.xlu0 %3687
    %v3691 = vunpack.c.l.s4 839922192
    %v3692 = vunpack.c.0.s8 %v3691
    %v3693 = vlaneseq
    %v3694 = vshrl.u32 %v3693, 7
    %v3695 = vsub.s32 %v3692, %v3694
    %v3696 = vrot.slane %v3688, %v3695
    %3697 = vset.pattern.permute.xlu0 4
    %3698 = vperm.xlu0 %3697, %v1372
    %v3699 = vpop.permute.xlu0 %3698
    %v3702 = vunpack.c.l.s4 839922192
    %v3703 = vunpack.c.0.s8 %v3702
    %v3704 = vlaneseq
    %v3705 = vshrl.u32 %v3704, 7
    %v3706 = vsub.s32 %v3703, %v3705
    %v3707 = vrot.slane %v3699, %v3706
    %3708 = vset.pattern.permute.xlu0 4
    %3709 = vperm.xlu0 %3708, %v1373
    %v3710 = vpop.permute.xlu0 %3709
    %v3713 = vunpack.c.l.s4 839922192
    %v3714 = vunpack.c.0.s8 %v3713
    %v3715 = vlaneseq
    %v3716 = vshrl.u32 %v3715, 7
    %v3717 = vsub.s32 %v3714, %v3716
    %v3718 = vrot.slane %v3710, %v3717
    %3719 = vset.pattern.permute.xlu0 4
    %3720 = vperm.xlu0 %3719, %v1374
    %v3721 = vpop.permute.xlu0 %3720
    %v3724 = vunpack.c.l.s4 839922192
    %v3725 = vunpack.c.0.s8 %v3724
    %v3726 = vlaneseq
    %v3727 = vshrl.u32 %v3726, 7
    %v3728 = vsub.s32 %v3725, %v3727
    %v3729 = vrot.slane %v3721, %v3728
    %3730 = vset.pattern.permute.xlu0 4
    %3731 = vperm.xlu0 %3730, %v1375
    %v3732 = vpop.permute.xlu0 %3731
    %v3735 = vunpack.c.l.s4 839922192
    %v3736 = vunpack.c.0.s8 %v3735
    %v3737 = vlaneseq
    %v3738 = vshrl.u32 %v3737, 7
    %v3739 = vsub.s32 %v3736, %v3738
    %v3740 = vrot.slane %v3732, %v3739
    %3741 = vset.pattern.permute.xlu0 4
    %3742 = vperm.xlu0 %3741, %v1376
    %v3743 = vpop.permute.xlu0 %3742
    %v3746 = vunpack.c.l.s4 839922192
    %v3747 = vunpack.c.0.s8 %v3746
    %v3748 = vlaneseq
    %v3749 = vshrl.u32 %v3748, 7
    %v3750 = vsub.s32 %v3747, %v3749
    %v3751 = vrot.slane %v3743, %v3750
    %3752 = vset.pattern.permute.xlu0 4
    %3753 = vperm.xlu0 %3752, %v1377
    %v3754 = vpop.permute.xlu0 %3753
    %v3757 = vunpack.c.l.s4 839922192
    %v3758 = vunpack.c.0.s8 %v3757
    %v3759 = vlaneseq
    %v3760 = vshrl.u32 %v3759, 7
    %v3761 = vsub.s32 %v3758, %v3760
    %v3762 = vrot.slane %v3754, %v3761
    %3763 = vset.pattern.permute.xlu0 4
    %3764 = vperm.xlu0 %3763, %v1378
    %v3765 = vpop.permute.xlu0 %3764
    %v3768 = vunpack.c.l.s4 839922192
    %v3769 = vunpack.c.0.s8 %v3768
    %v3770 = vlaneseq
    %v3771 = vshrl.u32 %v3770, 7
    %v3772 = vsub.s32 %v3769, %v3771
    %v3773 = vrot.slane %v3765, %v3772
    %3774 = vset.pattern.permute.xlu0 4
    %3775 = vperm.xlu0 %3774, %v1379
    %v3776 = vpop.permute.xlu0 %3775
    %v3779 = vunpack.c.l.s4 839922192
    %v3780 = vunpack.c.0.s8 %v3779
    %v3781 = vlaneseq
    %v3782 = vshrl.u32 %v3781, 7
    %v3783 = vsub.s32 %v3780, %v3782
    %v3784 = vrot.slane %v3776, %v3783
    %3785 = vset.pattern.permute.xlu0 4
    %3786 = vperm.xlu0 %3785, %v1380
    %v3787 = vpop.permute.xlu0 %3786
    %v3790 = vunpack.c.l.s4 839922192
    %v3791 = vunpack.c.0.s8 %v3790
    %v3792 = vlaneseq
    %v3793 = vshrl.u32 %v3792, 7
    %v3794 = vsub.s32 %v3791, %v3793
    %v3795 = vrot.slane %v3787, %v3794
    %3796 = vset.pattern.permute.xlu0 4
    %3797 = vperm.xlu0 %3796, %v1381
    %v3798 = vpop.permute.xlu0 %3797
    %v3801 = vunpack.c.l.s4 839922192
    %v3802 = vunpack.c.0.s8 %v3801
    %v3803 = vlaneseq
    %v3804 = vshrl.u32 %v3803, 7
    %v3805 = vsub.s32 %v3802, %v3804
    %v3806 = vrot.slane %v3798, %v3805
    %3807 = vset.pattern.permute.xlu0 4
    %3808 = vperm.xlu0 %3807, %v1382
    %v3809 = vpop.permute.xlu0 %3808
    %v3812 = vunpack.c.l.s4 839922192
    %v3813 = vunpack.c.0.s8 %v3812
    %v3814 = vlaneseq
    %v3815 = vshrl.u32 %v3814, 7
    %v3816 = vsub.s32 %v3813, %v3815
    %v3817 = vrot.slane %v3809, %v3816
    %3818 = vset.pattern.permute.xlu0 4
    %3819 = vperm.xlu0 %3818, %v1383
    %v3820 = vpop.permute.xlu0 %3819
    %v3823 = vunpack.c.l.s4 839922192
    %v3824 = vunpack.c.0.s8 %v3823
    %v3825 = vlaneseq
    %v3826 = vshrl.u32 %v3825, 7
    %v3827 = vsub.s32 %v3824, %v3826
    %v3828 = vrot.slane %v3820, %v3827
    %v3859 = vunpack.c.l.b16 %v3509
    %v3860 = vunpack.c.l.b16 %v3520
    %v3861 = vunpack.c.l.b16 %v3531
    %v3862 = vunpack.c.l.b16 %v3542
    %v3863 = vunpack.c.l.b16 %v3553
    %v3864 = vunpack.c.l.b16 %v3564
    %v3865 = vunpack.c.l.b16 %v3575
    %v3866 = vunpack.c.l.b16 %v3586
    %v3867 = vunpack.c.l.b16 %v3597
    %v3868 = vunpack.c.l.b16 %v3608
    %v3869 = vunpack.c.l.b16 %v3619
    %v3870 = vunpack.c.l.b16 %v3630
    %v3871 = vunpack.c.l.b16 %v3641
    %v3872 = vunpack.c.l.b16 %v3652
    %v3873 = vunpack.c.l.b16 %v3663
    %v3874 = vunpack.c.l.b16 %v3674
    %v3875 = vunpack.c.l.b16 %v3685
    %v3876 = vunpack.c.l.b16 %v3696
    %v3877 = vunpack.c.l.b16 %v3707
    %v3878 = vunpack.c.l.b16 %v3718
    %v3879 = vunpack.c.l.b16 %v3729
    %v3880 = vunpack.c.l.b16 %v3740
    %v3881 = vunpack.c.l.b16 %v3751
    %v3882 = vunpack.c.l.b16 %v3762
    %v3883 = vunpack.c.l.b16 %v3773
    %v3884 = vunpack.c.l.b16 %v3784
    %v3885 = vunpack.c.l.b16 %v3795
    %v3886 = vunpack.c.l.b16 %v3806
    %v3887 = vunpack.c.l.b16 %v3817
    %v3888 = vunpack.c.l.b16 %v3828
    %v3889 = vpack.c.b16 %v3860, %v3859
    %v3890 = vpack.c.b16 %v3862, %v3861
    %v3891 = vpack.c.b16 %v3864, %v3863
    %v3892 = vpack.c.b16 %v3866, %v3865
    %v3893 = vpack.c.b16 %v3868, %v3867
    %v3894 = vpack.c.b16 %v3870, %v3869
    %v3895 = vpack.c.b16 %v3872, %v3871
    %v3896 = vpack.c.b16 %v3874, %v3873
    %v3897 = vpack.c.b16 %v3876, %v3875
    %v3898 = vpack.c.b16 %v3878, %v3877
    %v3899 = vpack.c.b16 %v3880, %v3879
    %v3900 = vpack.c.b16 %v3882, %v3881
    %v3901 = vpack.c.b16 %v3884, %v3883
    %v3902 = vpack.c.b16 %v3886, %v3885
    %v3903 = vpack.c.b16 %v3888, %v3887
    %v3919 = vmul.bf16 %v1339, %v3889
    %v3920 = vmul.bf16 %v1340, %v3890
    %v3921 = vmul.bf16 %v1341, %v3891
    %v3922 = vmul.bf16 %v1342, %v3892
    %v3923 = vmul.bf16 %v1343, %v3893
    %v3924 = vmul.bf16 %v1344, %v3894
    %v3925 = vmul.bf16 %v1345, %v3895
    %v3926 = vmul.bf16 %v1346, %v3896
    %v3927 = vmul.bf16 %v1347, %v3897
    %v3928 = vmul.bf16 %v1348, %v3898
    %v3929 = vmul.bf16 %v1349, %v3899
    %v3930 = vmul.bf16 %v1350, %v3900
    %v3931 = vmul.bf16 %v1351, %v3901
    %v3932 = vmul.bf16 %v1352, %v3902
    %v3933 = vmul.bf16 %v1353, %v3903
    %3934 = vset.pattern.permute.xlu0 5
    %3935 = vperm.xlu0 %3934, %v1354
    %v3936 = vpop.permute.xlu0 %3935
    %v3939 = vunpack.c.l.s4 839922192
    %v3940 = vunpack.c.0.s8 %v3939
    %v3941 = vlaneseq
    %v3942 = vshrl.u32 %v3941, 7
    %v3943 = vsub.s32 %v3940, %v3942
    %v3944 = vrot.slane %v3936, %v3943
    %3945 = vset.pattern.permute.xlu0 5
    %3946 = vperm.xlu0 %3945, %v1355
    %v3947 = vpop.permute.xlu0 %3946
    %v3950 = vunpack.c.l.s4 839922192
    %v3951 = vunpack.c.0.s8 %v3950
    %v3952 = vlaneseq
    %v3953 = vshrl.u32 %v3952, 7
    %v3954 = vsub.s32 %v3951, %v3953
    %v3955 = vrot.slane %v3947, %v3954
    %3956 = vset.pattern.permute.xlu0 5
    %3957 = vperm.xlu0 %3956, %v1356
    %v3958 = vpop.permute.xlu0 %3957
    %v3961 = vunpack.c.l.s4 839922192
    %v3962 = vunpack.c.0.s8 %v3961
    %v3963 = vlaneseq
    %v3964 = vshrl.u32 %v3963, 7
    %v3965 = vsub.s32 %v3962, %v3964
    %v3966 = vrot.slane %v3958, %v3965
    %3967 = vset.pattern.permute.xlu0 5
    %3968 = vperm.xlu0 %3967, %v1357
    %v3969 = vpop.permute.xlu0 %3968
    %v3972 = vunpack.c.l.s4 839922192
    %v3973 = vunpack.c.0.s8 %v3972
    %v3974 = vlaneseq
    %v3975 = vshrl.u32 %v3974, 7
    %v3976 = vsub.s32 %v3973, %v3975
    %v3977 = vrot.slane %v3969, %v3976
    %3978 = vset.pattern.permute.xlu0 5
    %3979 = vperm.xlu0 %3978, %v1358
    %v3980 = vpop.permute.xlu0 %3979
    %v3983 = vunpack.c.l.s4 839922192
    %v3984 = vunpack.c.0.s8 %v3983
    %v3985 = vlaneseq
    %v3986 = vshrl.u32 %v3985, 7
    %v3987 = vsub.s32 %v3984, %v3986
    %v3988 = vrot.slane %v3980, %v3987
    %3989 = vset.pattern.permute.xlu0 5
    %3990 = vperm.xlu0 %3989, %v1359
    %v3991 = vpop.permute.xlu0 %3990
    %v3994 = vunpack.c.l.s4 839922192
    %v3995 = vunpack.c.0.s8 %v3994
    %v3996 = vlaneseq
    %v3997 = vshrl.u32 %v3996, 7
    %v3998 = vsub.s32 %v3995, %v3997
    %v3999 = vrot.slane %v3991, %v3998
    %4000 = vset.pattern.permute.xlu0 5
    %4001 = vperm.xlu0 %4000, %v1360
    %v4002 = vpop.permute.xlu0 %4001
    %v4005 = vunpack.c.l.s4 839922192
    %v4006 = vunpack.c.0.s8 %v4005
    %v4007 = vlaneseq
    %v4008 = vshrl.u32 %v4007, 7
    %v4009 = vsub.s32 %v4006, %v4008
    %v4010 = vrot.slane %v4002, %v4009
    %4011 = vset.pattern.permute.xlu0 5
    %4012 = vperm.xlu0 %4011, %v1361
    %v4013 = vpop.permute.xlu0 %4012
    %v4016 = vunpack.c.l.s4 839922192
    %v4017 = vunpack.c.0.s8 %v4016
    %v4018 = vlaneseq
    %v4019 = vshrl.u32 %v4018, 7
    %v4020 = vsub.s32 %v4017, %v4019
    %v4021 = vrot.slane %v4013, %v4020
    %4022 = vset.pattern.permute.xlu0 5
    %4023 = vperm.xlu0 %4022, %v1362
    %v4024 = vpop.permute.xlu0 %4023
    %v4027 = vunpack.c.l.s4 839922192
    %v4028 = vunpack.c.0.s8 %v4027
    %v4029 = vlaneseq
    %v4030 = vshrl.u32 %v4029, 7
    %v4031 = vsub.s32 %v4028, %v4030
    %v4032 = vrot.slane %v4024, %v4031
    %4033 = vset.pattern.permute.xlu0 5
    %4034 = vperm.xlu0 %4033, %v1363
    %v4035 = vpop.permute.xlu0 %4034
    %v4038 = vunpack.c.l.s4 839922192
    %v4039 = vunpack.c.0.s8 %v4038
    %v4040 = vlaneseq
    %v4041 = vshrl.u32 %v4040, 7
    %v4042 = vsub.s32 %v4039, %v4041
    %v4043 = vrot.slane %v4035, %v4042
    %4044 = vset.pattern.permute.xlu0 5
    %4045 = vperm.xlu0 %4044, %v1364
    %v4046 = vpop.permute.xlu0 %4045
    %v4049 = vunpack.c.l.s4 839922192
    %v4050 = vunpack.c.0.s8 %v4049
    %v4051 = vlaneseq
    %v4052 = vshrl.u32 %v4051, 7
    %v4053 = vsub.s32 %v4050, %v4052
    %v4054 = vrot.slane %v4046, %v4053
    %4055 = vset.pattern.permute.xlu0 5
    %4056 = vperm.xlu0 %4055, %v1365
    %v4057 = vpop.permute.xlu0 %4056
    %v4060 = vunpack.c.l.s4 839922192
    %v4061 = vunpack.c.0.s8 %v4060
    %v4062 = vlaneseq
    %v4063 = vshrl.u32 %v4062, 7
    %v4064 = vsub.s32 %v4061, %v4063
    %v4065 = vrot.slane %v4057, %v4064
    %4066 = vset.pattern.permute.xlu0 5
    %4067 = vperm.xlu0 %4066, %v1366
    %v4068 = vpop.permute.xlu0 %4067
    %v4071 = vunpack.c.l.s4 839922192
    %v4072 = vunpack.c.0.s8 %v4071
    %v4073 = vlaneseq
    %v4074 = vshrl.u32 %v4073, 7
    %v4075 = vsub.s32 %v4072, %v4074
    %v4076 = vrot.slane %v4068, %v4075
    %4077 = vset.pattern.permute.xlu0 5
    %4078 = vperm.xlu0 %4077, %v1367
    %v4079 = vpop.permute.xlu0 %4078
    %v4082 = vunpack.c.l.s4 839922192
    %v4083 = vunpack.c.0.s8 %v4082
    %v4084 = vlaneseq
    %v4085 = vshrl.u32 %v4084, 7
    %v4086 = vsub.s32 %v4083, %v4085
    %v4087 = vrot.slane %v4079, %v4086
    %4088 = vset.pattern.permute.xlu0 5
    %4089 = vperm.xlu0 %4088, %v1368
    %v4090 = vpop.permute.xlu0 %4089
    %v4093 = vunpack.c.l.s4 839922192
    %v4094 = vunpack.c.0.s8 %v4093
    %v4095 = vlaneseq
    %v4096 = vshrl.u32 %v4095, 7
    %v4097 = vsub.s32 %v4094, %v4096
    %v4098 = vrot.slane %v4090, %v4097
    %4099 = vset.pattern.permute.xlu0 5
    %4100 = vperm.xlu0 %4099, %v1369
    %v4101 = vpop.permute.xlu0 %4100
    %v4104 = vunpack.c.l.s4 839922192
    %v4105 = vunpack.c.0.s8 %v4104
    %v4106 = vlaneseq
    %v4107 = vshrl.u32 %v4106, 7
    %v4108 = vsub.s32 %v4105, %v4107
    %v4109 = vrot.slane %v4101, %v4108
    %4110 = vset.pattern.permute.xlu0 5
    %4111 = vperm.xlu0 %4110, %v1370
    %v4112 = vpop.permute.xlu0 %4111
    %v4115 = vunpack.c.l.s4 839922192
    %v4116 = vunpack.c.0.s8 %v4115
    %v4117 = vlaneseq
    %v4118 = vshrl.u32 %v4117, 7
    %v4119 = vsub.s32 %v4116, %v4118
    %v4120 = vrot.slane %v4112, %v4119
    %4121 = vset.pattern.permute.xlu0 5
    %4122 = vperm.xlu0 %4121, %v1371
    %v4123 = vpop.permute.xlu0 %4122
    %v4126 = vunpack.c.l.s4 839922192
    %v4127 = vunpack.c.0.s8 %v4126
    %v4128 = vlaneseq
    %v4129 = vshrl.u32 %v4128, 7
    %v4130 = vsub.s32 %v4127, %v4129
    %v4131 = vrot.slane %v4123, %v4130
    %4132 = vset.pattern.permute.xlu0 5
    %4133 = vperm.xlu0 %4132, %v1372
    %v4134 = vpop.permute.xlu0 %4133
    %v4137 = vunpack.c.l.s4 839922192
    %v4138 = vunpack.c.0.s8 %v4137
    %v4139 = vlaneseq
    %v4140 = vshrl.u32 %v4139, 7
    %v4141 = vsub.s32 %v4138, %v4140
    %v4142 = vrot.slane %v4134, %v4141
    %4143 = vset.pattern.permute.xlu0 5
    %4144 = vperm.xlu0 %4143, %v1373
    %v4145 = vpop.permute.xlu0 %4144
    %v4148 = vunpack.c.l.s4 839922192
    %v4149 = vunpack.c.0.s8 %v4148
    %v4150 = vlaneseq
    %v4151 = vshrl.u32 %v4150, 7
    %v4152 = vsub.s32 %v4149, %v4151
    %v4153 = vrot.slane %v4145, %v4152
    %4154 = vset.pattern.permute.xlu0 5
    %4155 = vperm.xlu0 %4154, %v1374
    %v4156 = vpop.permute.xlu0 %4155
    %v4159 = vunpack.c.l.s4 839922192
    %v4160 = vunpack.c.0.s8 %v4159
    %v4161 = vlaneseq
    %v4162 = vshrl.u32 %v4161, 7
    %v4163 = vsub.s32 %v4160, %v4162
    %v4164 = vrot.slane %v4156, %v4163
    %4165 = vset.pattern.permute.xlu0 5
    %4166 = vperm.xlu0 %4165, %v1375
    %v4167 = vpop.permute.xlu0 %4166
    %v4170 = vunpack.c.l.s4 839922192
    %v4171 = vunpack.c.0.s8 %v4170
    %v4172 = vlaneseq
    %v4173 = vshrl.u32 %v4172, 7
    %v4174 = vsub.s32 %v4171, %v4173
    %v4175 = vrot.slane %v4167, %v4174
    %4176 = vset.pattern.permute.xlu0 5
    %4177 = vperm.xlu0 %4176, %v1376
    %v4178 = vpop.permute.xlu0 %4177
    %v4181 = vunpack.c.l.s4 839922192
    %v4182 = vunpack.c.0.s8 %v4181
    %v4183 = vlaneseq
    %v4184 = vshrl.u32 %v4183, 7
    %v4185 = vsub.s32 %v4182, %v4184
    %v4186 = vrot.slane %v4178, %v4185
    %4187 = vset.pattern.permute.xlu0 5
    %4188 = vperm.xlu0 %4187, %v1377
    %v4189 = vpop.permute.xlu0 %4188
    %v4192 = vunpack.c.l.s4 839922192
    %v4193 = vunpack.c.0.s8 %v4192
    %v4194 = vlaneseq
    %v4195 = vshrl.u32 %v4194, 7
    %v4196 = vsub.s32 %v4193, %v4195
    %v4197 = vrot.slane %v4189, %v4196
    %4198 = vset.pattern.permute.xlu0 5
    %4199 = vperm.xlu0 %4198, %v1378
    %v4200 = vpop.permute.xlu0 %4199
    %v4203 = vunpack.c.l.s4 839922192
    %v4204 = vunpack.c.0.s8 %v4203
    %v4205 = vlaneseq
    %v4206 = vshrl.u32 %v4205, 7
    %v4207 = vsub.s32 %v4204, %v4206
    %v4208 = vrot.slane %v4200, %v4207
    %4209 = vset.pattern.permute.xlu0 5
    %4210 = vperm.xlu0 %4209, %v1379
    %v4211 = vpop.permute.xlu0 %4210
    %v4214 = vunpack.c.l.s4 839922192
    %v4215 = vunpack.c.0.s8 %v4214
    %v4216 = vlaneseq
    %v4217 = vshrl.u32 %v4216, 7
    %v4218 = vsub.s32 %v4215, %v4217
    %v4219 = vrot.slane %v4211, %v4218
    %4220 = vset.pattern.permute.xlu0 5
    %4221 = vperm.xlu0 %4220, %v1380
    %v4222 = vpop.permute.xlu0 %4221
    %v4225 = vunpack.c.l.s4 839922192
    %v4226 = vunpack.c.0.s8 %v4225
    %v4227 = vlaneseq
    %v4228 = vshrl.u32 %v4227, 7
    %v4229 = vsub.s32 %v4226, %v4228
    %v4230 = vrot.slane %v4222, %v4229
    %4231 = vset.pattern.permute.xlu0 5
    %4232 = vperm.xlu0 %4231, %v1381
    %v4233 = vpop.permute.xlu0 %4232
    %v4236 = vunpack.c.l.s4 839922192
    %v4237 = vunpack.c.0.s8 %v4236
    %v4238 = vlaneseq
    %v4239 = vshrl.u32 %v4238, 7
    %v4240 = vsub.s32 %v4237, %v4239
    %v4241 = vrot.slane %v4233, %v4240
    %4242 = vset.pattern.permute.xlu0 5
    %4243 = vperm.xlu0 %4242, %v1382
    %v4244 = vpop.permute.xlu0 %4243
    %v4247 = vunpack.c.l.s4 839922192
    %v4248 = vunpack.c.0.s8 %v4247
    %v4249 = vlaneseq
    %v4250 = vshrl.u32 %v4249, 7
    %v4251 = vsub.s32 %v4248, %v4250
    %v4252 = vrot.slane %v4244, %v4251
    %4253 = vset.pattern.permute.xlu0 5
    %4254 = vperm.xlu0 %4253, %v1383
    %v4255 = vpop.permute.xlu0 %4254
    %v4258 = vunpack.c.l.s4 839922192
    %v4259 = vunpack.c.0.s8 %v4258
    %v4260 = vlaneseq
    %v4261 = vshrl.u32 %v4260, 7
    %v4262 = vsub.s32 %v4259, %v4261
    %v4263 = vrot.slane %v4255, %v4262
    %v4294 = vunpack.c.l.b16 %v3944
    %v4295 = vunpack.c.l.b16 %v3955
    %v4296 = vunpack.c.l.b16 %v3966
    %v4297 = vunpack.c.l.b16 %v3977
    %v4298 = vunpack.c.l.b16 %v3988
    %v4299 = vunpack.c.l.b16 %v3999
    %v4300 = vunpack.c.l.b16 %v4010
    %v4301 = vunpack.c.l.b16 %v4021
    %v4302 = vunpack.c.l.b16 %v4032
    %v4303 = vunpack.c.l.b16 %v4043
    %v4304 = vunpack.c.l.b16 %v4054
    %v4305 = vunpack.c.l.b16 %v4065
    %v4306 = vunpack.c.l.b16 %v4076
    %v4307 = vunpack.c.l.b16 %v4087
    %v4308 = vunpack.c.l.b16 %v4098
    %v4309 = vunpack.c.l.b16 %v4109
    %v4310 = vunpack.c.l.b16 %v4120
    %v4311 = vunpack.c.l.b16 %v4131
    %v4312 = vunpack.c.l.b16 %v4142
    %v4313 = vunpack.c.l.b16 %v4153
    %v4314 = vunpack.c.l.b16 %v4164
    %v4315 = vunpack.c.l.b16 %v4175
    %v4316 = vunpack.c.l.b16 %v4186
    %v4317 = vunpack.c.l.b16 %v4197
    %v4318 = vunpack.c.l.b16 %v4208
    %v4319 = vunpack.c.l.b16 %v4219
    %v4320 = vunpack.c.l.b16 %v4230
    %v4321 = vunpack.c.l.b16 %v4241
    %v4322 = vunpack.c.l.b16 %v4252
    %v4323 = vunpack.c.l.b16 %v4263
    %v4324 = vpack.c.b16 %v4295, %v4294
    %v4325 = vpack.c.b16 %v4297, %v4296
    %v4326 = vpack.c.b16 %v4299, %v4298
    %v4327 = vpack.c.b16 %v4301, %v4300
    %v4328 = vpack.c.b16 %v4303, %v4302
    %v4329 = vpack.c.b16 %v4305, %v4304
    %v4330 = vpack.c.b16 %v4307, %v4306
    %v4331 = vpack.c.b16 %v4309, %v4308
    %v4332 = vpack.c.b16 %v4311, %v4310
    %v4333 = vpack.c.b16 %v4313, %v4312
    %v4334 = vpack.c.b16 %v4315, %v4314
    %v4335 = vpack.c.b16 %v4317, %v4316
    %v4336 = vpack.c.b16 %v4319, %v4318
    %v4337 = vpack.c.b16 %v4321, %v4320
    %v4338 = vpack.c.b16 %v4323, %v4322
    %v4354 = vmul.bf16 %v1413, %v4324
    %v4355 = vmul.bf16 %v1421, %v4325
    %v4356 = vmul.bf16 %v1429, %v4326
    %v4357 = vmul.bf16 %v1437, %v4327
    %v4358 = vmul.bf16 %v1445, %v4328
    %v4359 = vmul.bf16 %v1453, %v4329
    %v4360 = vmul.bf16 %v1461, %v4330
    %v4361 = vmul.bf16 %v1469, %v4331
    %v4362 = vmul.bf16 %v1477, %v4332
    %v4363 = vmul.bf16 %v1485, %v4333
    %v4364 = vmul.bf16 %v1493, %v4334
    %v4365 = vmul.bf16 %v1501, %v4335
    %v4366 = vmul.bf16 %v1505, %v4336
    %v4367 = vmul.bf16 %v1396, %v4337
    %v4368 = vmul.bf16 %v1522, %v4338
    %vm4369 = vsmask.f32 1280
    %v4370 = vrot.slane %v1414, 6
    %v4371 = vrot.slane %v1410, 7
    %v4372 = vor.u32 %v4370, %v4371
    %v4373 = vrot.slane %v1422, 6
    %v4374 = vrot.slane %v1418, 7
    %v4375 = vor.u32 %v4373, %v4374
    %v4376 = vsel %vm4369, %v4372, %v4375
    %v4377 = vrot.slane %v1430, 6
    %v4378 = vrot.slane %v1426, 7
    %v4379 = vor.u32 %v4377, %v4378
    %v4380 = vsel %vm4369, %v4375, %v4379
    %v4381 = vrot.slane %v1438, 6
    %v4382 = vrot.slane %v1434, 7
    %v4383 = vor.u32 %v4381, %v4382
    %v4384 = vsel %vm4369, %v4379, %v4383
    %v4385 = vrot.slane %v1446, 6
    %v4386 = vrot.slane %v1442, 7
    %v4387 = vor.u32 %v4385, %v4386
    %v4388 = vsel %vm4369, %v4383, %v4387
    %v4389 = vrot.slane %v1454, 6
    %v4390 = vrot.slane %v1450, 7
    %v4391 = vor.u32 %v4389, %v4390
    %v4392 = vsel %vm4369, %v4387, %v4391
    %v4393 = vrot.slane %v1462, 6
    %v4394 = vrot.slane %v1458, 7
    %v4395 = vor.u32 %v4393, %v4394
    %v4396 = vsel %vm4369, %v4391, %v4395
    %v4397 = vrot.slane %v1470, 6
    %v4398 = vrot.slane %v1466, 7
    %v4399 = vor.u32 %v4397, %v4398
    %v4400 = vsel %vm4369, %v4395, %v4399
    %v4401 = vrot.slane %v1478, 6
    %v4402 = vrot.slane %v1474, 7
    %v4403 = vor.u32 %v4401, %v4402
    %v4404 = vsel %vm4369, %v4399, %v4403
    %v4405 = vrot.slane %v1486, 6
    %v4406 = vrot.slane %v1482, 7
    %v4407 = vor.u32 %v4405, %v4406
    %v4408 = vsel %vm4369, %v4403, %v4407
    %v4409 = vrot.slane %v1494, 6
    %v4410 = vrot.slane %v1490, 7
    %v4411 = vor.u32 %v4409, %v4410
    %v4412 = vsel %vm4369, %v4407, %v4411
    %v4413 = vrot.slane %v1502, 6
    %v4414 = vrot.slane %v1498, 7
    %v4415 = vor.u32 %v4413, %v4414
    %v4416 = vsel %vm4369, %v4411, %v4415
    %v4417 = vrot.slane %v1386, 6
    %v4418 = vrot.slane %v1388, 7
    %v4419 = vor.u32 %v4417, %v4418
    %v4420 = vsel %vm4369, %v4415, %v4419
    %v4421 = vrot.slane %v1397, 6
    %v4422 = vrot.slane %v1393, 7
    %v4423 = vor.u32 %v4421, %v4422
    %v4424 = vsel %vm4369, %v4419, %v4423
    %v4439 = vrot.slane %v1406, 6
    %v4440 = vrot.slane %v1403, 7
    %v4441 = vor.u32 %v4439, %v4440
    %v4442 = vsel %vm4369, %v4441, %v4372
    %vm4445 = vcmask 1041408
    %vm4446 = vmand %vm4445, %vm4369
    %v4447 = vsel %vm4446, %v4423, %v4441
    %4448 = vset.pattern.permute.xlu0 6
    %4449 = vperm.xlu0 %4448, %v1354
    %v4450 = vpop.permute.xlu0 %4449
    %v4453 = vunpack.c.l.s4 839922192
    %v4454 = vunpack.c.0.s8 %v4453
    %v4455 = vlaneseq
    %v4456 = vshrl.u32 %v4455, 7
    %v4457 = vsub.s32 %v4454, %v4456
    %v4458 = vrot.slane %v4450, %v4457
    %4459 = vset.pattern.permute.xlu0 6
    %4460 = vperm.xlu0 %4459, %v1355
    %v4461 = vpop.permute.xlu0 %4460
    %v4464 = vunpack.c.l.s4 839922192
    %v4465 = vunpack.c.0.s8 %v4464
    %v4466 = vlaneseq
    %v4467 = vshrl.u32 %v4466, 7
    %v4468 = vsub.s32 %v4465, %v4467
    %v4469 = vrot.slane %v4461, %v4468
    %4470 = vset.pattern.permute.xlu0 6
    %4471 = vperm.xlu0 %4470, %v1356
    %v4472 = vpop.permute.xlu0 %4471
    %v4475 = vunpack.c.l.s4 839922192
    %v4476 = vunpack.c.0.s8 %v4475
    %v4477 = vlaneseq
    %v4478 = vshrl.u32 %v4477, 7
    %v4479 = vsub.s32 %v4476, %v4478
    %v4480 = vrot.slane %v4472, %v4479
    %4481 = vset.pattern.permute.xlu0 6
    %4482 = vperm.xlu0 %4481, %v1357
    %v4483 = vpop.permute.xlu0 %4482
    %v4486 = vunpack.c.l.s4 839922192
    %v4487 = vunpack.c.0.s8 %v4486
    %v4488 = vlaneseq
    %v4489 = vshrl.u32 %v4488, 7
    %v4490 = vsub.s32 %v4487, %v4489
    %v4491 = vrot.slane %v4483, %v4490
    %4492 = vset.pattern.permute.xlu0 6
    %4493 = vperm.xlu0 %4492, %v1358
    %v4494 = vpop.permute.xlu0 %4493
    %v4497 = vunpack.c.l.s4 839922192
    %v4498 = vunpack.c.0.s8 %v4497
    %v4499 = vlaneseq
    %v4500 = vshrl.u32 %v4499, 7
    %v4501 = vsub.s32 %v4498, %v4500
    %v4502 = vrot.slane %v4494, %v4501
    %4503 = vset.pattern.permute.xlu0 6
    %4504 = vperm.xlu0 %4503, %v1359
    %v4505 = vpop.permute.xlu0 %4504
    %v4508 = vunpack.c.l.s4 839922192
    %v4509 = vunpack.c.0.s8 %v4508
    %v4510 = vlaneseq
    %v4511 = vshrl.u32 %v4510, 7
    %v4512 = vsub.s32 %v4509, %v4511
    %v4513 = vrot.slane %v4505, %v4512
    %4514 = vset.pattern.permute.xlu0 6
    %4515 = vperm.xlu0 %4514, %v1360
    %v4516 = vpop.permute.xlu0 %4515
    %v4519 = vunpack.c.l.s4 839922192
    %v4520 = vunpack.c.0.s8 %v4519
    %v4521 = vlaneseq
    %v4522 = vshrl.u32 %v4521, 7
    %v4523 = vsub.s32 %v4520, %v4522
    %v4524 = vrot.slane %v4516, %v4523
    %4525 = vset.pattern.permute.xlu0 6
    %4526 = vperm.xlu0 %4525, %v1361
    %v4527 = vpop.permute.xlu0 %4526
    %v4530 = vunpack.c.l.s4 839922192
    %v4531 = vunpack.c.0.s8 %v4530
    %v4532 = vlaneseq
    %v4533 = vshrl.u32 %v4532, 7
    %v4534 = vsub.s32 %v4531, %v4533
    %v4535 = vrot.slane %v4527, %v4534
    %4536 = vset.pattern.permute.xlu0 6
    %4537 = vperm.xlu0 %4536, %v1362
    %v4538 = vpop.permute.xlu0 %4537
    %v4541 = vunpack.c.l.s4 839922192
    %v4542 = vunpack.c.0.s8 %v4541
    %v4543 = vlaneseq
    %v4544 = vshrl.u32 %v4543, 7
    %v4545 = vsub.s32 %v4542, %v4544
    %v4546 = vrot.slane %v4538, %v4545
    %4547 = vset.pattern.permute.xlu0 6
    %4548 = vperm.xlu0 %4547, %v1363
    %v4549 = vpop.permute.xlu0 %4548
    %v4552 = vunpack.c.l.s4 839922192
    %v4553 = vunpack.c.0.s8 %v4552
    %v4554 = vlaneseq
    %v4555 = vshrl.u32 %v4554, 7
    %v4556 = vsub.s32 %v4553, %v4555
    %v4557 = vrot.slane %v4549, %v4556
    %4558 = vset.pattern.permute.xlu0 6
    %4559 = vperm.xlu0 %4558, %v1364
    %v4560 = vpop.permute.xlu0 %4559
    %v4563 = vunpack.c.l.s4 839922192
    %v4564 = vunpack.c.0.s8 %v4563
    %v4565 = vlaneseq
    %v4566 = vshrl.u32 %v4565, 7
    %v4567 = vsub.s32 %v4564, %v4566
    %v4568 = vrot.slane %v4560, %v4567
    %4569 = vset.pattern.permute.xlu0 6
    %4570 = vperm.xlu0 %4569, %v1365
    %v4571 = vpop.permute.xlu0 %4570
    %v4574 = vunpack.c.l.s4 839922192
    %v4575 = vunpack.c.0.s8 %v4574
    %v4576 = vlaneseq
    %v4577 = vshrl.u32 %v4576, 7
    %v4578 = vsub.s32 %v4575, %v4577
    %v4579 = vrot.slane %v4571, %v4578
    %4580 = vset.pattern.permute.xlu0 6
    %4581 = vperm.xlu0 %4580, %v1366
    %v4582 = vpop.permute.xlu0 %4581
    %v4585 = vunpack.c.l.s4 839922192
    %v4586 = vunpack.c.0.s8 %v4585
    %v4587 = vlaneseq
    %v4588 = vshrl.u32 %v4587, 7
    %v4589 = vsub.s32 %v4586, %v4588
    %v4590 = vrot.slane %v4582, %v4589
    %4591 = vset.pattern.permute.xlu0 6
    %4592 = vperm.xlu0 %4591, %v1367
    %v4593 = vpop.permute.xlu0 %4592
    %v4596 = vunpack.c.l.s4 839922192
    %v4597 = vunpack.c.0.s8 %v4596
    %v4598 = vlaneseq
    %v4599 = vshrl.u32 %v4598, 7
    %v4600 = vsub.s32 %v4597, %v4599
    %v4601 = vrot.slane %v4593, %v4600
    %4602 = vset.pattern.permute.xlu0 6
    %4603 = vperm.xlu0 %4602, %v1368
    %v4604 = vpop.permute.xlu0 %4603
    %v4607 = vunpack.c.l.s4 839922192
    %v4608 = vunpack.c.0.s8 %v4607
    %v4609 = vlaneseq
    %v4610 = vshrl.u32 %v4609, 7
    %v4611 = vsub.s32 %v4608, %v4610
    %v4612 = vrot.slane %v4604, %v4611
    %4613 = vset.pattern.permute.xlu0 6
    %4614 = vperm.xlu0 %4613, %v1369
    %v4615 = vpop.permute.xlu0 %4614
    %v4618 = vunpack.c.l.s4 839922192
    %v4619 = vunpack.c.0.s8 %v4618
    %v4620 = vlaneseq
    %v4621 = vshrl.u32 %v4620, 7
    %v4622 = vsub.s32 %v4619, %v4621
    %v4623 = vrot.slane %v4615, %v4622
    %4624 = vset.pattern.permute.xlu0 6
    %4625 = vperm.xlu0 %4624, %v1370
    %v4626 = vpop.permute.xlu0 %4625
    %v4629 = vunpack.c.l.s4 839922192
    %v4630 = vunpack.c.0.s8 %v4629
    %v4631 = vlaneseq
    %v4632 = vshrl.u32 %v4631, 7
    %v4633 = vsub.s32 %v4630, %v4632
    %v4634 = vrot.slane %v4626, %v4633
    %4635 = vset.pattern.permute.xlu0 6
    %4636 = vperm.xlu0 %4635, %v1371
    %v4637 = vpop.permute.xlu0 %4636
    %v4640 = vunpack.c.l.s4 839922192
    %v4641 = vunpack.c.0.s8 %v4640
    %v4642 = vlaneseq
    %v4643 = vshrl.u32 %v4642, 7
    %v4644 = vsub.s32 %v4641, %v4643
    %v4645 = vrot.slane %v4637, %v4644
    %4646 = vset.pattern.permute.xlu0 6
    %4647 = vperm.xlu0 %4646, %v1372
    %v4648 = vpop.permute.xlu0 %4647
    %v4651 = vunpack.c.l.s4 839922192
    %v4652 = vunpack.c.0.s8 %v4651
    %v4653 = vlaneseq
    %v4654 = vshrl.u32 %v4653, 7
    %v4655 = vsub.s32 %v4652, %v4654
    %v4656 = vrot.slane %v4648, %v4655
    %4657 = vset.pattern.permute.xlu0 6
    %4658 = vperm.xlu0 %4657, %v1373
    %v4659 = vpop.permute.xlu0 %4658
    %v4662 = vunpack.c.l.s4 839922192
    %v4663 = vunpack.c.0.s8 %v4662
    %v4664 = vlaneseq
    %v4665 = vshrl.u32 %v4664, 7
    %v4666 = vsub.s32 %v4663, %v4665
    %v4667 = vrot.slane %v4659, %v4666
    %4668 = vset.pattern.permute.xlu0 6
    %4669 = vperm.xlu0 %4668, %v1374
    %v4670 = vpop.permute.xlu0 %4669
    %v4673 = vunpack.c.l.s4 839922192
    %v4674 = vunpack.c.0.s8 %v4673
    %v4675 = vlaneseq
    %v4676 = vshrl.u32 %v4675, 7
    %v4677 = vsub.s32 %v4674, %v4676
    %v4678 = vrot.slane %v4670, %v4677
    %4679 = vset.pattern.permute.xlu0 6
    %4680 = vperm.xlu0 %4679, %v1375
    %v4681 = vpop.permute.xlu0 %4680
    %v4684 = vunpack.c.l.s4 839922192
    %v4685 = vunpack.c.0.s8 %v4684
    %v4686 = vlaneseq
    %v4687 = vshrl.u32 %v4686, 7
    %v4688 = vsub.s32 %v4685, %v4687
    %v4689 = vrot.slane %v4681, %v4688
    %4690 = vset.pattern.permute.xlu0 6
    %4691 = vperm.xlu0 %4690, %v1376
    %v4692 = vpop.permute.xlu0 %4691
    %v4695 = vunpack.c.l.s4 839922192
    %v4696 = vunpack.c.0.s8 %v4695
    %v4697 = vlaneseq
    %v4698 = vshrl.u32 %v4697, 7
    %v4699 = vsub.s32 %v4696, %v4698
    %v4700 = vrot.slane %v4692, %v4699
    %4701 = vset.pattern.permute.xlu0 6
    %4702 = vperm.xlu0 %4701, %v1377
    %v4703 = vpop.permute.xlu0 %4702
    %v4706 = vunpack.c.l.s4 839922192
    %v4707 = vunpack.c.0.s8 %v4706
    %v4708 = vlaneseq
    %v4709 = vshrl.u32 %v4708, 7
    %v4710 = vsub.s32 %v4707, %v4709
    %v4711 = vrot.slane %v4703, %v4710
    %4712 = vset.pattern.permute.xlu0 6
    %4713 = vperm.xlu0 %4712, %v1378
    %v4714 = vpop.permute.xlu0 %4713
    %v4717 = vunpack.c.l.s4 839922192
    %v4718 = vunpack.c.0.s8 %v4717
    %v4719 = vlaneseq
    %v4720 = vshrl.u32 %v4719, 7
    %v4721 = vsub.s32 %v4718, %v4720
    %v4722 = vrot.slane %v4714, %v4721
    %4723 = vset.pattern.permute.xlu0 6
    %4724 = vperm.xlu0 %4723, %v1379
    %v4725 = vpop.permute.xlu0 %4724
    %v4728 = vunpack.c.l.s4 839922192
    %v4729 = vunpack.c.0.s8 %v4728
    %v4730 = vlaneseq
    %v4731 = vshrl.u32 %v4730, 7
    %v4732 = vsub.s32 %v4729, %v4731
    %v4733 = vrot.slane %v4725, %v4732
    %4734 = vset.pattern.permute.xlu0 6
    %4735 = vperm.xlu0 %4734, %v1380
    %v4736 = vpop.permute.xlu0 %4735
    %v4739 = vunpack.c.l.s4 839922192
    %v4740 = vunpack.c.0.s8 %v4739
    %v4741 = vlaneseq
    %v4742 = vshrl.u32 %v4741, 7
    %v4743 = vsub.s32 %v4740, %v4742
    %v4744 = vrot.slane %v4736, %v4743
    %4745 = vset.pattern.permute.xlu0 6
    %4746 = vperm.xlu0 %4745, %v1381
    %v4747 = vpop.permute.xlu0 %4746
    %v4750 = vunpack.c.l.s4 839922192
    %v4751 = vunpack.c.0.s8 %v4750
    %v4752 = vlaneseq
    %v4753 = vshrl.u32 %v4752, 7
    %v4754 = vsub.s32 %v4751, %v4753
    %v4755 = vrot.slane %v4747, %v4754
    %4756 = vset.pattern.permute.xlu0 6
    %4757 = vperm.xlu0 %4756, %v1382
    %v4758 = vpop.permute.xlu0 %4757
    %v4761 = vunpack.c.l.s4 839922192
    %v4762 = vunpack.c.0.s8 %v4761
    %v4763 = vlaneseq
    %v4764 = vshrl.u32 %v4763, 7
    %v4765 = vsub.s32 %v4762, %v4764
    %v4766 = vrot.slane %v4758, %v4765
    %4767 = vset.pattern.permute.xlu0 6
    %4768 = vperm.xlu0 %4767, %v1383
    %v4769 = vpop.permute.xlu0 %4768
    %v4772 = vunpack.c.l.s4 839922192
    %v4773 = vunpack.c.0.s8 %v4772
    %v4774 = vlaneseq
    %v4775 = vshrl.u32 %v4774, 7
    %v4776 = vsub.s32 %v4773, %v4775
    %v4777 = vrot.slane %v4769, %v4776
    %v4808 = vunpack.c.l.b16 %v4458
    %v4809 = vunpack.c.l.b16 %v4469
    %v4810 = vunpack.c.l.b16 %v4480
    %v4811 = vunpack.c.l.b16 %v4491
    %v4812 = vunpack.c.l.b16 %v4502
    %v4813 = vunpack.c.l.b16 %v4513
    %v4814 = vunpack.c.l.b16 %v4524
    %v4815 = vunpack.c.l.b16 %v4535
    %v4816 = vunpack.c.l.b16 %v4546
    %v4817 = vunpack.c.l.b16 %v4557
    %v4818 = vunpack.c.l.b16 %v4568
    %v4819 = vunpack.c.l.b16 %v4579
    %v4820 = vunpack.c.l.b16 %v4590
    %v4821 = vunpack.c.l.b16 %v4601
    %v4822 = vunpack.c.l.b16 %v4612
    %v4823 = vunpack.c.l.b16 %v4623
    %v4824 = vunpack.c.l.b16 %v4634
    %v4825 = vunpack.c.l.b16 %v4645
    %v4826 = vunpack.c.l.b16 %v4656
    %v4827 = vunpack.c.l.b16 %v4667
    %v4828 = vunpack.c.l.b16 %v4678
    %v4829 = vunpack.c.l.b16 %v4689
    %v4830 = vunpack.c.l.b16 %v4700
    %v4831 = vunpack.c.l.b16 %v4711
    %v4832 = vunpack.c.l.b16 %v4722
    %v4833 = vunpack.c.l.b16 %v4733
    %v4834 = vunpack.c.l.b16 %v4744
    %v4835 = vunpack.c.l.b16 %v4755
    %v4836 = vunpack.c.l.b16 %v4766
    %v4837 = vunpack.c.l.b16 %v4777
    %v4838 = vpack.c.b16 %v4809, %v4808
    %v4839 = vpack.c.b16 %v4811, %v4810
    %v4840 = vpack.c.b16 %v4813, %v4812
    %v4841 = vpack.c.b16 %v4815, %v4814
    %v4842 = vpack.c.b16 %v4817, %v4816
    %v4843 = vpack.c.b16 %v4819, %v4818
    %v4844 = vpack.c.b16 %v4821, %v4820
    %v4845 = vpack.c.b16 %v4823, %v4822
    %v4846 = vpack.c.b16 %v4825, %v4824
    %v4847 = vpack.c.b16 %v4827, %v4826
    %v4848 = vpack.c.b16 %v4829, %v4828
    %v4849 = vpack.c.b16 %v4831, %v4830
    %v4850 = vpack.c.b16 %v4833, %v4832
    %v4851 = vpack.c.b16 %v4835, %v4834
    %v4852 = vpack.c.b16 %v4837, %v4836
    %v4868 = vmul.bf16 %v4376, %v4838
    %v4869 = vmul.bf16 %v4380, %v4839
    %v4870 = vmul.bf16 %v4384, %v4840
    %v4871 = vmul.bf16 %v4388, %v4841
    %v4872 = vmul.bf16 %v4392, %v4842
    %v4873 = vmul.bf16 %v4396, %v4843
    %v4874 = vmul.bf16 %v4400, %v4844
    %v4875 = vmul.bf16 %v4404, %v4845
    %v4876 = vmul.bf16 %v4408, %v4846
    %v4877 = vmul.bf16 %v4412, %v4847
    %v4878 = vmul.bf16 %v4416, %v4848
    %v4879 = vmul.bf16 %v4420, %v4849
    %v4880 = vmul.bf16 %v4424, %v4850
    %v4881 = vmul.bf16 %v4447, %v4851
    %v4882 = vmul.bf16 %v4442, %v4852
    %v4883 = vrot.slane %v1340, 7
    %v4884 = vrot.slane %v1341, 7
    %v4885 = vsel %vm3061, %v4883, %v4884
    %v4886 = vrot.slane %v1342, 7
    %v4887 = vsel %vm3061, %v4884, %v4886
    %v4888 = vrot.slane %v1343, 7
    %v4889 = vsel %vm3061, %v4886, %v4888
    %v4890 = vrot.slane %v1344, 7
    %v4891 = vsel %vm3061, %v4888, %v4890
    %v4892 = vrot.slane %v1345, 7
    %v4893 = vsel %vm3061, %v4890, %v4892
    %v4894 = vrot.slane %v1346, 7
    %v4895 = vsel %vm3061, %v4892, %v4894
    %v4896 = vrot.slane %v1347, 7
    %v4897 = vsel %vm3061, %v4894, %v4896
    %v4898 = vrot.slane %v1348, 7
    %v4899 = vsel %vm3061, %v4896, %v4898
    %v4900 = vrot.slane %v1349, 7
    %v4901 = vsel %vm3061, %v4898, %v4900
    %v4902 = vrot.slane %v1350, 7
    %v4903 = vsel %vm3061, %v4900, %v4902
    %v4904 = vrot.slane %v1351, 7
    %v4905 = vsel %vm3061, %v4902, %v4904
    %v4906 = vrot.slane %v1352, 7
    %v4907 = vsel %vm3061, %v4904, %v4906
    %v4908 = vrot.slane %v1353, 7
    %v4909 = vsel %vm3061, %v4906, %v4908
    %v4923 = vrot.slane %v1339, 7
    %v4924 = vsel %vm3061, %v4923, %v4883
    %vm4926 = vcmask 1040384
    %v4929 = vsel %vm4926, %v4908, %v4923
    %4931 = vset.pattern.permute.xlu0 7
    %4932 = vperm.xlu0 %4931, %v1354
    %v4933 = vpop.permute.xlu0 %4932
    %v4936 = vunpack.c.l.s4 839922192
    %v4937 = vunpack.c.0.s8 %v4936
    %v4938 = vlaneseq
    %v4939 = vshrl.u32 %v4938, 7
    %v4940 = vsub.s32 %v4937, %v4939
    %v4941 = vrot.slane %v4933, %v4940
    %4942 = vset.pattern.permute.xlu0 7
    %4943 = vperm.xlu0 %4942, %v1355
    %v4944 = vpop.permute.xlu0 %4943
    %v4947 = vunpack.c.l.s4 839922192
    %v4948 = vunpack.c.0.s8 %v4947
    %v4949 = vlaneseq
    %v4950 = vshrl.u32 %v4949, 7
    %v4951 = vsub.s32 %v4948, %v4950
    %v4952 = vrot.slane %v4944, %v4951
    %4953 = vset.pattern.permute.xlu0 7
    %4954 = vperm.xlu0 %4953, %v1356
    %v4955 = vpop.permute.xlu0 %4954
    %v4958 = vunpack.c.l.s4 839922192
    %v4959 = vunpack.c.0.s8 %v4958
    %v4960 = vlaneseq
    %v4961 = vshrl.u32 %v4960, 7
    %v4962 = vsub.s32 %v4959, %v4961
    %v4963 = vrot.slane %v4955, %v4962
    %4964 = vset.pattern.permute.xlu0 7
    %4965 = vperm.xlu0 %4964, %v1357
    %v4966 = vpop.permute.xlu0 %4965
    %v4969 = vunpack.c.l.s4 839922192
    %v4970 = vunpack.c.0.s8 %v4969
    %v4971 = vlaneseq
    %v4972 = vshrl.u32 %v4971, 7
    %v4973 = vsub.s32 %v4970, %v4972
    %v4974 = vrot.slane %v4966, %v4973
    %4975 = vset.pattern.permute.xlu0 7
    %4976 = vperm.xlu0 %4975, %v1358
    %v4977 = vpop.permute.xlu0 %4976
    %v4980 = vunpack.c.l.s4 839922192
    %v4981 = vunpack.c.0.s8 %v4980
    %v4982 = vlaneseq
    %v4983 = vshrl.u32 %v4982, 7
    %v4984 = vsub.s32 %v4981, %v4983
    %v4985 = vrot.slane %v4977, %v4984
    %4986 = vset.pattern.permute.xlu0 7
    %4987 = vperm.xlu0 %4986, %v1359
    %v4988 = vpop.permute.xlu0 %4987
    %v4991 = vunpack.c.l.s4 839922192
    %v4992 = vunpack.c.0.s8 %v4991
    %v4993 = vlaneseq
    %v4994 = vshrl.u32 %v4993, 7
    %v4995 = vsub.s32 %v4992, %v4994
    %v4996 = vrot.slane %v4988, %v4995
    %4997 = vset.pattern.permute.xlu0 7
    %4998 = vperm.xlu0 %4997, %v1360
    %v4999 = vpop.permute.xlu0 %4998
    %v5002 = vunpack.c.l.s4 839922192
    %v5003 = vunpack.c.0.s8 %v5002
    %v5004 = vlaneseq
    %v5005 = vshrl.u32 %v5004, 7
    %v5006 = vsub.s32 %v5003, %v5005
    %v5007 = vrot.slane %v4999, %v5006
    %5008 = vset.pattern.permute.xlu0 7
    %5009 = vperm.xlu0 %5008, %v1361
    %v5010 = vpop.permute.xlu0 %5009
    %v5013 = vunpack.c.l.s4 839922192
    %v5014 = vunpack.c.0.s8 %v5013
    %v5015 = vlaneseq
    %v5016 = vshrl.u32 %v5015, 7
    %v5017 = vsub.s32 %v5014, %v5016
    %v5018 = vrot.slane %v5010, %v5017
    %5019 = vset.pattern.permute.xlu0 7
    %5020 = vperm.xlu0 %5019, %v1362
    %v5021 = vpop.permute.xlu0 %5020
    %v5024 = vunpack.c.l.s4 839922192
    %v5025 = vunpack.c.0.s8 %v5024
    %v5026 = vlaneseq
    %v5027 = vshrl.u32 %v5026, 7
    %v5028 = vsub.s32 %v5025, %v5027
    %v5029 = vrot.slane %v5021, %v5028
    %5030 = vset.pattern.permute.xlu0 7
    %5031 = vperm.xlu0 %5030, %v1363
    %v5032 = vpop.permute.xlu0 %5031
    %v5035 = vunpack.c.l.s4 839922192
    %v5036 = vunpack.c.0.s8 %v5035
    %v5037 = vlaneseq
    %v5038 = vshrl.u32 %v5037, 7
    %v5039 = vsub.s32 %v5036, %v5038
    %v5040 = vrot.slane %v5032, %v5039
    %5041 = vset.pattern.permute.xlu0 7
    %5042 = vperm.xlu0 %5041, %v1364
    %v5043 = vpop.permute.xlu0 %5042
    %v5046 = vunpack.c.l.s4 839922192
    %v5047 = vunpack.c.0.s8 %v5046
    %v5048 = vlaneseq
    %v5049 = vshrl.u32 %v5048, 7
    %v5050 = vsub.s32 %v5047, %v5049
    %v5051 = vrot.slane %v5043, %v5050
    %5052 = vset.pattern.permute.xlu0 7
    %5053 = vperm.xlu0 %5052, %v1365
    %v5054 = vpop.permute.xlu0 %5053
    %v5057 = vunpack.c.l.s4 839922192
    %v5058 = vunpack.c.0.s8 %v5057
    %v5059 = vlaneseq
    %v5060 = vshrl.u32 %v5059, 7
    %v5061 = vsub.s32 %v5058, %v5060
    %v5062 = vrot.slane %v5054, %v5061
    %5063 = vset.pattern.permute.xlu0 7
    %5064 = vperm.xlu0 %5063, %v1366
    %v5065 = vpop.permute.xlu0 %5064
    %v5068 = vunpack.c.l.s4 839922192
    %v5069 = vunpack.c.0.s8 %v5068
    %v5070 = vlaneseq
    %v5071 = vshrl.u32 %v5070, 7
    %v5072 = vsub.s32 %v5069, %v5071
    %v5073 = vrot.slane %v5065, %v5072
    %5074 = vset.pattern.permute.xlu0 7
    %5075 = vperm.xlu0 %5074, %v1367
    %v5076 = vpop.permute.xlu0 %5075
    %v5079 = vunpack.c.l.s4 839922192
    %v5080 = vunpack.c.0.s8 %v5079
    %v5081 = vlaneseq
    %v5082 = vshrl.u32 %v5081, 7
    %v5083 = vsub.s32 %v5080, %v5082
    %v5084 = vrot.slane %v5076, %v5083
    %5085 = vset.pattern.permute.xlu0 7
    %5086 = vperm.xlu0 %5085, %v1368
    %v5087 = vpop.permute.xlu0 %5086
    %v5090 = vunpack.c.l.s4 839922192
    %v5091 = vunpack.c.0.s8 %v5090
    %v5092 = vlaneseq
    %v5093 = vshrl.u32 %v5092, 7
    %v5094 = vsub.s32 %v5091, %v5093
    %v5095 = vrot.slane %v5087, %v5094
    %5096 = vset.pattern.permute.xlu0 7
    %5097 = vperm.xlu0 %5096, %v1369
    %v5098 = vpop.permute.xlu0 %5097
    %v5101 = vunpack.c.l.s4 839922192
    %v5102 = vunpack.c.0.s8 %v5101
    %v5103 = vlaneseq
    %v5104 = vshrl.u32 %v5103, 7
    %v5105 = vsub.s32 %v5102, %v5104
    %v5106 = vrot.slane %v5098, %v5105
    %5107 = vset.pattern.permute.xlu0 7
    %5108 = vperm.xlu0 %5107, %v1370
    %v5109 = vpop.permute.xlu0 %5108
    %v5112 = vunpack.c.l.s4 839922192
    %v5113 = vunpack.c.0.s8 %v5112
    %v5114 = vlaneseq
    %v5115 = vshrl.u32 %v5114, 7
    %v5116 = vsub.s32 %v5113, %v5115
    %v5117 = vrot.slane %v5109, %v5116
    %5118 = vset.pattern.permute.xlu0 7
    %5119 = vperm.xlu0 %5118, %v1371
    %v5120 = vpop.permute.xlu0 %5119
    %v5123 = vunpack.c.l.s4 839922192
    %v5124 = vunpack.c.0.s8 %v5123
    %v5125 = vlaneseq
    %v5126 = vshrl.u32 %v5125, 7
    %v5127 = vsub.s32 %v5124, %v5126
    %v5128 = vrot.slane %v5120, %v5127
    %5129 = vset.pattern.permute.xlu0 7
    %5130 = vperm.xlu0 %5129, %v1372
    %v5131 = vpop.permute.xlu0 %5130
    %v5134 = vunpack.c.l.s4 839922192
    %v5135 = vunpack.c.0.s8 %v5134
    %v5136 = vlaneseq
    %v5137 = vshrl.u32 %v5136, 7
    %v5138 = vsub.s32 %v5135, %v5137
    %v5139 = vrot.slane %v5131, %v5138
    %5140 = vset.pattern.permute.xlu0 7
    %5141 = vperm.xlu0 %5140, %v1373
    %v5142 = vpop.permute.xlu0 %5141
    %v5145 = vunpack.c.l.s4 839922192
    %v5146 = vunpack.c.0.s8 %v5145
    %v5147 = vlaneseq
    %v5148 = vshrl.u32 %v5147, 7
    %v5149 = vsub.s32 %v5146, %v5148
    %v5150 = vrot.slane %v5142, %v5149
    %5151 = vset.pattern.permute.xlu0 7
    %5152 = vperm.xlu0 %5151, %v1374
    %v5153 = vpop.permute.xlu0 %5152
    %v5156 = vunpack.c.l.s4 839922192
    %v5157 = vunpack.c.0.s8 %v5156
    %v5158 = vlaneseq
    %v5159 = vshrl.u32 %v5158, 7
    %v5160 = vsub.s32 %v5157, %v5159
    %v5161 = vrot.slane %v5153, %v5160
    %5162 = vset.pattern.permute.xlu0 7
    %5163 = vperm.xlu0 %5162, %v1375
    %v5164 = vpop.permute.xlu0 %5163
    %v5167 = vunpack.c.l.s4 839922192
    %v5168 = vunpack.c.0.s8 %v5167
    %v5169 = vlaneseq
    %v5170 = vshrl.u32 %v5169, 7
    %v5171 = vsub.s32 %v5168, %v5170
    %v5172 = vrot.slane %v5164, %v5171
    %5173 = vset.pattern.permute.xlu0 7
    %5174 = vperm.xlu0 %5173, %v1376
    %v5175 = vpop.permute.xlu0 %5174
    %v5178 = vunpack.c.l.s4 839922192
    %v5179 = vunpack.c.0.s8 %v5178
    %v5180 = vlaneseq
    %v5181 = vshrl.u32 %v5180, 7
    %v5182 = vsub.s32 %v5179, %v5181
    %v5183 = vrot.slane %v5175, %v5182
    %5184 = vset.pattern.permute.xlu0 7
    %5185 = vperm.xlu0 %5184, %v1377
    %v5186 = vpop.permute.xlu0 %5185
    %v5189 = vunpack.c.l.s4 839922192
    %v5190 = vunpack.c.0.s8 %v5189
    %v5191 = vlaneseq
    %v5192 = vshrl.u32 %v5191, 7
    %v5193 = vsub.s32 %v5190, %v5192
    %v5194 = vrot.slane %v5186, %v5193
    %5195 = vset.pattern.permute.xlu0 7
    %5196 = vperm.xlu0 %5195, %v1378
    %v5197 = vpop.permute.xlu0 %5196
    %v5200 = vunpack.c.l.s4 839922192
    %v5201 = vunpack.c.0.s8 %v5200
    %v5202 = vlaneseq
    %v5203 = vshrl.u32 %v5202, 7
    %v5204 = vsub.s32 %v5201, %v5203
    %v5205 = vrot.slane %v5197, %v5204
    %5206 = vset.pattern.permute.xlu0 7
    %5207 = vperm.xlu0 %5206, %v1379
    %v5208 = vpop.permute.xlu0 %5207
    %v5211 = vunpack.c.l.s4 839922192
    %v5212 = vunpack.c.0.s8 %v5211
    %v5213 = vlaneseq
    %v5214 = vshrl.u32 %v5213, 7
    %v5215 = vsub.s32 %v5212, %v5214
    %v5216 = vrot.slane %v5208, %v5215
    %5217 = vset.pattern.permute.xlu0 7
    %5218 = vperm.xlu0 %5217, %v1380
    %v5219 = vpop.permute.xlu0 %5218
    %v5222 = vunpack.c.l.s4 839922192
    %v5223 = vunpack.c.0.s8 %v5222
    %v5224 = vlaneseq
    %v5225 = vshrl.u32 %v5224, 7
    %v5226 = vsub.s32 %v5223, %v5225
    %v5227 = vrot.slane %v5219, %v5226
    %5228 = vset.pattern.permute.xlu0 7
    %5229 = vperm.xlu0 %5228, %v1381
    %v5230 = vpop.permute.xlu0 %5229
    %v5233 = vunpack.c.l.s4 839922192
    %v5234 = vunpack.c.0.s8 %v5233
    %v5235 = vlaneseq
    %v5236 = vshrl.u32 %v5235, 7
    %v5237 = vsub.s32 %v5234, %v5236
    %v5238 = vrot.slane %v5230, %v5237
    %5239 = vset.pattern.permute.xlu0 7
    %5240 = vperm.xlu0 %5239, %v1382
    %v5241 = vpop.permute.xlu0 %5240
    %v5244 = vunpack.c.l.s4 839922192
    %v5245 = vunpack.c.0.s8 %v5244
    %v5246 = vlaneseq
    %v5247 = vshrl.u32 %v5246, 7
    %v5248 = vsub.s32 %v5245, %v5247
    %v5249 = vrot.slane %v5241, %v5248
    %5250 = vset.pattern.permute.xlu0 7
    %5251 = vperm.xlu0 %5250, %v1383
    %v5252 = vpop.permute.xlu0 %5251
    %v5255 = vunpack.c.l.s4 839922192
    %v5256 = vunpack.c.0.s8 %v5255
    %v5257 = vlaneseq
    %v5258 = vshrl.u32 %v5257, 7
    %v5259 = vsub.s32 %v5256, %v5258
    %v5260 = vrot.slane %v5252, %v5259
    %v5291 = vunpack.c.l.b16 %v4941
    %v5292 = vunpack.c.l.b16 %v4952
    %v5293 = vunpack.c.l.b16 %v4963
    %v5294 = vunpack.c.l.b16 %v4974
    %v5295 = vunpack.c.l.b16 %v4985
    %v5296 = vunpack.c.l.b16 %v4996
    %v5297 = vunpack.c.l.b16 %v5007
    %v5298 = vunpack.c.l.b16 %v5018
    %v5299 = vunpack.c.l.b16 %v5029
    %v5300 = vunpack.c.l.b16 %v5040
    %v5301 = vunpack.c.l.b16 %v5051
    %v5302 = vunpack.c.l.b16 %v5062
    %v5303 = vunpack.c.l.b16 %v5073
    %v5304 = vunpack.c.l.b16 %v5084
    %v5305 = vunpack.c.l.b16 %v5095
    %v5306 = vunpack.c.l.b16 %v5106
    %v5307 = vunpack.c.l.b16 %v5117
    %v5308 = vunpack.c.l.b16 %v5128
    %v5309 = vunpack.c.l.b16 %v5139
    %v5310 = vunpack.c.l.b16 %v5150
    %v5311 = vunpack.c.l.b16 %v5161
    %v5312 = vunpack.c.l.b16 %v5172
    %v5313 = vunpack.c.l.b16 %v5183
    %v5314 = vunpack.c.l.b16 %v5194
    %v5315 = vunpack.c.l.b16 %v5205
    %v5316 = vunpack.c.l.b16 %v5216
    %v5317 = vunpack.c.l.b16 %v5227
    %v5318 = vunpack.c.l.b16 %v5238
    %v5319 = vunpack.c.l.b16 %v5249
    %v5320 = vunpack.c.l.b16 %v5260
    %v5321 = vpack.c.b16 %v5292, %v5291
    %v5322 = vpack.c.b16 %v5294, %v5293
    %v5323 = vpack.c.b16 %v5296, %v5295
    %v5324 = vpack.c.b16 %v5298, %v5297
    %v5325 = vpack.c.b16 %v5300, %v5299
    %v5326 = vpack.c.b16 %v5302, %v5301
    %v5327 = vpack.c.b16 %v5304, %v5303
    %v5328 = vpack.c.b16 %v5306, %v5305
    %v5329 = vpack.c.b16 %v5308, %v5307
    %v5330 = vpack.c.b16 %v5310, %v5309
    %v5331 = vpack.c.b16 %v5312, %v5311
    %v5332 = vpack.c.b16 %v5314, %v5313
    %v5333 = vpack.c.b16 %v5316, %v5315
    %v5334 = vpack.c.b16 %v5318, %v5317
    %v5335 = vpack.c.b16 %v5320, %v5319
    %v5351 = vmul.bf16 %v4885, %v5321
    %v5352 = vmul.bf16 %v4887, %v5322
    %v5353 = vmul.bf16 %v4889, %v5323
    %v5354 = vmul.bf16 %v4891, %v5324
    %v5355 = vmul.bf16 %v4893, %v5325
    %v5356 = vmul.bf16 %v4895, %v5326
    %v5357 = vmul.bf16 %v4897, %v5327
    %v5358 = vmul.bf16 %v4899, %v5328
    %v5359 = vmul.bf16 %v4901, %v5329
    %v5360 = vmul.bf16 %v4903, %v5330
    %v5361 = vmul.bf16 %v4905, %v5331
    %v5362 = vmul.bf16 %v4907, %v5332
    %v5363 = vmul.bf16 %v4909, %v5333
    %v5364 = vmul.bf16 %v4929, %v5334
    %v5365 = vmul.bf16 %v4924, %v5335
    %5366 = vset.pattern.permute.xlu0 8
    %5367 = vperm.xlu0 %5366, %v1354
    %v5368 = vpop.permute.xlu0 %5367
    %v5371 = vunpack.c.l.s4 839922192
    %v5372 = vunpack.c.0.s8 %v5371
    %v5373 = vlaneseq
    %v5374 = vshrl.u32 %v5373, 7
    %v5375 = vsub.s32 %v5372, %v5374
    %v5376 = vrot.slane %v5368, %v5375
    %5377 = vset.pattern.permute.xlu0 8
    %5378 = vperm.xlu0 %5377, %v1355
    %v5379 = vpop.permute.xlu0 %5378
    %v5382 = vunpack.c.l.s4 839922192
    %v5383 = vunpack.c.0.s8 %v5382
    %v5384 = vlaneseq
    %v5385 = vshrl.u32 %v5384, 7
    %v5386 = vsub.s32 %v5383, %v5385
    %v5387 = vrot.slane %v5379, %v5386
    %5388 = vset.pattern.permute.xlu0 8
    %5389 = vperm.xlu0 %5388, %v1356
    %v5390 = vpop.permute.xlu0 %5389
    %v5393 = vunpack.c.l.s4 839922192
    %v5394 = vunpack.c.0.s8 %v5393
    %v5395 = vlaneseq
    %v5396 = vshrl.u32 %v5395, 7
    %v5397 = vsub.s32 %v5394, %v5396
    %v5398 = vrot.slane %v5390, %v5397
    %5399 = vset.pattern.permute.xlu0 8
    %5400 = vperm.xlu0 %5399, %v1357
    %v5401 = vpop.permute.xlu0 %5400
    %v5404 = vunpack.c.l.s4 839922192
    %v5405 = vunpack.c.0.s8 %v5404
    %v5406 = vlaneseq
    %v5407 = vshrl.u32 %v5406, 7
    %v5408 = vsub.s32 %v5405, %v5407
    %v5409 = vrot.slane %v5401, %v5408
    %5410 = vset.pattern.permute.xlu0 8
    %5411 = vperm.xlu0 %5410, %v1358
    %v5412 = vpop.permute.xlu0 %5411
    %v5415 = vunpack.c.l.s4 839922192
    %v5416 = vunpack.c.0.s8 %v5415
    %v5417 = vlaneseq
    %v5418 = vshrl.u32 %v5417, 7
    %v5419 = vsub.s32 %v5416, %v5418
    %v5420 = vrot.slane %v5412, %v5419
    %5421 = vset.pattern.permute.xlu0 8
    %5422 = vperm.xlu0 %5421, %v1359
    %v5423 = vpop.permute.xlu0 %5422
    %v5426 = vunpack.c.l.s4 839922192
    %v5427 = vunpack.c.0.s8 %v5426
    %v5428 = vlaneseq
    %v5429 = vshrl.u32 %v5428, 7
    %v5430 = vsub.s32 %v5427, %v5429
    %v5431 = vrot.slane %v5423, %v5430
    %5432 = vset.pattern.permute.xlu0 8
    %5433 = vperm.xlu0 %5432, %v1360
    %v5434 = vpop.permute.xlu0 %5433
    %v5437 = vunpack.c.l.s4 839922192
    %v5438 = vunpack.c.0.s8 %v5437
    %v5439 = vlaneseq
    %v5440 = vshrl.u32 %v5439, 7
    %v5441 = vsub.s32 %v5438, %v5440
    %v5442 = vrot.slane %v5434, %v5441
    %5443 = vset.pattern.permute.xlu0 8
    %5444 = vperm.xlu0 %5443, %v1361
    %v5445 = vpop.permute.xlu0 %5444
    %v5448 = vunpack.c.l.s4 839922192
    %v5449 = vunpack.c.0.s8 %v5448
    %v5450 = vlaneseq
    %v5451 = vshrl.u32 %v5450, 7
    %v5452 = vsub.s32 %v5449, %v5451
    %v5453 = vrot.slane %v5445, %v5452
    %5454 = vset.pattern.permute.xlu0 8
    %5455 = vperm.xlu0 %5454, %v1362
    %v5456 = vpop.permute.xlu0 %5455
    %v5459 = vunpack.c.l.s4 839922192
    %v5460 = vunpack.c.0.s8 %v5459
    %v5461 = vlaneseq
    %v5462 = vshrl.u32 %v5461, 7
    %v5463 = vsub.s32 %v5460, %v5462
    %v5464 = vrot.slane %v5456, %v5463
    %5465 = vset.pattern.permute.xlu0 8
    %5466 = vperm.xlu0 %5465, %v1363
    %v5467 = vpop.permute.xlu0 %5466
    %v5470 = vunpack.c.l.s4 839922192
    %v5471 = vunpack.c.0.s8 %v5470
    %v5472 = vlaneseq
    %v5473 = vshrl.u32 %v5472, 7
    %v5474 = vsub.s32 %v5471, %v5473
    %v5475 = vrot.slane %v5467, %v5474
    %5476 = vset.pattern.permute.xlu0 8
    %5477 = vperm.xlu0 %5476, %v1364
    %v5478 = vpop.permute.xlu0 %5477
    %v5481 = vunpack.c.l.s4 839922192
    %v5482 = vunpack.c.0.s8 %v5481
    %v5483 = vlaneseq
    %v5484 = vshrl.u32 %v5483, 7
    %v5485 = vsub.s32 %v5482, %v5484
    %v5486 = vrot.slane %v5478, %v5485
    %5487 = vset.pattern.permute.xlu0 8
    %5488 = vperm.xlu0 %5487, %v1365
    %v5489 = vpop.permute.xlu0 %5488
    %v5492 = vunpack.c.l.s4 839922192
    %v5493 = vunpack.c.0.s8 %v5492
    %v5494 = vlaneseq
    %v5495 = vshrl.u32 %v5494, 7
    %v5496 = vsub.s32 %v5493, %v5495
    %v5497 = vrot.slane %v5489, %v5496
    %5498 = vset.pattern.permute.xlu0 8
    %5499 = vperm.xlu0 %5498, %v1366
    %v5500 = vpop.permute.xlu0 %5499
    %v5503 = vunpack.c.l.s4 839922192
    %v5504 = vunpack.c.0.s8 %v5503
    %v5505 = vlaneseq
    %v5506 = vshrl.u32 %v5505, 7
    %v5507 = vsub.s32 %v5504, %v5506
    %v5508 = vrot.slane %v5500, %v5507
    %5509 = vset.pattern.permute.xlu0 8
    %5510 = vperm.xlu0 %5509, %v1367
    %v5511 = vpop.permute.xlu0 %5510
    %v5514 = vunpack.c.l.s4 839922192
    %v5515 = vunpack.c.0.s8 %v5514
    %v5516 = vlaneseq
    %v5517 = vshrl.u32 %v5516, 7
    %v5518 = vsub.s32 %v5515, %v5517
    %v5519 = vrot.slane %v5511, %v5518
    %5520 = vset.pattern.permute.xlu0 8
    %5521 = vperm.xlu0 %5520, %v1368
    %v5522 = vpop.permute.xlu0 %5521
    %v5525 = vunpack.c.l.s4 839922192
    %v5526 = vunpack.c.0.s8 %v5525
    %v5527 = vlaneseq
    %v5528 = vshrl.u32 %v5527, 7
    %v5529 = vsub.s32 %v5526, %v5528
    %v5530 = vrot.slane %v5522, %v5529
    %5531 = vset.pattern.permute.xlu0 8
    %5532 = vperm.xlu0 %5531, %v1369
    %v5533 = vpop.permute.xlu0 %5532
    %v5536 = vunpack.c.l.s4 839922192
    %v5537 = vunpack.c.0.s8 %v5536
    %v5538 = vlaneseq
    %v5539 = vshrl.u32 %v5538, 7
    %v5540 = vsub.s32 %v5537, %v5539
    %v5541 = vrot.slane %v5533, %v5540
    %5542 = vset.pattern.permute.xlu0 8
    %5543 = vperm.xlu0 %5542, %v1370
    %v5544 = vpop.permute.xlu0 %5543
    %v5547 = vunpack.c.l.s4 839922192
    %v5548 = vunpack.c.0.s8 %v5547
    %v5549 = vlaneseq
    %v5550 = vshrl.u32 %v5549, 7
    %v5551 = vsub.s32 %v5548, %v5550
    %v5552 = vrot.slane %v5544, %v5551
    %5553 = vset.pattern.permute.xlu0 8
    %5554 = vperm.xlu0 %5553, %v1371
    %v5555 = vpop.permute.xlu0 %5554
    %v5558 = vunpack.c.l.s4 839922192
    %v5559 = vunpack.c.0.s8 %v5558
    %v5560 = vlaneseq
    %v5561 = vshrl.u32 %v5560, 7
    %v5562 = vsub.s32 %v5559, %v5561
    %v5563 = vrot.slane %v5555, %v5562
    %5564 = vset.pattern.permute.xlu0 8
    %5565 = vperm.xlu0 %5564, %v1372
    %v5566 = vpop.permute.xlu0 %5565
    %v5569 = vunpack.c.l.s4 839922192
    %v5570 = vunpack.c.0.s8 %v5569
    %v5571 = vlaneseq
    %v5572 = vshrl.u32 %v5571, 7
    %v5573 = vsub.s32 %v5570, %v5572
    %v5574 = vrot.slane %v5566, %v5573
    %5575 = vset.pattern.permute.xlu0 8
    %5576 = vperm.xlu0 %5575, %v1373
    %v5577 = vpop.permute.xlu0 %5576
    %v5580 = vunpack.c.l.s4 839922192
    %v5581 = vunpack.c.0.s8 %v5580
    %v5582 = vlaneseq
    %v5583 = vshrl.u32 %v5582, 7
    %v5584 = vsub.s32 %v5581, %v5583
    %v5585 = vrot.slane %v5577, %v5584
    %5586 = vset.pattern.permute.xlu0 8
    %5587 = vperm.xlu0 %5586, %v1374
    %v5588 = vpop.permute.xlu0 %5587
    %v5591 = vunpack.c.l.s4 839922192
    %v5592 = vunpack.c.0.s8 %v5591
    %v5593 = vlaneseq
    %v5594 = vshrl.u32 %v5593, 7
    %v5595 = vsub.s32 %v5592, %v5594
    %v5596 = vrot.slane %v5588, %v5595
    %5597 = vset.pattern.permute.xlu0 8
    %5598 = vperm.xlu0 %5597, %v1375
    %v5599 = vpop.permute.xlu0 %5598
    %v5602 = vunpack.c.l.s4 839922192
    %v5603 = vunpack.c.0.s8 %v5602
    %v5604 = vlaneseq
    %v5605 = vshrl.u32 %v5604, 7
    %v5606 = vsub.s32 %v5603, %v5605
    %v5607 = vrot.slane %v5599, %v5606
    %5608 = vset.pattern.permute.xlu0 8
    %5609 = vperm.xlu0 %5608, %v1376
    %v5610 = vpop.permute.xlu0 %5609
    %v5613 = vunpack.c.l.s4 839922192
    %v5614 = vunpack.c.0.s8 %v5613
    %v5615 = vlaneseq
    %v5616 = vshrl.u32 %v5615, 7
    %v5617 = vsub.s32 %v5614, %v5616
    %v5618 = vrot.slane %v5610, %v5617
    %5619 = vset.pattern.permute.xlu0 8
    %5620 = vperm.xlu0 %5619, %v1377
    %v5621 = vpop.permute.xlu0 %5620
    %v5624 = vunpack.c.l.s4 839922192
    %v5625 = vunpack.c.0.s8 %v5624
    %v5626 = vlaneseq
    %v5627 = vshrl.u32 %v5626, 7
    %v5628 = vsub.s32 %v5625, %v5627
    %v5629 = vrot.slane %v5621, %v5628
    %5630 = vset.pattern.permute.xlu0 8
    %5631 = vperm.xlu0 %5630, %v1378
    %v5632 = vpop.permute.xlu0 %5631
    %v5635 = vunpack.c.l.s4 839922192
    %v5636 = vunpack.c.0.s8 %v5635
    %v5637 = vlaneseq
    %v5638 = vshrl.u32 %v5637, 7
    %v5639 = vsub.s32 %v5636, %v5638
    %v5640 = vrot.slane %v5632, %v5639
    %5641 = vset.pattern.permute.xlu0 8
    %5642 = vperm.xlu0 %5641, %v1379
    %v5643 = vpop.permute.xlu0 %5642
    %v5646 = vunpack.c.l.s4 839922192
    %v5647 = vunpack.c.0.s8 %v5646
    %v5648 = vlaneseq
    %v5649 = vshrl.u32 %v5648, 7
    %v5650 = vsub.s32 %v5647, %v5649
    %v5651 = vrot.slane %v5643, %v5650
    %5652 = vset.pattern.permute.xlu0 8
    %5653 = vperm.xlu0 %5652, %v1380
    %v5654 = vpop.permute.xlu0 %5653
    %v5657 = vunpack.c.l.s4 839922192
    %v5658 = vunpack.c.0.s8 %v5657
    %v5659 = vlaneseq
    %v5660 = vshrl.u32 %v5659, 7
    %v5661 = vsub.s32 %v5658, %v5660
    %v5662 = vrot.slane %v5654, %v5661
    %5663 = vset.pattern.permute.xlu0 8
    %5664 = vperm.xlu0 %5663, %v1381
    %v5665 = vpop.permute.xlu0 %5664
    %v5668 = vunpack.c.l.s4 839922192
    %v5669 = vunpack.c.0.s8 %v5668
    %v5670 = vlaneseq
    %v5671 = vshrl.u32 %v5670, 7
    %v5672 = vsub.s32 %v5669, %v5671
    %v5673 = vrot.slane %v5665, %v5672
    %5674 = vset.pattern.permute.xlu0 8
    %5675 = vperm.xlu0 %5674, %v1382
    %v5676 = vpop.permute.xlu0 %5675
    %v5679 = vunpack.c.l.s4 839922192
    %v5680 = vunpack.c.0.s8 %v5679
    %v5681 = vlaneseq
    %v5682 = vshrl.u32 %v5681, 7
    %v5683 = vsub.s32 %v5680, %v5682
    %v5684 = vrot.slane %v5676, %v5683
    %5685 = vset.pattern.permute.xlu0 8
    %5686 = vperm.xlu0 %5685, %v1383
    %v5687 = vpop.permute.xlu0 %5686
    %v5690 = vunpack.c.l.s4 839922192
    %v5691 = vunpack.c.0.s8 %v5690
    %v5692 = vlaneseq
    %v5693 = vshrl.u32 %v5692, 7
    %v5694 = vsub.s32 %v5691, %v5693
    %v5695 = vrot.slane %v5687, %v5694
    %v5726 = vunpack.c.l.b16 %v5376
    %v5727 = vunpack.c.l.b16 %v5387
    %v5728 = vunpack.c.l.b16 %v5398
    %v5729 = vunpack.c.l.b16 %v5409
    %v5730 = vunpack.c.l.b16 %v5420
    %v5731 = vunpack.c.l.b16 %v5431
    %v5732 = vunpack.c.l.b16 %v5442
    %v5733 = vunpack.c.l.b16 %v5453
    %v5734 = vunpack.c.l.b16 %v5464
    %v5735 = vunpack.c.l.b16 %v5475
    %v5736 = vunpack.c.l.b16 %v5486
    %v5737 = vunpack.c.l.b16 %v5497
    %v5738 = vunpack.c.l.b16 %v5508
    %v5739 = vunpack.c.l.b16 %v5519
    %v5740 = vunpack.c.l.b16 %v5530
    %v5741 = vunpack.c.l.b16 %v5541
    %v5742 = vunpack.c.l.b16 %v5552
    %v5743 = vunpack.c.l.b16 %v5563
    %v5744 = vunpack.c.l.b16 %v5574
    %v5745 = vunpack.c.l.b16 %v5585
    %v5746 = vunpack.c.l.b16 %v5596
    %v5747 = vunpack.c.l.b16 %v5607
    %v5748 = vunpack.c.l.b16 %v5618
    %v5749 = vunpack.c.l.b16 %v5629
    %v5750 = vunpack.c.l.b16 %v5640
    %v5751 = vunpack.c.l.b16 %v5651
    %v5752 = vunpack.c.l.b16 %v5662
    %v5753 = vunpack.c.l.b16 %v5673
    %v5754 = vunpack.c.l.b16 %v5684
    %v5755 = vunpack.c.l.b16 %v5695
    %v5756 = vpack.c.b16 %v5727, %v5726
    %v5757 = vpack.c.b16 %v5729, %v5728
    %v5758 = vpack.c.b16 %v5731, %v5730
    %v5759 = vpack.c.b16 %v5733, %v5732
    %v5760 = vpack.c.b16 %v5735, %v5734
    %v5761 = vpack.c.b16 %v5737, %v5736
    %v5762 = vpack.c.b16 %v5739, %v5738
    %v5763 = vpack.c.b16 %v5741, %v5740
    %v5764 = vpack.c.b16 %v5743, %v5742
    %v5765 = vpack.c.b16 %v5745, %v5744
    %v5766 = vpack.c.b16 %v5747, %v5746
    %v5767 = vpack.c.b16 %v5749, %v5748
    %v5768 = vpack.c.b16 %v5751, %v5750
    %v5769 = vpack.c.b16 %v5753, %v5752
    %v5770 = vpack.c.b16 %v5755, %v5754
    %v5786 = vmul.bf16 %v3010, %v5756
    %v5787 = vmul.bf16 %v3013, %v5757
    %v5788 = vmul.bf16 %v3016, %v5758
    %v5789 = vmul.bf16 %v3019, %v5759
    %v5790 = vmul.bf16 %v3022, %v5760
    %v5791 = vmul.bf16 %v3025, %v5761
    %v5792 = vmul.bf16 %v3028, %v5762
    %v5793 = vmul.bf16 %v3031, %v5763
    %v5794 = vmul.bf16 %v3034, %v5764
    %v5795 = vmul.bf16 %v3037, %v5765
    %v5796 = vmul.bf16 %v3040, %v5766
    %v5797 = vmul.bf16 %v3043, %v5767
    %v5798 = vmul.bf16 %v3045, %v5768
    %v5799 = vmul.bf16 %v3063, %v5769
    %v5800 = vmul.bf16 %v3007, %v5770
    %5816 = vrot.lane.b32.xlu0 %v2472, 16
    %v5817 = vpop.permute.xlu0 %5816
    %5818 = vrot.lane.b32.xlu0 %v2473, 16
    %v5819 = vpop.permute.xlu0 %5818
    %5820 = vrot.lane.b32.xlu0 %v2474, 16
    %v5821 = vpop.permute.xlu0 %5820
    %5822 = vrot.lane.b32.xlu0 %v2475, 16
    %v5823 = vpop.permute.xlu0 %5822
    %5824 = vrot.lane.b32.xlu0 %v2476, 16
    %v5825 = vpop.permute.xlu0 %5824
    %5826 = vrot.lane.b32.xlu0 %v2477, 16
    %v5827 = vpop.permute.xlu0 %5826
    %5828 = vrot.lane.b32.xlu0 %v2478, 16
    %v5829 = vpop.permute.xlu0 %5828
    %5830 = vrot.lane.b32.xlu0 %v2479, 16
    %v5831 = vpop.permute.xlu0 %5830
    %5832 = vrot.lane.b32.xlu0 %v2480, 16
    %v5833 = vpop.permute.xlu0 %5832
    %5834 = vrot.lane.b32.xlu0 %v2481, 16
    %v5835 = vpop.permute.xlu0 %5834
    %5836 = vrot.lane.b32.xlu0 %v2482, 16
    %v5837 = vpop.permute.xlu0 %5836
    %5838 = vrot.lane.b32.xlu0 %v2483, 16
    %v5839 = vpop.permute.xlu0 %5838
    %5840 = vrot.lane.b32.xlu0 %v2484, 16
    %v5841 = vpop.permute.xlu0 %5840
    %5842 = vrot.lane.b32.xlu0 %v2485, 16
    %v5843 = vpop.permute.xlu0 %5842
    %5844 = vrot.lane.b32.xlu0 %v2486, 16
    %v5845 = vpop.permute.xlu0 %5844
    %5861 = vrot.lane.b32.xlu0 %v2985, 32
    %v5862 = vpop.permute.xlu0 %5861
    %5863 = vrot.lane.b32.xlu0 %v2986, 32
    %v5864 = vpop.permute.xlu0 %5863
    %5865 = vrot.lane.b32.xlu0 %v2987, 32
    %v5866 = vpop.permute.xlu0 %5865
    %5867 = vrot.lane.b32.xlu0 %v2988, 32
    %v5868 = vpop.permute.xlu0 %5867
    %5869 = vrot.lane.b32.xlu0 %v2989, 32
    %v5870 = vpop.permute.xlu0 %5869
    %5871 = vrot.lane.b32.xlu0 %v2990, 32
    %v5872 = vpop.permute.xlu0 %5871
    %5873 = vrot.lane.b32.xlu0 %v2991, 32
    %v5874 = vpop.permute.xlu0 %5873
    %5875 = vrot.lane.b32.xlu0 %v2992, 32
    %v5876 = vpop.permute.xlu0 %5875
    %5877 = vrot.lane.b32.xlu0 %v2993, 32
    %v5878 = vpop.permute.xlu0 %5877
    %5879 = vrot.lane.b32.xlu0 %v2994, 32
    %v5880 = vpop.permute.xlu0 %5879
    %5881 = vrot.lane.b32.xlu0 %v2995, 32
    %v5882 = vpop.permute.xlu0 %5881
    %5883 = vrot.lane.b32.xlu0 %v2996, 32
    %v5884 = vpop.permute.xlu0 %5883
    %5885 = vrot.lane.b32.xlu0 %v2997, 32
    %v5886 = vpop.permute.xlu0 %5885
    %5887 = vrot.lane.b32.xlu0 %v2998, 32
    %v5888 = vpop.permute.xlu0 %5887
    %5889 = vrot.lane.b32.xlu0 %v2999, 32
    %v5890 = vpop.permute.xlu0 %5889
    %5906 = vrot.lane.b32.xlu0 %v3484, 48
    %v5907 = vpop.permute.xlu0 %5906
    %5908 = vrot.lane.b32.xlu0 %v3485, 48
    %v5909 = vpop.permute.xlu0 %5908
    %5910 = vrot.lane.b32.xlu0 %v3486, 48
    %v5911 = vpop.permute.xlu0 %5910
    %5912 = vrot.lane.b32.xlu0 %v3487, 48
    %v5913 = vpop.permute.xlu0 %5912
    %5914 = vrot.lane.b32.xlu0 %v3488, 48
    %v5915 = vpop.permute.xlu0 %5914
    %5916 = vrot.lane.b32.xlu0 %v3489, 48
    %v5917 = vpop.permute.xlu0 %5916
    %5918 = vrot.lane.b32.xlu0 %v3490, 48
    %v5919 = vpop.permute.xlu0 %5918
    %5920 = vrot.lane.b32.xlu0 %v3491, 48
    %v5921 = vpop.permute.xlu0 %5920
    %5922 = vrot.lane.b32.xlu0 %v3492, 48
    %v5923 = vpop.permute.xlu0 %5922
    %5924 = vrot.lane.b32.xlu0 %v3493, 48
    %v5925 = vpop.permute.xlu0 %5924
    %5926 = vrot.lane.b32.xlu0 %v3494, 48
    %v5927 = vpop.permute.xlu0 %5926
    %5928 = vrot.lane.b32.xlu0 %v3495, 48
    %v5929 = vpop.permute.xlu0 %5928
    %5930 = vrot.lane.b32.xlu0 %v3496, 48
    %v5931 = vpop.permute.xlu0 %5930
    %5932 = vrot.lane.b32.xlu0 %v3497, 48
    %v5933 = vpop.permute.xlu0 %5932
    %5934 = vrot.lane.b32.xlu0 %v3498, 48
    %v5935 = vpop.permute.xlu0 %5934
    %5951 = vrot.lane.b32.xlu0 %v3919, 64
    %v5952 = vpop.permute.xlu0 %5951
    %5953 = vrot.lane.b32.xlu0 %v3920, 64
    %v5954 = vpop.permute.xlu0 %5953
    %5955 = vrot.lane.b32.xlu0 %v3921, 64
    %v5956 = vpop.permute.xlu0 %5955
    %5957 = vrot.lane.b32.xlu0 %v3922, 64
    %v5958 = vpop.permute.xlu0 %5957
    %5959 = vrot.lane.b32.xlu0 %v3923, 64
    %v5960 = vpop.permute.xlu0 %5959
    %5961 = vrot.lane.b32.xlu0 %v3924, 64
    %v5962 = vpop.permute.xlu0 %5961
    %5963 = vrot.lane.b32.xlu0 %v3925, 64
    %v5964 = vpop.permute.xlu0 %5963
    %5965 = vrot.lane.b32.xlu0 %v3926, 64
    %v5966 = vpop.permute.xlu0 %5965
    %5967 = vrot.lane.b32.xlu0 %v3927, 64
    %v5968 = vpop.permute.xlu0 %5967
    %5969 = vrot.lane.b32.xlu0 %v3928, 64
    %v5970 = vpop.permute.xlu0 %5969
    %5971 = vrot.lane.b32.xlu0 %v3929, 64
    %v5972 = vpop.permute.xlu0 %5971
    %5973 = vrot.lane.b32.xlu0 %v3930, 64
    %v5974 = vpop.permute.xlu0 %5973
    %5975 = vrot.lane.b32.xlu0 %v3931, 64
    %v5976 = vpop.permute.xlu0 %5975
    %5977 = vrot.lane.b32.xlu0 %v3932, 64
    %v5978 = vpop.permute.xlu0 %5977
    %5979 = vrot.lane.b32.xlu0 %v3933, 64
    %v5980 = vpop.permute.xlu0 %5979
    %5996 = vrot.lane.b32.xlu0 %v4354, 80
    %v5997 = vpop.permute.xlu0 %5996
    %5998 = vrot.lane.b32.xlu0 %v4355, 80
    %v5999 = vpop.permute.xlu0 %5998
    %6000 = vrot.lane.b32.xlu0 %v4356, 80
    %v6001 = vpop.permute.xlu0 %6000
    %6002 = vrot.lane.b32.xlu0 %v4357, 80
    %v6003 = vpop.permute.xlu0 %6002
    %6004 = vrot.lane.b32.xlu0 %v4358, 80
    %v6005 = vpop.permute.xlu0 %6004
    %6006 = vrot.lane.b32.xlu0 %v4359, 80
    %v6007 = vpop.permute.xlu0 %6006
    %6008 = vrot.lane.b32.xlu0 %v4360, 80
    %v6009 = vpop.permute.xlu0 %6008
    %6010 = vrot.lane.b32.xlu0 %v4361, 80
    %v6011 = vpop.permute.xlu0 %6010
    %6012 = vrot.lane.b32.xlu0 %v4362, 80
    %v6013 = vpop.permute.xlu0 %6012
    %6014 = vrot.lane.b32.xlu0 %v4363, 80
    %v6015 = vpop.permute.xlu0 %6014
    %6016 = vrot.lane.b32.xlu0 %v4364, 80
    %v6017 = vpop.permute.xlu0 %6016
    %6018 = vrot.lane.b32.xlu0 %v4365, 80
    %v6019 = vpop.permute.xlu0 %6018
    %6020 = vrot.lane.b32.xlu0 %v4366, 80
    %v6021 = vpop.permute.xlu0 %6020
    %6022 = vrot.lane.b32.xlu0 %v4367, 80
    %v6023 = vpop.permute.xlu0 %6022
    %6024 = vrot.lane.b32.xlu0 %v4368, 80
    %v6025 = vpop.permute.xlu0 %6024
    %6041 = vrot.lane.b32.xlu0 %v4868, 96
    %v6042 = vpop.permute.xlu0 %6041
    %6043 = vrot.lane.b32.xlu0 %v4869, 96
    %v6044 = vpop.permute.xlu0 %6043
    %6045 = vrot.lane.b32.xlu0 %v4870, 96
    %v6046 = vpop.permute.xlu0 %6045
    %6047 = vrot.lane.b32.xlu0 %v4871, 96
    %v6048 = vpop.permute.xlu0 %6047
    %6049 = vrot.lane.b32.xlu0 %v4872, 96
    %v6050 = vpop.permute.xlu0 %6049
    %6051 = vrot.lane.b32.xlu0 %v4873, 96
    %v6052 = vpop.permute.xlu0 %6051
    %6053 = vrot.lane.b32.xlu0 %v4874, 96
    %v6054 = vpop.permute.xlu0 %6053
    %6055 = vrot.lane.b32.xlu0 %v4875, 96
    %v6056 = vpop.permute.xlu0 %6055
    %6057 = vrot.lane.b32.xlu0 %v4876, 96
    %v6058 = vpop.permute.xlu0 %6057
    %6059 = vrot.lane.b32.xlu0 %v4877, 96
    %v6060 = vpop.permute.xlu0 %6059
    %6061 = vrot.lane.b32.xlu0 %v4878, 96
    %v6062 = vpop.permute.xlu0 %6061
    %6063 = vrot.lane.b32.xlu0 %v4879, 96
    %v6064 = vpop.permute.xlu0 %6063
    %6065 = vrot.lane.b32.xlu0 %v4880, 96
    %v6066 = vpop.permute.xlu0 %6065
    %6067 = vrot.lane.b32.xlu0 %v4881, 96
    %v6068 = vpop.permute.xlu0 %6067
    %6069 = vrot.lane.b32.xlu0 %v4882, 96
    %v6070 = vpop.permute.xlu0 %6069
    %6086 = vrot.lane.b32.xlu0 %v5351, 112
    %v6087 = vpop.permute.xlu0 %6086
    %6088 = vrot.lane.b32.xlu0 %v5352, 112
    %v6089 = vpop.permute.xlu0 %6088
    %6090 = vrot.lane.b32.xlu0 %v5353, 112
    %v6091 = vpop.permute.xlu0 %6090
    %6092 = vrot.lane.b32.xlu0 %v5354, 112
    %v6093 = vpop.permute.xlu0 %6092
    %6094 = vrot.lane.b32.xlu0 %v5355, 112
    %v6095 = vpop.permute.xlu0 %6094
    %6096 = vrot.lane.b32.xlu0 %v5356, 112
    %v6097 = vpop.permute.xlu0 %6096
    %6098 = vrot.lane.b32.xlu0 %v5357, 112
    %v6099 = vpop.permute.xlu0 %6098
    %6100 = vrot.lane.b32.xlu0 %v5358, 112
    %v6101 = vpop.permute.xlu0 %6100
    %6102 = vrot.lane.b32.xlu0 %v5359, 112
    %v6103 = vpop.permute.xlu0 %6102
    %6104 = vrot.lane.b32.xlu0 %v5360, 112
    %v6105 = vpop.permute.xlu0 %6104
    %6106 = vrot.lane.b32.xlu0 %v5361, 112
    %v6107 = vpop.permute.xlu0 %6106
    %6108 = vrot.lane.b32.xlu0 %v5362, 112
    %v6109 = vpop.permute.xlu0 %6108
    %6110 = vrot.lane.b32.xlu0 %v5363, 112
    %v6111 = vpop.permute.xlu0 %6110
    %6112 = vrot.lane.b32.xlu0 %v5364, 112
    %v6113 = vpop.permute.xlu0 %6112
    %6114 = vrot.lane.b32.xlu0 %v5365, 112
    %v6115 = vpop.permute.xlu0 %6114
    %vm6116 = vcmask 130048
    %v6119 = vsel %vm6116, %v1973, %v5817
    %v6122 = vsel %vm6116, %v1974, %v5819
    %v6125 = vsel %vm6116, %v1975, %v5821
    %v6128 = vsel %vm6116, %v1976, %v5823
    %v6131 = vsel %vm6116, %v1977, %v5825
    %v6134 = vsel %vm6116, %v1978, %v5827
    %v6137 = vsel %vm6116, %v1979, %v5829
    %v6140 = vsel %vm6116, %v1980, %v5831
    %v6143 = vsel %vm6116, %v1981, %v5833
    %v6146 = vsel %vm6116, %v1982, %v5835
    %v6149 = vsel %vm6116, %v1983, %v5837
    %v6152 = vsel %vm6116, %v1984, %v5839
    %v6155 = vsel %vm6116, %v1985, %v5841
    %v6158 = vsel %vm6116, %v1986, %v5843
    %v6161 = vsel %vm6116, %v1987, %v5845
    %vm6162 = vcmask 261120
    %v6164 = vsel %vm6162, %v6119, %v5862
    %v6166 = vsel %vm6162, %v6122, %v5864
    %v6168 = vsel %vm6162, %v6125, %v5866
    %v6170 = vsel %vm6162, %v6128, %v5868
    %v6172 = vsel %vm6162, %v6131, %v5870
    %v6174 = vsel %vm6162, %v6134, %v5872
    %v6176 = vsel %vm6162, %v6137, %v5874
    %v6178 = vsel %vm6162, %v6140, %v5876
    %v6180 = vsel %vm6162, %v6143, %v5878
    %v6182 = vsel %vm6162, %v6146, %v5880
    %v6184 = vsel %vm6162, %v6149, %v5882
    %v6186 = vsel %vm6162, %v6152, %v5884
    %v6188 = vsel %vm6162, %v6155, %v5886
    %v6190 = vsel %vm6162, %v6158, %v5888
    %v6192 = vsel %vm6162, %v6161, %v5890
    %vm6193 = vcmask 392192
    %v6195 = vsel %vm6193, %v6164, %v5907
    %v6197 = vsel %vm6193, %v6166, %v5909
    %v6199 = vsel %vm6193, %v6168, %v5911
    %v6201 = vsel %vm6193, %v6170, %v5913
    %v6203 = vsel %vm6193, %v6172, %v5915
    %v6205 = vsel %vm6193, %v6174, %v5917
    %v6207 = vsel %vm6193, %v6176, %v5919
    %v6209 = vsel %vm6193, %v6178, %v5921
    %v6211 = vsel %vm6193, %v6180, %v5923
    %v6213 = vsel %vm6193, %v6182, %v5925
    %v6215 = vsel %vm6193, %v6184, %v5927
    %v6217 = vsel %vm6193, %v6186, %v5929
    %v6219 = vsel %vm6193, %v6188, %v5931
    %v6221 = vsel %vm6193, %v6190, %v5933
    %v6223 = vsel %vm6193, %v6192, %v5935
    %vm6224 = vcmask 523264
    %v6226 = vsel %vm6224, %v6195, %v5952
    %v6228 = vsel %vm6224, %v6197, %v5954
    %v6230 = vsel %vm6224, %v6199, %v5956
    %v6232 = vsel %vm6224, %v6201, %v5958
    %v6234 = vsel %vm6224, %v6203, %v5960
    %v6236 = vsel %vm6224, %v6205, %v5962
    %v6238 = vsel %vm6224, %v6207, %v5964
    %v6240 = vsel %vm6224, %v6209, %v5966
    %v6242 = vsel %vm6224, %v6211, %v5968
    %v6244 = vsel %vm6224, %v6213, %v5970
    %v6246 = vsel %vm6224, %v6215, %v5972
    %v6248 = vsel %vm6224, %v6217, %v5974
    %v6250 = vsel %vm6224, %v6219, %v5976
    %v6252 = vsel %vm6224, %v6221, %v5978
    %v6254 = vsel %vm6224, %v6223, %v5980
    %vm6255 = vcmask 654336
    %v6257 = vsel %vm6255, %v6226, %v5997
    %v6259 = vsel %vm6255, %v6228, %v5999
    %v6261 = vsel %vm6255, %v6230, %v6001
    %v6263 = vsel %vm6255, %v6232, %v6003
    %v6265 = vsel %vm6255, %v6234, %v6005
    %v6267 = vsel %vm6255, %v6236, %v6007
    %v6269 = vsel %vm6255, %v6238, %v6009
    %v6271 = vsel %vm6255, %v6240, %v6011
    %v6273 = vsel %vm6255, %v6242, %v6013
    %v6275 = vsel %vm6255, %v6244, %v6015
    %v6277 = vsel %vm6255, %v6246, %v6017
    %v6279 = vsel %vm6255, %v6248, %v6019
    %v6281 = vsel %vm6255, %v6250, %v6021
    %v6283 = vsel %vm6255, %v6252, %v6023
    %v6285 = vsel %vm6255, %v6254, %v6025
    %vm6286 = vcmask 785408
    %v6288 = vsel %vm6286, %v6257, %v6042
    %v6290 = vsel %vm6286, %v6259, %v6044
    %v6292 = vsel %vm6286, %v6261, %v6046
    %v6294 = vsel %vm6286, %v6263, %v6048
    %v6296 = vsel %vm6286, %v6265, %v6050
    %v6298 = vsel %vm6286, %v6267, %v6052
    %v6300 = vsel %vm6286, %v6269, %v6054
    %v6302 = vsel %vm6286, %v6271, %v6056
    %v6304 = vsel %vm6286, %v6273, %v6058
    %v6306 = vsel %vm6286, %v6275, %v6060
    %v6308 = vsel %vm6286, %v6277, %v6062
    %v6310 = vsel %vm6286, %v6279, %v6064
    %v6312 = vsel %vm6286, %v6281, %v6066
    %v6314 = vsel %vm6286, %v6283, %v6068
    %v6316 = vsel %vm6286, %v6285, %v6070
    %vm6317 = vcmask 916480
    %v6319 = vsel %vm6317, %v6288, %v6087
    %v6322 = vsel %vm6317, %v6290, %v6089
    %v6325 = vsel %vm6317, %v6292, %v6091
    %v6328 = vsel %vm6317, %v6294, %v6093
    %v6331 = vsel %vm6317, %v6296, %v6095
    %v6334 = vsel %vm6317, %v6298, %v6097
    %v6337 = vsel %vm6317, %v6300, %v6099
    %v6340 = vsel %vm6317, %v6302, %v6101
    %v6343 = vsel %vm6317, %v6304, %v6103
    %v6346 = vsel %vm6317, %v6306, %v6105
    %v6349 = vsel %vm6317, %v6308, %v6107
    %v6352 = vsel %vm6317, %v6310, %v6109
    %v6355 = vsel %vm6317, %v6312, %v6111
    %v6358 = vsel %vm6317, %v6314, %v6113
    %v6361 = vsel %vm6317, %v6316, %v6115
    %v6363 = vld [vmem:[%s4] sm:$0xf]
    %v6364 = vld [vmem:[%s4 + $0x4] sm:$0xf]
    %v6365 = vld [vmem:[%s4 + $0x8] sm:$0xf]
    %v6366 = vld [vmem:[%s4 + $0xc] sm:$0xf]
    %v6367 = vld [vmem:[%s4 + $0x10] sm:$0xf]
    %v6368 = vld [vmem:[%s4 + $0x14] sm:$0xf]
    %v6369 = vld [vmem:[%s4 + $0x18] sm:$0xf]
    %v6370 = vld [vmem:[%s4 + $0x1c] sm:$0xf]
    %v6371 = vld [vmem:[%s4 + $0x20] sm:$0xf]
    %v6372 = vld [vmem:[%s4 + $0x24] sm:$0xf]
    %v6373 = vld [vmem:[%s4 + $0x28] sm:$0xf]
    %v6374 = vld [vmem:[%s4 + $0x2c] sm:$0xf]
    %v6375 = vld [vmem:[%s4 + $0x30] sm:$0xf]
    %v6376 = vld [vmem:[%s4 + $0x34] sm:$0xf]
    %v6377 = vld [vmem:[%s4 + $0x38] sm:$0xf]
    %v6378 = vld [vmem:[%s4 + $0x3c] sm:$0xf]
    %v6379 = vld [vmem:[%s4 + $0x40] sm:$0xf]
    %v6380 = vld [vmem:[%s4 + $0x44] sm:$0xf]
    %v6399 = vunpack.c.l.b16 %v6363
    %v6400 = vunpack.c.l.b16 %v6364
    %v6401 = vunpack.c.l.b16 %v6365
    %v6402 = vunpack.c.l.b16 %v6366
    %v6403 = vunpack.c.l.b16 %v6367
    %v6404 = vunpack.c.l.b16 %v6368
    %v6405 = vunpack.c.l.b16 %v6369
    %v6406 = vunpack.c.l.b16 %v6370
    %v6407 = vunpack.c.l.b16 %v6371
    %v6408 = vunpack.c.l.b16 %v6372
    %v6409 = vunpack.c.l.b16 %v6373
    %v6410 = vunpack.c.l.b16 %v6374
    %v6411 = vunpack.c.l.b16 %v6375
    %v6412 = vunpack.c.l.b16 %v6376
    %v6413 = vunpack.c.l.b16 %v6377
    %v6414 = vunpack.c.l.b16 %v6378
    %v6415 = vunpack.c.l.b16 %v6379
    %v6416 = vunpack.c.l.b16 %v6380
    %v6417 = vpack.c.b16 %v6400, %v6399
    %v6418 = vpack.c.b16 %v6402, %v6401
    %v6419 = vpack.c.b16 %v6404, %v6403
    %v6420 = vpack.c.b16 %v6406, %v6405
    %v6421 = vpack.c.b16 %v6408, %v6407
    %v6422 = vpack.c.b16 %v6410, %v6409
    %v6423 = vpack.c.b16 %v6412, %v6411
    %v6424 = vpack.c.b16 %v6414, %v6413
    %v6425 = vpack.c.b16 %v6416, %v6415
    %v6436 = vsel %vm6116, %v5786, 0
    %v6439 = vsel %vm6116, %v5787, 0
    %v6442 = vsel %vm6116, %v5788, 0
    %v6445 = vsel %vm6116, %v5789, 0
    %v6448 = vsel %vm6116, %v5790, 0
    %v6451 = vsel %vm6116, %v5791, 0
    %v6454 = vsel %vm6116, %v5792, 0
    %v6457 = vsel %vm6116, %v5793, 0
    %v6460 = vsel %vm6116, %v5794, 0
    %v6463 = vsel %vm6116, %v5795, 0
    %v6466 = vsel %vm6116, %v5796, 0
    %v6469 = vsel %vm6116, %v5797, 0
    %v6472 = vsel %vm6116, %v5798, 0
    %v6475 = vsel %vm6116, %v5799, 0
    %v6478 = vsel %vm6116, %v5800, 0
    %6480 = vmatprep.subr.bf16.mxu0 0
    %6481 = vmatpush1.bf16.msra.mxu0 %v6417
    %6482 = vmatprep.subr.bf16.mxu0 0
    %6483 = vmatpush1.bf16.msra.mxu0 %v6418
    %6484 = vmatprep.subr.bf16.mxu0 0
    %6485 = vmatpush1.bf16.msra.mxu0 %v6419
    %6486 = vmatprep.subr.bf16.mxu0 0
    %6487 = vmatpush1.bf16.msra.mxu0 %v6420
    %6488 = vmatprep.subr.bf16.mxu0 0
    %6489 = vmatpush1.bf16.msra.mxu0 %v6421
    %6490 = vmatprep.subr.bf16.mxu0 0
    %6491 = vmatpush1.bf16.msra.mxu0 %v6422
    %6492 = vmatprep.subr.bf16.mxu0 0
    %6493 = vmatpush1.bf16.msra.mxu0 %v6423
    %6494 = vmatprep.subr.bf16.mxu0 0
    %6495 = vmatpush1.bf16.msra.mxu0 %v6424
    %6496 = vmatprep.subr.bf16.mxu0 0
    %6497 = vmatpush1.bf16.msra.mxu0 %v6425
    %6498 = vmatprep.subr.bf16.mxu0 0
    %6499 = vmatpush1.bf16.msra.mxu0 0
    %6500 = vmatprep.subr.bf16.mxu0 0
    %6501 = vmatpush1.bf16.msra.mxu0 0
    %6502 = vmatprep.subr.bf16.mxu0 0
    %6503 = vmatpush1.bf16.msra.mxu0 0
    %6504 = vmatprep.subr.bf16.mxu0 0
    %6505 = vmatpush1.bf16.msra.mxu0 0
    %6506 = vmatprep.subr.bf16.mxu0 0
    %6507 = vmatpush1.bf16.msra.mxu0 0
    %6508 = vmatprep.subr.bf16.mxu0 0
    %6509 = vmatpush1.bf16.msra.mxu0 0
    %6510 = vmatprep.subr.bf16.mxu0 0
    %6511 = vmatpush1.bf16.msra.mxu0 0
    %6512 = vmatprep.mubr.bf16.mxu0 %v6436
    %6513 = vmatmul.mubr.bf16.gmra.mrb[0].mxu0 %v6319
    %v6514 = vpop.f32.mrb[0].mxu0
    %v6515 = vadd.f32 0.0, %v6514
    %v6516 = vpop.f32.mrb[0].mxu0
    %v6517 = vpop.f32.mrb[0].mxu0
    %v6518 = vadd.f32 0.0, %v6517
    %v6519 = vpop.f32.mrb[0].mxu0
    %6520 = vmatprep.mubr.bf16.mxu0 %v6439
    %6521 = vmatmul.mubr.bf16.gmra.mrb[0].mxu0 %v6322
    %v6522 = vpop.f32.mrb[0].mxu0
    %v6523 = vadd.f32 0.0, %v6522
    %v6524 = vpop.f32.mrb[0].mxu0
    %v6525 = vpop.f32.mrb[0].mxu0
    %v6526 = vadd.f32 0.0, %v6525
    %v6527 = vpop.f32.mrb[0].mxu0
    %6528 = vmatprep.mubr.bf16.mxu0 %v6442
    %6529 = vmatmul.mubr.bf16.gmra.mrb[0].mxu0 %v6325
    %v6530 = vpop.f32.mrb[0].mxu0
    %v6531 = vadd.f32 0.0, %v6530
    %v6532 = vpop.f32.mrb[0].mxu0
    %v6533 = vpop.f32.mrb[0].mxu0
    %v6534 = vadd.f32 0.0, %v6533
    %v6535 = vpop.f32.mrb[0].mxu0
    %6536 = vmatprep.mubr.bf16.mxu0 %v6445
    %6537 = vmatmul.mubr.bf16.gmra.mrb[0].mxu0 %v6328
    %v6538 = vpop.f32.mrb[0].mxu0
    %v6539 = vadd.f32 0.0, %v6538
    %v6540 = vpop.f32.mrb[0].mxu0
    %v6541 = vpop.f32.mrb[0].mxu0
    %v6542 = vadd.f32 0.0, %v6541
    %v6543 = vpop.f32.mrb[0].mxu0
    %6544 = vmatprep.mubr.bf16.mxu0 %v6448
    %6545 = vmatmul.mubr.bf16.gmra.mrb[0].mxu0 %v6331
    %v6546 = vpop.f32.mrb[0].mxu0
    %v6547 = vadd.f32 0.0, %v6546
    %v6548 = vpop.f32.mrb[0].mxu0
    %v6549 = vpop.f32.mrb[0].mxu0
    %v6550 = vadd.f32 0.0, %v6549
    %v6551 = vpop.f32.mrb[0].mxu0
    %6552 = vmatprep.mubr.bf16.mxu0 %v6451
    %6553 = vmatmul.mubr.bf16.gmra.mrb[0].mxu0 %v6334
    %v6554 = vpop.f32.mrb[0].mxu0
    %v6555 = vadd.f32 0.0, %v6554
    %v6556 = vpop.f32.mrb[0].mxu0
    %v6557 = vpop.f32.mrb[0].mxu0
    %v6558 = vadd.f32 0.0, %v6557
    %v6559 = vpop.f32.mrb[0].mxu0
    %6560 = vmatprep.mubr.bf16.mxu0 %v6454
    %6561 = vmatmul.mubr.bf16.gmra.mrb[0].mxu0 %v6337
    %v6562 = vpop.f32.mrb[0].mxu0
    %v6563 = vadd.f32 0.0, %v6562
    %v6564 = vpop.f32.mrb[0].mxu0
    %v6565 = vpop.f32.mrb[0].mxu0
    %v6566 = vadd.f32 0.0, %v6565
    %v6567 = vpop.f32.mrb[0].mxu0
    %6568 = vmatprep.mubr.bf16.mxu0 %v6457
    %6569 = vmatmul.mubr.bf16.gmra.mrb[0].mxu0 %v6340
    %v6570 = vpop.f32.mrb[0].mxu0
    %v6571 = vadd.f32 0.0, %v6570
    %v6572 = vpop.f32.mrb[0].mxu0
    %v6573 = vpop.f32.mrb[0].mxu0
    %v6574 = vadd.f32 0.0, %v6573
    %v6575 = vpop.f32.mrb[0].mxu0
    %6576 = vmatprep.mubr.bf16.mxu0 %v6460
    %6577 = vmatmul.mubr.bf16.gmra.mrb[0].mxu0 %v6343
    %v6578 = vpop.f32.mrb[0].mxu0
    %v6579 = vadd.f32 0.0, %v6578
    %v6580 = vpop.f32.mrb[0].mxu0
    %v6581 = vpop.f32.mrb[0].mxu0
    %v6582 = vadd.f32 0.0, %v6581
    %v6583 = vpop.f32.mrb[0].mxu0
    %6584 = vmatprep.mubr.bf16.mxu0 %v6463
    %6585 = vmatmul.mubr.bf16.gmra.mrb[0].mxu0 %v6346
    %v6586 = vpop.f32.mrb[0].mxu0
    %v6587 = vadd.f32 0.0, %v6586
    %v6588 = vpop.f32.mrb[0].mxu0
    %v6589 = vpop.f32.mrb[0].mxu0
    %v6590 = vadd.f32 0.0, %v6589
    %v6591 = vpop.f32.mrb[0].mxu0
    %6592 = vmatprep.mubr.bf16.mxu0 %v6466
    %6593 = vmatmul.mubr.bf16.gmra.mrb[0].mxu0 %v6349
    %v6594 = vpop.f32.mrb[0].mxu0
    %v6595 = vadd.f32 0.0, %v6594
    %v6596 = vpop.f32.mrb[0].mxu0
    %v6597 = vpop.f32.mrb[0].mxu0
    %v6598 = vadd.f32 0.0, %v6597
    %v6599 = vpop.f32.mrb[0].mxu0
    %6600 = vmatprep.mubr.bf16.mxu0 %v6469
    %6601 = vmatmul.mubr.bf16.gmra.mrb[0].mxu0 %v6352
    %v6602 = vpop.f32.mrb[0].mxu0
    %v6603 = vadd.f32 0.0, %v6602
    %v6604 = vpop.f32.mrb[0].mxu0
    %v6605 = vpop.f32.mrb[0].mxu0
    %v6606 = vadd.f32 0.0, %v6605
    %v6607 = vpop.f32.mrb[0].mxu0
    %6608 = vmatprep.mubr.bf16.mxu0 %v6472
    %6609 = vmatmul.mubr.bf16.gmra.mrb[0].mxu0 %v6355
    %v6610 = vpop.f32.mrb[0].mxu0
    %v6611 = vadd.f32 0.0, %v6610
    %v6612 = vpop.f32.mrb[0].mxu0
    %v6613 = vpop.f32.mrb[0].mxu0
    %v6614 = vadd.f32 0.0, %v6613
    %v6615 = vpop.f32.mrb[0].mxu0
    %6616 = vmatprep.mubr.bf16.mxu0 %v6475
    %6617 = vmatmul.mubr.bf16.gmra.mrb[0].mxu0 %v6358
    %v6618 = vpop.f32.mrb[0].mxu0
    %v6619 = vadd.f32 0.0, %v6618
    %v6620 = vpop.f32.mrb[0].mxu0
    %v6621 = vpop.f32.mrb[0].mxu0
    %v6622 = vadd.f32 0.0, %v6621
    %v6623 = vpop.f32.mrb[0].mxu0
    %6624 = vmatprep.mubr.bf16.mxu0 %v6478
    %6625 = vmatmul.mubr.bf16.gmra.mrb[0].mxu0 %v6361
    %v6626 = vpop.f32.mrb[0].mxu0
    %v6627 = vadd.f32 0.0, %v6626
    %v6628 = vpop.f32.mrb[0].mxu0
    %v6629 = vpop.f32.mrb[0].mxu0
    %v6630 = vadd.f32 0.0, %v6629
    %v6631 = vpop.f32.mrb[0].mxu0
    %6632 = vdwg.mxu0
    %v6633 = vpack.c.bf16 %v6518, %v6515
    %v6634 = vpack.c.bf16 %v6526, %v6523
    %v6635 = vpack.c.bf16 %v6534, %v6531
    %v6636 = vpack.c.bf16 %v6542, %v6539
    %v6637 = vpack.c.bf16 %v6550, %v6547
    %v6638 = vpack.c.bf16 %v6558, %v6555
    %v6639 = vpack.c.bf16 %v6566, %v6563
    %v6640 = vpack.c.bf16 %v6574, %v6571
    %v6641 = vpack.c.bf16 %v6582, %v6579
    %v6642 = vpack.c.bf16 %v6590, %v6587
    %v6643 = vpack.c.bf16 %v6598, %v6595
    %v6644 = vpack.c.bf16 %v6606, %v6603
    %v6645 = vpack.c.bf16 %v6614, %v6611
    %v6646 = vpack.c.bf16 %v6622, %v6619
    %v6647 = vpack.c.bf16 %v6630, %v6627
    %v6648 = vld [vmem:[%s6] sm:$0xff]
    %v6649 = vld [vmem:[%s6 + $0x8] sm:$0xff]
    %v6650 = vld [vmem:[%s6 + $0x10] sm:$0xff]
    %v6651 = vld [vmem:[%s6 + $0x18] sm:$0xff]
    %v6652 = vld [vmem:[%s6 + $0x20] sm:$0xff]
    %v6653 = vld [vmem:[%s6 + $0x28] sm:$0xff]
    %v6654 = vld [vmem:[%s6 + $0x30] sm:$0xff]
    %v6655 = vld [vmem:[%s6 + $0x38] sm:$0x33]
    %v6664 = vunpack.c.l.b16 %v6648
    %v6665 = vunpack.c.h.b16 %v6648
    %v6666 = vunpack.c.l.b16 %v6649
    %v6667 = vunpack.c.h.b16 %v6649
    %v6668 = vunpack.c.l.b16 %v6650
    %v6669 = vunpack.c.h.b16 %v6650
    %v6670 = vunpack.c.l.b16 %v6651
    %v6671 = vunpack.c.h.b16 %v6651
    %v6672 = vunpack.c.l.b16 %v6652
    %v6673 = vunpack.c.h.b16 %v6652
    %v6674 = vunpack.c.l.b16 %v6653
    %v6675 = vunpack.c.h.b16 %v6653
    %v6676 = vunpack.c.l.b16 %v6654
    %v6677 = vunpack.c.h.b16 %v6654
    %v6678 = vunpack.c.l.b16 %v6655
    %v6679 = vunpack.c.h.b16 %v6655
    %v6680 = vpack.c.b16 %v6666, %v6664
    %v6681 = vpack.c.b16 %v6667, %v6665
    %v6682 = vpack.c.b16 %v6670, %v6668
    %v6683 = vpack.c.b16 %v6671, %v6669
    %v6684 = vpack.c.b16 %v6674, %v6672
    %v6685 = vpack.c.b16 %v6675, %v6673
    %v6686 = vpack.c.b16 %v6678, %v6676
    %v6687 = vpack.c.b16 %v6679, %v6677
    %v6693 = vsel %vm6317, %v6681, 0
    %v6696 = vsel %vm6317, %v6683, 0
    %v6699 = vsel %vm6317, %v6685, 0
    %v6702 = vsel %vm6317, %v6687, 0
    %6704 = vmatprep.subr.bf16.mxu0 0
    %6705 = vmatpush1.bf16.msra.mxu0 %v6633
    %6706 = vmatprep.subr.bf16.mxu0 0
    %6707 = vmatpush1.bf16.msra.mxu0 %v6634
    %6708 = vmatprep.subr.bf16.mxu0 0
    %6709 = vmatpush1.bf16.msra.mxu0 %v6635
    %6710 = vmatprep.subr.bf16.mxu0 0
    %6711 = vmatpush1.bf16.msra.mxu0 %v6636
    %6712 = vmatprep.subr.bf16.mxu0 0
    %6713 = vmatpush1.bf16.msra.mxu0 %v6637
    %6714 = vmatprep.subr.bf16.mxu0 0
    %6715 = vmatpush1.bf16.msra.mxu0 %v6638
    %6716 = vmatprep.subr.bf16.mxu0 0
    %6717 = vmatpush1.bf16.msra.mxu0 %v6639
    %6718 = vmatprep.subr.bf16.mxu0 0
    %6719 = vmatpush1.bf16.msra.mxu0 %v6640
    %6720 = vmatprep.subr.bf16.mxu0 0
    %6721 = vmatpush1.bf16.msra.mxu0 %v6641
    %6722 = vmatprep.subr.bf16.mxu0 0
    %6723 = vmatpush1.bf16.msra.mxu0 %v6642
    %6724 = vmatprep.subr.bf16.mxu0 0
    %6725 = vmatpush1.bf16.msra.mxu0 %v6643
    %6726 = vmatprep.subr.bf16.mxu0 0
    %6727 = vmatpush1.bf16.msra.mxu0 %v6644
    %6728 = vmatprep.subr.bf16.mxu0 0
    %6729 = vmatpush1.bf16.msra.mxu0 %v6645
    %6730 = vmatprep.subr.bf16.mxu0 0
    %6731 = vmatpush1.bf16.msra.mxu0 %v6646
    %6732 = vmatprep.subr.bf16.mxu0 0
    %6733 = vmatpush1.bf16.msra.mxu0 %v6647
    %6734 = vmatprep.subr.bf16.mxu0 0
    %6735 = vmatpush1.bf16.msra.mxu0 0
    %6736 = vmatprep.mubr.bf16.mxu0 %v6693
    %6737 = vmatmul.mubr.bf16.gmra.mrb[0].mxu0 %v6680
    %v6738 = vpop.f32.mrb[0].mxu0
    %v6739 = vadd.f32 0.0, %v6738
    %v6740 = vpop.f32.mrb[0].mxu0
    %v6741 = vpop.f32.mrb[0].mxu0
    %v6742 = vadd.f32 0.0, %v6741
    %v6743 = vpop.f32.mrb[0].mxu0
    %6744 = vmatprep.mubr.bf16.mxu0 %v6696
    %6745 = vmatmul.mubr.bf16.gmra.mrb[0].mxu0 %v6682
    %v6746 = vpop.f32.mrb[0].mxu0
    %v6747 = vadd.f32 0.0, %v6746
    %v6748 = vpop.f32.mrb[0].mxu0
    %v6749 = vpop.f32.mrb[0].mxu0
    %v6750 = vadd.f32 0.0, %v6749
    %v6751 = vpop.f32.mrb[0].mxu0
    %6752 = vmatprep.mubr.bf16.mxu0 %v6699
    %6753 = vmatmul.mubr.bf16.gmra.mrb[0].mxu0 %v6684
    %v6754 = vpop.f32.mrb[0].mxu0
    %v6755 = vadd.f32 0.0, %v6754
    %v6756 = vpop.f32.mrb[0].mxu0
    %v6757 = vpop.f32.mrb[0].mxu0
    %v6758 = vadd.f32 0.0, %v6757
    %v6759 = vpop.f32.mrb[0].mxu0
    %6760 = vmatprep.mubr.bf16.mxu0 %v6702
    %6761 = vmatmul.mubr.bf16.gmra.mrb[0].mxu0 %v6686
    %v6762 = vpop.f32.mrb[0].mxu0
    %v6763 = vadd.f32 0.0, %v6762
    %v6764 = vpop.f32.mrb[0].mxu0
    %v6765 = vpop.f32.mrb[0].mxu0
    %v6766 = vadd.f32 0.0, %v6765
    %v6767 = vpop.f32.mrb[0].mxu0
    %6768 = vdwg.mxu0
    %s6769 = scalar_lea.vmem %s6, 64
    %v6770 = vld [vmem:[%s6769] sm:$0xff]
    %v6771 = vld [vmem:[%s6769 + $0x8] sm:$0xff]
    %v6772 = vld [vmem:[%s6769 + $0x10] sm:$0xff]
    %v6773 = vld [vmem:[%s6769 + $0x18] sm:$0xff]
    %v6774 = vld [vmem:[%s6769 + $0x20] sm:$0xff]
    %v6775 = vld [vmem:[%s6769 + $0x28] sm:$0xff]
    %v6776 = vld [vmem:[%s6769 + $0x30] sm:$0xff]
    %v6777 = vld [vmem:[%s6769 + $0x38] sm:$0x33]
    %v6786 = vunpack.c.l.b16 %v6770
    %v6787 = vunpack.c.h.b16 %v6770
    %v6788 = vunpack.c.l.b16 %v6771
    %v6789 = vunpack.c.h.b16 %v6771
    %v6790 = vunpack.c.l.b16 %v6772
    %v6791 = vunpack.c.h.b16 %v6772
    %v6792 = vunpack.c.l.b16 %v6773
    %v6793 = vunpack.c.h.b16 %v6773
    %v6794 = vunpack.c.l.b16 %v6774
    %v6795 = vunpack.c.h.b16 %v6774
    %v6796 = vunpack.c.l.b16 %v6775
    %v6797 = vunpack.c.h.b16 %v6775
    %v6798 = vunpack.c.l.b16 %v6776
    %v6799 = vunpack.c.h.b16 %v6776
    %v6800 = vunpack.c.l.b16 %v6777
    %v6801 = vunpack.c.h.b16 %v6777
    %v6802 = vpack.c.b16 %v6788, %v6786
    %v6803 = vpack.c.b16 %v6789, %v6787
    %v6804 = vpack.c.b16 %v6792, %v6790
    %v6805 = vpack.c.b16 %v6793, %v6791
    %v6806 = vpack.c.b16 %v6796, %v6794
    %v6807 = vpack.c.b16 %v6797, %v6795
    %v6808 = vpack.c.b16 %v6800, %v6798
    %v6809 = vpack.c.b16 %v6801, %v6799
    %v6815 = vsel %vm6317, %v6803, 0
    %v6818 = vsel %vm6317, %v6805, 0
    %v6821 = vsel %vm6317, %v6807, 0
    %v6824 = vsel %vm6317, %v6809, 0
    %6826 = vmatprep.subr.bf16.mxu0 0
    %6827 = vmatpush1.bf16.msra.mxu0 %v6633
    %6828 = vmatprep.subr.bf16.mxu0 0
    %6829 = vmatpush1.bf16.msra.mxu0 %v6634
    %6830 = vmatprep.subr.bf16.mxu0 0
    %6831 = vmatpush1.bf16.msra.mxu0 %v6635
    %6832 = vmatprep.subr.bf16.mxu0 0
    %6833 = vmatpush1.bf16.msra.mxu0 %v6636
    %6834 = vmatprep.subr.bf16.mxu0 0
    %6835 = vmatpush1.bf16.msra.mxu0 %v6637
    %6836 = vmatprep.subr.bf16.mxu0 0
    %6837 = vmatpush1.bf16.msra.mxu0 %v6638
    %6838 = vmatprep.subr.bf16.mxu0 0
    %6839 = vmatpush1.bf16.msra.mxu0 %v6639
    %6840 = vmatprep.subr.bf16.mxu0 0
    %6841 = vmatpush1.bf16.msra.mxu0 %v6640
    %6842 = vmatprep.subr.bf16.mxu0 0
    %6843 = vmatpush1.bf16.msra.mxu0 %v6641
    %6844 = vmatprep.subr.bf16.mxu0 0
    %6845 = vmatpush1.bf16.msra.mxu0 %v6642
    %6846 = vmatprep.subr.bf16.mxu0 0
    %6847 = vmatpush1.bf16.msra.mxu0 %v6643
    %6848 = vmatprep.subr.bf16.mxu0 0
    %6849 = vmatpush1.bf16.msra.mxu0 %v6644
    %6850 = vmatprep.subr.bf16.mxu0 0
    %6851 = vmatpush1.bf16.msra.mxu0 %v6645
    %6852 = vmatprep.subr.bf16.mxu0 0
    %6853 = vmatpush1.bf16.msra.mxu0 %v6646
    %6854 = vmatprep.subr.bf16.mxu0 0
    %6855 = vmatpush1.bf16.msra.mxu0 %v6647
    %6856 = vmatprep.subr.bf16.mxu0 0
    %6857 = vmatpush1.bf16.msra.mxu0 0
    %6858 = vmatprep.mubr.bf16.mxu0 %v6815
    %6859 = vmatmul.mubr.bf16.gmra.mrb[0].mxu0 %v6802
    %v6860 = vpop.f32.mrb[0].mxu0
    %v6861 = vadd.f32 0.0, %v6860
    %v6862 = vpop.f32.mrb[0].mxu0
    %v6863 = vpop.f32.mrb[0].mxu0
    %v6864 = vadd.f32 0.0, %v6863
    %v6865 = vpop.f32.mrb[0].mxu0
    %6866 = vmatprep.mubr.bf16.mxu0 %v6818
    %6867 = vmatmul.mubr.bf16.gmra.mrb[0].mxu0 %v6804
    %v6868 = vpop.f32.mrb[0].mxu0
    %v6869 = vadd.f32 0.0, %v6868
    %v6870 = vpop.f32.mrb[0].mxu0
    %v6871 = vpop.f32.mrb[0].mxu0
    %v6872 = vadd.f32 0.0, %v6871
    %v6873 = vpop.f32.mrb[0].mxu0
    %6874 = vmatprep.mubr.bf16.mxu0 %v6821
    %6875 = vmatmul.mubr.bf16.gmra.mrb[0].mxu0 %v6806
    %v6876 = vpop.f32.mrb[0].mxu0
    %v6877 = vadd.f32 0.0, %v6876
    %v6878 = vpop.f32.mrb[0].mxu0
    %v6879 = vpop.f32.mrb[0].mxu0
    %v6880 = vadd.f32 0.0, %v6879
    %v6881 = vpop.f32.mrb[0].mxu0
    %6882 = vmatprep.mubr.bf16.mxu0 %v6824
    %6883 = vmatmul.mubr.bf16.gmra.mrb[0].mxu0 %v6808
    %v6884 = vpop.f32.mrb[0].mxu0
    %v6885 = vadd.f32 0.0, %v6884
    %v6886 = vpop.f32.mrb[0].mxu0
    %v6887 = vpop.f32.mrb[0].mxu0
    %v6888 = vadd.f32 0.0, %v6887
    %v6889 = vpop.f32.mrb[0].mxu0
    %6890 = vdwg.mxu0
    %s6891 = scalar_lea.vmem %s6, 128
    %v6892 = vld [vmem:[%s6891] sm:$0xff]
    %v6893 = vld [vmem:[%s6891 + $0x8] sm:$0xff]
    %v6894 = vld [vmem:[%s6891 + $0x10] sm:$0xff]
    %v6895 = vld [vmem:[%s6891 + $0x18] sm:$0xff]
    %v6896 = vld [vmem:[%s6891 + $0x20] sm:$0xff]
    %v6897 = vld [vmem:[%s6891 + $0x28] sm:$0xff]
    %v6898 = vld [vmem:[%s6891 + $0x30] sm:$0xff]
    %v6899 = vld [vmem:[%s6891 + $0x38] sm:$0x33]
    %v6908 = vunpack.c.l.b16 %v6892
    %v6909 = vunpack.c.h.b16 %v6892
    %v6910 = vunpack.c.l.b16 %v6893
    %v6911 = vunpack.c.h.b16 %v6893
    %v6912 = vunpack.c.l.b16 %v6894
    %v6913 = vunpack.c.h.b16 %v6894
    %v6914 = vunpack.c.l.b16 %v6895
    %v6915 = vunpack.c.h.b16 %v6895
    %v6916 = vunpack.c.l.b16 %v6896
    %v6917 = vunpack.c.h.b16 %v6896
    %v6918 = vunpack.c.l.b16 %v6897
    %v6919 = vunpack.c.h.b16 %v6897
    %v6920 = vunpack.c.l.b16 %v6898
    %v6921 = vunpack.c.h.b16 %v6898
    %v6922 = vunpack.c.l.b16 %v6899
    %v6923 = vunpack.c.h.b16 %v6899
    %v6924 = vpack.c.b16 %v6910, %v6908
    %v6925 = vpack.c.b16 %v6911, %v6909
    %v6926 = vpack.c.b16 %v6914, %v6912
    %v6927 = vpack.c.b16 %v6915, %v6913
    %v6928 = vpack.c.b16 %v6918, %v6916
    %v6929 = vpack.c.b16 %v6919, %v6917
    %v6930 = vpack.c.b16 %v6922, %v6920
    %v6931 = vpack.c.b16 %v6923, %v6921
    %v6937 = vsel %vm6317, %v6925, 0
    %v6940 = vsel %vm6317, %v6927, 0
    %v6943 = vsel %vm6317, %v6929, 0
    %v6946 = vsel %vm6317, %v6931, 0
    %6948 = vmatprep.subr.bf16.mxu0 0
    %6949 = vmatpush1.bf16.msra.mxu0 %v6633
    %6950 = vmatprep.subr.bf16.mxu0 0
    %6951 = vmatpush1.bf16.msra.mxu0 %v6634
    %6952 = vmatprep.subr.bf16.mxu0 0
    %6953 = vmatpush1.bf16.msra.mxu0 %v6635
    %6954 = vmatprep.subr.bf16.mxu0 0
    %6955 = vmatpush1.bf16.msra.mxu0 %v6636
    %6956 = vmatprep.subr.bf16.mxu0 0
    %6957 = vmatpush1.bf16.msra.mxu0 %v6637
    %6958 = vmatprep.subr.bf16.mxu0 0
    %6959 = vmatpush1.bf16.msra.mxu0 %v6638
    %6960 = vmatprep.subr.bf16.mxu0 0
    %6961 = vmatpush1.bf16.msra.mxu0 %v6639
    %6962 = vmatprep.subr.bf16.mxu0 0
    %6963 = vmatpush1.bf16.msra.mxu0 %v6640
    %6964 = vmatprep.subr.bf16.mxu0 0
    %6965 = vmatpush1.bf16.msra.mxu0 %v6641
    %6966 = vmatprep.subr.bf16.mxu0 0
    %6967 = vmatpush1.bf16.msra.mxu0 %v6642
    %6968 = vmatprep.subr.bf16.mxu0 0
    %6969 = vmatpush1.bf16.msra.mxu0 %v6643
    %6970 = vmatprep.subr.bf16.mxu0 0
    %6971 = vmatpush1.bf16.msra.mxu0 %v6644
    %6972 = vmatprep.subr.bf16.mxu0 0
    %6973 = vmatpush1.bf16.msra.mxu0 %v6645
    %6974 = vmatprep.subr.bf16.mxu0 0
    %6975 = vmatpush1.bf16.msra.mxu0 %v6646
    %6976 = vmatprep.subr.bf16.mxu0 0
    %6977 = vmatpush1.bf16.msra.mxu0 %v6647
    %6978 = vmatprep.subr.bf16.mxu0 0
    %6979 = vmatpush1.bf16.msra.mxu0 0
    %6980 = vmatprep.mubr.bf16.mxu0 %v6937
    %6981 = vmatmul.mubr.bf16.gmra.mrb[0].mxu0 %v6924
    %v6982 = vpop.f32.mrb[0].mxu0
    %v6983 = vadd.f32 0.0, %v6982
    %v6984 = vpop.f32.mrb[0].mxu0
    %v6985 = vpop.f32.mrb[0].mxu0
    %v6986 = vadd.f32 0.0, %v6985
    %v6987 = vpop.f32.mrb[0].mxu0
    %6988 = vmatprep.mubr.bf16.mxu0 %v6940
    %6989 = vmatmul.mubr.bf16.gmra.mrb[0].mxu0 %v6926
    %v6990 = vpop.f32.mrb[0].mxu0
    %v6991 = vadd.f32 0.0, %v6990
    %v6992 = vpop.f32.mrb[0].mxu0
    %v6993 = vpop.f32.mrb[0].mxu0
    %v6994 = vadd.f32 0.0, %v6993
    %v6995 = vpop.f32.mrb[0].mxu0
    %6996 = vmatprep.mubr.bf16.mxu0 %v6943
    %6997 = vmatmul.mubr.bf16.gmra.mrb[0].mxu0 %v6928
    %v6998 = vpop.f32.mrb[0].mxu0
    %v6999 = vadd.f32 0.0, %v6998
    %v7000 = vpop.f32.mrb[0].mxu0
    %v7001 = vpop.f32.mrb[0].mxu0
    %v7002 = vadd.f32 0.0, %v7001
    %v7003 = vpop.f32.mrb[0].mxu0
    %7004 = vmatprep.mubr.bf16.mxu0 %v6946
    %7005 = vmatmul.mubr.bf16.gmra.mrb[0].mxu0 %v6930
    %v7006 = vpop.f32.mrb[0].mxu0
    %v7007 = vadd.f32 0.0, %v7006
    %v7008 = vpop.f32.mrb[0].mxu0
    %v7009 = vpop.f32.mrb[0].mxu0
    %v7010 = vadd.f32 0.0, %v7009
    %v7011 = vpop.f32.mrb[0].mxu0
    %7012 = vdwg.mxu0
    %s7013 = scalar_lea.vmem %s6, 192
    %v7014 = vld [vmem:[%s7013] sm:$0xff]
    %v7015 = vld [vmem:[%s7013 + $0x8] sm:$0xff]
    %v7016 = vld [vmem:[%s7013 + $0x10] sm:$0xff]
    %v7017 = vld [vmem:[%s7013 + $0x18] sm:$0xff]
    %v7018 = vld [vmem:[%s7013 + $0x20] sm:$0xff]
    %v7019 = vld [vmem:[%s7013 + $0x28] sm:$0xff]
    %v7020 = vld [vmem:[%s7013 + $0x30] sm:$0xff]
    %v7021 = vld [vmem:[%s7013 + $0x38] sm:$0x33]
    %v7030 = vunpack.c.l.b16 %v7014
    %v7031 = vunpack.c.h.b16 %v7014
    %v7032 = vunpack.c.l.b16 %v7015
    %v7033 = vunpack.c.h.b16 %v7015
    %v7034 = vunpack.c.l.b16 %v7016
    %v7035 = vunpack.c.h.b16 %v7016
    %v7036 = vunpack.c.l.b16 %v7017
    %v7037 = vunpack.c.h.b16 %v7017
    %v7038 = vunpack.c.l.b16 %v7018
    %v7039 = vunpack.c.h.b16 %v7018
    %v7040 = vunpack.c.l.b16 %v7019
    %v7041 = vunpack.c.h.b16 %v7019
    %v7042 = vunpack.c.l.b16 %v7020
    %v7043 = vunpack.c.h.b16 %v7020
    %v7044 = vunpack.c.l.b16 %v7021
    %v7045 = vunpack.c.h.b16 %v7021
    %v7046 = vpack.c.b16 %v7032, %v7030
    %v7047 = vpack.c.b16 %v7033, %v7031
    %v7048 = vpack.c.b16 %v7036, %v7034
    %v7049 = vpack.c.b16 %v7037, %v7035
    %v7050 = vpack.c.b16 %v7040, %v7038
    %v7051 = vpack.c.b16 %v7041, %v7039
    %v7052 = vpack.c.b16 %v7044, %v7042
    %v7053 = vpack.c.b16 %v7045, %v7043
    %v7059 = vsel %vm6317, %v7047, 0
    %v7062 = vsel %vm6317, %v7049, 0
    %v7065 = vsel %vm6317, %v7051, 0
    %v7068 = vsel %vm6317, %v7053, 0
    %7070 = vmatprep.subr.bf16.mxu0 0
    %7071 = vmatpush1.bf16.msra.mxu0 %v6633
    %7072 = vmatprep.subr.bf16.mxu0 0
    %7073 = vmatpush1.bf16.msra.mxu0 %v6634
    %7074 = vmatprep.subr.bf16.mxu0 0
    %7075 = vmatpush1.bf16.msra.mxu0 %v6635
    %7076 = vmatprep.subr.bf16.mxu0 0
    %7077 = vmatpush1.bf16.msra.mxu0 %v6636
    %7078 = vmatprep.subr.bf16.mxu0 0
    %7079 = vmatpush1.bf16.msra.mxu0 %v6637
    %7080 = vmatprep.subr.bf16.mxu0 0
    %7081 = vmatpush1.bf16.msra.mxu0 %v6638
    %7082 = vmatprep.subr.bf16.mxu0 0
    %7083 = vmatpush1.bf16.msra.mxu0 %v6639
    %7084 = vmatprep.subr.bf16.mxu0 0
    %7085 = vmatpush1.bf16.msra.mxu0 %v6640
    %7086 = vmatprep.subr.bf16.mxu0 0
    %7087 = vmatpush1.bf16.msra.mxu0 %v6641
    %7088 = vmatprep.subr.bf16.mxu0 0
    %7089 = vmatpush1.bf16.msra.mxu0 %v6642
    %7090 = vmatprep.subr.bf16.mxu0 0
    %7091 = vmatpush1.bf16.msra.mxu0 %v6643
    %7092 = vmatprep.subr.bf16.mxu0 0
    %7093 = vmatpush1.bf16.msra.mxu0 %v6644
    %7094 = vmatprep.subr.bf16.mxu0 0
    %7095 = vmatpush1.bf16.msra.mxu0 %v6645
    %7096 = vmatprep.subr.bf16.mxu0 0
    %7097 = vmatpush1.bf16.msra.mxu0 %v6646
    %7098 = vmatprep.subr.bf16.mxu0 0
    %7099 = vmatpush1.bf16.msra.mxu0 %v6647
    %7100 = vmatprep.subr.bf16.mxu0 0
    %7101 = vmatpush1.bf16.msra.mxu0 0
    %7102 = vmatprep.mubr.bf16.mxu0 %v7059
    %7103 = vmatmul.mubr.bf16.gmra.mrb[0].mxu0 %v7046
    %v7104 = vpop.f32.mrb[0].mxu0
    %v7105 = vadd.f32 0.0, %v7104
    %v7106 = vpop.f32.mrb[0].mxu0
    %v7107 = vpop.f32.mrb[0].mxu0
    %v7108 = vadd.f32 0.0, %v7107
    %v7109 = vpop.f32.mrb[0].mxu0
    %7110 = vmatprep.mubr.bf16.mxu0 %v7062
    %7111 = vmatmul.mubr.bf16.gmra.mrb[0].mxu0 %v7048
    %v7112 = vpop.f32.mrb[0].mxu0
    %v7113 = vadd.f32 0.0, %v7112
    %v7114 = vpop.f32.mrb[0].mxu0
    %v7115 = vpop.f32.mrb[0].mxu0
    %v7116 = vadd.f32 0.0, %v7115
    %v7117 = vpop.f32.mrb[0].mxu0
    %7118 = vmatprep.mubr.bf16.mxu0 %v7065
    %7119 = vmatmul.mubr.bf16.gmra.mrb[0].mxu0 %v7050
    %v7120 = vpop.f32.mrb[0].mxu0
    %v7121 = vadd.f32 0.0, %v7120
    %v7122 = vpop.f32.mrb[0].mxu0
    %v7123 = vpop.f32.mrb[0].mxu0
    %v7124 = vadd.f32 0.0, %v7123
    %v7125 = vpop.f32.mrb[0].mxu0
    %7126 = vmatprep.mubr.bf16.mxu0 %v7068
    %7127 = vmatmul.mubr.bf16.gmra.mrb[0].mxu0 %v7052
    %v7128 = vpop.f32.mrb[0].mxu0
    %v7129 = vadd.f32 0.0, %v7128
    %v7130 = vpop.f32.mrb[0].mxu0
    %v7131 = vpop.f32.mrb[0].mxu0
    %v7132 = vadd.f32 0.0, %v7131
    %v7133 = vpop.f32.mrb[0].mxu0
    %7134 = vdwg.mxu0
    %v7135 = vmax.f32 %v6739, %v6861
    %v7136 = vmax.f32 %v6742, %v6864
    %v7137 = vmax.f32 %v6747, %v6869
    %v7138 = vmax.f32 %v6750, %v6872
    %v7139 = vmax.f32 %v6755, %v6877
    %v7140 = vmax.f32 %v6758, %v6880
    %v7141 = vmax.f32 %v6763, %v6885
    %v7142 = vmax.f32 %v6766, %v6888
    %v7143 = vmax.f32 %v6983, %v7105
    %v7144 = vmax.f32 %v6986, %v7108
    %v7145 = vmax.f32 %v6991, %v7113
    %v7146 = vmax.f32 %v6994, %v7116
    %v7147 = vmax.f32 %v6999, %v7121
    %v7148 = vmax.f32 %v7002, %v7124
    %v7149 = vmax.f32 %v7007, %v7129
    %v7150 = vmax.f32 %v7010, %v7132
    %v7151 = vmax.f32 %v7135, %v7143
    %v7152 = vmax.f32 %v7136, %v7144
    %v7153 = vmax.f32 %v7137, %v7145
    %v7154 = vmax.f32 %v7138, %v7146
    %v7155 = vmax.f32 %v7139, %v7147
    %v7156 = vmax.f32 %v7140, %v7148
    %v7157 = vmax.f32 %v7141, %v7149
    %v7158 = vmax.f32 %v7142, %v7150
    %v7159 = vld [vmem:[%s5] sm:$0x1]
    %v7161 = vlaneseq
    %v7162 = vshrl.u32 %v7161, 7
    %v7163 = vsub.s32 0, %v7162
    %v7164 = vrot.slane %v7159, %v7163
    %v7166 = vadd.f32 %v7151, %v7164
    %v7167 = vadd.f32 %v7152, %v7164
    %v7168 = vadd.f32 %v7153, %v7164
    %v7169 = vadd.f32 %v7154, %v7164
    %v7170 = vadd.f32 %v7155, %v7164
    %v7171 = vadd.f32 %v7156, %v7164
    %v7172 = vadd.f32 %v7157, %v7164
    %v7173 = vadd.f32 %v7158, %v7164
    %v7174 = vmax.f32 %v7166, 0.0
    %v7175 = vmax.f32 %v7167, 0.0
    %v7176 = vmax.f32 %v7168, 0.0
    %v7177 = vmax.f32 %v7169, 0.0
    %v7178 = vmax.f32 %v7170, 0.0
    %v7179 = vmax.f32 %v7171, 0.0
    %v7180 = vmax.f32 %v7172, 0.0
    %v7181 = vmax.f32 %v7173, 0.0
    %v7182 = vpack.c.bf16 %v7175, %v7174
    %v7183 = vpack.c.bf16 %v7177, %v7176
    %v7184 = vpack.c.bf16 %v7179, %v7178
    %v7185 = vpack.c.bf16 %v7181, %v7180
    %v7187 = vshrl.u32 %v7182, 16
    %7189 = vrot.lane.b32.xlu0 %v7187, 64
    %v7190 = vpop.permute.xlu0 %7189
    %v7192 = vrot.slane %v7182, 1
    %v7193 = vrot.slane %v7187, 1
    %7194 = vrot.lane.b32.xlu0 %v7193, 64
    %v7195 = vpop.permute.xlu0 %7194
    %v7196 = vrot.slane %v7182, 2
    %v7197 = vrot.slane %v7187, 2
    %7198 = vrot.lane.b32.xlu0 %v7197, 64
    %v7199 = vpop.permute.xlu0 %7198
    %v7200 = vrot.slane %v7182, 3
    %v7201 = vrot.slane %v7187, 3
    %7202 = vrot.lane.b32.xlu0 %v7201, 64
    %v7203 = vpop.permute.xlu0 %7202
    %v7204 = vrot.slane %v7182, 4
    %v7205 = vrot.slane %v7187, 4
    %7206 = vrot.lane.b32.xlu0 %v7205, 64
    %v7207 = vpop.permute.xlu0 %7206
    %v7208 = vrot.slane %v7182, 5
    %v7209 = vrot.slane %v7187, 5
    %7210 = vrot.lane.b32.xlu0 %v7209, 64
    %v7211 = vpop.permute.xlu0 %7210
    %v7212 = vrot.slane %v7182, 6
    %v7213 = vrot.slane %v7187, 6
    %7214 = vrot.lane.b32.xlu0 %v7213, 64
    %v7215 = vpop.permute.xlu0 %7214
    %v7216 = vrot.slane %v7182, 7
    %v7217 = vrot.slane %v7187, 7
    %7218 = vrot.lane.b32.xlu0 %v7217, 64
    %v7219 = vpop.permute.xlu0 %7218
    %v7221 = vsel %vm6224, %v7182, %v7190
    %v7225 = vsel %vm6224, %v7192, %v7195
    %v7229 = vsel %vm6224, %v7196, %v7199
    %v7233 = vsel %vm6224, %v7200, %v7203
    %v7237 = vsel %vm6224, %v7204, %v7207
    %v7241 = vsel %vm6224, %v7208, %v7211
    %v7245 = vsel %vm6224, %v7212, %v7215
    %v7249 = vsel %vm6224, %v7216, %v7219
    %v7252 = vshrl.u32 %v7183, 16
    %7254 = vrot.lane.b32.xlu0 %v7252, 64
    %v7255 = vpop.permute.xlu0 %7254
    %v7257 = vrot.slane %v7183, 1
    %v7258 = vrot.slane %v7252, 1
    %7259 = vrot.lane.b32.xlu0 %v7258, 64
    %v7260 = vpop.permute.xlu0 %7259
    %v7261 = vrot.slane %v7183, 2
    %v7262 = vrot.slane %v7252, 2
    %7263 = vrot.lane.b32.xlu0 %v7262, 64
    %v7264 = vpop.permute.xlu0 %7263
    %v7265 = vrot.slane %v7183, 3
    %v7266 = vrot.slane %v7252, 3
    %7267 = vrot.lane.b32.xlu0 %v7266, 64
    %v7268 = vpop.permute.xlu0 %7267
    %v7269 = vrot.slane %v7183, 4
    %v7270 = vrot.slane %v7252, 4
    %7271 = vrot.lane.b32.xlu0 %v7270, 64
    %v7272 = vpop.permute.xlu0 %7271
    %v7273 = vrot.slane %v7183, 5
    %v7274 = vrot.slane %v7252, 5
    %7275 = vrot.lane.b32.xlu0 %v7274, 64
    %v7276 = vpop.permute.xlu0 %7275
    %v7277 = vrot.slane %v7183, 6
    %v7278 = vrot.slane %v7252, 6
    %7279 = vrot.lane.b32.xlu0 %v7278, 64
    %v7280 = vpop.permute.xlu0 %7279
    %v7282 = vsel %vm6224, %v7183, %v7255
    %v7286 = vsel %vm6224, %v7257, %v7260
    %v7290 = vsel %vm6224, %v7261, %v7264
    %v7294 = vsel %vm6224, %v7265, %v7268
    %v7298 = vsel %vm6224, %v7269, %v7272
    %v7302 = vsel %vm6224, %v7273, %v7276
    %v7306 = vsel %vm6224, %v7277, %v7280
    %v7309 = vrot.slane %v7184, 1
    %v7311 = vshrl.u32 %v7184, 16
    %v7313 = vrot.slane %v7311, 1
    %7314 = vrot.lane.b32.xlu0 %v7313, 64
    %v7315 = vpop.permute.xlu0 %7314
    %v7316 = vrot.slane %v7184, 2
    %v7317 = vrot.slane %v7311, 2
    %7318 = vrot.lane.b32.xlu0 %v7317, 64
    %v7319 = vpop.permute.xlu0 %7318
    %v7320 = vrot.slane %v7184, 3
    %v7321 = vrot.slane %v7311, 3
    %7322 = vrot.lane.b32.xlu0 %v7321, 64
    %v7323 = vpop.permute.xlu0 %7322
    %v7324 = vrot.slane %v7184, 4
    %v7325 = vrot.slane %v7311, 4
    %7326 = vrot.lane.b32.xlu0 %v7325, 64
    %v7327 = vpop.permute.xlu0 %7326
    %v7328 = vrot.slane %v7184, 5
    %v7329 = vrot.slane %v7311, 5
    %7330 = vrot.lane.b32.xlu0 %v7329, 64
    %v7331 = vpop.permute.xlu0 %7330
    %v7332 = vrot.slane %v7184, 6
    %v7333 = vrot.slane %v7311, 6
    %7334 = vrot.lane.b32.xlu0 %v7333, 64
    %v7335 = vpop.permute.xlu0 %7334
    %v7336 = vrot.slane %v7184, 7
    %v7337 = vrot.slane %v7311, 7
    %7338 = vrot.lane.b32.xlu0 %v7337, 64
    %v7339 = vpop.permute.xlu0 %7338
    %v7342 = vsel %vm6224, %v7309, %v7315
    %v7345 = vsel %vm6224, %v7316, %v7319
    %v7348 = vsel %vm6224, %v7320, %v7323
    %v7351 = vsel %vm6224, %v7324, %v7327
    %v7354 = vsel %vm6224, %v7328, %v7331
    %v7357 = vsel %vm6224, %v7332, %v7335
    %v7360 = vsel %vm6224, %v7336, %v7339
    %7361 = vrot.lane.b32.xlu0 %v7311, 64
    %v7362 = vpop.permute.xlu0 %7361
    %v7364 = vrot.slane %v7185, 1
    %v7366 = vshrl.u32 %v7185, 16
    %v7368 = vrot.slane %v7366, 1
    %7369 = vrot.lane.b32.xlu0 %v7368, 64
    %v7370 = vpop.permute.xlu0 %7369
    %v7371 = vrot.slane %v7185, 2
    %v7372 = vrot.slane %v7366, 2
    %7373 = vrot.lane.b32.xlu0 %v7372, 64
    %v7374 = vpop.permute.xlu0 %7373
    %v7375 = vrot.slane %v7185, 3
    %v7376 = vrot.slane %v7366, 3
    %7377 = vrot.lane.b32.xlu0 %v7376, 64
    %v7378 = vpop.permute.xlu0 %7377
    %v7379 = vrot.slane %v7185, 4
    %v7380 = vrot.slane %v7366, 4
    %7381 = vrot.lane.b32.xlu0 %v7380, 64
    %v7382 = vpop.permute.xlu0 %7381
    %v7383 = vrot.slane %v7185, 5
    %v7384 = vrot.slane %v7366, 5
    %7385 = vrot.lane.b32.xlu0 %v7384, 64
    %v7386 = vpop.permute.xlu0 %7385
    %v7387 = vrot.slane %v7185, 6
    %v7388 = vrot.slane %v7366, 6
    %7389 = vrot.lane.b32.xlu0 %v7388, 64
    %v7390 = vpop.permute.xlu0 %7389
    %v7392 = vsel %vm6224, %v7184, %v7362
    %v7395 = vsel %vm6224, %v7364, %v7370
    %v7398 = vsel %vm6224, %v7371, %v7374
    %v7401 = vsel %vm6224, %v7375, %v7378
    %v7404 = vsel %vm6224, %v7379, %v7382
    %v7407 = vsel %vm6224, %v7383, %v7386
    %v7410 = vsel %vm6224, %v7387, %v7390
    %v7411 = vshll.u32 %v7282, 16
    %v7413 = vrot.slane %v7411, 7
    %v7414 = vshll.u32 %v7342, 16
    %v7416 = vrot.slane %v7414, 7
    %v7417 = vshll.u32 %v7345, 16
    %v7419 = vrot.slane %v7417, 7
    %v7420 = vshll.u32 %v7348, 16
    %v7422 = vrot.slane %v7420, 7
    %v7423 = vshll.u32 %v7351, 16
    %v7425 = vrot.slane %v7423, 7
    %v7426 = vshll.u32 %v7354, 16
    %v7428 = vrot.slane %v7426, 7
    %v7429 = vshll.u32 %v7357, 16
    %v7431 = vrot.slane %v7429, 7
    %v7432 = vshll.u32 %v7360, 16
    %v7434 = vrot.slane %v7432, 7
    %v7435 = vshll.u32 %v7392, 16
    %v7437 = vrot.slane %v7435, 7
    %v7438 = vshll.u32 %v7395, 16
    %v7440 = vrot.slane %v7438, 7
    %v7441 = vshll.u32 %v7398, 16
    %v7443 = vrot.slane %v7441, 7
    %v7444 = vshll.u32 %v7401, 16
    %v7446 = vrot.slane %v7444, 7
    %v7447 = vshll.u32 %v7404, 16
    %v7449 = vrot.slane %v7447, 7
    %v7450 = vshll.u32 %v7407, 16
    %v7452 = vrot.slane %v7450, 7
    %v7453 = vshll.u32 %v7410, 16
    %v7455 = vrot.slane %v7453, 7
    %v7471 = vsel %vm3062, %v7221, %v7413
    %v7472 = vsel %vm3062, %v7225, %v7416
    %v7473 = vsel %vm3062, %v7229, %v7419
    %v7474 = vsel %vm3062, %v7233, %v7422
    %v7475 = vsel %vm3062, %v7237, %v7425
    %v7476 = vsel %vm3062, %v7241, %v7428
    %v7477 = vsel %vm3062, %v7245, %v7431
    %v7478 = vsel %vm3062, %v7249, %v7434
    %v7479 = vsel %vm3062, %v7282, %v7437
    %v7480 = vsel %vm3062, %v7286, %v7440
    %v7481 = vsel %vm3062, %v7290, %v7443
    %v7482 = vsel %vm3062, %v7294, %v7446
    %v7483 = vsel %vm3062, %v7298, %v7449
    %v7484 = vsel %vm3062, %v7302, %v7452
    %v7485 = vsel %vm3062, %v7306, %v7455
    %v7486 = vld [vmem:[%s7] sm:$0xf]
    %v7487 = vld [vmem:[%s7 + $0x4] sm:$0xf]
    %v7488 = vld [vmem:[%s7 + $0x8] sm:$0xf]
    %v7489 = vld [vmem:[%s7 + $0xc] sm:$0xf]
    %v7490 = vld [vmem:[%s7 + $0x10] sm:$0xf]
    %v7491 = vld [vmem:[%s7 + $0x14] sm:$0xf]
    %v7492 = vld [vmem:[%s7 + $0x18] sm:$0xf]
    %v7493 = vld [vmem:[%s7 + $0x1c] sm:$0xf]
    %v7494 = vld [vmem:[%s7 + $0x20] sm:$0xf]
    %v7495 = vld [vmem:[%s7 + $0x24] sm:$0xf]
    %v7496 = vld [vmem:[%s7 + $0x28] sm:$0xf]
    %v7497 = vld [vmem:[%s7 + $0x2c] sm:$0xf]
    %v7498 = vld [vmem:[%s7 + $0x30] sm:$0xf]
    %v7499 = vld [vmem:[%s7 + $0x34] sm:$0xf]
    %v7500 = vld [vmem:[%s7 + $0x38] sm:$0xf]
    %v7501 = vld [vmem:[%s7 + $0x3c] sm:$0xf]
    %v7502 = vld [vmem:[%s7 + $0x40] sm:$0xf]
    %v7503 = vld [vmem:[%s7 + $0x44] sm:$0xf]
    %v7504 = vld [vmem:[%s7 + $0x48] sm:$0xf]
    %v7505 = vld [vmem:[%s7 + $0x4c] sm:$0xf]
    %v7506 = vld [vmem:[%s7 + $0x50] sm:$0xf]
    %v7507 = vld [vmem:[%s7 + $0x54] sm:$0xf]
    %v7508 = vld [vmem:[%s7 + $0x58] sm:$0xf]
    %v7509 = vld [vmem:[%s7 + $0x5c] sm:$0xf]
    %v7510 = vld [vmem:[%s7 + $0x60] sm:$0xf]
    %v7511 = vld [vmem:[%s7 + $0x64] sm:$0xf]
    %v7512 = vld [vmem:[%s7 + $0x68] sm:$0xf]
    %v7513 = vld [vmem:[%s7 + $0x6c] sm:$0xf]
    %v7514 = vld [vmem:[%s7 + $0x70] sm:$0xf]
    %v7515 = vld [vmem:[%s7 + $0x74] sm:$0xf]
    %v7516 = vld [vmem:[%s7 + $0x78] sm:$0xf]
    %v7517 = vld [vmem:[%s7 + $0x7c] sm:$0xf]
    %v7518 = vld [vmem:[%s7 + $0x80] sm:$0xf]
    %v7519 = vld [vmem:[%s7 + $0x84] sm:$0xf]
    %v7520 = vld [vmem:[%s7 + $0x88] sm:$0xf]
    %v7521 = vld [vmem:[%s7 + $0x8c] sm:$0xf]
    %v7522 = vld [vmem:[%s7 + $0x90] sm:$0xf]
    %v7523 = vld [vmem:[%s7 + $0x94] sm:$0xf]
    %v7524 = vld [vmem:[%s7 + $0x98] sm:$0xf]
    %v7525 = vld [vmem:[%s7 + $0x9c] sm:$0xf]
    %v7526 = vld [vmem:[%s7 + $0xa0] sm:$0xf]
    %v7527 = vld [vmem:[%s7 + $0xa4] sm:$0xf]
    %v7528 = vld [vmem:[%s7 + $0xa8] sm:$0xf]
    %v7529 = vld [vmem:[%s7 + $0xac] sm:$0xf]
    %v7530 = vld [vmem:[%s7 + $0xb0] sm:$0xf]
    %v7531 = vld [vmem:[%s7 + $0xb4] sm:$0xf]
    %v7532 = vld [vmem:[%s7 + $0xb8] sm:$0xf]
    %v7533 = vld [vmem:[%s7 + $0xbc] sm:$0xf]
    %v7534 = vld [vmem:[%s7 + $0xc0] sm:$0xf]
    %v7535 = vld [vmem:[%s7 + $0xc4] sm:$0xf]
    %v7536 = vld [vmem:[%s7 + $0xc8] sm:$0xf]
    %v7537 = vld [vmem:[%s7 + $0xcc] sm:$0xf]
    %v7538 = vld [vmem:[%s7 + $0xd0] sm:$0xf]
    %v7539 = vld [vmem:[%s7 + $0xd4] sm:$0xf]
    %v7540 = vld [vmem:[%s7 + $0xd8] sm:$0xf]
    %v7541 = vld [vmem:[%s7 + $0xdc] sm:$0xf]
    %v7542 = vld [vmem:[%s7 + $0xe0] sm:$0xf]
    %v7543 = vld [vmem:[%s7 + $0xe4] sm:$0xf]
    %v7544 = vld [vmem:[%s7 + $0xe8] sm:$0xf]
    %v7545 = vld [vmem:[%s7 + $0xec] sm:$0xf]
    %v7546 = vld [vmem:[%s7 + $0xf0] sm:$0xf]
    %v7547 = vld [vmem:[%s7 + $0xf4] sm:$0xf]
    %v7548 = vld [vmem:[%s7 + $0xf8] sm:$0xf]
    %v7549 = vld [vmem:[%s7 + $0xfc] sm:$0xf]
    %v7550 = vld [vmem:[%s7 + $0x100] sm:$0xf]
    %v7551 = vld [vmem:[%s7 + $0x104] sm:$0xf]
    %v7552 = vld [vmem:[%s7 + $0x108] sm:$0xf]
    %v7553 = vld [vmem:[%s7 + $0x10c] sm:$0xf]
    %v7554 = vld [vmem:[%s7 + $0x110] sm:$0xf]
    %v7555 = vld [vmem:[%s7 + $0x114] sm:$0xf]
    %v7556 = vld [vmem:[%s7 + $0x118] sm:$0xf]
    %v7557 = vld [vmem:[%s7 + $0x11c] sm:$0xf]
    %v7558 = vld [vmem:[%s7 + $0x120] sm:$0xf]
    %v7559 = vld [vmem:[%s7 + $0x124] sm:$0xf]
    %v7560 = vld [vmem:[%s7 + $0x128] sm:$0xf]
    %v7561 = vld [vmem:[%s7 + $0x12c] sm:$0xf]
    %v7562 = vld [vmem:[%s7 + $0x130] sm:$0xf]
    %v7563 = vld [vmem:[%s7 + $0x134] sm:$0xf]
    %v7564 = vld [vmem:[%s7 + $0x138] sm:$0xf]
    %v7565 = vld [vmem:[%s7 + $0x13c] sm:$0xf]
    %v7566 = vld [vmem:[%s7 + $0x140] sm:$0xf]
    %v7567 = vld [vmem:[%s7 + $0x144] sm:$0xf]
    %v7568 = vld [vmem:[%s7 + $0x148] sm:$0xf]
    %v7569 = vld [vmem:[%s7 + $0x14c] sm:$0xf]
    %v7570 = vld [vmem:[%s7 + $0x150] sm:$0xf]
    %v7571 = vld [vmem:[%s7 + $0x154] sm:$0xf]
    %v7572 = vld [vmem:[%s7 + $0x158] sm:$0xf]
    %v7573 = vld [vmem:[%s7 + $0x15c] sm:$0xf]
    %v7574 = vld [vmem:[%s7 + $0x160] sm:$0xf]
    %v7575 = vld [vmem:[%s7 + $0x164] sm:$0xf]
    %v7576 = vld [vmem:[%s7 + $0x168] sm:$0xf]
    %v7577 = vld [vmem:[%s7 + $0x16c] sm:$0xf]
    %v7578 = vld [vmem:[%s7 + $0x170] sm:$0xf]
    %v7579 = vld [vmem:[%s7 + $0x174] sm:$0xf]
    %v7580 = vld [vmem:[%s7 + $0x178] sm:$0xf]
    %v7581 = vld [vmem:[%s7 + $0x17c] sm:$0xf]
    %v7582 = vld [vmem:[%s7 + $0x180] sm:$0xf]
    %v7583 = vld [vmem:[%s7 + $0x184] sm:$0xf]
    %v7584 = vld [vmem:[%s7 + $0x188] sm:$0xf]
    %v7585 = vld [vmem:[%s7 + $0x18c] sm:$0xf]
    %v7586 = vld [vmem:[%s7 + $0x190] sm:$0xf]
    %v7587 = vld [vmem:[%s7 + $0x194] sm:$0xf]
    %v7588 = vld [vmem:[%s7 + $0x198] sm:$0xf]
    %v7589 = vld [vmem:[%s7 + $0x19c] sm:$0xf]
    %v7590 = vld [vmem:[%s7 + $0x1a0] sm:$0xf]
    %v7591 = vld [vmem:[%s7 + $0x1a4] sm:$0xf]
    %v7592 = vld [vmem:[%s7 + $0x1a8] sm:$0xf]
    %v7593 = vld [vmem:[%s7 + $0x1ac] sm:$0xf]
    %v7594 = vld [vmem:[%s7 + $0x1b0] sm:$0xf]
    %v7595 = vld [vmem:[%s7 + $0x1b4] sm:$0xf]
    %v7596 = vld [vmem:[%s7 + $0x1b8] sm:$0xf]
    %v7597 = vld [vmem:[%s7 + $0x1bc] sm:$0xf]
    %v7598 = vld [vmem:[%s7 + $0x1c0] sm:$0xf]
    %v7599 = vld [vmem:[%s7 + $0x1c4] sm:$0xf]
    %v7600 = vld [vmem:[%s7 + $0x1c8] sm:$0xf]
    %v7601 = vld [vmem:[%s7 + $0x1cc] sm:$0xf]
    %v7602 = vld [vmem:[%s7 + $0x1d0] sm:$0xf]
    %v7603 = vld [vmem:[%s7 + $0x1d4] sm:$0xf]
    %v7604 = vld [vmem:[%s7 + $0x1d8] sm:$0xf]
    %v7605 = vld [vmem:[%s7 + $0x1dc] sm:$0xf]
    %v7606 = vld [vmem:[%s7 + $0x1e0] sm:$0xf]
    %v7607 = vld [vmem:[%s7 + $0x1e4] sm:$0xf]
    %v7608 = vld [vmem:[%s7 + $0x1e8] sm:$0xf]
    %v7609 = vld [vmem:[%s7 + $0x1ec] sm:$0xf]
    %v7610 = vld [vmem:[%s7 + $0x1f0] sm:$0xf]
    %v7611 = vld [vmem:[%s7 + $0x1f4] sm:$0xf]
    %v7612 = vld [vmem:[%s7 + $0x1f8] sm:$0xf]
    %v7613 = vld [vmem:[%s7 + $0x1fc] sm:$0xf]
    %v7614 = vld [vmem:[%s7 + $0x200] sm:$0xf]
    %v7615 = vld [vmem:[%s7 + $0x204] sm:$0xf]
    %v7616 = vld [vmem:[%s7 + $0x208] sm:$0xf]
    %v7617 = vld [vmem:[%s7 + $0x20c] sm:$0xf]
    %v7618 = vld [vmem:[%s7 + $0x210] sm:$0xf]
    %v7619 = vld [vmem:[%s7 + $0x214] sm:$0xf]
    %v7620 = vld [vmem:[%s7 + $0x218] sm:$0xf]
    %v7621 = vld [vmem:[%s7 + $0x21c] sm:$0xf]
    %v7622 = vld [vmem:[%s7 + $0x220] sm:$0xf]
    %v7623 = vld [vmem:[%s7 + $0x224] sm:$0xf]
    %v7624 = vld [vmem:[%s7 + $0x228] sm:$0xf]
    %v7625 = vld [vmem:[%s7 + $0x22c] sm:$0xf]
    %v7626 = vld [vmem:[%s7 + $0x230] sm:$0xf]
    %v7627 = vld [vmem:[%s7 + $0x234] sm:$0xf]
    %v7628 = vld [vmem:[%s7 + $0x238] sm:$0xf]
    %v7629 = vld [vmem:[%s7 + $0x23c] sm:$0xf]
    %v7630 = vld [vmem:[%s7 + $0x240] sm:$0xf]
    %v7631 = vld [vmem:[%s7 + $0x244] sm:$0xf]
    %v7632 = vld [vmem:[%s7 + $0x248] sm:$0xf]
    %v7633 = vld [vmem:[%s7 + $0x24c] sm:$0xf]
    %v7634 = vld [vmem:[%s7 + $0x250] sm:$0xf]
    %v7635 = vld [vmem:[%s7 + $0x254] sm:$0xf]
    %v7636 = vld [vmem:[%s7 + $0x258] sm:$0xf]
    %v7637 = vld [vmem:[%s7 + $0x25c] sm:$0xf]
    %v7638 = vld [vmem:[%s7 + $0x260] sm:$0xf]
    %v7639 = vld [vmem:[%s7 + $0x264] sm:$0xf]
    %v7640 = vld [vmem:[%s7 + $0x268] sm:$0xf]
    %v7641 = vld [vmem:[%s7 + $0x26c] sm:$0xf]
    %v7642 = vld [vmem:[%s7 + $0x270] sm:$0xf]
    %v7643 = vld [vmem:[%s7 + $0x274] sm:$0xf]
    %v7644 = vld [vmem:[%s7 + $0x278] sm:$0xf]
    %v7645 = vld [vmem:[%s7 + $0x27c] sm:$0xf]
    %v7646 = vld [vmem:[%s7 + $0x280] sm:$0xf]
    %v7647 = vld [vmem:[%s7 + $0x284] sm:$0xf]
    %v7648 = vld [vmem:[%s7 + $0x288] sm:$0xf]
    %v7649 = vld [vmem:[%s7 + $0x28c] sm:$0xf]
    %v7650 = vld [vmem:[%s7 + $0x290] sm:$0xf]
    %v7651 = vld [vmem:[%s7 + $0x294] sm:$0xf]
    %v7652 = vld [vmem:[%s7 + $0x298] sm:$0xf]
    %v7653 = vld [vmem:[%s7 + $0x29c] sm:$0xf]
    %v7654 = vld [vmem:[%s7 + $0x2a0] sm:$0xf]
    %v7655 = vld [vmem:[%s7 + $0x2a4] sm:$0xf]
    %v7656 = vld [vmem:[%s7 + $0x2a8] sm:$0xf]
    %v7657 = vld [vmem:[%s7 + $0x2ac] sm:$0xf]
    %v7658 = vld [vmem:[%s7 + $0x2b0] sm:$0xf]
    %v7659 = vld [vmem:[%s7 + $0x2b4] sm:$0xf]
    %v7660 = vld [vmem:[%s7 + $0x2b8] sm:$0xf]
    %v7661 = vld [vmem:[%s7 + $0x2bc] sm:$0xf]
    %v7662 = vld [vmem:[%s7 + $0x2c0] sm:$0xf]
    %v7663 = vld [vmem:[%s7 + $0x2c4] sm:$0xf]
    %v7664 = vld [vmem:[%s7 + $0x2c8] sm:$0xf]
    %v7665 = vld [vmem:[%s7 + $0x2cc] sm:$0xf]
    %v7666 = vld [vmem:[%s7 + $0x2d0] sm:$0xf]
    %v7667 = vld [vmem:[%s7 + $0x2d4] sm:$0xf]
    %v7668 = vld [vmem:[%s7 + $0x2d8] sm:$0xf]
    %v7669 = vld [vmem:[%s7 + $0x2dc] sm:$0xf]
    %v7670 = vld [vmem:[%s7 + $0x2e0] sm:$0xf]
    %v7671 = vld [vmem:[%s7 + $0x2e4] sm:$0xf]
    %v7672 = vld [vmem:[%s7 + $0x2e8] sm:$0xf]
    %v7673 = vld [vmem:[%s7 + $0x2ec] sm:$0xf]
    %v7674 = vld [vmem:[%s7 + $0x2f0] sm:$0xf]
    %v7675 = vld [vmem:[%s7 + $0x2f4] sm:$0xf]
    %v7676 = vld [vmem:[%s7 + $0x2f8] sm:$0xf]
    %v7677 = vld [vmem:[%s7 + $0x2fc] sm:$0xf]
    %v7678 = vld [vmem:[%s7 + $0x300] sm:$0xf]
    %v7679 = vld [vmem:[%s7 + $0x304] sm:$0xf]
    %v7680 = vld [vmem:[%s7 + $0x308] sm:$0xf]
    %v7681 = vld [vmem:[%s7 + $0x30c] sm:$0xf]
    %v7682 = vld [vmem:[%s7 + $0x310] sm:$0xf]
    %v7683 = vld [vmem:[%s7 + $0x314] sm:$0xf]
    %v7684 = vld [vmem:[%s7 + $0x318] sm:$0xf]
    %v7685 = vld [vmem:[%s7 + $0x31c] sm:$0xf]
    %v7686 = vld [vmem:[%s7 + $0x320] sm:$0xf]
    %v7687 = vld [vmem:[%s7 + $0x324] sm:$0xf]
    %v7688 = vld [vmem:[%s7 + $0x328] sm:$0xf]
    %v7689 = vld [vmem:[%s7 + $0x32c] sm:$0xf]
    %v7690 = vld [vmem:[%s7 + $0x330] sm:$0xf]
    %v7691 = vld [vmem:[%s7 + $0x334] sm:$0xf]
    %v7692 = vld [vmem:[%s7 + $0x338] sm:$0xf]
    %v7693 = vld [vmem:[%s7 + $0x33c] sm:$0xf]
    %v7694 = vld [vmem:[%s7 + $0x340] sm:$0xf]
    %v7695 = vld [vmem:[%s7 + $0x344] sm:$0xf]
    %v7696 = vld [vmem:[%s7 + $0x348] sm:$0xf]
    %v7697 = vld [vmem:[%s7 + $0x34c] sm:$0xf]
    %v7698 = vld [vmem:[%s7 + $0x350] sm:$0xf]
    %v7699 = vld [vmem:[%s7 + $0x354] sm:$0xf]
    %v7700 = vld [vmem:[%s7 + $0x358] sm:$0xf]
    %v7701 = vld [vmem:[%s7 + $0x35c] sm:$0xf]
    %v7702 = vld [vmem:[%s7 + $0x360] sm:$0xf]
    %v7703 = vld [vmem:[%s7 + $0x364] sm:$0xf]
    %v7704 = vld [vmem:[%s7 + $0x368] sm:$0xf]
    %v7705 = vld [vmem:[%s7 + $0x36c] sm:$0xf]
    %v7706 = vld [vmem:[%s7 + $0x370] sm:$0xf]
    %v7707 = vld [vmem:[%s7 + $0x374] sm:$0xf]
    %v7708 = vld [vmem:[%s7 + $0x378] sm:$0xf]
    %v7709 = vld [vmem:[%s7 + $0x37c] sm:$0xf]
    %v7710 = vld [vmem:[%s7 + $0x380] sm:$0xf]
    %v7711 = vld [vmem:[%s7 + $0x384] sm:$0xf]
    %v7712 = vld [vmem:[%s7 + $0x388] sm:$0xf]
    %v7713 = vld [vmem:[%s7 + $0x38c] sm:$0xf]
    %v7714 = vld [vmem:[%s7 + $0x390] sm:$0xf]
    %v7715 = vld [vmem:[%s7 + $0x394] sm:$0xf]
    %v7716 = vld [vmem:[%s7 + $0x398] sm:$0xf]
    %v7717 = vld [vmem:[%s7 + $0x39c] sm:$0xf]
    %v7718 = vld [vmem:[%s7 + $0x3a0] sm:$0xf]
    %v7719 = vld [vmem:[%s7 + $0x3a4] sm:$0xf]
    %v7720 = vld [vmem:[%s7 + $0x3a8] sm:$0xf]
    %v7721 = vld [vmem:[%s7 + $0x3ac] sm:$0xf]
    %v7722 = vld [vmem:[%s7 + $0x3b0] sm:$0xf]
    %v7723 = vld [vmem:[%s7 + $0x3b4] sm:$0xf]
    %v7724 = vld [vmem:[%s7 + $0x3b8] sm:$0xf]
    %v7725 = vld [vmem:[%s7 + $0x3bc] sm:$0xf]
    %v7726 = vld [vmem:[%s8] sm:$0x1]
    %v7728 = vlaneseq
    %v7729 = vshrl.u32 %v7728, 7
    %v7730 = vsub.s32 0, %v7729
    %v7731 = vrot.slane %v7726, %v7730
    %v7973 = vunpack.c.l.b16 %v7486
    %v7974 = vunpack.c.l.b16 %v7487
    %v7975 = vunpack.c.l.b16 %v7488
    %v7976 = vunpack.c.l.b16 %v7489
    %v7977 = vunpack.c.l.b16 %v7490
    %v7978 = vunpack.c.l.b16 %v7491
    %v7979 = vunpack.c.l.b16 %v7492
    %v7980 = vunpack.c.l.b16 %v7493
    %v7981 = vunpack.c.l.b16 %v7494
    %v7982 = vunpack.c.l.b16 %v7495
    %v7983 = vunpack.c.l.b16 %v7496
    %v7984 = vunpack.c.l.b16 %v7497
    %v7985 = vunpack.c.l.b16 %v7498
    %v7986 = vunpack.c.l.b16 %v7499
    %v7987 = vunpack.c.l.b16 %v7500
    %v7988 = vunpack.c.l.b16 %v7501
    %v7989 = vunpack.c.l.b16 %v7502
    %v7990 = vunpack.c.l.b16 %v7503
    %v7991 = vunpack.c.l.b16 %v7504
    %v7992 = vunpack.c.l.b16 %v7505
    %v7993 = vunpack.c.l.b16 %v7506
    %v7994 = vunpack.c.l.b16 %v7507
    %v7995 = vunpack.c.l.b16 %v7508
    %v7996 = vunpack.c.l.b16 %v7509
    %v7997 = vunpack.c.l.b16 %v7510
    %v7998 = vunpack.c.l.b16 %v7511
    %v7999 = vunpack.c.l.b16 %v7512
    %v8000 = vunpack.c.l.b16 %v7513
    %v8001 = vunpack.c.l.b16 %v7514
    %v8002 = vunpack.c.l.b16 %v7515
    %v8003 = vunpack.c.l.b16 %v7516
    %v8004 = vunpack.c.l.b16 %v7517
    %v8005 = vunpack.c.l.b16 %v7518
    %v8006 = vunpack.c.l.b16 %v7519
    %v8007 = vunpack.c.l.b16 %v7520
    %v8008 = vunpack.c.l.b16 %v7521
    %v8009 = vunpack.c.l.b16 %v7522
    %v8010 = vunpack.c.l.b16 %v7523
    %v8011 = vunpack.c.l.b16 %v7524
    %v8012 = vunpack.c.l.b16 %v7525
    %v8013 = vunpack.c.l.b16 %v7526
    %v8014 = vunpack.c.l.b16 %v7527
    %v8015 = vunpack.c.l.b16 %v7528
    %v8016 = vunpack.c.l.b16 %v7529
    %v8017 = vunpack.c.l.b16 %v7530
    %v8018 = vunpack.c.l.b16 %v7531
    %v8019 = vunpack.c.l.b16 %v7532
    %v8020 = vunpack.c.l.b16 %v7533
    %v8021 = vunpack.c.l.b16 %v7534
    %v8022 = vunpack.c.l.b16 %v7535
    %v8023 = vunpack.c.l.b16 %v7536
    %v8024 = vunpack.c.l.b16 %v7537
    %v8025 = vunpack.c.l.b16 %v7538
    %v8026 = vunpack.c.l.b16 %v7539
    %v8027 = vunpack.c.l.b16 %v7540
    %v8028 = vunpack.c.l.b16 %v7541
    %v8029 = vunpack.c.l.b16 %v7542
    %v8030 = vunpack.c.l.b16 %v7543
    %v8031 = vunpack.c.l.b16 %v7544
    %v8032 = vunpack.c.l.b16 %v7545
    %v8033 = vunpack.c.l.b16 %v7546
    %v8034 = vunpack.c.l.b16 %v7547
    %v8035 = vunpack.c.l.b16 %v7548
    %v8036 = vunpack.c.l.b16 %v7549
    %v8037 = vunpack.c.l.b16 %v7550
    %v8038 = vunpack.c.l.b16 %v7551
    %v8039 = vunpack.c.l.b16 %v7552
    %v8040 = vunpack.c.l.b16 %v7553
    %v8041 = vunpack.c.l.b16 %v7554
    %v8042 = vunpack.c.l.b16 %v7555
    %v8043 = vunpack.c.l.b16 %v7556
    %v8044 = vunpack.c.l.b16 %v7557
    %v8045 = vunpack.c.l.b16 %v7558
    %v8046 = vunpack.c.l.b16 %v7559
    %v8047 = vunpack.c.l.b16 %v7560
    %v8048 = vunpack.c.l.b16 %v7561
    %v8049 = vunpack.c.l.b16 %v7562
    %v8050 = vunpack.c.l.b16 %v7563
    %v8051 = vunpack.c.l.b16 %v7564
    %v8052 = vunpack.c.l.b16 %v7565
    %v8053 = vunpack.c.l.b16 %v7566
    %v8054 = vunpack.c.l.b16 %v7567
    %v8055 = vunpack.c.l.b16 %v7568
    %v8056 = vunpack.c.l.b16 %v7569
    %v8057 = vunpack.c.l.b16 %v7570
    %v8058 = vunpack.c.l.b16 %v7571
    %v8059 = vunpack.c.l.b16 %v7572
    %v8060 = vunpack.c.l.b16 %v7573
    %v8061 = vunpack.c.l.b16 %v7574
    %v8062 = vunpack.c.l.b16 %v7575
    %v8063 = vunpack.c.l.b16 %v7576
    %v8064 = vunpack.c.l.b16 %v7577
    %v8065 = vunpack.c.l.b16 %v7578
    %v8066 = vunpack.c.l.b16 %v7579
    %v8067 = vunpack.c.l.b16 %v7580
    %v8068 = vunpack.c.l.b16 %v7581
    %v8069 = vunpack.c.l.b16 %v7582
    %v8070 = vunpack.c.l.b16 %v7583
    %v8071 = vunpack.c.l.b16 %v7584
    %v8072 = vunpack.c.l.b16 %v7585
    %v8073 = vunpack.c.l.b16 %v7586
    %v8074 = vunpack.c.l.b16 %v7587
    %v8075 = vunpack.c.l.b16 %v7588
    %v8076 = vunpack.c.l.b16 %v7589
    %v8077 = vunpack.c.l.b16 %v7590
    %v8078 = vunpack.c.l.b16 %v7591
    %v8079 = vunpack.c.l.b16 %v7592
    %v8080 = vunpack.c.l.b16 %v7593
    %v8081 = vunpack.c.l.b16 %v7594
    %v8082 = vunpack.c.l.b16 %v7595
    %v8083 = vunpack.c.l.b16 %v7596
    %v8084 = vunpack.c.l.b16 %v7597
    %v8085 = vunpack.c.l.b16 %v7598
    %v8086 = vunpack.c.l.b16 %v7599
    %v8087 = vunpack.c.l.b16 %v7600
    %v8088 = vunpack.c.l.b16 %v7601
    %v8089 = vunpack.c.l.b16 %v7602
    %v8090 = vunpack.c.l.b16 %v7603
    %v8091 = vunpack.c.l.b16 %v7604
    %v8092 = vunpack.c.l.b16 %v7605
    %v8093 = vunpack.c.l.b16 %v7606
    %v8094 = vunpack.c.l.b16 %v7607
    %v8095 = vunpack.c.l.b16 %v7608
    %v8096 = vunpack.c.l.b16 %v7609
    %v8097 = vunpack.c.l.b16 %v7610
    %v8098 = vunpack.c.l.b16 %v7611
    %v8099 = vunpack.c.l.b16 %v7612
    %v8100 = vunpack.c.l.b16 %v7613
    %v8101 = vunpack.c.l.b16 %v7614
    %v8102 = vunpack.c.l.b16 %v7615
    %v8103 = vunpack.c.l.b16 %v7616
    %v8104 = vunpack.c.l.b16 %v7617
    %v8105 = vunpack.c.l.b16 %v7618
    %v8106 = vunpack.c.l.b16 %v7619
    %v8107 = vunpack.c.l.b16 %v7620
    %v8108 = vunpack.c.l.b16 %v7621
    %v8109 = vunpack.c.l.b16 %v7622
    %v8110 = vunpack.c.l.b16 %v7623
    %v8111 = vunpack.c.l.b16 %v7624
    %v8112 = vunpack.c.l.b16 %v7625
    %v8113 = vunpack.c.l.b16 %v7626
    %v8114 = vunpack.c.l.b16 %v7627
    %v8115 = vunpack.c.l.b16 %v7628
    %v8116 = vunpack.c.l.b16 %v7629
    %v8117 = vunpack.c.l.b16 %v7630
    %v8118 = vunpack.c.l.b16 %v7631
    %v8119 = vunpack.c.l.b16 %v7632
    %v8120 = vunpack.c.l.b16 %v7633
    %v8121 = vunpack.c.l.b16 %v7634
    %v8122 = vunpack.c.l.b16 %v7635
    %v8123 = vunpack.c.l.b16 %v7636
    %v8124 = vunpack.c.l.b16 %v7637
    %v8125 = vunpack.c.l.b16 %v7638
    %v8126 = vunpack.c.l.b16 %v7639
    %v8127 = vunpack.c.l.b16 %v7640
    %v8128 = vunpack.c.l.b16 %v7641
    %v8129 = vunpack.c.l.b16 %v7642
    %v8130 = vunpack.c.l.b16 %v7643
    %v8131 = vunpack.c.l.b16 %v7644
    %v8132 = vunpack.c.l.b16 %v7645
    %v8133 = vunpack.c.l.b16 %v7646
    %v8134 = vunpack.c.l.b16 %v7647
    %v8135 = vunpack.c.l.b16 %v7648
    %v8136 = vunpack.c.l.b16 %v7649
    %v8137 = vunpack.c.l.b16 %v7650
    %v8138 = vunpack.c.l.b16 %v7651
    %v8139 = vunpack.c.l.b16 %v7652
    %v8140 = vunpack.c.l.b16 %v7653
    %v8141 = vunpack.c.l.b16 %v7654
    %v8142 = vunpack.c.l.b16 %v7655
    %v8143 = vunpack.c.l.b16 %v7656
    %v8144 = vunpack.c.l.b16 %v7657
    %v8145 = vunpack.c.l.b16 %v7658
    %v8146 = vunpack.c.l.b16 %v7659
    %v8147 = vunpack.c.l.b16 %v7660
    %v8148 = vunpack.c.l.b16 %v7661
    %v8149 = vunpack.c.l.b16 %v7662
    %v8150 = vunpack.c.l.b16 %v7663
    %v8151 = vunpack.c.l.b16 %v7664
    %v8152 = vunpack.c.l.b16 %v7665
    %v8153 = vunpack.c.l.b16 %v7666
    %v8154 = vunpack.c.l.b16 %v7667
    %v8155 = vunpack.c.l.b16 %v7668
    %v8156 = vunpack.c.l.b16 %v7669
    %v8157 = vunpack.c.l.b16 %v7670
    %v8158 = vunpack.c.l.b16 %v7671
    %v8159 = vunpack.c.l.b16 %v7672
    %v8160 = vunpack.c.l.b16 %v7673
    %v8161 = vunpack.c.l.b16 %v7674
    %v8162 = vunpack.c.l.b16 %v7675
    %v8163 = vunpack.c.l.b16 %v7676
    %v8164 = vunpack.c.l.b16 %v7677
    %v8165 = vunpack.c.l.b16 %v7678
    %v8166 = vunpack.c.l.b16 %v7679
    %v8167 = vunpack.c.l.b16 %v7680
    %v8168 = vunpack.c.l.b16 %v7681
    %v8169 = vunpack.c.l.b16 %v7682
    %v8170 = vunpack.c.l.b16 %v7683
    %v8171 = vunpack.c.l.b16 %v7684
    %v8172 = vunpack.c.l.b16 %v7685
    %v8173 = vunpack.c.l.b16 %v7686
    %v8174 = vunpack.c.l.b16 %v7687
    %v8175 = vunpack.c.l.b16 %v7688
    %v8176 = vunpack.c.l.b16 %v7689
    %v8177 = vunpack.c.l.b16 %v7690
    %v8178 = vunpack.c.l.b16 %v7691
    %v8179 = vunpack.c.l.b16 %v7692
    %v8180 = vunpack.c.l.b16 %v7693
    %v8181 = vunpack.c.l.b16 %v7694
    %v8182 = vunpack.c.l.b16 %v7695
    %v8183 = vunpack.c.l.b16 %v7696
    %v8184 = vunpack.c.l.b16 %v7697
    %v8185 = vunpack.c.l.b16 %v7698
    %v8186 = vunpack.c.l.b16 %v7699
    %v8187 = vunpack.c.l.b16 %v7700
    %v8188 = vunpack.c.l.b16 %v7701
    %v8189 = vunpack.c.l.b16 %v7702
    %v8190 = vunpack.c.l.b16 %v7703
    %v8191 = vunpack.c.l.b16 %v7704
    %v8192 = vunpack.c.l.b16 %v7705
    %v8193 = vunpack.c.l.b16 %v7706
    %v8194 = vunpack.c.l.b16 %v7707
    %v8195 = vunpack.c.l.b16 %v7708
    %v8196 = vunpack.c.l.b16 %v7709
    %v8197 = vunpack.c.l.b16 %v7710
    %v8198 = vunpack.c.l.b16 %v7711
    %v8199 = vunpack.c.l.b16 %v7712
    %v8200 = vunpack.c.l.b16 %v7713
    %v8201 = vunpack.c.l.b16 %v7714
    %v8202 = vunpack.c.l.b16 %v7715
    %v8203 = vunpack.c.l.b16 %v7716
    %v8204 = vunpack.c.l.b16 %v7717
    %v8205 = vunpack.c.l.b16 %v7718
    %v8206 = vunpack.c.l.b16 %v7719
    %v8207 = vunpack.c.l.b16 %v7720
    %v8208 = vunpack.c.l.b16 %v7721
    %v8209 = vunpack.c.l.b16 %v7722
    %v8210 = vunpack.c.l.b16 %v7723
    %v8211 = vunpack.c.l.b16 %v7724
    %v8212 = vunpack.c.l.b16 %v7725
    %v8213 = vpack.c.b16 %v7974, %v7973
    %v8214 = vpack.c.b16 %v7976, %v7975
    %v8215 = vpack.c.b16 %v7978, %v7977
    %v8216 = vpack.c.b16 %v7980, %v7979
    %v8217 = vpack.c.b16 %v7982, %v7981
    %v8218 = vpack.c.b16 %v7984, %v7983
    %v8219 = vpack.c.b16 %v7986, %v7985
    %v8220 = vpack.c.b16 %v7988, %v7987
    %v8221 = vpack.c.b16 %v7990, %v7989
    %v8222 = vpack.c.b16 %v7992, %v7991
    %v8223 = vpack.c.b16 %v7994, %v7993
    %v8224 = vpack.c.b16 %v7996, %v7995
    %v8225 = vpack.c.b16 %v7998, %v7997
    %v8226 = vpack.c.b16 %v8000, %v7999
    %v8227 = vpack.c.b16 %v8002, %v8001
    %v8228 = vpack.c.b16 %v8004, %v8003
    %v8229 = vpack.c.b16 %v8006, %v8005
    %v8230 = vpack.c.b16 %v8008, %v8007
    %v8231 = vpack.c.b16 %v8010, %v8009
    %v8232 = vpack.c.b16 %v8012, %v8011
    %v8233 = vpack.c.b16 %v8014, %v8013
    %v8234 = vpack.c.b16 %v8016, %v8015
    %v8235 = vpack.c.b16 %v8018, %v8017
    %v8236 = vpack.c.b16 %v8020, %v8019
    %v8237 = vpack.c.b16 %v8022, %v8021
    %v8238 = vpack.c.b16 %v8024, %v8023
    %v8239 = vpack.c.b16 %v8026, %v8025
    %v8240 = vpack.c.b16 %v8028, %v8027
    %v8241 = vpack.c.b16 %v8030, %v8029
    %v8242 = vpack.c.b16 %v8032, %v8031
    %v8243 = vpack.c.b16 %v8034, %v8033
    %v8244 = vpack.c.b16 %v8036, %v8035
    %v8245 = vpack.c.b16 %v8038, %v8037
    %v8246 = vpack.c.b16 %v8040, %v8039
    %v8247 = vpack.c.b16 %v8042, %v8041
    %v8248 = vpack.c.b16 %v8044, %v8043
    %v8249 = vpack.c.b16 %v8046, %v8045
    %v8250 = vpack.c.b16 %v8048, %v8047
    %v8251 = vpack.c.b16 %v8050, %v8049
    %v8252 = vpack.c.b16 %v8052, %v8051
    %v8253 = vpack.c.b16 %v8054, %v8053
    %v8254 = vpack.c.b16 %v8056, %v8055
    %v8255 = vpack.c.b16 %v8058, %v8057
    %v8256 = vpack.c.b16 %v8060, %v8059
    %v8257 = vpack.c.b16 %v8062, %v8061
    %v8258 = vpack.c.b16 %v8064, %v8063
    %v8259 = vpack.c.b16 %v8066, %v8065
    %v8260 = vpack.c.b16 %v8068, %v8067
    %v8261 = vpack.c.b16 %v8070, %v8069
    %v8262 = vpack.c.b16 %v8072, %v8071
    %v8263 = vpack.c.b16 %v8074, %v8073
    %v8264 = vpack.c.b16 %v8076, %v8075
    %v8265 = vpack.c.b16 %v8078, %v8077
    %v8266 = vpack.c.b16 %v8080, %v8079
    %v8267 = vpack.c.b16 %v8082, %v8081
    %v8268 = vpack.c.b16 %v8084, %v8083
    %v8269 = vpack.c.b16 %v8086, %v8085
    %v8270 = vpack.c.b16 %v8088, %v8087
    %v8271 = vpack.c.b16 %v8090, %v8089
    %v8272 = vpack.c.b16 %v8092, %v8091
    %v8273 = vpack.c.b16 %v8094, %v8093
    %v8274 = vpack.c.b16 %v8096, %v8095
    %v8275 = vpack.c.b16 %v8098, %v8097
    %v8276 = vpack.c.b16 %v8100, %v8099
    %v8277 = vpack.c.b16 %v8102, %v8101
    %v8278 = vpack.c.b16 %v8104, %v8103
    %v8279 = vpack.c.b16 %v8106, %v8105
    %v8280 = vpack.c.b16 %v8108, %v8107
    %v8281 = vpack.c.b16 %v8110, %v8109
    %v8282 = vpack.c.b16 %v8112, %v8111
    %v8283 = vpack.c.b16 %v8114, %v8113
    %v8284 = vpack.c.b16 %v8116, %v8115
    %v8285 = vpack.c.b16 %v8118, %v8117
    %v8286 = vpack.c.b16 %v8120, %v8119
    %v8287 = vpack.c.b16 %v8122, %v8121
    %v8288 = vpack.c.b16 %v8124, %v8123
    %v8289 = vpack.c.b16 %v8126, %v8125
    %v8290 = vpack.c.b16 %v8128, %v8127
    %v8291 = vpack.c.b16 %v8130, %v8129
    %v8292 = vpack.c.b16 %v8132, %v8131
    %v8293 = vpack.c.b16 %v8134, %v8133
    %v8294 = vpack.c.b16 %v8136, %v8135
    %v8295 = vpack.c.b16 %v8138, %v8137
    %v8296 = vpack.c.b16 %v8140, %v8139
    %v8297 = vpack.c.b16 %v8142, %v8141
    %v8298 = vpack.c.b16 %v8144, %v8143
    %v8299 = vpack.c.b16 %v8146, %v8145
    %v8300 = vpack.c.b16 %v8148, %v8147
    %v8301 = vpack.c.b16 %v8150, %v8149
    %v8302 = vpack.c.b16 %v8152, %v8151
    %v8303 = vpack.c.b16 %v8154, %v8153
    %v8304 = vpack.c.b16 %v8156, %v8155
    %v8305 = vpack.c.b16 %v8158, %v8157
    %v8306 = vpack.c.b16 %v8160, %v8159
    %v8307 = vpack.c.b16 %v8162, %v8161
    %v8308 = vpack.c.b16 %v8164, %v8163
    %v8309 = vpack.c.b16 %v8166, %v8165
    %v8310 = vpack.c.b16 %v8168, %v8167
    %v8311 = vpack.c.b16 %v8170, %v8169
    %v8312 = vpack.c.b16 %v8172, %v8171
    %v8313 = vpack.c.b16 %v8174, %v8173
    %v8314 = vpack.c.b16 %v8176, %v8175
    %v8315 = vpack.c.b16 %v8178, %v8177
    %v8316 = vpack.c.b16 %v8180, %v8179
    %v8317 = vpack.c.b16 %v8182, %v8181
    %v8318 = vpack.c.b16 %v8184, %v8183
    %v8319 = vpack.c.b16 %v8186, %v8185
    %v8320 = vpack.c.b16 %v8188, %v8187
    %v8321 = vpack.c.b16 %v8190, %v8189
    %v8322 = vpack.c.b16 %v8192, %v8191
    %v8323 = vpack.c.b16 %v8194, %v8193
    %v8324 = vpack.c.b16 %v8196, %v8195
    %v8325 = vpack.c.b16 %v8198, %v8197
    %v8326 = vpack.c.b16 %v8200, %v8199
    %v8327 = vpack.c.b16 %v8202, %v8201
    %v8328 = vpack.c.b16 %v8204, %v8203
    %v8329 = vpack.c.b16 %v8206, %v8205
    %v8330 = vpack.c.b16 %v8208, %v8207
    %v8331 = vpack.c.b16 %v8210, %v8209
    %v8332 = vpack.c.b16 %v8212, %v8211
    %8453 = vmatprep.subr.bf16.mxu0 0
    %8454 = vmatpush1.bf16.msra.mxu0 %v8213
    %8455 = vmatprep.subr.bf16.mxu0 0
    %8456 = vmatpush1.bf16.msra.mxu0 %v8214
    %8457 = vmatprep.subr.bf16.mxu0 0
    %8458 = vmatpush1.bf16.msra.mxu0 %v8215
    %8459 = vmatprep.subr.bf16.mxu0 0
    %8460 = vmatpush1.bf16.msra.mxu0 %v8216
    %8461 = vmatprep.subr.bf16.mxu0 0
    %8462 = vmatpush1.bf16.msra.mxu0 %v8217
    %8463 = vmatprep.subr.bf16.mxu0 0
    %8464 = vmatpush1.bf16.msra.mxu0 %v8218
    %8465 = vmatprep.subr.bf16.mxu0 0
    %8466 = vmatpush1.bf16.msra.mxu0 %v8219
    %8467 = vmatprep.subr.bf16.mxu0 0
    %8468 = vmatpush1.bf16.msra.mxu0 %v8220
    %8469 = vmatprep.subr.bf16.mxu0 0
    %8470 = vmatpush1.bf16.msra.mxu0 %v8221
    %8471 = vmatprep.subr.bf16.mxu0 0
    %8472 = vmatpush1.bf16.msra.mxu0 %v8222
    %8473 = vmatprep.subr.bf16.mxu0 0
    %8474 = vmatpush1.bf16.msra.mxu0 %v8223
    %8475 = vmatprep.subr.bf16.mxu0 0
    %8476 = vmatpush1.bf16.msra.mxu0 %v8224
    %8477 = vmatprep.subr.bf16.mxu0 0
    %8478 = vmatpush1.bf16.msra.mxu0 %v8225
    %8479 = vmatprep.subr.bf16.mxu0 0
    %8480 = vmatpush1.bf16.msra.mxu0 %v8226
    %8481 = vmatprep.subr.bf16.mxu0 0
    %8482 = vmatpush1.bf16.msra.mxu0 %v8227
    %8483 = vmatprep.subr.bf16.mxu0 0
    %8484 = vmatpush1.bf16.msra.mxu0 %v8228
    %8485 = vmatprep.mubr.bf16.mxu0 %v7472
    %8486 = vmatmul.mubr.bf16.gmra.mrb[0].mxu0 %v7471
    %v8487 = vpop.f32.mrb[0].mxu0
    %v8488 = vadd.f32 %v7731, %v8487
    %v8489 = vpop.f32.mrb[0].mxu0
    %v8490 = vpop.f32.mrb[0].mxu0
    %v8491 = vpop.f32.mrb[0].mxu0
    %8492 = vdwg.mxu0
    %8493 = vmatprep.subr.bf16.mxu0 0
    %8494 = vmatpush1.bf16.msra.mxu0 %v8229
    %8495 = vmatprep.subr.bf16.mxu0 0
    %8496 = vmatpush1.bf16.msra.mxu0 %v8230
    %8497 = vmatprep.subr.bf16.mxu0 0
    %8498 = vmatpush1.bf16.msra.mxu0 %v8231
    %8499 = vmatprep.subr.bf16.mxu0 0
    %8500 = vmatpush1.bf16.msra.mxu0 %v8232
    %8501 = vmatprep.subr.bf16.mxu0 0
    %8502 = vmatpush1.bf16.msra.mxu0 %v8233
    %8503 = vmatprep.subr.bf16.mxu0 0
    %8504 = vmatpush1.bf16.msra.mxu0 %v8234
    %8505 = vmatprep.subr.bf16.mxu0 0
    %8506 = vmatpush1.bf16.msra.mxu0 %v8235
    %8507 = vmatprep.subr.bf16.mxu0 0
    %8508 = vmatpush1.bf16.msra.mxu0 %v8236
    %8509 = vmatprep.subr.bf16.mxu0 0
    %8510 = vmatpush1.bf16.msra.mxu0 %v8237
    %8511 = vmatprep.subr.bf16.mxu0 0
    %8512 = vmatpush1.bf16.msra.mxu0 %v8238
    %8513 = vmatprep.subr.bf16.mxu0 0
    %8514 = vmatpush1.bf16.msra.mxu0 %v8239
    %8515 = vmatprep.subr.bf16.mxu0 0
    %8516 = vmatpush1.bf16.msra.mxu0 %v8240
    %8517 = vmatprep.subr.bf16.mxu0 0
    %8518 = vmatpush1.bf16.msra.mxu0 %v8241
    %8519 = vmatprep.subr.bf16.mxu0 0
    %8520 = vmatpush1.bf16.msra.mxu0 %v8242
    %8521 = vmatprep.subr.bf16.mxu0 0
    %8522 = vmatpush1.bf16.msra.mxu0 %v8243
    %8523 = vmatprep.subr.bf16.mxu0 0
    %8524 = vmatpush1.bf16.msra.mxu0 %v8244
    %8525 = vmatprep.mubr.bf16.mxu0 %v7474
    %8526 = vmatmul.mubr.bf16.gmra.mrb[0].mxu0 %v7473
    %v8527 = vpop.f32.mrb[0].mxu0
    %v8528 = vadd.f32 %v8488, %v8527
    %v8529 = vpop.f32.mrb[0].mxu0
    %v8530 = vpop.f32.mrb[0].mxu0
    %v8531 = vpop.f32.mrb[0].mxu0
    %8532 = vdwg.mxu0
    %8533 = vmatprep.subr.bf16.mxu0 0
    %8534 = vmatpush1.bf16.msra.mxu0 %v8245
    %8535 = vmatprep.subr.bf16.mxu0 0
    %8536 = vmatpush1.bf16.msra.mxu0 %v8246
    %8537 = vmatprep.subr.bf16.mxu0 0
    %8538 = vmatpush1.bf16.msra.mxu0 %v8247
    %8539 = vmatprep.subr.bf16.mxu0 0
    %8540 = vmatpush1.bf16.msra.mxu0 %v8248
    %8541 = vmatprep.subr.bf16.mxu0 0
    %8542 = vmatpush1.bf16.msra.mxu0 %v8249
    %8543 = vmatprep.subr.bf16.mxu0 0
    %8544 = vmatpush1.bf16.msra.mxu0 %v8250
    %8545 = vmatprep.subr.bf16.mxu0 0
    %8546 = vmatpush1.bf16.msra.mxu0 %v8251
    %8547 = vmatprep.subr.bf16.mxu0 0
    %8548 = vmatpush1.bf16.msra.mxu0 %v8252
    %8549 = vmatprep.subr.bf16.mxu0 0
    %8550 = vmatpush1.bf16.msra.mxu0 %v8253
    %8551 = vmatprep.subr.bf16.mxu0 0
    %8552 = vmatpush1.bf16.msra.mxu0 %v8254
    %8553 = vmatprep.subr.bf16.mxu0 0
    %8554 = vmatpush1.bf16.msra.mxu0 %v8255
    %8555 = vmatprep.subr.bf16.mxu0 0
    %8556 = vmatpush1.bf16.msra.mxu0 %v8256
    %8557 = vmatprep.subr.bf16.mxu0 0
    %8558 = vmatpush1.bf16.msra.mxu0 %v8257
    %8559 = vmatprep.subr.bf16.mxu0 0
    %8560 = vmatpush1.bf16.msra.mxu0 %v8258
    %8561 = vmatprep.subr.bf16.mxu0 0
    %8562 = vmatpush1.bf16.msra.mxu0 %v8259
    %8563 = vmatprep.subr.bf16.mxu0 0
    %8564 = vmatpush1.bf16.msra.mxu0 %v8260
    %8565 = vmatprep.mubr.bf16.mxu0 %v7476
    %8566 = vmatmul.mubr.bf16.gmra.mrb[0].mxu0 %v7475
    %v8567 = vpop.f32.mrb[0].mxu0
    %v8568 = vadd.f32 %v8528, %v8567
    %v8569 = vpop.f32.mrb[0].mxu0
    %v8570 = vpop.f32.mrb[0].mxu0
    %v8571 = vpop.f32.mrb[0].mxu0
    %8572 = vdwg.mxu0
    %8573 = vmatprep.subr.bf16.mxu0 0
    %8574 = vmatpush1.bf16.msra.mxu0 %v8261
    %8575 = vmatprep.subr.bf16.mxu0 0
    %8576 = vmatpush1.bf16.msra.mxu0 %v8262
    %8577 = vmatprep.subr.bf16.mxu0 0
    %8578 = vmatpush1.bf16.msra.mxu0 %v8263
    %8579 = vmatprep.subr.bf16.mxu0 0
    %8580 = vmatpush1.bf16.msra.mxu0 %v8264
    %8581 = vmatprep.subr.bf16.mxu0 0
    %8582 = vmatpush1.bf16.msra.mxu0 %v8265
    %8583 = vmatprep.subr.bf16.mxu0 0
    %8584 = vmatpush1.bf16.msra.mxu0 %v8266
    %8585 = vmatprep.subr.bf16.mxu0 0
    %8586 = vmatpush1.bf16.msra.mxu0 %v8267
    %8587 = vmatprep.subr.bf16.mxu0 0
    %8588 = vmatpush1.bf16.msra.mxu0 %v8268
    %8589 = vmatprep.subr.bf16.mxu0 0
    %8590 = vmatpush1.bf16.msra.mxu0 %v8269
    %8591 = vmatprep.subr.bf16.mxu0 0
    %8592 = vmatpush1.bf16.msra.mxu0 %v8270
    %8593 = vmatprep.subr.bf16.mxu0 0
    %8594 = vmatpush1.bf16.msra.mxu0 %v8271
    %8595 = vmatprep.subr.bf16.mxu0 0
    %8596 = vmatpush1.bf16.msra.mxu0 %v8272
    %8597 = vmatprep.subr.bf16.mxu0 0
    %8598 = vmatpush1.bf16.msra.mxu0 %v8273
    %8599 = vmatprep.subr.bf16.mxu0 0
    %8600 = vmatpush1.bf16.msra.mxu0 %v8274
    %8601 = vmatprep.subr.bf16.mxu0 0
    %8602 = vmatpush1.bf16.msra.mxu0 %v8275
    %8603 = vmatprep.subr.bf16.mxu0 0
    %8604 = vmatpush1.bf16.msra.mxu0 %v8276
    %8605 = vmatprep.mubr.bf16.mxu0 %v7478
    %8606 = vmatmul.mubr.bf16.gmra.mrb[0].mxu0 %v7477
    %v8607 = vpop.f32.mrb[0].mxu0
    %v8608 = vadd.f32 %v8568, %v8607
    %v8609 = vpop.f32.mrb[0].mxu0
    %v8610 = vpop.f32.mrb[0].mxu0
    %v8611 = vpop.f32.mrb[0].mxu0
    %8612 = vdwg.mxu0
    %8613 = vmatprep.subr.bf16.mxu0 0
    %8614 = vmatpush1.bf16.msra.mxu0 %v8277
    %8615 = vmatprep.subr.bf16.mxu0 0
    %8616 = vmatpush1.bf16.msra.mxu0 %v8278
    %8617 = vmatprep.subr.bf16.mxu0 0
    %8618 = vmatpush1.bf16.msra.mxu0 %v8279
    %8619 = vmatprep.subr.bf16.mxu0 0
    %8620 = vmatpush1.bf16.msra.mxu0 %v8280
    %8621 = vmatprep.subr.bf16.mxu0 0
    %8622 = vmatpush1.bf16.msra.mxu0 %v8281
    %8623 = vmatprep.subr.bf16.mxu0 0
    %8624 = vmatpush1.bf16.msra.mxu0 %v8282
    %8625 = vmatprep.subr.bf16.mxu0 0
    %8626 = vmatpush1.bf16.msra.mxu0 %v8283
    %8627 = vmatprep.subr.bf16.mxu0 0
    %8628 = vmatpush1.bf16.msra.mxu0 %v8284
    %8629 = vmatprep.subr.bf16.mxu0 0
    %8630 = vmatpush1.bf16.msra.mxu0 %v8285
    %8631 = vmatprep.subr.bf16.mxu0 0
    %8632 = vmatpush1.bf16.msra.mxu0 %v8286
    %8633 = vmatprep.subr.bf16.mxu0 0
    %8634 = vmatpush1.bf16.msra.mxu0 %v8287
    %8635 = vmatprep.subr.bf16.mxu0 0
    %8636 = vmatpush1.bf16.msra.mxu0 %v8288
    %8637 = vmatprep.subr.bf16.mxu0 0
    %8638 = vmatpush1.bf16.msra.mxu0 %v8289
    %8639 = vmatprep.subr.bf16.mxu0 0
    %8640 = vmatpush1.bf16.msra.mxu0 %v8290
    %8641 = vmatprep.subr.bf16.mxu0 0
    %8642 = vmatpush1.bf16.msra.mxu0 %v8291
    %8643 = vmatprep.subr.bf16.mxu0 0
    %8644 = vmatpush1.bf16.msra.mxu0 %v8292
    %8645 = vmatprep.mubr.bf16.mxu0 %v7480
    %8646 = vmatmul.mubr.bf16.gmra.mrb[0].mxu0 %v7479
    %v8647 = vpop.f32.mrb[0].mxu0
    %v8648 = vadd.f32 %v8608, %v8647
    %v8649 = vpop.f32.mrb[0].mxu0
    %v8650 = vpop.f32.mrb[0].mxu0
    %v8651 = vpop.f32.mrb[0].mxu0
    %8652 = vdwg.mxu0
    %8653 = vmatprep.subr.bf16.mxu0 0
    %8654 = vmatpush1.bf16.msra.mxu0 %v8293
    %8655 = vmatprep.subr.bf16.mxu0 0
    %8656 = vmatpush1.bf16.msra.mxu0 %v8294
    %8657 = vmatprep.subr.bf16.mxu0 0
    %8658 = vmatpush1.bf16.msra.mxu0 %v8295
    %8659 = vmatprep.subr.bf16.mxu0 0
    %8660 = vmatpush1.bf16.msra.mxu0 %v8296
    %8661 = vmatprep.subr.bf16.mxu0 0
    %8662 = vmatpush1.bf16.msra.mxu0 %v8297
    %8663 = vmatprep.subr.bf16.mxu0 0
    %8664 = vmatpush1.bf16.msra.mxu0 %v8298
    %8665 = vmatprep.subr.bf16.mxu0 0
    %8666 = vmatpush1.bf16.msra.mxu0 %v8299
    %8667 = vmatprep.subr.bf16.mxu0 0
    %8668 = vmatpush1.bf16.msra.mxu0 %v8300
    %8669 = vmatprep.subr.bf16.mxu0 0
    %8670 = vmatpush1.bf16.msra.mxu0 %v8301
    %8671 = vmatprep.subr.bf16.mxu0 0
    %8672 = vmatpush1.bf16.msra.mxu0 %v8302
    %8673 = vmatprep.subr.bf16.mxu0 0
    %8674 = vmatpush1.bf16.msra.mxu0 %v8303
    %8675 = vmatprep.subr.bf16.mxu0 0
    %8676 = vmatpush1.bf16.msra.mxu0 %v8304
    %8677 = vmatprep.subr.bf16.mxu0 0
    %8678 = vmatpush1.bf16.msra.mxu0 %v8305
    %8679 = vmatprep.subr.bf16.mxu0 0
    %8680 = vmatpush1.bf16.msra.mxu0 %v8306
    %8681 = vmatprep.subr.bf16.mxu0 0
    %8682 = vmatpush1.bf16.msra.mxu0 %v8307
    %8683 = vmatprep.subr.bf16.mxu0 0
    %8684 = vmatpush1.bf16.msra.mxu0 %v8308
    %8685 = vmatprep.mubr.bf16.mxu0 %v7482
    %8686 = vmatmul.mubr.bf16.gmra.mrb[0].mxu0 %v7481
    %v8687 = vpop.f32.mrb[0].mxu0
    %v8688 = vadd.f32 %v8648, %v8687
    %v8689 = vpop.f32.mrb[0].mxu0
    %v8690 = vpop.f32.mrb[0].mxu0
    %v8691 = vpop.f32.mrb[0].mxu0
    %8692 = vdwg.mxu0
    %8693 = vmatprep.subr.bf16.mxu0 0
    %8694 = vmatpush1.bf16.msra.mxu0 %v8309
    %8695 = vmatprep.subr.bf16.mxu0 0
    %8696 = vmatpush1.bf16.msra.mxu0 %v8310
    %8697 = vmatprep.subr.bf16.mxu0 0
    %8698 = vmatpush1.bf16.msra.mxu0 %v8311
    %8699 = vmatprep.subr.bf16.mxu0 0
    %8700 = vmatpush1.bf16.msra.mxu0 %v8312
    %8701 = vmatprep.subr.bf16.mxu0 0
    %8702 = vmatpush1.bf16.msra.mxu0 %v8313
    %8703 = vmatprep.subr.bf16.mxu0 0
    %8704 = vmatpush1.bf16.msra.mxu0 %v8314
    %8705 = vmatprep.subr.bf16.mxu0 0
    %8706 = vmatpush1.bf16.msra.mxu0 %v8315
    %8707 = vmatprep.subr.bf16.mxu0 0
    %8708 = vmatpush1.bf16.msra.mxu0 %v8316
    %8709 = vmatprep.subr.bf16.mxu0 0
    %8710 = vmatpush1.bf16.msra.mxu0 %v8317
    %8711 = vmatprep.subr.bf16.mxu0 0
    %8712 = vmatpush1.bf16.msra.mxu0 %v8318
    %8713 = vmatprep.subr.bf16.mxu0 0
    %8714 = vmatpush1.bf16.msra.mxu0 %v8319
    %8715 = vmatprep.subr.bf16.mxu0 0
    %8716 = vmatpush1.bf16.msra.mxu0 %v8320
    %8717 = vmatprep.subr.bf16.mxu0 0
    %8718 = vmatpush1.bf16.msra.mxu0 %v8321
    %8719 = vmatprep.subr.bf16.mxu0 0
    %8720 = vmatpush1.bf16.msra.mxu0 %v8322
    %8721 = vmatprep.subr.bf16.mxu0 0
    %8722 = vmatpush1.bf16.msra.mxu0 %v8323
    %8723 = vmatprep.subr.bf16.mxu0 0
    %8724 = vmatpush1.bf16.msra.mxu0 %v8324
    %8725 = vmatprep.mubr.bf16.mxu0 %v7484
    %8726 = vmatmul.mubr.bf16.gmra.mrb[0].mxu0 %v7483
    %v8727 = vpop.f32.mrb[0].mxu0
    %v8728 = vadd.f32 %v8688, %v8727
    %v8729 = vpop.f32.mrb[0].mxu0
    %v8730 = vpop.f32.mrb[0].mxu0
    %v8731 = vpop.f32.mrb[0].mxu0
    %8732 = vdwg.mxu0
    %8733 = vmatprep.subr.bf16.mxu0 0
    %8734 = vmatpush1.bf16.msra.mxu0 %v8325
    %8735 = vmatprep.subr.bf16.mxu0 0
    %8736 = vmatpush1.bf16.msra.mxu0 %v8326
    %8737 = vmatprep.subr.bf16.mxu0 0
    %8738 = vmatpush1.bf16.msra.mxu0 %v8327
    %8739 = vmatprep.subr.bf16.mxu0 0
    %8740 = vmatpush1.bf16.msra.mxu0 %v8328
    %8741 = vmatprep.subr.bf16.mxu0 0
    %8742 = vmatpush1.bf16.msra.mxu0 %v8329
    %8743 = vmatprep.subr.bf16.mxu0 0
    %8744 = vmatpush1.bf16.msra.mxu0 %v8330
    %8745 = vmatprep.subr.bf16.mxu0 0
    %8746 = vmatpush1.bf16.msra.mxu0 %v8331
    %8747 = vmatprep.subr.bf16.mxu0 0
    %8748 = vmatpush1.bf16.msra.mxu0 %v8332
    %8749 = vmatprep.subr.bf16.mxu0 0
    %8750 = vmatpush1.bf16.msra.mxu0 0
    %8751 = vmatprep.subr.bf16.mxu0 0
    %8752 = vmatpush1.bf16.msra.mxu0 0
    %8753 = vmatprep.subr.bf16.mxu0 0
    %8754 = vmatpush1.bf16.msra.mxu0 0
    %8755 = vmatprep.subr.bf16.mxu0 0
    %8756 = vmatpush1.bf16.msra.mxu0 0
    %8757 = vmatprep.subr.bf16.mxu0 0
    %8758 = vmatpush1.bf16.msra.mxu0 0
    %8759 = vmatprep.subr.bf16.mxu0 0
    %8760 = vmatpush1.bf16.msra.mxu0 0
    %8761 = vmatprep.subr.bf16.mxu0 0
    %8762 = vmatpush1.bf16.msra.mxu0 0
    %8763 = vmatprep.subr.bf16.mxu0 0
    %8764 = vmatpush1.bf16.msra.mxu0 0
    %8765 = vmatprep.mubr.bf16.mxu0 0
    %8766 = vmatmul.mubr.bf16.gmra.mrb[0].mxu0 %v7485
    %v8767 = vpop.f32.mrb[0].mxu0
    %v8768 = vadd.f32 %v8728, %v8767
    %v8769 = vpop.f32.mrb[0].mxu0
    %v8770 = vpop.f32.mrb[0].mxu0
    %v8771 = vpop.f32.mrb[0].mxu0
    %8772 = vdwg.mxu0
    %v8773 = vmax.f32 %v8768, 0.0
    %v8774 = vpack.c.bf16 %v8773, %v8773
    %v8775 = vld [vmem:[%s9] sm:$0xf]
    %v8776 = vld [vmem:[%s9 + $0x4] sm:$0xf]
    %v8777 = vld [vmem:[%s9 + $0x8] sm:$0xf]
    %v8778 = vld [vmem:[%s9 + $0xc] sm:$0xf]
    %v8779 = vld [vmem:[%s9 + $0x10] sm:$0xf]
    %v8780 = vld [vmem:[%s9 + $0x14] sm:$0xf]
    %v8781 = vld [vmem:[%s9 + $0x18] sm:$0xf]
    %v8782 = vld [vmem:[%s9 + $0x1c] sm:$0xf]
    %v8783 = vld [vmem:[%s9 + $0x20] sm:$0xf]
    %v8784 = vld [vmem:[%s9 + $0x24] sm:$0xf]
    %v8785 = vld [vmem:[%s9 + $0x28] sm:$0xf]
    %v8786 = vld [vmem:[%s9 + $0x2c] sm:$0xf]
    %v8787 = vld [vmem:[%s9 + $0x30] sm:$0xf]
    %v8788 = vld [vmem:[%s9 + $0x34] sm:$0xf]
    %v8789 = vld [vmem:[%s9 + $0x38] sm:$0xf]
    %v8790 = vld [vmem:[%s10] sm:$0x1]
    %v8792 = vlaneseq
    %v8793 = vshrl.u32 %v8792, 7
    %v8794 = vsub.s32 0, %v8793
    %v8795 = vrot.slane %v8790, %v8794
    %v8812 = vunpack.c.l.b16 %v8775
    %v8813 = vunpack.c.l.b16 %v8776
    %v8814 = vunpack.c.l.b16 %v8777
    %v8815 = vunpack.c.l.b16 %v8778
    %v8816 = vunpack.c.l.b16 %v8779
    %v8817 = vunpack.c.l.b16 %v8780
    %v8818 = vunpack.c.l.b16 %v8781
    %v8819 = vunpack.c.l.b16 %v8782
    %v8820 = vunpack.c.l.b16 %v8783
    %v8821 = vunpack.c.l.b16 %v8784
    %v8822 = vunpack.c.l.b16 %v8785
    %v8823 = vunpack.c.l.b16 %v8786
    %v8824 = vunpack.c.l.b16 %v8787
    %v8825 = vunpack.c.l.b16 %v8788
    %v8826 = vunpack.c.l.b16 %v8789
    %v8827 = vpack.c.b16 %v8813, %v8812
    %v8828 = vpack.c.b16 %v8815, %v8814
    %v8829 = vpack.c.b16 %v8817, %v8816
    %v8830 = vpack.c.b16 %v8819, %v8818
    %v8831 = vpack.c.b16 %v8821, %v8820
    %v8832 = vpack.c.b16 %v8823, %v8822
    %v8833 = vpack.c.b16 %v8825, %v8824
    %v8834 = vpack.c.b16 %v8826, %v8826
    %vm8842 = vcmask 982016
    %v8844 = vsel %vm8842, %v8774, 0
    %vm8846 = vcmask 1043456
    %v8848 = vsel %vm8846, %v8834, 0
    %8850 = vmatprep.subr.bf16.mxu0 0
    %8851 = vmatpush1.bf16.msra.mxu0 %v8827
    %8852 = vmatprep.subr.bf16.mxu0 0
    %8853 = vmatpush1.bf16.msra.mxu0 %v8828
    %8854 = vmatprep.subr.bf16.mxu0 0
    %8855 = vmatpush1.bf16.msra.mxu0 %v8829
    %8856 = vmatprep.subr.bf16.mxu0 0
    %8857 = vmatpush1.bf16.msra.mxu0 %v8830
    %8858 = vmatprep.subr.bf16.mxu0 0
    %8859 = vmatpush1.bf16.msra.mxu0 %v8831
    %8860 = vmatprep.subr.bf16.mxu0 0
    %8861 = vmatpush1.bf16.msra.mxu0 %v8832
    %8862 = vmatprep.subr.bf16.mxu0 0
    %8863 = vmatpush1.bf16.msra.mxu0 %v8833
    %8864 = vmatprep.subr.bf16.mxu0 0
    %8865 = vmatpush1.bf16.msra.mxu0 %v8848
    %8866 = vmatprep.subr.bf16.mxu0 0
    %8867 = vmatpush1.bf16.msra.mxu0 0
    %8868 = vmatprep.subr.bf16.mxu0 0
    %8869 = vmatpush1.bf16.msra.mxu0 0
    %8870 = vmatprep.subr.bf16.mxu0 0
    %8871 = vmatpush1.bf16.msra.mxu0 0
    %8872 = vmatprep.subr.bf16.mxu0 0
    %8873 = vmatpush1.bf16.msra.mxu0 0
    %8874 = vmatprep.subr.bf16.mxu0 0
    %8875 = vmatpush1.bf16.msra.mxu0 0
    %8876 = vmatprep.subr.bf16.mxu0 0
    %8877 = vmatpush1.bf16.msra.mxu0 0
    %8878 = vmatprep.subr.bf16.mxu0 0
    %8879 = vmatpush1.bf16.msra.mxu0 0
    %8880 = vmatprep.subr.bf16.mxu0 0
    %8881 = vmatpush1.bf16.msra.mxu0 0
    %8882 = vmatprep.mubr.bf16.mxu0 0
    %8883 = vmatmul.mubr.bf16.gmra.mrb[0].mxu0 %v8844
    %v8884 = vpop.f32.mrb[0].mxu0
    %v8885 = vadd.f32 %v8795, %v8884
    %v8886 = vpop.f32.mrb[0].mxu0
    %v8887 = vpop.f32.mrb[0].mxu0
    %v8888 = vpop.f32.mrb[0].mxu0
    %8889 = vdwg.mxu0
    %v8890 = vmax.f32 %v8885, 0.0
    %v8891 = vpack.c.bf16 %v8890, %v8890
    %v8892 = vld [vmem:[%s11] sm:$0xf]
    %v8893 = vld [vmem:[%s11 + $0x4] sm:$0xf]
    %v8894 = vld [vmem:[%s11 + $0x8] sm:$0xf]
    %v8895 = vld [vmem:[%s11 + $0xc] sm:$0xf]
    %v8896 = vld [vmem:[%s11 + $0x10] sm:$0xf]
    %v8897 = vld [vmem:[%s11 + $0x14] sm:$0xf]
    %v8898 = vld [vmem:[%s11 + $0x18] sm:$0xf]
    %v8899 = vld [vmem:[%s11 + $0x1c] sm:$0xf]
    %v8900 = vld [vmem:[%s11 + $0x20] sm:$0xf]
    %v8901 = vld [vmem:[%s11 + $0x24] sm:$0xf]
    %v8902 = vld [vmem:[%s11 + $0x28] sm:$0x3]
    %v8903 = vld [vmem:[%s12] sm:$0x1]
    %v8905 = vlaneseq
    %v8906 = vshrl.u32 %v8905, 7
    %v8907 = vsub.s32 0, %v8906
    %v8908 = vrot.slane %v8903, %v8907
    %v8921 = vunpack.c.l.b16 %v8892
    %v8922 = vunpack.c.l.b16 %v8893
    %v8923 = vunpack.c.l.b16 %v8894
    %v8924 = vunpack.c.l.b16 %v8895
    %v8925 = vunpack.c.l.b16 %v8896
    %v8926 = vunpack.c.l.b16 %v8897
    %v8927 = vunpack.c.l.b16 %v8898
    %v8928 = vunpack.c.l.b16 %v8899
    %v8929 = vunpack.c.l.b16 %v8900
    %v8930 = vunpack.c.l.b16 %v8901
    %v8931 = vunpack.c.l.b16 %v8902
    %v8932 = vpack.c.b16 %v8922, %v8921
    %v8933 = vpack.c.b16 %v8924, %v8923
    %v8934 = vpack.c.b16 %v8926, %v8925
    %v8935 = vpack.c.b16 %v8928, %v8927
    %v8936 = vpack.c.b16 %v8930, %v8929
    %v8937 = vpack.c.b16 %v8931, %v8931
    %vm8943 = vcmask 687104
    %v8945 = vsel %vm8943, %v8891, 0
    %vm8947 = vcmask 1041408
    %v8949 = vsel %vm8947, %v8937, 0
    %8951 = vmatprep.subr.bf16.mxu0 0
    %8952 = vmatpush1.bf16.msra.mxu0 %v8932
    %8953 = vmatprep.subr.bf16.mxu0 0
    %8954 = vmatpush1.bf16.msra.mxu0 %v8933
    %8955 = vmatprep.subr.bf16.mxu0 0
    %8956 = vmatpush1.bf16.msra.mxu0 %v8934
    %8957 = vmatprep.subr.bf16.mxu0 0
    %8958 = vmatpush1.bf16.msra.mxu0 %v8935
    %8959 = vmatprep.subr.bf16.mxu0 0
    %8960 = vmatpush1.bf16.msra.mxu0 %v8936
    %8961 = vmatprep.subr.bf16.mxu0 0
    %8962 = vmatpush1.bf16.msra.mxu0 %v8949
    %8963 = vmatprep.subr.bf16.mxu0 0
    %8964 = vmatpush1.bf16.msra.mxu0 0
    %8965 = vmatprep.subr.bf16.mxu0 0
    %8966 = vmatpush1.bf16.msra.mxu0 0
    %8967 = vmatprep.subr.bf16.mxu0 0
    %8968 = vmatpush1.bf16.msra.mxu0 0
    %8969 = vmatprep.subr.bf16.mxu0 0
    %8970 = vmatpush1.bf16.msra.mxu0 0
    %8971 = vmatprep.subr.bf16.mxu0 0
    %8972 = vmatpush1.bf16.msra.mxu0 0
    %8973 = vmatprep.subr.bf16.mxu0 0
    %8974 = vmatpush1.bf16.msra.mxu0 0
    %8975 = vmatprep.subr.bf16.mxu0 0
    %8976 = vmatpush1.bf16.msra.mxu0 0
    %8977 = vmatprep.subr.bf16.mxu0 0
    %8978 = vmatpush1.bf16.msra.mxu0 0
    %8979 = vmatprep.subr.bf16.mxu0 0
    %8980 = vmatpush1.bf16.msra.mxu0 0
    %8981 = vmatprep.subr.bf16.mxu0 0
    %8982 = vmatpush1.bf16.msra.mxu0 0
    %8983 = vmatprep.mubr.bf16.mxu0 0
    %8984 = vmatmul.mubr.bf16.gmra.mrb[0].mxu0 %v8945
    %v8985 = vpop.f32.mrb[0].mxu0
    %v8986 = vadd.f32 %v8908, %v8985
    %v8987 = vpop.f32.mrb[0].mxu0
    %v8988 = vpop.f32.mrb[0].mxu0
    %v8989 = vpop.f32.mrb[0].mxu0
    %8990 = vdwg.mxu0
    %8991 = vst [vmem:[#allocation2] sm:$0x3] %v8986
    // Predicated region
    $region54: #{net_forward.1} parent=1 // pred_check
      _
    $region55: #{net_forward.1} parent=1 // pred_check_branch
      %8993 = sbr.rel (0) target = $region57
    $region56: #{net_forward.1} parent=1 // pred_region
      %s8995 = ssub.s32 32, 32
      %8996 = vsyncadd [#allocation3], %s8995
      %s8998 = sshll.u32 [#allocation2], 4
      %s8999 = int_to_ptr.vmem [resolvable:$true] %s8998
      %9001 = dma.vmem_to_hbm [thread:$0]  %s8999, 32, %s13, [#allocation3]
    $region57: #{net_forward.1} parent=1 // pred_fallthru
      _
    // Predicated region
    $region58: #{net_forward.1} parent=1 // pred_check
      _
    $region59: #{net_forward.1} parent=1 // pred_check_branch
      %9003 = sbr.rel (0) target = $region61
    $region60: #{net_forward.1} parent=1 // pred_region
      %9004 = dma.done [#allocation3], 32
    $region61: #{net_forward.1} parent=1 // pred_fallthru
      _
    %9005 = vsyncpa [#allocation3], 1

</llo_original>
